<compile_context>
chip_gen: v7x
topology: tpu7x:2x2x1
jax: 0.10.0
libtpu: 0.0.40
codegen_flags: <defaults>
</compile_context>

<pallas_src>
import functools

import jax
import jax.numpy as jnp
from jax import lax
from jax.experimental import pallas as pl
from jax.experimental.pallas import tpu as pltpu


def _vmem_limit_bytes():
    """Generation-aware scoped-VMEM limit: ~3/4 of physical per-core VMEM
    (~96 MiB on v5e/v6e with 128 MiB, ~48 MiB on v7x with 64 MiB)."""
    cap = 64 * 1024 * 1024
    try:
        info = pltpu.get_tpu_info()
        cap = int(getattr(info, "vmem_capacity_bytes", cap))
    except Exception:
        pass
    return max(32 * 1024 * 1024, (cap * 3) // 4)


def _pick_tile(dim, target):
    """Largest divisor of `dim` that is <= target (>= 1).
    TODO(synk): for prime/awkward H this collapses toward 1 (still correct, just slow);
    a cdiv grid with in-kernel row masking would remove the cliff."""
    t = max(1, min(dim, int(target)))
    while dim % t:
        t -= 1
    return t


# ---------------------------------------------------------------------------
# Kernel 1: fused channel LayerNorm (WithBias_LayerNorm) + q1 1x1 conv (matmul)
# ---------------------------------------------------------------------------
def _ln_q1_kernel(x_ref, g_ref, be_ref, w_ref, wb_ref, o_ref):
    th, wd, c = x_ref.shape[1], x_ref.shape[2], x_ref.shape[3]
    x = x_ref[0].astype(jnp.float32).reshape(th * wd, c)
    mu = jnp.mean(x, axis=-1, keepdims=True)
    var = jnp.mean((x - mu) ** 2, axis=-1, keepdims=True)          # unbiased=False
    xn = (x - mu) * lax.rsqrt(var + 1e-5)
    xn = xn * g_ref[0] + be_ref[0]
    y = jnp.dot(xn.astype(jnp.bfloat16), w_ref[...],               # w pre-cast to bf16
                preferred_element_type=jnp.float32) + wb_ref[0]
    o_ref[0] = y.reshape(th, wd, -1).astype(o_ref.dtype)


def ln_q1(x_nhwc, gamma, beta, w_bf16, b, vmem_limit):
    n, H, W, C = x_nhwc.shape
    C3 = w_bf16.shape[1]
    # HBM-bound kernel: grow the M tile until double-buffered blocks (+ f32 live values)
    # use a comfortable fraction of the scoped-VMEM budget.
    bytes_per_row = W * (2 * C * x_nhwc.dtype.itemsize + 2 * C3 * 2) + 1
    th = _pick_tile(H, max(1, (3 * vmem_limit // 10) // bytes_per_row))
    return pl.pallas_call(
        _ln_q1_kernel,
        out_shape=jax.ShapeDtypeStruct((n, H, W, C3), jnp.bfloat16),   # bf16 qkv in HBM
        grid=(n, H // th),
        in_specs=[
            pl.BlockSpec((1, th, W, C), lambda i, t: (i, t, 0, 0)),
            pl.BlockSpec((1, C), lambda i, t: (0, 0)),
            pl.BlockSpec((1, C), lambda i, t: (0, 0)),
            pl.BlockSpec((C, C3), lambda i, t: (0, 0)),                # resident weight
            pl.BlockSpec((1, C3), lambda i, t: (0, 0)),
        ],
        out_specs=pl.BlockSpec((1, th, W, C3), lambda i, t: (i, t, 0, 0)),
        compiler_params=pltpu.CompilerParams(
            dimension_semantics=("parallel", "parallel"),
            vmem_limit_bytes=vmem_limit),
    )(x_nhwc, gamma, beta, w_bf16, b)


# ---------------------------------------------------------------------------
# Kernel 2: q2/q3 depthwise 3x3 convs + row-wise attention + fin 1x1 conv + residual,
# fused and tiled over H with an explicit 2-row halo (1-row BlockSpec strips).
# ---------------------------------------------------------------------------
def _dw_attn_fin_kernel(fac_ref, qkv_ref, t0_ref, t1_ref, b0_ref, b1_ref, x_ref,
                        w2_ref, b2_ref, w3_ref, b3_ref, wf_ref, bf_ref,
                        o_ref, p1_ref, p2_ref, *, num_heads, H):
    TH, W, C = o_ref.shape[1], o_ref.shape[2], o_ref.shape[3]
    C3 = qkv_ref.shape[3]
    dh = C // num_heads
    g0 = pl.program_id(1) * TH                      # first global row of this tile

    # ---- bf16 zero-halo slab of qkv (2-row H halo, 1-col W halo), border-only zeroing ----
    zcol = jnp.zeros((TH + 4, 1, C3), p1_ref.dtype)
    p1_ref[:, 0:1, :] = zcol
    p1_ref[:, W + 1:W + 2, :] = zcol
    t0 = t0_ref[0]; t1 = t1_ref[0]; b0 = b0_ref[0]; b1 = b1_ref[0]   # (1, W, C3) strips
    p1_ref[0:1, 1:W + 1, :] = jnp.where(g0 - 2 >= 0, t0, jnp.zeros_like(t0))
    p1_ref[1:2, 1:W + 1, :] = jnp.where(g0 - 1 >= 0, t1, jnp.zeros_like(t1))
    p1_ref[2:TH + 2, 1:W + 1, :] = qkv_ref[0]
    p1_ref[TH + 2:TH + 3, 1:W + 1, :] = jnp.where(g0 + TH <= H - 1, b0, jnp.zeros_like(b0))
    p1_ref[TH + 3:TH + 4, 1:W + 1, :] = jnp.where(g0 + TH + 1 <= H - 1, b1, jnp.zeros_like(b1))

    # ---- q2: depthwise 3x3 (padding=1), computed for TH+2 rows (1-row halo for q3) ----
    acc = jnp.zeros((TH + 2, W, C3), jnp.float32)
    for dy in range(3):                              # static taps -> unrolled shifted MACs
        for dx in range(3):
            acc = acc + p1_ref[dy:dy + TH + 2, dx:dx + W, :].astype(jnp.float32) * w2_ref[dy, dx, :]
    acc = acc + b2_ref[0]
    # q2 output rows outside the image are zero for q3's padding (not bias).
    row = lax.broadcasted_iota(jnp.int32, (TH + 2, 1, 1), 0) + (g0 - 1)
    acc = jnp.where((row >= 0) & (row < H), acc, 0.0)

    zcol2 = jnp.zeros((TH + 2, 1, C3), p2_ref.dtype)
    p2_ref[:, 0:1, :] = zcol2
    p2_ref[:, W + 1:W + 2, :] = zcol2
    p2_ref[:, 1:W + 1, :] = acc

    # ---- q3: depthwise 3x3 (padding=1) ----
    qkv3 = jnp.zeros((TH, W, C3), jnp.float32)
    for dy in range(3):
        for dx in range(3):
            qkv3 = qkv3 + p2_ref[dy:dy + TH, dx:dx + W, :] * w3_ref[dy, dx, :]
    qkv3 = qkv3 + b3_ref[0]
    # TODO(synk): the dx=+-1 taps are sublane-misaligned reads; pltpu.roll in the idle XLU
    # slot (with halo masking) would make the horizontal shifts free on a VALU-bound profile.

    # ---- row-wise attention per head + fin 1x1 conv accumulated per head ----
    fac = fac_ref[0, 0]
    y = jnp.zeros((TH * W, C), jnp.float32)
    for j in range(num_heads):                       # static head loop
        q = qkv3[:, :, j * dh:(j + 1) * dh]
        k = qkv3[:, :, C + j * dh:C + (j + 1) * dh]
        v = qkv3[:, :, 2 * C + j * dh:2 * C + (j + 1) * dh]
        # F.normalize(dim=-1): x / max(||x||, 1e-12) == x * rsqrt(max(||x||^2, 1e-24))
        qn = q * lax.rsqrt(jnp.maximum(jnp.sum(q * q, -1, keepdims=True), 1e-24))
        kn = k * lax.rsqrt(jnp.maximum(jnp.sum(k * k, -1, keepdims=True), 1e-24))
        s = jnp.einsum("hqd,hkd->hqk", qn.astype(jnp.bfloat16), kn.astype(jnp.bfloat16),
                       preferred_element_type=jnp.float32) * fac
        s = s - jnp.max(s, axis=-1, keepdims=True)
        p = jnp.exp(s)
        # approx reciprocal (EUP) for the softmax denominator: ~1e-3 rel. error vs exact div.
        p = p * pl.reciprocal(jnp.sum(p, axis=-1, keepdims=True), approx=True)
        pv = jnp.einsum("hqk,hkd->hqd", p.astype(jnp.bfloat16), v.astype(jnp.bfloat16),
                        preferred_element_type=jnp.float32)
        y = y + jnp.dot(pv.reshape(TH * W, dh).astype(jnp.bfloat16),
                        wf_ref[j * dh:(j + 1) * dh, :],          # wf pre-cast to bf16
                        preferred_element_type=jnp.float32)
    y = y + bf_ref[0]
    o_ref[0] = (y.reshape(TH, W, C) + x_ref[0].astype(jnp.float32)).astype(o_ref.dtype)


def dw_attn_fin_res(qkv, x_nhwc, w2, b2, w3, b3, wf_bf16, bf, fac, num_heads, vmem_limit):
    n, H, W, C3 = qkv.shape
    C = x_nhwc.shape[3]
    xb = x_nhwc.dtype.itemsize
    # Rough per-row VMEM model: double-buffered qkv/x/out blocks, bf16 + f32 halo scratch,
    # live f32 conv values, fin accumulator, and ~3 live (W, W) f32 softmax temporaries.
    per_row = W * (18 * C3 + 4 * C * xb + 4 * C) + 12 * W * W + 1
    th = _pick_tile(H, min(256, max(1, (vmem_limit // 2) // per_row)))
    kern = functools.partial(_dw_attn_fin_kernel, num_heads=num_heads, H=H)
    # TODO(synk): for C < 128 the output store is lane-masked; a (n, H, W*C)-shaped output
    # slab (reshaped host-side) would give unmasked lane-dense stores at realistic sizes.
    return pl.pallas_call(
        kern,
        out_shape=jax.ShapeDtypeStruct((n, H, W, C), x_nhwc.dtype),
        grid=(n, H // th),
        in_specs=[
            pl.BlockSpec(memory_space=pltpu.MemorySpace.SMEM),                    # fac scalar
            pl.BlockSpec((1, th, W, C3), lambda i, t: (i, t, 0, 0)),              # qkv tile
            # 2-row top / 2-row bottom halo strips (clamped; masked in-kernel at borders)
            pl.BlockSpec((1, 1, W, C3), lambda i, t: (i, jnp.maximum(t * th - 2, 0), 0, 0)),
            pl.BlockSpec((1, 1, W, C3), lambda i, t: (i, jnp.maximum(t * th - 1, 0), 0, 0)),
            pl.BlockSpec((1, 1, W, C3), lambda i, t: (i, jnp.minimum(t * th + th, H - 1), 0, 0)),
            pl.BlockSpec((1, 1, W, C3), lambda i, t: (i, jnp.minimum(t * th + th + 1, H - 1), 0, 0)),
            pl.BlockSpec((1, th, W, C), lambda i, t: (i, t, 0, 0)),               # residual x
            pl.BlockSpec((3, 3, C3), lambda i, t: (0, 0, 0)),                     # w2
            pl.BlockSpec((1, C3), lambda i, t: (0, 0)),                           # b2
            pl.BlockSpec((3, 3, C3), lambda i, t: (0, 0, 0)),                     # w3
            pl.BlockSpec((1, C3), lambda i, t: (0, 0)),                           # b3
            pl.BlockSpec((C, C), lambda i, t: (0, 0)),                            # wf (bf16)
            pl.BlockSpec((1, C), lambda i, t: (0, 0)),                            # bf
        ],
        out_specs=pl.BlockSpec((1, th, W, C), lambda i, t: (i, t, 0, 0)),
        scratch_shapes=[pltpu.VMEM((th + 4, W + 2, C3), jnp.bfloat16),   # qkv halo slab
                        pltpu.VMEM((th + 2, W + 2, C3), jnp.float32)],   # q2-out halo slab
        # operand order above: x (the residual) is input index 6 -> reuse its HBM buffer.
        input_output_aliases={6: 0},
        compiler_params=pltpu.CompilerParams(
            dimension_semantics=("parallel", "parallel"),
            vmem_limit_bytes=vmem_limit),
    )(fac, qkv, qkv, qkv, qkv, qkv, x_nhwc, w2, b2, w3, b3, wf_bf16, bf)


# ---------------------------------------------------------------------------
# Full LSAB forward (NCHW in / NCHW out, like the PyTorch module)
# ---------------------------------------------------------------------------
def lsab_forward(x_nchw, params, num_heads=1):
    n, c, h, w = x_nchw.shape
    assert c % num_heads == 0
    vmem_limit = _vmem_limit_bytes()
    x_nhwc = jnp.transpose(x_nchw, (0, 2, 3, 1))          # only boundary transpose
    # pre-cast the resident 1x1-conv weights to bf16 once (MXU operands)
    w1_bf = params["w1"].astype(jnp.bfloat16)
    wf_bf = params["wf"].astype(jnp.bfloat16)
    qkv = ln_q1(x_nhwc, params["ln_gamma"], params["ln_beta"],
                w1_bf, params["b1"], vmem_limit)          # (n, h, w, 3c) bf16
    out = dw_attn_fin_res(qkv, x_nhwc, params["w2"], params["b2"],
                          params["w3"], params["b3"], wf_bf, params["bf"],
                          params["fac"], num_heads, vmem_limit)   # (n, h, w, c)
    return jnp.transpose(out, (0, 3, 1, 2))               # back to NCHW


# ---------------------------------------------------------------------------
# Pure-JAX reference (mirrors the PyTorch module exactly, all f32)
# ---------------------------------------------------------------------------
def lsab_reference(x_nchw, params, num_heads=1):
    n, c, h, w = x_nchw.shape
    x = jnp.transpose(x_nchw, (0, 2, 3, 1)).astype(jnp.float32)
    mu = jnp.mean(x, -1, keepdims=True)
    var = jnp.mean((x - mu) ** 2, -1, keepdims=True)
    xn = (x - mu) / jnp.sqrt(var + 1e-5) * params["ln_gamma"][0] + params["ln_beta"][0]
    qkv = xn @ params["w1"] + params["b1"][0]

    def dwconv(z, wk, bk):
        zp = jnp.pad(z, ((0, 0), (1, 1), (1, 1), (0, 0)))
        out = jnp.zeros_like(z)
        for dy in range(3):
            for dx in range(3):
                out = out + zp[:, dy:dy + h, dx:dx + w, :] * wk[dy, dx, :]
        return out + bk[0]

    qkv = dwconv(dwconv(qkv, params["w2"], params["b2"]), params["w3"], params["b3"])
    dh = c // num_heads
    outs = []
    for j in range(num_heads):
        q = qkv[..., j * dh:(j + 1) * dh]
        k = qkv[..., c + j * dh:c + (j + 1) * dh]
        v = qkv[..., 2 * c + j * dh:2 * c + (j + 1) * dh]
        qn = q / jnp.maximum(jnp.linalg.norm(q, axis=-1, keepdims=True), 1e-12)
        kn = k / jnp.maximum(jnp.linalg.norm(k, axis=-1, keepdims=True), 1e-12)
        s = jnp.einsum("nhqd,nhkd->nhqk", qn, kn) * params["fac"][0, 0]
        p = jax.nn.softmax(s, axis=-1)
        outs.append(jnp.einsum("nhqk,nhkd->nhqd", p, v))
    attn = outs[0] if num_heads == 1 else jnp.concatenate(outs, axis=-1)
    y = attn @ params["wf"] + params["bf"][0]
    return jnp.transpose(y + x, (0, 3, 1, 2))


# ---------------------------------------------------------------------------
# Deterministic synthetic parameter init (shapes from LSAB.__init__ with dim=c)
# ---------------------------------------------------------------------------
def init_params(key, dim):
    c = dim
    ks = jax.random.split(key, 8)
    s = 0.1
    return {
        "ln_gamma": jnp.ones((1, c), jnp.float32),          # WithBias_LayerNorm init
        "ln_beta": jnp.zeros((1, c), jnp.float32),
        "w1": s * jax.random.normal(ks[0], (c, 3 * c), jnp.float32),   # q1 1x1 conv
        "b1": s * jax.random.normal(ks[1], (1, 3 * c), jnp.float32),
        "w2": s * jax.random.normal(ks[2], (3, 3, 3 * c), jnp.float32),  # q2 depthwise 3x3
        "b2": s * jax.random.normal(ks[3], (1, 3 * c), jnp.float32),
        "w3": s * jax.random.normal(ks[4], (3, 3, 3 * c), jnp.float32),  # q3 depthwise 3x3
        "b3": s * jax.random.normal(ks[5], (1, 3 * c), jnp.float32),
        "fac": jnp.ones((1, 1), jnp.float32),                # nn.Parameter(torch.ones(1))
        "wf": s * jax.random.normal(ks[6], (c, c), jnp.float32),        # fin 1x1 conv
        "bf": s * jax.random.normal(ks[7], (1, c), jnp.float32),
    }


if __name__ == "__main__":
    key = jax.random.PRNGKey(0)
    kx, kp = jax.random.split(key)

    n, c, h, w = 2, 4, 16, 16          # small shapes consistent with the NCHW module input
    x = jax.random.normal(kx, (n, c, h, w), jnp.float32)
    params = init_params(kp, c)

    fwd = jax.jit(functools.partial(lsab_forward, num_heads=1))
    out = jax.block_until_ready(fwd(x, params))

    assert out.shape == (n, c, h, w)
    assert bool(jnp.all(jnp.isfinite(out)))
    ref = lsab_reference(x, params, num_heads=1)
    max_err = float(jnp.max(jnp.abs(out - ref)))
    # bf16 qkv intermediate + bf16 MXU operands + approx softmax reciprocal -> loose tol
    assert max_err < 5e-2, f"mismatch vs reference: max abs err {max_err}"
    print("KERNEL_OK")
</pallas_src>

<mosaic_0001>
module attributes {stable_mosaic.version = 11 : i64} {
  func.func @_ln_q1_kernel(%arg0: i32, %arg1: i32, %arg2: memref<1x16x16x4xf32, #tpu.memory_space<vmem>>, %arg3: memref<1x4xf32, #tpu.memory_space<vmem>>, %arg4: memref<1x4xf32, #tpu.memory_space<vmem>>, %arg5: memref<4x12xbf16, #tpu.memory_space<vmem>>, %arg6: memref<1x12xf32, #tpu.memory_space<vmem>>, %arg7: memref<1x16x16x12xbf16, #tpu.memory_space<vmem>>) attributes {dimension_semantics = [#tpu.dimension_semantics<parallel>, #tpu.dimension_semantics<parallel>], iteration_bounds = array<i64: 2, 1>, scalar_prefetch = 0 : i64, scratch_operands = 0 : i64, tpu.core_type = #tpu.core_type<tc>, window_params = [{transform_indices = @transform_0, window_bounds = array<i64: 1, 16, 16, 4>}, {pipeline_mode = #tpu.pipeline_mode<synchronous>, transform_indices = @transform_1, window_bounds = array<i64: 1, 4>}, {pipeline_mode = #tpu.pipeline_mode<synchronous>, transform_indices = @transform_2, window_bounds = array<i64: 1, 4>}, {pipeline_mode = #tpu.pipeline_mode<synchronous>, transform_indices = @transform_3, window_bounds = array<i64: 4, 12>}, {pipeline_mode = #tpu.pipeline_mode<synchronous>, transform_indices = @transform_4, window_bounds = array<i64: 1, 12>}, {transform_indices = @transform_5, window_bounds = array<i64: 1, 16, 16, 12>}]} {
    %c0 = arith.constant 0 : index
    %c0_0 = arith.constant 0 : index
    %c0_1 = arith.constant 0 : index
    %c0_2 = arith.constant 0 : index
    %0 = vector.load %arg2[%c0, %c0_0, %c0_1, %c0_2] : memref<1x16x16x4xf32, #tpu.memory_space<vmem>>, vector<1x16x16x4xf32>
    %1 = vector.shape_cast %0 : vector<1x16x16x4xf32> to vector<16x16x4xf32>
    %2 = vector.shape_cast %1 : vector<16x16x4xf32> to vector<256x4xf32>
    %cst = arith.constant dense<0.000000e+00> : vector<256xf32>
    %3 = vector.multi_reduction <add>, %2, %cst [1] : vector<256x4xf32> to vector<256xf32>
    %4 = vector.shape_cast %3 : vector<256xf32> to vector<256x1xf32>
    %cst_3 = arith.constant 4.000000e+00 : f32
    %5 = vector.broadcast %cst_3 : f32 to vector<256x1xf32>
    %6 = arith.divf %4, %5 : vector<256x1xf32>
    %7 = vector.broadcast %6 : vector<256x1xf32> to vector<256x4xf32>
    %8 = arith.subf %2, %7 : vector<256x4xf32>
    %9 = arith.mulf %8, %8 : vector<256x4xf32>
    %cst_4 = arith.constant dense<0.000000e+00> : vector<256xf32>
    %10 = vector.multi_reduction <add>, %9, %cst_4 [1] : vector<256x4xf32> to vector<256xf32>
    %11 = vector.shape_cast %10 : vector<256xf32> to vector<256x1xf32>
    %cst_5 = arith.constant 4.000000e+00 : f32
    %12 = vector.broadcast %cst_5 : f32 to vector<256x1xf32>
    %13 = arith.divf %11, %12 : vector<256x1xf32>
    %14 = vector.broadcast %6 : vector<256x1xf32> to vector<256x4xf32>
    %15 = arith.subf %2, %14 : vector<256x4xf32>
    %cst_6 = arith.constant 9.99999974E-6 : f32
    %16 = vector.broadcast %cst_6 : f32 to vector<256x1xf32>
    %17 = arith.addf %13, %16 : vector<256x1xf32>
    %18 = math.rsqrt %17 : vector<256x1xf32>
    %19 = vector.broadcast %18 : vector<256x1xf32> to vector<256x4xf32>
    %20 = arith.mulf %15, %19 : vector<256x4xf32>
    %c0_7 = arith.constant 0 : index
    %c0_8 = arith.constant 0 : index
    %21 = vector.load %arg3[%c0_7, %c0_8] : memref<1x4xf32, #tpu.memory_space<vmem>>, vector<1x4xf32>
    %22 = vector.shape_cast %21 : vector<1x4xf32> to vector<4xf32>
    %23 = vector.shape_cast %22 : vector<4xf32> to vector<1x4xf32>
    %24 = vector.broadcast %23 : vector<1x4xf32> to vector<256x4xf32>
    %25 = arith.mulf %20, %24 : vector<256x4xf32>
    %c0_9 = arith.constant 0 : index
    %c0_10 = arith.constant 0 : index
    %26 = vector.load %arg4[%c0_9, %c0_10] : memref<1x4xf32, #tpu.memory_space<vmem>>, vector<1x4xf32>
    %27 = vector.shape_cast %26 : vector<1x4xf32> to vector<4xf32>
    %28 = vector.shape_cast %27 : vector<4xf32> to vector<1x4xf32>
    %29 = vector.broadcast %28 : vector<1x4xf32> to vector<256x4xf32>
    %30 = arith.addf %25, %29 : vector<256x4xf32>
    %31 = arith.truncf %30 : vector<256x4xf32> to vector<256x4xbf16>
    %c0_11 = arith.constant 0 : index
    %c0_12 = arith.constant 0 : index
    %32 = vector.load %arg5[%c0_11, %c0_12] : memref<4x12xbf16, #tpu.memory_space<vmem>>, vector<4x12xbf16>
    %cst_13 = arith.constant dense<0.000000e+00> : vector<256x12xf32>
    %33 = tpu.matmul %31, %32, %cst_13 {dimension_numbers = #tpu.dot_dimension_numbers<[1], [0], [0], [1], [0, 0, 1, 1], [], []>} : vector<256x4xbf16>, vector<4x12xbf16>, vector<256x12xf32> -> vector<256x12xf32>
    %c0_14 = arith.constant 0 : index
    %c0_15 = arith.constant 0 : index
    %34 = vector.load %arg6[%c0_14, %c0_15] : memref<1x12xf32, #tpu.memory_space<vmem>>, vector<1x12xf32>
    %35 = vector.shape_cast %34 : vector<1x12xf32> to vector<12xf32>
    %36 = vector.shape_cast %35 : vector<12xf32> to vector<1x12xf32>
    %37 = vector.broadcast %36 : vector<1x12xf32> to vector<256x12xf32>
    %38 = arith.addf %33, %37 : vector<256x12xf32>
    %39 = vector.shape_cast %38 : vector<256x12xf32> to vector<16x16x12xf32>
    %40 = arith.truncf %39 : vector<16x16x12xf32> to vector<16x16x12xbf16>
    %c0_16 = arith.constant 0 : index
    %c0_17 = arith.constant 0 : index
    %c0_18 = arith.constant 0 : index
    %c0_19 = arith.constant 0 : index
    %41 = vector.load %arg7[%c0_16, %c0_17, %c0_18, %c0_19] : memref<1x16x16x12xbf16, #tpu.memory_space<vmem>>, vector<1x16x16x12xbf16>
    %42 = vector.shape_cast %41 : vector<1x16x16x12xbf16> to vector<16x16x12xbf16>
    %43 = vector.shape_cast %40 : vector<16x16x12xbf16> to vector<1x16x16x12xbf16>
    tpu.vector_store %arg7[%c0_16, %c0_17, %c0_18, %c0_19], %43 {strides = array<i32>} : memref<1x16x16x12xbf16, #tpu.memory_space<vmem>>, vector<1x16x16x12xbf16>,
    return
  }
  func.func @transform_0(%arg0: i32, %arg1: i32) -> (i32, i32, i32, i32) {
    %c0_i32 = arith.constant 0 : i32
    %c0_i32_0 = arith.constant 0 : i32
    %c0_i32_1 = arith.constant 0 : i32
    return %arg0, %arg1, %c0_i32, %c0_i32_0 : i32, i32, i32, i32
  }
  func.func @transform_1(%arg0: i32, %arg1: i32) -> (i32, i32) {
    %c0_i32 = arith.constant 0 : i32
    %c0_i32_0 = arith.constant 0 : i32
    %c0_i32_1 = arith.constant 0 : i32
    return %c0_i32, %c0_i32_0 : i32, i32
  }
  func.func @transform_2(%arg0: i32, %arg1: i32) -> (i32, i32) {
    %c0_i32 = arith.constant 0 : i32
    %c0_i32_0 = arith.constant 0 : i32
    %c0_i32_1 = arith.constant 0 : i32
    return %c0_i32, %c0_i32_0 : i32, i32
  }
  func.func @transform_3(%arg0: i32, %arg1: i32) -> (i32, i32) {
    %c0_i32 = arith.constant 0 : i32
    %c0_i32_0 = arith.constant 0 : i32
    %c0_i32_1 = arith.constant 0 : i32
    return %c0_i32, %c0_i32_0 : i32, i32
  }
  func.func @transform_4(%arg0: i32, %arg1: i32) -> (i32, i32) {
    %c0_i32 = arith.constant 0 : i32
    %c0_i32_0 = arith.constant 0 : i32
    %c0_i32_1 = arith.constant 0 : i32
    return %c0_i32, %c0_i32_0 : i32, i32
  }
  func.func @transform_5(%arg0: i32, %arg1: i32) -> (i32, i32, i32, i32) {
    %c0_i32 = arith.constant 0 : i32
    %c0_i32_0 = arith.constant 0 : i32
    %c0_i32_1 = arith.constant 0 : i32
    return %arg0, %arg1, %c0_i32, %c0_i32_0 : i32, i32, i32, i32
  }
}

module attributes {stable_mosaic.version = 11 : i64} {
  func.func @_dw_attn_fin_kernel(%arg0: i32, %arg1: i32, %arg2: memref<1x1xf32, #tpu.memory_space<smem>>, %arg3: memref<1x16x16x12xbf16, #tpu.memory_space<vmem>>, %arg4: memref<1x1x16x12xbf16, #tpu.memory_space<vmem>>, %arg5: memref<1x1x16x12xbf16, #tpu.memory_space<vmem>>, %arg6: memref<1x1x16x12xbf16, #tpu.memory_space<vmem>>, %arg7: memref<1x1x16x12xbf16, #tpu.memory_space<vmem>>, %arg8: memref<1x16x16x4xf32, #tpu.memory_space<vmem>>, %arg9: memref<3x3x12xf32, #tpu.memory_space<vmem>>, %arg10: memref<1x12xf32, #tpu.memory_space<vmem>>, %arg11: memref<3x3x12xf32, #tpu.memory_space<vmem>>, %arg12: memref<1x12xf32, #tpu.memory_space<vmem>>, %arg13: memref<4x4xbf16, #tpu.memory_space<vmem>>, %arg14: memref<1x4xf32, #tpu.memory_space<vmem>>, %arg15: memref<1x16x16x4xf32, #tpu.memory_space<vmem>>, %arg16: memref<20x18x12xbf16, #tpu.memory_space<vmem>>, %arg17: memref<18x18x12xf32, #tpu.memory_space<vmem>>) attributes {dimension_semantics = [#tpu.dimension_semantics<parallel>, #tpu.dimension_semantics<parallel>], iteration_bounds = array<i64: 2, 1>, scalar_prefetch = 0 : i64, scratch_operands = 2 : i64, tpu.core_type = #tpu.core_type<tc>, window_params = [{transform_indices = @transform_0, window_bounds = array<i64: 1, 1>}, {transform_indices = @transform_1, window_bounds = array<i64: 1, 16, 16, 12>}, {transform_indices = @transform_2, window_bounds = array<i64: 1, 1, 16, 12>}, {transform_indices = @transform_3, window_bounds = array<i64: 1, 1, 16, 12>}, {transform_indices = @transform_4, window_bounds = array<i64: 1, 1, 16, 12>}, {transform_indices = @transform_5, window_bounds = array<i64: 1, 1, 16, 12>}, {transform_indices = @transform_6, window_bounds = array<i64: 1, 16, 16, 4>}, {pipeline_mode = #tpu.pipeline_mode<synchronous>, transform_indices = @transform_7, window_bounds = array<i64: 3, 3, 12>}, {pipeline_mode = #tpu.pipeline_mode<synchronous>, transform_indices = @transform_8, window_bounds = array<i64: 1, 12>}, {pipeline_mode = #tpu.pipeline_mode<synchronous>, transform_indices = @transform_9, window_bounds = array<i64: 3, 3, 12>}, {pipeline_mode = #tpu.pipeline_mode<synchronous>, transform_indices = @transform_10, window_bounds = array<i64: 1, 12>}, {pipeline_mode = #tpu.pipeline_mode<synchronous>, transform_indices = @transform_11, window_bounds = array<i64: 4, 4>}, {pipeline_mode = #tpu.pipeline_mode<synchronous>, transform_indices = @transform_12, window_bounds = array<i64: 1, 4>}, {transform_indices = @transform_13, window_bounds = array<i64: 1, 16, 16, 4>}]} {
    %c16_i32 = arith.constant 16 : i32
    %0 = arith.muli %arg1, %c16_i32 : i32
    %cst = arith.constant 0.000000e+00 : bf16
    %1 = vector.broadcast %cst : bf16 to vector<20x1x12xbf16>
    %c0 = arith.constant 0 : index
    %c0_0 = arith.constant 0 : index
    %c0_1 = arith.constant 0 : index
    %2 = vector.load %arg16[%c0, %c0_0, %c0_1] : memref<20x18x12xbf16, #tpu.memory_space<vmem>>, vector<20x1x12xbf16>
    tpu.vector_store %arg16[%c0, %c0_0, %c0_1], %1 {strides = array<i32>} : memref<20x18x12xbf16, #tpu.memory_space<vmem>>, vector<20x1x12xbf16>,
    %c0_2 = arith.constant 0 : index
    %c17 = arith.constant 17 : index
    %c0_3 = arith.constant 0 : index
    %3 = vector.load %arg16[%c0_2, %c17, %c0_3] : memref<20x18x12xbf16, #tpu.memory_space<vmem>>, vector<20x1x12xbf16>
    tpu.vector_store %arg16[%c0_2, %c17, %c0_3], %1 {strides = array<i32>} : memref<20x18x12xbf16, #tpu.memory_space<vmem>>, vector<20x1x12xbf16>,
    %c0_4 = arith.constant 0 : index
    %c0_5 = arith.constant 0 : index
    %c0_6 = arith.constant 0 : index
    %c0_7 = arith.constant 0 : index
    %4 = vector.load %arg4[%c0_4, %c0_5, %c0_6, %c0_7] : memref<1x1x16x12xbf16, #tpu.memory_space<vmem>>, vector<1x1x16x12xbf16>
    %5 = vector.shape_cast %4 : vector<1x1x16x12xbf16> to vector<1x16x12xbf16>
    %c0_8 = arith.constant 0 : index
    %c0_9 = arith.constant 0 : index
    %c0_10 = arith.constant 0 : index
    %c0_11 = arith.constant 0 : index
    %6 = vector.load %arg5[%c0_8, %c0_9, %c0_10, %c0_11] : memref<1x1x16x12xbf16, #tpu.memory_space<vmem>>, vector<1x1x16x12xbf16>
    %7 = vector.shape_cast %6 : vector<1x1x16x12xbf16> to vector<1x16x12xbf16>
    %c0_12 = arith.constant 0 : index
    %c0_13 = arith.constant 0 : index
    %c0_14 = arith.constant 0 : index
    %c0_15 = arith.constant 0 : index
    %8 = vector.load %arg6[%c0_12, %c0_13, %c0_14, %c0_15] : memref<1x1x16x12xbf16, #tpu.memory_space<vmem>>, vector<1x1x16x12xbf16>
    %9 = vector.shape_cast %8 : vector<1x1x16x12xbf16> to vector<1x16x12xbf16>
    %c0_16 = arith.constant 0 : index
    %c0_17 = arith.constant 0 : index
    %c0_18 = arith.constant 0 : index
    %c0_19 = arith.constant 0 : index
    %10 = vector.load %arg7[%c0_16, %c0_17, %c0_18, %c0_19] : memref<1x1x16x12xbf16, #tpu.memory_space<vmem>>, vector<1x1x16x12xbf16>
    %11 = vector.shape_cast %10 : vector<1x1x16x12xbf16> to vector<1x16x12xbf16>
    %c2_i32 = arith.constant 2 : i32
    %12 = arith.subi %0, %c2_i32 : i32
    %c0_i32 = arith.constant 0 : i32
    %13 = arith.cmpi sge, %12, %c0_i32 : i32
    %cst_20 = arith.constant 0.000000e+00 : bf16
    %14 = vector.broadcast %cst_20 : bf16 to vector<1x16x12xbf16>
    %15 = arith.select %13, %5, %14 : vector<1x16x12xbf16>
    %c0_21 = arith.constant 0 : index
    %c1 = arith.constant 1 : index
    %c0_22 = arith.constant 0 : index
    %16 = vector.load %arg16[%c0_21, %c1, %c0_22] : memref<20x18x12xbf16, #tpu.memory_space<vmem>>, vector<1x16x12xbf16>
    tpu.vector_store %arg16[%c0_21, %c1, %c0_22], %15 {strides = array<i32>} : memref<20x18x12xbf16, #tpu.memory_space<vmem>>, vector<1x16x12xbf16>,
    %c1_i32 = arith.constant 1 : i32
    %17 = arith.subi %0, %c1_i32 : i32
    %c0_i32_23 = arith.constant 0 : i32
    %18 = arith.cmpi sge, %17, %c0_i32_23 : i32
    %cst_24 = arith.constant 0.000000e+00 : bf16
    %19 = vector.broadcast %cst_24 : bf16 to vector<1x16x12xbf16>
    %20 = arith.select %18, %7, %19 : vector<1x16x12xbf16>
    %c1_25 = arith.constant 1 : index
    %c1_26 = arith.constant 1 : index
    %c0_27 = arith.constant 0 : index
    %21 = vector.load %arg16[%c1_25, %c1_26, %c0_27] : memref<20x18x12xbf16, #tpu.memory_space<vmem>>, vector<1x16x12xbf16>
    tpu.vector_store %arg16[%c1_25, %c1_26, %c0_27], %20 {strides = array<i32>} : memref<20x18x12xbf16, #tpu.memory_space<vmem>>, vector<1x16x12xbf16>,
    %c0_28 = arith.constant 0 : index
    %c0_29 = arith.constant 0 : index
    %c0_30 = arith.constant 0 : index
    %c0_31 = arith.constant 0 : index
    %22 = vector.load %arg3[%c0_28, %c0_29, %c0_30, %c0_31] : memref<1x16x16x12xbf16, #tpu.memory_space<vmem>>, vector<1x16x16x12xbf16>
    %23 = vector.shape_cast %22 : vector<1x16x16x12xbf16> to vector<16x16x12xbf16>
    %c2 = arith.constant 2 : index
    %c1_32 = arith.constant 1 : index
    %c0_33 = arith.constant 0 : index
    %24 = vector.load %arg16[%c2, %c1_32, %c0_33] : memref<20x18x12xbf16, #tpu.memory_space<vmem>>, vector<16x16x12xbf16>
    tpu.vector_store %arg16[%c2, %c1_32, %c0_33], %23 {strides = array<i32>} : memref<20x18x12xbf16, #tpu.memory_space<vmem>>, vector<16x16x12xbf16>,
    %c16_i32_34 = arith.constant 16 : i32
    %25 = arith.addi %0, %c16_i32_34 : i32
    %c15_i32 = arith.constant 15 : i32
    %26 = arith.cmpi sle, %25, %c15_i32 : i32
    %cst_35 = arith.constant 0.000000e+00 : bf16
    %27 = vector.broadcast %cst_35 : bf16 to vector<1x16x12xbf16>
    %28 = arith.select %26, %9, %27 : vector<1x16x12xbf16>
    %c18 = arith.constant 18 : index
    %c1_36 = arith.constant 1 : index
    %c0_37 = arith.constant 0 : index
    %29 = vector.load %arg16[%c18, %c1_36, %c0_37] : memref<20x18x12xbf16, #tpu.memory_space<vmem>>, vector<1x16x12xbf16>
    tpu.vector_store %arg16[%c18, %c1_36, %c0_37], %28 {strides = array<i32>} : memref<20x18x12xbf16, #tpu.memory_space<vmem>>, vector<1x16x12xbf16>,
    %c16_i32_38 = arith.constant 16 : i32
    %30 = arith.addi %0, %c16_i32_38 : i32
    %c1_i32_39 = arith.constant 1 : i32
    %31 = arith.addi %30, %c1_i32_39 : i32
    %c15_i32_40 = arith.constant 15 : i32
    %32 = arith.cmpi sle, %31, %c15_i32_40 : i32
    %cst_41 = arith.constant 0.000000e+00 : bf16
    %33 = vector.broadcast %cst_41 : bf16 to vector<1x16x12xbf16>
    %34 = arith.select %32, %11, %33 : vector<1x16x12xbf16>
    %c19 = arith.constant 19 : index
    %c1_42 = arith.constant 1 : index
    %c0_43 = arith.constant 0 : index
    %35 = vector.load %arg16[%c19, %c1_42, %c0_43] : memref<20x18x12xbf16, #tpu.memory_space<vmem>>, vector<1x16x12xbf16>
    tpu.vector_store %arg16[%c19, %c1_42, %c0_43], %34 {strides = array<i32>} : memref<20x18x12xbf16, #tpu.memory_space<vmem>>, vector<1x16x12xbf16>,
    %cst_44 = arith.constant 0.000000e+00 : f32
    %36 = vector.broadcast %cst_44 : f32 to vector<18x16x12xf32>
    %c0_45 = arith.constant 0 : index
    %c0_46 = arith.constant 0 : index
    %c0_47 = arith.constant 0 : index
    %37 = vector.load %arg16[%c0_45, %c0_46, %c0_47] : memref<20x18x12xbf16, #tpu.memory_space<vmem>>, vector<18x16x12xbf16>
    %38 = arith.extf %37 : vector<18x16x12xbf16> to vector<18x16x12xf32>
    %c0_48 = arith.constant 0 : index
    %c0_49 = arith.constant 0 : index
    %c0_50 = arith.constant 0 : index
    %39 = vector.load %arg9[%c0_48, %c0_49, %c0_50] : memref<3x3x12xf32, #tpu.memory_space<vmem>>, vector<1x1x12xf32>
    %40 = vector.shape_cast %39 : vector<1x1x12xf32> to vector<12xf32>
    %41 = vector.shape_cast %40 : vector<12xf32> to vector<1x1x12xf32>
    %42 = vector.broadcast %41 : vector<1x1x12xf32> to vector<18x16x12xf32>
    %43 = arith.mulf %38, %42 : vector<18x16x12xf32>
    %44 = arith.addf %36, %43 : vector<18x16x12xf32>
    %c0_51 = arith.constant 0 : index
    %c1_52 = arith.constant 1 : index
    %c0_53 = arith.constant 0 : index
    %45 = vector.load %arg16[%c0_51, %c1_52, %c0_53] : memref<20x18x12xbf16, #tpu.memory_space<vmem>>, vector<18x16x12xbf16>
    %46 = arith.extf %45 : vector<18x16x12xbf16> to vector<18x16x12xf32>
    %c0_54 = arith.constant 0 : index
    %c1_55 = arith.constant 1 : index
    %c0_56 = arith.constant 0 : index
    %47 = vector.load %arg9[%c0_54, %c1_55, %c0_56] : memref<3x3x12xf32, #tpu.memory_space<vmem>>, vector<1x1x12xf32>
    %48 = vector.shape_cast %47 : vector<1x1x12xf32> to vector<12xf32>
    %49 = vector.shape_cast %48 : vector<12xf32> to vector<1x1x12xf32>
    %50 = vector.broadcast %49 : vector<1x1x12xf32> to vector<18x16x12xf32>
    %51 = arith.mulf %46, %50 : vector<18x16x12xf32>
    %52 = arith.addf %44, %51 : vector<18x16x12xf32>
    %c0_57 = arith.constant 0 : index
    %c2_58 = arith.constant 2 : index
    %c0_59 = arith.constant 0 : index
    %53 = vector.load %arg16[%c0_57, %c2_58, %c0_59] : memref<20x18x12xbf16, #tpu.memory_space<vmem>>, vector<18x16x12xbf16>
    %54 = arith.extf %53 : vector<18x16x12xbf16> to vector<18x16x12xf32>
    %c0_60 = arith.constant 0 : index
    %c2_61 = arith.constant 2 : index
    %c0_62 = arith.constant 0 : index
    %55 = vector.load %arg9[%c0_60, %c2_61, %c0_62] : memref<3x3x12xf32, #tpu.memory_space<vmem>>, vector<1x1x12xf32>
    %56 = vector.shape_cast %55 : vector<1x1x12xf32> to vector<12xf32>
    %57 = vector.shape_cast %56 : vector<12xf32> to vector<1x1x12xf32>
    %58 = vector.broadcast %57 : vector<1x1x12xf32> to vector<18x16x12xf32>
    %59 = arith.mulf %54, %58 : vector<18x16x12xf32>
    %60 = arith.addf %52, %59 : vector<18x16x12xf32>
    %c1_63 = arith.constant 1 : index
    %c0_64 = arith.constant 0 : index
    %c0_65 = arith.constant 0 : index
    %61 = vector.load %arg16[%c1_63, %c0_64, %c0_65] : memref<20x18x12xbf16, #tpu.memory_space<vmem>>, vector<18x16x12xbf16>
    %62 = arith.extf %61 : vector<18x16x12xbf16> to vector<18x16x12xf32>
    %c1_66 = arith.constant 1 : index
    %c0_67 = arith.constant 0 : index
    %c0_68 = arith.constant 0 : index
    %63 = vector.load %arg9[%c1_66, %c0_67, %c0_68] : memref<3x3x12xf32, #tpu.memory_space<vmem>>, vector<1x1x12xf32>
    %64 = vector.shape_cast %63 : vector<1x1x12xf32> to vector<12xf32>
    %65 = vector.shape_cast %64 : vector<12xf32> to vector<1x1x12xf32>
    %66 = vector.broadcast %65 : vector<1x1x12xf32> to vector<18x16x12xf32>
    %67 = arith.mulf %62, %66 : vector<18x16x12xf32>
    %68 = arith.addf %60, %67 : vector<18x16x12xf32>
    %c1_69 = arith.constant 1 : index
    %c1_70 = arith.constant 1 : index
    %c0_71 = arith.constant 0 : index
    %69 = vector.load %arg16[%c1_69, %c1_70, %c0_71] : memref<20x18x12xbf16, #tpu.memory_space<vmem>>, vector<18x16x12xbf16>
    %70 = arith.extf %69 : vector<18x16x12xbf16> to vector<18x16x12xf32>
    %c1_72 = arith.constant 1 : index
    %c1_73 = arith.constant 1 : index
    %c0_74 = arith.constant 0 : index
    %71 = vector.load %arg9[%c1_72, %c1_73, %c0_74] : memref<3x3x12xf32, #tpu.memory_space<vmem>>, vector<1x1x12xf32>
    %72 = vector.shape_cast %71 : vector<1x1x12xf32> to vector<12xf32>
    %73 = vector.shape_cast %72 : vector<12xf32> to vector<1x1x12xf32>
    %74 = vector.broadcast %73 : vector<1x1x12xf32> to vector<18x16x12xf32>
    %75 = arith.mulf %70, %74 : vector<18x16x12xf32>
    %76 = arith.addf %68, %75 : vector<18x16x12xf32>
    %c1_75 = arith.constant 1 : index
    %c2_76 = arith.constant 2 : index
    %c0_77 = arith.constant 0 : index
    %77 = vector.load %arg16[%c1_75, %c2_76, %c0_77] : memref<20x18x12xbf16, #tpu.memory_space<vmem>>, vector<18x16x12xbf16>
    %78 = arith.extf %77 : vector<18x16x12xbf16> to vector<18x16x12xf32>
    %c1_78 = arith.constant 1 : index
    %c2_79 = arith.constant 2 : index
    %c0_80 = arith.constant 0 : index
    %79 = vector.load %arg9[%c1_78, %c2_79, %c0_80] : memref<3x3x12xf32, #tpu.memory_space<vmem>>, vector<1x1x12xf32>
    %80 = vector.shape_cast %79 : vector<1x1x12xf32> to vector<12xf32>
    %81 = vector.shape_cast %80 : vector<12xf32> to vector<1x1x12xf32>
    %82 = vector.broadcast %81 : vector<1x1x12xf32> to vector<18x16x12xf32>
    %83 = arith.mulf %78, %82 : vector<18x16x12xf32>
    %84 = arith.addf %76, %83 : vector<18x16x12xf32>
    %c2_81 = arith.constant 2 : index
    %c0_82 = arith.constant 0 : index
    %c0_83 = arith.constant 0 : index
    %85 = vector.load %arg16[%c2_81, %c0_82, %c0_83] : memref<20x18x12xbf16, #tpu.memory_space<vmem>>, vector<18x16x12xbf16>
    %86 = arith.extf %85 : vector<18x16x12xbf16> to vector<18x16x12xf32>
    %c2_84 = arith.constant 2 : index
    %c0_85 = arith.constant 0 : index
    %c0_86 = arith.constant 0 : index
    %87 = vector.load %arg9[%c2_84, %c0_85, %c0_86] : memref<3x3x12xf32, #tpu.memory_space<vmem>>, vector<1x1x12xf32>
    %88 = vector.shape_cast %87 : vector<1x1x12xf32> to vector<12xf32>
    %89 = vector.shape_cast %88 : vector<12xf32> to vector<1x1x12xf32>
    %90 = vector.broadcast %89 : vector<1x1x12xf32> to vector<18x16x12xf32>
    %91 = arith.mulf %86, %90 : vector<18x16x12xf32>
    %92 = arith.addf %84, %91 : vector<18x16x12xf32>
    %c2_87 = arith.constant 2 : index
    %c1_88 = arith.constant 1 : index
    %c0_89 = arith.constant 0 : index
    %93 = vector.load %arg16[%c2_87, %c1_88, %c0_89] : memref<20x18x12xbf16, #tpu.memory_space<vmem>>, vector<18x16x12xbf16>
    %94 = arith.extf %93 : vector<18x16x12xbf16> to vector<18x16x12xf32>
    %c2_90 = arith.constant 2 : index
    %c1_91 = arith.constant 1 : index
    %c0_92 = arith.constant 0 : index
    %95 = vector.load %arg9[%c2_90, %c1_91, %c0_92] : memref<3x3x12xf32, #tpu.memory_space<vmem>>, vector<1x1x12xf32>
    %96 = vector.shape_cast %95 : vector<1x1x12xf32> to vector<12xf32>
    %97 = vector.shape_cast %96 : vector<12xf32> to vector<1x1x12xf32>
    %98 = vector.broadcast %97 : vector<1x1x12xf32> to vector<18x16x12xf32>
    %99 = arith.mulf %94, %98 : vector<18x16x12xf32>
    %100 = arith.addf %92, %99 : vector<18x16x12xf32>
    %c2_93 = arith.constant 2 : index
    %c2_94 = arith.constant 2 : index
    %c0_95 = arith.constant 0 : index
    %101 = vector.load %arg16[%c2_93, %c2_94, %c0_95] : memref<20x18x12xbf16, #tpu.memory_space<vmem>>, vector<18x16x12xbf16>
    %102 = arith.extf %101 : vector<18x16x12xbf16> to vector<18x16x12xf32>
    %c2_96 = arith.constant 2 : index
    %c2_97 = arith.constant 2 : index
    %c0_98 = arith.constant 0 : index
    %103 = vector.load %arg9[%c2_96, %c2_97, %c0_98] : memref<3x3x12xf32, #tpu.memory_space<vmem>>, vector<1x1x12xf32>
    %104 = vector.shape_cast %103 : vector<1x1x12xf32> to vector<12xf32>
    %105 = vector.shape_cast %104 : vector<12xf32> to vector<1x1x12xf32>
    %106 = vector.broadcast %105 : vector<1x1x12xf32> to vector<18x16x12xf32>
    %107 = arith.mulf %102, %106 : vector<18x16x12xf32>
    %108 = arith.addf %100, %107 : vector<18x16x12xf32>
    %c0_99 = arith.constant 0 : index
    %c0_100 = arith.constant 0 : index
    %109 = vector.load %arg10[%c0_99, %c0_100] : memref<1x12xf32, #tpu.memory_space<vmem>>, vector<1x12xf32>
    %110 = vector.shape_cast %109 : vector<1x12xf32> to vector<12xf32>
    %111 = vector.shape_cast %110 : vector<12xf32> to vector<1x1x12xf32>
    %112 = vector.broadcast %111 : vector<1x1x12xf32> to vector<18x16x12xf32>
    %113 = arith.addf %108, %112 : vector<18x16x12xf32>
    %114 = tpu.iota {dimensions = array<i32: 0>} : vector<18x1x1xi32>
    %c1_i32_101 = arith.constant 1 : i32
    %115 = arith.subi %0, %c1_i32_101 : i32
    %116 = vector.broadcast %115 : i32 to vector<18x1x1xi32>
    %117 = arith.addi %114, %116 : vector<18x1x1xi32>
    %c0_i32_102 = arith.constant 0 : i32
    %118 = vector.broadcast %c0_i32_102 : i32 to vector<18x1x1xi32>
    %119 = arith.cmpi sge, %117, %118 : vector<18x1x1xi32>
    %c16_i32_103 = arith.constant 16 : i32
    %120 = vector.broadcast %c16_i32_103 : i32 to vector<18x1x1xi32>
    %121 = arith.cmpi slt, %117, %120 : vector<18x1x1xi32>
    %122 = arith.andi %119, %121 : vector<18x1x1xi1>
    %cst_104 = arith.constant 0.000000e+00 : f32
    %123 = vector.shape_cast %122 : vector<18x1x1xi1> to vector<18x1x1xi1>
    %124 = vector.broadcast %123 : vector<18x1x1xi1> to vector<18x16x12xi1>
    %125 = vector.broadcast %cst_104 : f32 to vector<18x16x12xf32>
    %126 = arith.select %124, %113, %125 : vector<18x16x12xi1>, vector<18x16x12xf32>
    %cst_105 = arith.constant 0.000000e+00 : f32
    %127 = vector.broadcast %cst_105 : f32 to vector<18x1x12xf32>
    %c0_106 = arith.constant 0 : index
    %c0_107 = arith.constant 0 : index
    %c0_108 = arith.constant 0 : index
    %128 = vector.load %arg17[%c0_106, %c0_107, %c0_108] : memref<18x18x12xf32, #tpu.memory_space<vmem>>, vector<18x1x12xf32>
    tpu.vector_store %arg17[%c0_106, %c0_107, %c0_108], %127 {strides = array<i32>} : memref<18x18x12xf32, #tpu.memory_space<vmem>>, vector<18x1x12xf32>,
    %c0_109 = arith.constant 0 : index
    %c17_110 = arith.constant 17 : index
    %c0_111 = arith.constant 0 : index
    %129 = vector.load %arg17[%c0_109, %c17_110, %c0_111] : memref<18x18x12xf32, #tpu.memory_space<vmem>>, vector<18x1x12xf32>
    tpu.vector_store %arg17[%c0_109, %c17_110, %c0_111], %127 {strides = array<i32>} : memref<18x18x12xf32, #tpu.memory_space<vmem>>, vector<18x1x12xf32>,
    %c0_112 = arith.constant 0 : index
    %c1_113 = arith.constant 1 : index
    %c0_114 = arith.constant 0 : index
    %130 = vector.load %arg17[%c0_112, %c1_113, %c0_114] : memref<18x18x12xf32, #tpu.memory_space<vmem>>, vector<18x16x12xf32>
    tpu.vector_store %arg17[%c0_112, %c1_113, %c0_114], %126 {strides = array<i32>} : memref<18x18x12xf32, #tpu.memory_space<vmem>>, vector<18x16x12xf32>,
    %cst_115 = arith.constant 0.000000e+00 : f32
    %131 = vector.broadcast %cst_115 : f32 to vector<16x16x12xf32>
    %c0_116 = arith.constant 0 : index
    %c0_117 = arith.constant 0 : index
    %c0_118 = arith.constant 0 : index
    %132 = vector.load %arg17[%c0_116, %c0_117, %c0_118] : memref<18x18x12xf32, #tpu.memory_space<vmem>>, vector<16x16x12xf32>
    %c0_119 = arith.constant 0 : index
    %c0_120 = arith.constant 0 : index
    %c0_121 = arith.constant 0 : index
    %133 = vector.load %arg11[%c0_119, %c0_120, %c0_121] : memref<3x3x12xf32, #tpu.memory_space<vmem>>, vector<1x1x12xf32>
    %134 = vector.shape_cast %133 : vector<1x1x12xf32> to vector<12xf32>
    %135 = vector.shape_cast %134 : vector<12xf32> to vector<1x1x12xf32>
    %136 = vector.broadcast %135 : vector<1x1x12xf32> to vector<16x16x12xf32>
    %137 = arith.mulf %132, %136 : vector<16x16x12xf32>
    %138 = arith.addf %131, %137 : vector<16x16x12xf32>
    %c0_122 = arith.constant 0 : index
    %c1_123 = arith.constant 1 : index
    %c0_124 = arith.constant 0 : index
    %139 = vector.load %arg17[%c0_122, %c1_123, %c0_124] : memref<18x18x12xf32, #tpu.memory_space<vmem>>, vector<16x16x12xf32>
    %c0_125 = arith.constant 0 : index
    %c1_126 = arith.constant 1 : index
    %c0_127 = arith.constant 0 : index
    %140 = vector.load %arg11[%c0_125, %c1_126, %c0_127] : memref<3x3x12xf32, #tpu.memory_space<vmem>>, vector<1x1x12xf32>
    %141 = vector.shape_cast %140 : vector<1x1x12xf32> to vector<12xf32>
    %142 = vector.shape_cast %141 : vector<12xf32> to vector<1x1x12xf32>
    %143 = vector.broadcast %142 : vector<1x1x12xf32> to vector<16x16x12xf32>
    %144 = arith.mulf %139, %143 : vector<16x16x12xf32>
    %145 = arith.addf %138, %144 : vector<16x16x12xf32>
    %c0_128 = arith.constant 0 : index
    %c2_129 = arith.constant 2 : index
    %c0_130 = arith.constant 0 : index
    %146 = vector.load %arg17[%c0_128, %c2_129, %c0_130] : memref<18x18x12xf32, #tpu.memory_space<vmem>>, vector<16x16x12xf32>
    %c0_131 = arith.constant 0 : index
    %c2_132 = arith.constant 2 : index
    %c0_133 = arith.constant 0 : index
    %147 = vector.load %arg11[%c0_131, %c2_132, %c0_133] : memref<3x3x12xf32, #tpu.memory_space<vmem>>, vector<1x1x12xf32>
    %148 = vector.shape_cast %147 : vector<1x1x12xf32> to vector<12xf32>
    %149 = vector.shape_cast %148 : vector<12xf32> to vector<1x1x12xf32>
    %150 = vector.broadcast %149 : vector<1x1x12xf32> to vector<16x16x12xf32>
    %151 = arith.mulf %146, %150 : vector<16x16x12xf32>
    %152 = arith.addf %145, %151 : vector<16x16x12xf32>
    %c1_134 = arith.constant 1 : index
    %c0_135 = arith.constant 0 : index
    %c0_136 = arith.constant 0 : index
    %153 = vector.load %arg17[%c1_134, %c0_135, %c0_136] : memref<18x18x12xf32, #tpu.memory_space<vmem>>, vector<16x16x12xf32>
    %c1_137 = arith.constant 1 : index
    %c0_138 = arith.constant 0 : index
    %c0_139 = arith.constant 0 : index
    %154 = vector.load %arg11[%c1_137, %c0_138, %c0_139] : memref<3x3x12xf32, #tpu.memory_space<vmem>>, vector<1x1x12xf32>
    %155 = vector.shape_cast %154 : vector<1x1x12xf32> to vector<12xf32>
    %156 = vector.shape_cast %155 : vector<12xf32> to vector<1x1x12xf32>
    %157 = vector.broadcast %156 : vector<1x1x12xf32> to vector<16x16x12xf32>
    %158 = arith.mulf %153, %157 : vector<16x16x12xf32>
    %159 = arith.addf %152, %158 : vector<16x16x12xf32>
    %c1_140 = arith.constant 1 : index
    %c1_141 = arith.constant 1 : index
    %c0_142 = arith.constant 0 : index
    %160 = vector.load %arg17[%c1_140, %c1_141, %c0_142] : memref<18x18x12xf32, #tpu.memory_space<vmem>>, vector<16x16x12xf32>
    %c1_143 = arith.constant 1 : index
    %c1_144 = arith.constant 1 : index
    %c0_145 = arith.constant 0 : index
    %161 = vector.load %arg11[%c1_143, %c1_144, %c0_145] : memref<3x3x12xf32, #tpu.memory_space<vmem>>, vector<1x1x12xf32>
    %162 = vector.shape_cast %161 : vector<1x1x12xf32> to vector<12xf32>
    %163 = vector.shape_cast %162 : vector<12xf32> to vector<1x1x12xf32>
    %164 = vector.broadcast %163 : vector<1x1x12xf32> to vector<16x16x12xf32>
    %165 = arith.mulf %160, %164 : vector<16x16x12xf32>
    %166 = arith.addf %159, %165 : vector<16x16x12xf32>
    %c1_146 = arith.constant 1 : index
    %c2_147 = arith.constant 2 : index
    %c0_148 = arith.constant 0 : index
    %167 = vector.load %arg17[%c1_146, %c2_147, %c0_148] : memref<18x18x12xf32, #tpu.memory_space<vmem>>, vector<16x16x12xf32>
    %c1_149 = arith.constant 1 : index
    %c2_150 = arith.constant 2 : index
    %c0_151 = arith.constant 0 : index
    %168 = vector.load %arg11[%c1_149, %c2_150, %c0_151] : memref<3x3x12xf32, #tpu.memory_space<vmem>>, vector<1x1x12xf32>
    %169 = vector.shape_cast %168 : vector<1x1x12xf32> to vector<12xf32>
    %170 = vector.shape_cast %169 : vector<12xf32> to vector<1x1x12xf32>
    %171 = vector.broadcast %170 : vector<1x1x12xf32> to vector<16x16x12xf32>
    %172 = arith.mulf %167, %171 : vector<16x16x12xf32>
    %173 = arith.addf %166, %172 : vector<16x16x12xf32>
    %c2_152 = arith.constant 2 : index
    %c0_153 = arith.constant 0 : index
    %c0_154 = arith.constant 0 : index
    %174 = vector.load %arg17[%c2_152, %c0_153, %c0_154] : memref<18x18x12xf32, #tpu.memory_space<vmem>>, vector<16x16x12xf32>
    %c2_155 = arith.constant 2 : index
    %c0_156 = arith.constant 0 : index
    %c0_157 = arith.constant 0 : index
    %175 = vector.load %arg11[%c2_155, %c0_156, %c0_157] : memref<3x3x12xf32, #tpu.memory_space<vmem>>, vector<1x1x12xf32>
    %176 = vector.shape_cast %175 : vector<1x1x12xf32> to vector<12xf32>
    %177 = vector.shape_cast %176 : vector<12xf32> to vector<1x1x12xf32>
    %178 = vector.broadcast %177 : vector<1x1x12xf32> to vector<16x16x12xf32>
    %179 = arith.mulf %174, %178 : vector<16x16x12xf32>
    %180 = arith.addf %173, %179 : vector<16x16x12xf32>
    %c2_158 = arith.constant 2 : index
    %c1_159 = arith.constant 1 : index
    %c0_160 = arith.constant 0 : index
    %181 = vector.load %arg17[%c2_158, %c1_159, %c0_160] : memref<18x18x12xf32, #tpu.memory_space<vmem>>, vector<16x16x12xf32>
    %c2_161 = arith.constant 2 : index
    %c1_162 = arith.constant 1 : index
    %c0_163 = arith.constant 0 : index
    %182 = vector.load %arg11[%c2_161, %c1_162, %c0_163] : memref<3x3x12xf32, #tpu.memory_space<vmem>>, vector<1x1x12xf32>
    %183 = vector.shape_cast %182 : vector<1x1x12xf32> to vector<12xf32>
    %184 = vector.shape_cast %183 : vector<12xf32> to vector<1x1x12xf32>
    %185 = vector.broadcast %184 : vector<1x1x12xf32> to vector<16x16x12xf32>
    %186 = arith.mulf %181, %185 : vector<16x16x12xf32>
    %187 = arith.addf %180, %186 : vector<16x16x12xf32>
    %c2_164 = arith.constant 2 : index
    %c2_165 = arith.constant 2 : index
    %c0_166 = arith.constant 0 : index
    %188 = vector.load %arg17[%c2_164, %c2_165, %c0_166] : memref<18x18x12xf32, #tpu.memory_space<vmem>>, vector<16x16x12xf32>
    %c2_167 = arith.constant 2 : index
    %c2_168 = arith.constant 2 : index
    %c0_169 = arith.constant 0 : index
    %189 = vector.load %arg11[%c2_167, %c2_168, %c0_169] : memref<3x3x12xf32, #tpu.memory_space<vmem>>, vector<1x1x12xf32>
    %190 = vector.shape_cast %189 : vector<1x1x12xf32> to vector<12xf32>
    %191 = vector.shape_cast %190 : vector<12xf32> to vector<1x1x12xf32>
    %192 = vector.broadcast %191 : vector<1x1x12xf32> to vector<16x16x12xf32>
    %193 = arith.mulf %188, %192 : vector<16x16x12xf32>
    %194 = arith.addf %187, %193 : vector<16x16x12xf32>
    %c0_170 = arith.constant 0 : index
    %c0_171 = arith.constant 0 : index
    %195 = vector.load %arg12[%c0_170, %c0_171] : memref<1x12xf32, #tpu.memory_space<vmem>>, vector<1x12xf32>
    %196 = vector.shape_cast %195 : vector<1x12xf32> to vector<12xf32>
    %197 = vector.shape_cast %196 : vector<12xf32> to vector<1x1x12xf32>
    %198 = vector.broadcast %197 : vector<1x1x12xf32> to vector<16x16x12xf32>
    %199 = arith.addf %194, %198 : vector<16x16x12xf32>
    %c0_172 = arith.constant 0 : index
    %c0_173 = arith.constant 0 : index
    %200 = memref.load %arg2[%c0_172, %c0_173] : memref<1x1xf32, #tpu.memory_space<smem>>
    %cst_174 = arith.constant 0.000000e+00 : f32
    %201 = vector.broadcast %cst_174 : f32 to vector<256x4xf32>
    %202 = vector.extract_strided_slice %199 {offsets = [0, 0, 0], sizes = [16, 16, 4], strides = [1, 1, 1]} : vector<16x16x12xf32> to vector<16x16x4xf32>
    %203 = vector.extract_strided_slice %199 {offsets = [0, 0, 4], sizes = [16, 16, 4], strides = [1, 1, 1]} : vector<16x16x12xf32> to vector<16x16x4xf32>
    %204 = vector.extract_strided_slice %199 {offsets = [0, 0, 8], sizes = [16, 16, 4], strides = [1, 1, 1]} : vector<16x16x12xf32> to vector<16x16x4xf32>
    %205 = arith.mulf %202, %202 : vector<16x16x4xf32>
    %cst_175 = arith.constant dense<0.000000e+00> : vector<16x16xf32>
    %206 = vector.multi_reduction <add>, %205, %cst_175 [2] : vector<16x16x4xf32> to vector<16x16xf32>
    %207 = vector.shape_cast %206 : vector<16x16xf32> to vector<16x16x1xf32>
    %cst_176 = arith.constant 1.000000e-24 : f32
    %208 = vector.broadcast %cst_176 : f32 to vector<16x16x1xf32>
    %209 = arith.maximumf %207, %208 : vector<16x16x1xf32>
    %210 = math.rsqrt %209 : vector<16x16x1xf32>
    %211 = vector.broadcast %210 : vector<16x16x1xf32> to vector<16x16x4xf32>
    %212 = arith.mulf %202, %211 : vector<16x16x4xf32>
    %213 = arith.mulf %203, %203 : vector<16x16x4xf32>
    %cst_177 = arith.constant dense<0.000000e+00> : vector<16x16xf32>
    %214 = vector.multi_reduction <add>, %213, %cst_177 [2] : vector<16x16x4xf32> to vector<16x16xf32>
    %215 = vector.shape_cast %214 : vector<16x16xf32> to vector<16x16x1xf32>
    %cst_178 = arith.constant 1.000000e-24 : f32
    %216 = vector.broadcast %cst_178 : f32 to vector<16x16x1xf32>
    %217 = arith.maximumf %215, %216 : vector<16x16x1xf32>
    %218 = math.rsqrt %217 : vector<16x16x1xf32>
    %219 = vector.broadcast %218 : vector<16x16x1xf32> to vector<16x16x4xf32>
    %220 = arith.mulf %203, %219 : vector<16x16x4xf32>
    %221 = arith.truncf %212 : vector<16x16x4xf32> to vector<16x16x4xbf16>
    %222 = arith.truncf %220 : vector<16x16x4xf32> to vector<16x16x4xbf16>
    "tpu.trace_start"() <{level = 10 : i32, message = "hqd,hkd->hqk"}> : () -> ()
    %cst_179 = arith.constant dense<0.000000e+00> : vector<16x16x16xf32>
    %223 = tpu.matmul %221, %222, %cst_179 {dimension_numbers = #tpu.dot_dimension_numbers<[2], [2], [1], [1], [0, 0, 0, 1, 1, 1], [0], [0]>} : vector<16x16x4xbf16>, vector<16x16x4xbf16>, vector<16x16x16xf32> -> vector<16x16x16xf32>
    "tpu.trace_stop"() : () -> ()
    %224 = vector.broadcast %200 : f32 to vector<16x16x16xf32>
    %225 = arith.mulf %223, %224 : vector<16x16x16xf32>
    %cst_180 = arith.constant dense<0xFF800000> : vector<16x16xf32>
    %226 = vector.multi_reduction <maximumf>, %225, %cst_180 [2] : vector<16x16x16xf32> to vector<16x16xf32>
    %227 = vector.shape_cast %226 : vector<16x16xf32> to vector<16x16x1xf32>
    %228 = vector.broadcast %227 : vector<16x16x1xf32> to vector<16x16x16xf32>
    %229 = arith.subf %225, %228 : vector<16x16x16xf32>
    %230 = math.exp %229 : vector<16x16x16xf32>
    %cst_181 = arith.constant dense<0.000000e+00> : vector<16x16xf32>
    %231 = vector.multi_reduction <add>, %230, %cst_181 [2] : vector<16x16x16xf32> to vector<16x16xf32>
    %232 = vector.shape_cast %231 : vector<16x16xf32> to vector<16x16x1xf32>
    %233 = tpu.reciprocal %232 {approx = true} : vector<16x16x1xf32> -> vector<16x16x1xf32>
    %234 = vector.broadcast %233 : vector<16x16x1xf32> to vector<16x16x16xf32>
    %235 = arith.mulf %230, %234 : vector<16x16x16xf32>
    %236 = arith.truncf %235 : vector<16x16x16xf32> to vector<16x16x16xbf16>
    %237 = arith.truncf %204 : vector<16x16x4xf32> to vector<16x16x4xbf16>
    "tpu.trace_start"() <{level = 10 : i32, message = "hqk,hkd->hqd"}> : () -> ()
    %cst_182 = arith.constant dense<0.000000e+00> : vector<16x16x4xf32>
    %238 = tpu.matmul %236, %237, %cst_182 {dimension_numbers = #tpu.dot_dimension_numbers<[2], [1], [1], [2], [0, 0, 0, 1, 1, 2], [0], [0]>} : vector<16x16x16xbf16>, vector<16x16x4xbf16>, vector<16x16x4xf32> -> vector<16x16x4xf32>
    "tpu.trace_stop"() : () -> ()
    %239 = vector.shape_cast %238 : vector<16x16x4xf32> to vector<256x4xf32>
    %240 = arith.truncf %239 : vector<256x4xf32> to vector<256x4xbf16>
    %c0_183 = arith.constant 0 : index
    %c0_184 = arith.constant 0 : index
    %241 = vector.load %arg13[%c0_183, %c0_184] : memref<4x4xbf16, #tpu.memory_space<vmem>>, vector<4x4xbf16>
    %cst_185 = arith.constant dense<0.000000e+00> : vector<256x4xf32>
    %242 = tpu.matmul %240, %241, %cst_185 {dimension_numbers = #tpu.dot_dimension_numbers<[1], [0], [0], [1], [0, 0, 1, 1], [], []>} : vector<256x4xbf16>, vector<4x4xbf16>, vector<256x4xf32> -> vector<256x4xf32>
    %243 = arith.addf %201, %242 : vector<256x4xf32>
    %c0_186 = arith.constant 0 : index
    %c0_187 = arith.constant 0 : index
    %244 = vector.load %arg14[%c0_186, %c0_187] : memref<1x4xf32, #tpu.memory_space<vmem>>, vector<1x4xf32>
    %245 = vector.shape_cast %244 : vector<1x4xf32> to vector<4xf32>
    %246 = vector.shape_cast %245 : vector<4xf32> to vector<1x4xf32>
    %247 = vector.broadcast %246 : vector<1x4xf32> to vector<256x4xf32>
    %248 = arith.addf %243, %247 : vector<256x4xf32>
    %249 = vector.shape_cast %248 : vector<256x4xf32> to vector<16x16x4xf32>
    %c0_188 = arith.constant 0 : index
    %c0_189 = arith.constant 0 : index
    %c0_190 = arith.constant 0 : index
    %c0_191 = arith.constant 0 : index
    %250 = vector.load %arg8[%c0_188, %c0_189, %c0_190, %c0_191] : memref<1x16x16x4xf32, #tpu.memory_space<vmem>>, vector<1x16x16x4xf32>
    %251 = vector.shape_cast %250 : vector<1x16x16x4xf32> to vector<16x16x4xf32>
    %252 = arith.addf %249, %251 : vector<16x16x4xf32>
    %c0_192 = arith.constant 0 : index
    %c0_193 = arith.constant 0 : index
    %c0_194 = arith.constant 0 : index
    %c0_195 = arith.constant 0 : index
    %253 = vector.load %arg15[%c0_192, %c0_193, %c0_194, %c0_195] : memref<1x16x16x4xf32, #tpu.memory_space<vmem>>, vector<1x16x16x4xf32>
    %254 = vector.shape_cast %253 : vector<1x16x16x4xf32> to vector<16x16x4xf32>
    %255 = vector.shape_cast %252 : vector<16x16x4xf32> to vector<1x16x16x4xf32>
    tpu.vector_store %arg15[%c0_192, %c0_193, %c0_194, %c0_195], %255 {strides = array<i32>} : memref<1x16x16x4xf32, #tpu.memory_space<vmem>>, vector<1x16x16x4xf32>,
    return
  }
  func.func @transform_0(%arg0: i32, %arg1: i32) -> (i32, i32) {
    %c0_i32 = arith.constant 0 : i32
    %c0_i32_0 = arith.constant 0 : i32
    %c0_i32_1 = arith.constant 0 : i32
    return %c0_i32, %c0_i32_0 : i32, i32
  }
  func.func @transform_1(%arg0: i32, %arg1: i32) -> (i32, i32, i32, i32) {
    %c0_i32 = arith.constant 0 : i32
    %c0_i32_0 = arith.constant 0 : i32
    %c0_i32_1 = arith.constant 0 : i32
    return %arg0, %arg1, %c0_i32, %c0_i32_0 : i32, i32, i32, i32
  }
  func.func @transform_2(%arg0: i32, %arg1: i32) -> (i32, i32, i32, i32) {
    %c16_i32 = arith.constant 16 : i32
    %0 = arith.muli %arg1, %c16_i32 : i32
    %c2_i32 = arith.constant 2 : i32
    %1 = arith.subi %0, %c2_i32 : i32
    %c0_i32 = arith.constant 0 : i32
    %2 = arith.maxsi %1, %c0_i32 : i32
    %c0_i32_0 = arith.constant 0 : i32
    %c0_i32_1 = arith.constant 0 : i32
    %c0_i32_2 = arith.constant 0 : i32
    return %arg0, %2, %c0_i32_0, %c0_i32_1 : i32, i32, i32, i32
  }
  func.func @transform_3(%arg0: i32, %arg1: i32) -> (i32, i32, i32, i32) {
    %c16_i32 = arith.constant 16 : i32
    %0 = arith.muli %arg1, %c16_i32 : i32
    %c1_i32 = arith.constant 1 : i32
    %1 = arith.subi %0, %c1_i32 : i32
    %c0_i32 = arith.constant 0 : i32
    %2 = arith.maxsi %1, %c0_i32 : i32
    %c0_i32_0 = arith.constant 0 : i32
    %c0_i32_1 = arith.constant 0 : i32
    %c0_i32_2 = arith.constant 0 : i32
    return %arg0, %2, %c0_i32_0, %c0_i32_1 : i32, i32, i32, i32
  }
  func.func @transform_4(%arg0: i32, %arg1: i32) -> (i32, i32, i32, i32) {
    %c16_i32 = arith.constant 16 : i32
    %0 = arith.muli %arg1, %c16_i32 : i32
    %c16_i32_0 = arith.constant 16 : i32
    %1 = arith.addi %0, %c16_i32_0 : i32
    %c15_i32 = arith.constant 15 : i32
    %2 = arith.minsi %1, %c15_i32 : i32
    %c0_i32 = arith.constant 0 : i32
    %c0_i32_1 = arith.constant 0 : i32
    %c0_i32_2 = arith.constant 0 : i32
    return %arg0, %2, %c0_i32, %c0_i32_1 : i32, i32, i32, i32
  }
  func.func @transform_5(%arg0: i32, %arg1: i32) -> (i32, i32, i32, i32) {
    %c16_i32 = arith.constant 16 : i32
    %0 = arith.muli %arg1, %c16_i32 : i32
    %c16_i32_0 = arith.constant 16 : i32
    %1 = arith.addi %0, %c16_i32_0 : i32
    %c1_i32 = arith.constant 1 : i32
    %2 = arith.addi %1, %c1_i32 : i32
    %c15_i32 = arith.constant 15 : i32
    %3 = arith.minsi %2, %c15_i32 : i32
    %c0_i32 = arith.constant 0 : i32
    %c0_i32_1 = arith.constant 0 : i32
    %c0_i32_2 = arith.constant 0 : i32
    return %arg0, %3, %c0_i32, %c0_i32_1 : i32, i32, i32, i32
  }
  func.func @transform_6(%arg0: i32, %arg1: i32) -> (i32, i32, i32, i32) {
    %c0_i32 = arith.constant 0 : i32
    %c0_i32_0 = arith.constant 0 : i32
    %c0_i32_1 = arith.constant 0 : i32
    return %arg0, %arg1, %c0_i32, %c0_i32_0 : i32, i32, i32, i32
  }
  func.func @transform_7(%arg0: i32, %arg1: i32) -> (i32, i32, i32) {
    %c0_i32 = arith.constant 0 : i32
    %c0_i32_0 = arith.constant 0 : i32
    %c0_i32_1 = arith.constant 0 : i32
    %c0_i32_2 = arith.constant 0 : i32
    return %c0_i32, %c0_i32_0, %c0_i32_1 : i32, i32, i32
  }
  func.func @transform_8(%arg0: i32, %arg1: i32) -> (i32, i32) {
    %c0_i32 = arith.constant 0 : i32
    %c0_i32_0 = arith.constant 0 : i32
    %c0_i32_1 = arith.constant 0 : i32
    return %c0_i32, %c0_i32_0 : i32, i32
  }
  func.func @transform_9(%arg0: i32, %arg1: i32) -> (i32, i32, i32) {
    %c0_i32 = arith.constant 0 : i32
    %c0_i32_0 = arith.constant 0 : i32
    %c0_i32_1 = arith.constant 0 : i32
    %c0_i32_2 = arith.constant 0 : i32
    return %c0_i32, %c0_i32_0, %c0_i32_1 : i32, i32, i32
  }
  func.func @transform_10(%arg0: i32, %arg1: i32) -> (i32, i32) {
    %c0_i32 = arith.constant 0 : i32
    %c0_i32_0 = arith.constant 0 : i32
    %c0_i32_1 = arith.constant 0 : i32
    return %c0_i32, %c0_i32_0 : i32, i32
  }
  func.func @transform_11(%arg0: i32, %arg1: i32) -> (i32, i32) {
    %c0_i32 = arith.constant 0 : i32
    %c0_i32_0 = arith.constant 0 : i32
    %c0_i32_1 = arith.constant 0 : i32
    return %c0_i32, %c0_i32_0 : i32, i32
  }
  func.func @transform_12(%arg0: i32, %arg1: i32) -> (i32, i32) {
    %c0_i32 = arith.constant 0 : i32
    %c0_i32_0 = arith.constant 0 : i32
    %c0_i32_1 = arith.constant 0 : i32
    return %c0_i32, %c0_i32_0 : i32, i32
  }
  func.func @transform_13(%arg0: i32, %arg1: i32) -> (i32, i32, i32, i32) {
    %c0_i32 = arith.constant 0 : i32
    %c0_i32_0 = arith.constant 0 : i32
    %c0_i32_1 = arith.constant 0 : i32
    return %arg0, %arg1, %c0_i32, %c0_i32_0 : i32, i32, i32, i32
  }
}

</mosaic_0001>

<llo_original>
// kernel: lsab_forward.2
$region0: #{lsab_forward.2}
  #allocation0 [shape = 'u32[]', space=smem, size = 0x4, offset = 0x4, fixed_abs, tag = 'smem constant byte address 0x4 - core index']
  #allocation1 [shape = 'u32[144,128]{1,0:T(1,128)}', space=vmem, size = 0x12000, scoped, tag = 'internal scratch']
  %s0 = inlined_call_operand.vmem [shape: f32[2,16,16,4], index: 0, kind: input, shape index: {}]
  %s1 = inlined_call_operand.vmem [shape: f32[1,4], index: 1, kind: input, shape index: {}]
  %s2 = inlined_call_operand.vmem [shape: f32[1,4], index: 2, kind: input, shape index: {}]
  %s3 = inlined_call_operand.vmem [shape: bf16[4,12], index: 3, kind: input, shape index: {}]
  %s4 = inlined_call_operand.vmem [shape: f32[1,12], index: 4, kind: input, shape index: {}]
  %s5 = inlined_call_operand.vmem [shape: bf16[2,16,16,12], index: 5, kind: output, shape index: {}]
  %s6 = sld [smem:[#allocation0]]
  $region53: #{lsab_forward.2} parent=0
    _
  %s8 = ssub.s32 1, %s6
  %s9 = scalar_select 0, %s8, %s6
  loop: start=0, step=1, limit=4
  $region2: #{lsab_forward.2} parent=0 // loop_pre_header
    _
  $region3: #{lsab_forward.2} parent=0 // loop_header
    %s11 = sphi 0, %s15
    %p12 = scmp.ge.s32.totalorder %s11, 4
    %s18 = sphi 0, %s30
    %s19 = sphi 0, %s26
    %s20 = sphi 0, %s18
    %s21 = sphi 0, %s19
    %s22 = sphi 0, %s20
    %s23 = sphi 0, %s21
    %s35 = sphi 0, %s37
    %s38 = sphi 0, %s35
    %s39 = sphi 0, %s38
    %s55 = sphi 0, %s39
    %s59 = sphi 0, %s59
    %s61 = sphi 0, %s59
    %s62 = sphi 0, %s61
    %s76 = sphi 0, %s62
    %s80 = sphi 0, %s80
    %s82 = sphi 0, %s80
    %s83 = sphi 0, %s82
    %s97 = sphi 0, %s83
    %s101 = sphi 0, %s101
    %s103 = sphi 0, %s101
    %s104 = sphi 0, %s103
    %s118 = sphi 0, %s104
    %s122 = sphi 0, %s122
    %s124 = sphi 0, %s122
    %s125 = sphi 0, %s124
    %s139 = sphi 0, %s125
    %s147 = sphi 0, %s149
    %s150 = sphi 0, %s147
    %s151 = sphi 0, %s150
    %s167 = sphi 0, %s151
  $region4: #{lsab_forward.2} parent=0 // loop_header_branch
    %14 = sbr.rel (%p12) target = $region8
  $region5: #{lsab_forward.2} parent=0 // loop_body
    %s16 = ssub.s32 %s11, 1
    %s17 = ssub.s32 %s11, 2
    %s24 = sadd.s32 1, %s19
    %p25 = scmp.ge.s32.totalorder %s24, 1
    %s26 = scalar_select %p25, 0, %s24
    %s27 = sadd.s32 1, %s18
    %s28 = scalar_select %p25, %s27, %s18
    %p29 = scmp.ge.s32.totalorder %s28, 2
    %s30 = scalar_select %p29, 0, %s28
    %s31 = ssub.s32 %s18, %s30
    %s32 = ssub.s32 %s19, %s26
    %s33 = sor.u32 %s31, %s32
    %p34 = scmp.eq.s32.totalorder %s33, 0
    %s36 = sadd.s32 %s35, 1
    %s37 = scalar_select %p34, %s35, %s36
    %p40 = pneg %p34
    %p41 = scmp.eq.s32.totalorder %s11, 1
    %p42 = por %p40, %p41
    %p43 = scmp.ne.s32.totalorder %s35, %s38
    %p44 = scmp.eq.s32.totalorder %s11, 0
    %p45 = por %p43, %p44
    %p46 = scmp.ne.s32.totalorder %s35, %s38
    %p47 = scmp.eq.s32.totalorder %s16, 1
    %p48 = por %p46, %p47
    %p49 = scmp.ne.s32.totalorder %s38, %s39
    %p50 = scmp.eq.s32.totalorder %s16, 0
    %p51 = por %p49, %p50
    %p52 = scmp.ne.s32.totalorder %s38, %s39
    %p53 = scmp.eq.s32.totalorder %s17, 1
    %p54 = por %p52, %p53
    %p56 = scmp.ne.s32.totalorder %s39, %s55
    %p57 = scmp.eq.s32.totalorder %s17, 0
    %p58 = por %p56, %p57
    %s60 = sadd.s32 %s59, 1
    %p63 = scmp.eq.s32.totalorder %s11, 1
    %p64 = scmp.ne.s32.totalorder %s59, %s61
    %p65 = scmp.eq.s32.totalorder %s11, 0
    %p66 = por %p64, %p65
    %p67 = scmp.ne.s32.totalorder %s59, %s61
    %p68 = scmp.eq.s32.totalorder %s16, 1
    %p69 = por %p67, %p68
    %p70 = scmp.ne.s32.totalorder %s61, %s62
    %p71 = scmp.eq.s32.totalorder %s16, 0
    %p72 = por %p70, %p71
    %p73 = scmp.ne.s32.totalorder %s61, %s62
    %p74 = scmp.eq.s32.totalorder %s17, 1
    %p75 = por %p73, %p74
    %p77 = scmp.ne.s32.totalorder %s62, %s76
    %p78 = scmp.eq.s32.totalorder %s17, 0
    %p79 = por %p77, %p78
    %s81 = sadd.s32 %s80, 1
    %p84 = scmp.eq.s32.totalorder %s11, 1
    %p85 = scmp.ne.s32.totalorder %s80, %s82
    %p86 = scmp.eq.s32.totalorder %s11, 0
    %p87 = por %p85, %p86
    %p88 = scmp.ne.s32.totalorder %s80, %s82
    %p89 = scmp.eq.s32.totalorder %s16, 1
    %p90 = por %p88, %p89
    %p91 = scmp.ne.s32.totalorder %s82, %s83
    %p92 = scmp.eq.s32.totalorder %s16, 0
    %p93 = por %p91, %p92
    %p94 = scmp.ne.s32.totalorder %s82, %s83
    %p95 = scmp.eq.s32.totalorder %s17, 1
    %p96 = por %p94, %p95
    %p98 = scmp.ne.s32.totalorder %s83, %s97
    %p99 = scmp.eq.s32.totalorder %s17, 0
    %p100 = por %p98, %p99
    %s102 = sadd.s32 %s101, 1
    %p105 = scmp.eq.s32.totalorder %s11, 1
    %p106 = scmp.ne.s32.totalorder %s101, %s103
    %p107 = scmp.eq.s32.totalorder %s11, 0
    %p108 = por %p106, %p107
    %p109 = scmp.ne.s32.totalorder %s101, %s103
    %p110 = scmp.eq.s32.totalorder %s16, 1
    %p111 = por %p109, %p110
    %p112 = scmp.ne.s32.totalorder %s103, %s104
    %p113 = scmp.eq.s32.totalorder %s16, 0
    %p114 = por %p112, %p113
    %p115 = scmp.ne.s32.totalorder %s103, %s104
    %p116 = scmp.eq.s32.totalorder %s17, 1
    %p117 = por %p115, %p116
    %p119 = scmp.ne.s32.totalorder %s104, %s118
    %p120 = scmp.eq.s32.totalorder %s17, 0
    %p121 = por %p119, %p120
    %s123 = sadd.s32 %s122, 1
    %p126 = scmp.eq.s32.totalorder %s11, 1
    %p127 = scmp.ne.s32.totalorder %s122, %s124
    %p128 = scmp.eq.s32.totalorder %s11, 0
    %p129 = por %p127, %p128
    %p130 = scmp.ne.s32.totalorder %s122, %s124
    %p131 = scmp.eq.s32.totalorder %s16, 1
    %p132 = por %p130, %p131
    %p133 = scmp.ne.s32.totalorder %s124, %s125
    %p134 = scmp.eq.s32.totalorder %s16, 0
    %p135 = por %p133, %p134
    %p136 = scmp.ne.s32.totalorder %s124, %s125
    %p137 = scmp.eq.s32.totalorder %s17, 1
    %p138 = por %p136, %p137
    %p140 = scmp.ne.s32.totalorder %s125, %s139
    %p141 = scmp.eq.s32.totalorder %s17, 0
    %p142 = por %p140, %p141
    %s143 = ssub.s32 %s18, %s30
    %s144 = ssub.s32 %s19, %s26
    %s145 = sor.u32 %s143, %s144
    %p146 = scmp.eq.s32.totalorder %s145, 0
    %s148 = sadd.s32 %s147, 1
    %s149 = scalar_select %p146, %s147, %s148
    %p152 = pneg %p146
    %p153 = scmp.eq.s32.totalorder %s11, 1
    %p154 = por %p152, %p153
    %p155 = scmp.ne.s32.totalorder %s147, %s150
    %p156 = scmp.eq.s32.totalorder %s11, 0
    %p157 = por %p155, %p156
    %p158 = scmp.ne.s32.totalorder %s147, %s150
    %p159 = scmp.eq.s32.totalorder %s16, 1
    %p160 = por %p158, %p159
    %p161 = scmp.ne.s32.totalorder %s150, %s151
    %p162 = scmp.eq.s32.totalorder %s16, 0
    %p163 = por %p161, %p162
    %p164 = scmp.ne.s32.totalorder %s150, %s151
    %p165 = scmp.eq.s32.totalorder %s17, 1
    %p166 = por %p164, %p165
    %p168 = scmp.ne.s32.totalorder %s151, %s167
    %p169 = scmp.eq.s32.totalorder %s17, 0
    %p170 = por %p168, %p169
    %p171 = scmp.le.s32.totalorder 1, %s11
    %p172 = scmp.lt.s32.totalorder %s11, 3
    %p173 = pnand %p171, %p172
    %p174 = pneg %p173
    // Predicated region
    $region9: #{lsab_forward.2} parent=5 // pred_check
      _
    $region10: #{lsab_forward.2} parent=5 // pred_check_branch
      %176 = sbr.rel (%p173) target = $region12
    $region11: #{lsab_forward.2} parent=5 // pred_region
      %s177 = ssub.s32 %s11, 1
      // Predicated region
      $region13: #{lsab_forward.2} parent=11 // pred_check
        %p178 = pneg %p72
      $region14: #{lsab_forward.2} parent=11 // pred_check_branch
        %180 = sbr.rel (%p178) target = $region16
      $region15: #{lsab_forward.2} parent=11 // pred_region
        _
      $region16: #{lsab_forward.2} parent=11 // pred_fallthru
        _
      // Predicated region
      $region17: #{lsab_forward.2} parent=11 // pred_check
        %p181 = pneg %p93
      $region18: #{lsab_forward.2} parent=11 // pred_check_branch
        %183 = sbr.rel (%p181) target = $region20
      $region19: #{lsab_forward.2} parent=11 // pred_region
        _
      $region20: #{lsab_forward.2} parent=11 // pred_fallthru
        _
      // Predicated region
      $region21: #{lsab_forward.2} parent=11 // pred_check
        %p184 = pneg %p114
      $region22: #{lsab_forward.2} parent=11 // pred_check_branch
        %186 = sbr.rel (%p184) target = $region24
      $region23: #{lsab_forward.2} parent=11 // pred_region
        _
      $region24: #{lsab_forward.2} parent=11 // pred_fallthru
        _
      // Predicated region
      $region25: #{lsab_forward.2} parent=11 // pred_check
        %p187 = pneg %p135
      $region26: #{lsab_forward.2} parent=11 // pred_check_branch
        %189 = sbr.rel (%p187) target = $region28
      $region27: #{lsab_forward.2} parent=11 // pred_region
        _
      $region28: #{lsab_forward.2} parent=11 // pred_fallthru
        _
    $region12: #{lsab_forward.2} parent=5 // pred_fallthru
      _
    %p190 = scmp.lt.s32.totalorder %s11, 2
    // Predicated region
    $region29: #{lsab_forward.2} parent=5 // pred_check
      %p191 = pneg %p190
    $region30: #{lsab_forward.2} parent=5 // pred_check_branch
      %193 = sbr.rel (%p191) target = $region32
    $region31: #{lsab_forward.2} parent=5 // pred_region
      // Predicated region
      $region33: #{lsab_forward.2} parent=31 // pred_check
        %p194 = pneg %p45
      $region34: #{lsab_forward.2} parent=31 // pred_check_branch
        %196 = sbr.rel (%p194) target = $region36
      $region35: #{lsab_forward.2} parent=31 // pred_region
        %s197 = smul.u32 16, %s19
        %p198 = scmp.lt.s32.totalorder %s18, 1
        %s199 = scalar_select %p198, %s18, 1
        %p200 = scmp.lt.s32.totalorder %s197, 15
        %s201 = scalar_select %p200, %s197, 15
        %s202 = smul.addr %s201, 2
        %s203 = smul.addr %s199, 32
        %s204 = sadd.s32 %s202, %s203
        %s205 = smul.addr %s204, 8
        %s206 = scalar_lea.vmem %s0, %s205
        %s207 = smul.u32 16, %s19
      $region36: #{lsab_forward.2} parent=31 // pred_fallthru
        _
    $region32: #{lsab_forward.2} parent=5 // pred_fallthru
      _
    %p208 = scmp.le.s32.totalorder 1, %s11
    %p209 = scmp.lt.s32.totalorder %s11, 3
    %p210 = pnand %p208, %p209
    %p211 = pneg %p210
    // Predicated region
    $region37: #{lsab_forward.2} parent=5 // pred_check
      _
    $region38: #{lsab_forward.2} parent=5 // pred_check_branch
      %213 = sbr.rel (%p210) target = $region40
    $region39: #{lsab_forward.2} parent=5 // pred_region
      %s214 = ssub.s32 %s11, 1
      %s215 = smul.u32 16, %s21
      %p216 = scmp.lt.s32.totalorder %s20, 1
      %s217 = scalar_select %p216, %s20, 1
      %p218 = scmp.lt.s32.totalorder %s215, 15
      %s219 = scalar_select %p218, %s215, 15
      %s220 = smul.addr %s219, 2
      %s221 = smul.addr %s217, 32
      %s222 = sadd.s32 %s220, %s221
      %s223 = smul.addr %s222, 8
      %s224 = scalar_lea.vmem %s0, %s223
      %p225 = pneg %p51
      %p226 = pneg %p48
      %p227 = pneg %p72
      %p228 = pneg %p69
      %p229 = pneg %p93
      %p230 = pneg %p90
      %p231 = pneg %p114
      %p232 = pneg %p111
      %p233 = pneg %p135
      %p234 = pneg %p132
      %p235 = pneg %p163
      %p236 = pneg %p160
      %s237 = smul.u32 16, %s21
      %p238 = scmp.lt.s32.totalorder %s20, 1
      %s239 = scalar_select %p238, %s20, 1
      %p240 = scmp.lt.s32.totalorder %s237, 15
      %s241 = scalar_select %p240, %s237, 15
      %s242 = smul.addr %s241, 2
      %s243 = smul.addr %s239, 32
      %s244 = sadd.s32 %s242, %s243
      %s245 = smul.addr %s244, 4
      %s246 = scalar_lea.vmem %s5, %s245
      %s247 = smul.u32 16, %s21
      %p248 = scmp.lt.s32.totalorder %s20, 1
      %s249 = scalar_select %p248, %s20, 1
      %p250 = scmp.lt.s32.totalorder %s247, 15
      %s251 = scalar_select %p250, %s247, 15
      %s252 = smul.addr %s251, 2
      %s253 = smul.addr %s249, 32
      %s254 = sadd.s32 %s252, %s253
      %s255 = smul.addr %s254, 8
      %s256 = scalar_lea.vmem %s0, %s255
      %s257 = smul.u32 16, %s21
      %s258 = smul.u32 16, %s21
      %p259 = scmp.lt.s32.totalorder %s20, 1
      %s260 = scalar_select %p259, %s20, 1
      %p261 = scmp.lt.s32.totalorder %s258, 15
      %s262 = scalar_select %p261, %s258, 15
      %s263 = smul.addr %s262, 2
      %s264 = smul.addr %s260, 32
      %s265 = sadd.s32 %s263, %s264
      %s266 = smul.addr %s265, 4
      %s267 = scalar_lea.vmem %s5, %s266
      %s268 = smul.u32 16, %s21
      %v270 = vld [vmem:[%s256] sm:$0xff]
      %v271 = vld [vmem:[%s256 + $0x8] sm:$0xff]
      %v272 = vld [vmem:[%s256 + $0x10] sm:$0xff]
      %v273 = vld [vmem:[%s256 + $0x18] sm:$0xff]
      %v274 = vld [vmem:[%s256 + $0x20] sm:$0xff]
      %v275 = vld [vmem:[%s256 + $0x28] sm:$0xff]
      %v276 = vld [vmem:[%s256 + $0x30] sm:$0xff]
      %v277 = vld [vmem:[%s256 + $0x38] sm:$0xff]
      %v278 = vld [vmem:[%s256 + $0x40] sm:$0xff]
      %v279 = vld [vmem:[%s256 + $0x48] sm:$0xff]
      %v280 = vld [vmem:[%s256 + $0x50] sm:$0xff]
      %v281 = vld [vmem:[%s256 + $0x58] sm:$0xff]
      %v282 = vld [vmem:[%s256 + $0x60] sm:$0xff]
      %v283 = vld [vmem:[%s256 + $0x68] sm:$0xff]
      %v284 = vld [vmem:[%s256 + $0x70] sm:$0xff]
      %v285 = vld [vmem:[%s256 + $0x78] sm:$0xff]
      %v286 = vld [vmem:[%s256 + $0x80] sm:$0xff]
      %v287 = vld [vmem:[%s256 + $0x88] sm:$0xff]
      %v288 = vld [vmem:[%s256 + $0x90] sm:$0xff]
      %v289 = vld [vmem:[%s256 + $0x98] sm:$0xff]
      %v290 = vld [vmem:[%s256 + $0xa0] sm:$0xff]
      %v291 = vld [vmem:[%s256 + $0xa8] sm:$0xff]
      %v292 = vld [vmem:[%s256 + $0xb0] sm:$0xff]
      %v293 = vld [vmem:[%s256 + $0xb8] sm:$0xff]
      %v294 = vld [vmem:[%s256 + $0xc0] sm:$0xff]
      %v295 = vld [vmem:[%s256 + $0xc8] sm:$0xff]
      %v296 = vld [vmem:[%s256 + $0xd0] sm:$0xff]
      %v297 = vld [vmem:[%s256 + $0xd8] sm:$0xff]
      %v298 = vld [vmem:[%s256 + $0xe0] sm:$0xff]
      %v299 = vld [vmem:[%s256 + $0xe8] sm:$0xff]
      %v300 = vld [vmem:[%s256 + $0xf0] sm:$0xff]
      %v301 = vld [vmem:[%s256 + $0xf8] sm:$0xff]
      %vm302 = vcmask 31744
      %v303 = vsel %vm302, %v270, 0.0
      %304 = vadd.xlane.f32.xlu0 %v303
      %v305 = vpop.xlane.xlu0 %304
      %v306 = vsel %vm302, %v271, 0.0
      %307 = vadd.xlane.f32.xlu0 %v306
      %v308 = vpop.xlane.xlu0 %307
      %v309 = vsel %vm302, %v272, 0.0
      %310 = vadd.xlane.f32.xlu0 %v309
      %v311 = vpop.xlane.xlu0 %310
      %v312 = vsel %vm302, %v273, 0.0
      %313 = vadd.xlane.f32.xlu0 %v312
      %v314 = vpop.xlane.xlu0 %313
      %v315 = vsel %vm302, %v274, 0.0
      %316 = vadd.xlane.f32.xlu0 %v315
      %v317 = vpop.xlane.xlu0 %316
      %v318 = vsel %vm302, %v275, 0.0
      %319 = vadd.xlane.f32.xlu0 %v318
      %v320 = vpop.xlane.xlu0 %319
      %v321 = vsel %vm302, %v276, 0.0
      %322 = vadd.xlane.f32.xlu0 %v321
      %v323 = vpop.xlane.xlu0 %322
      %v324 = vsel %vm302, %v277, 0.0
      %325 = vadd.xlane.f32.xlu0 %v324
      %v326 = vpop.xlane.xlu0 %325
      %v327 = vsel %vm302, %v278, 0.0
      %328 = vadd.xlane.f32.xlu0 %v327
      %v329 = vpop.xlane.xlu0 %328
      %v330 = vsel %vm302, %v279, 0.0
      %331 = vadd.xlane.f32.xlu0 %v330
      %v332 = vpop.xlane.xlu0 %331
      %v333 = vsel %vm302, %v280, 0.0
      %334 = vadd.xlane.f32.xlu0 %v333
      %v335 = vpop.xlane.xlu0 %334
      %v336 = vsel %vm302, %v281, 0.0
      %337 = vadd.xlane.f32.xlu0 %v336
      %v338 = vpop.xlane.xlu0 %337
      %v339 = vsel %vm302, %v282, 0.0
      %340 = vadd.xlane.f32.xlu0 %v339
      %v341 = vpop.xlane.xlu0 %340
      %v342 = vsel %vm302, %v283, 0.0
      %343 = vadd.xlane.f32.xlu0 %v342
      %v344 = vpop.xlane.xlu0 %343
      %v345 = vsel %vm302, %v284, 0.0
      %346 = vadd.xlane.f32.xlu0 %v345
      %v347 = vpop.xlane.xlu0 %346
      %v348 = vsel %vm302, %v285, 0.0
      %349 = vadd.xlane.f32.xlu0 %v348
      %v350 = vpop.xlane.xlu0 %349
      %v351 = vsel %vm302, %v286, 0.0
      %352 = vadd.xlane.f32.xlu0 %v351
      %v353 = vpop.xlane.xlu0 %352
      %v354 = vsel %vm302, %v287, 0.0
      %355 = vadd.xlane.f32.xlu0 %v354
      %v356 = vpop.xlane.xlu0 %355
      %v357 = vsel %vm302, %v288, 0.0
      %358 = vadd.xlane.f32.xlu0 %v357
      %v359 = vpop.xlane.xlu0 %358
      %v360 = vsel %vm302, %v289, 0.0
      %361 = vadd.xlane.f32.xlu0 %v360
      %v362 = vpop.xlane.xlu0 %361
      %v363 = vsel %vm302, %v290, 0.0
      %364 = vadd.xlane.f32.xlu0 %v363
      %v365 = vpop.xlane.xlu0 %364
      %v366 = vsel %vm302, %v291, 0.0
      %367 = vadd.xlane.f32.xlu0 %v366
      %v368 = vpop.xlane.xlu0 %367
      %v369 = vsel %vm302, %v292, 0.0
      %370 = vadd.xlane.f32.xlu0 %v369
      %v371 = vpop.xlane.xlu0 %370
      %v372 = vsel %vm302, %v293, 0.0
      %373 = vadd.xlane.f32.xlu0 %v372
      %v374 = vpop.xlane.xlu0 %373
      %v375 = vsel %vm302, %v294, 0.0
      %376 = vadd.xlane.f32.xlu0 %v375
      %v377 = vpop.xlane.xlu0 %376
      %v378 = vsel %vm302, %v295, 0.0
      %379 = vadd.xlane.f32.xlu0 %v378
      %v380 = vpop.xlane.xlu0 %379
      %v381 = vsel %vm302, %v296, 0.0
      %382 = vadd.xlane.f32.xlu0 %v381
      %v383 = vpop.xlane.xlu0 %382
      %v384 = vsel %vm302, %v297, 0.0
      %385 = vadd.xlane.f32.xlu0 %v384
      %v386 = vpop.xlane.xlu0 %385
      %v387 = vsel %vm302, %v298, 0.0
      %388 = vadd.xlane.f32.xlu0 %v387
      %v389 = vpop.xlane.xlu0 %388
      %v390 = vsel %vm302, %v299, 0.0
      %391 = vadd.xlane.f32.xlu0 %v390
      %v392 = vpop.xlane.xlu0 %391
      %v393 = vsel %vm302, %v300, 0.0
      %394 = vadd.xlane.f32.xlu0 %v393
      %v395 = vpop.xlane.xlu0 %394
      %v396 = vsel %vm302, %v301, 0.0
      %397 = vadd.xlane.f32.xlu0 %v396
      %v398 = vpop.xlane.xlu0 %397
      %v399 = vrcp.pop 4.0
      %v400 = vmul.f32 %v305, %v399
      %v401 = vmul.f32 %v308, %v399
      %v402 = vmul.f32 %v311, %v399
      %v403 = vmul.f32 %v314, %v399
      %v404 = vmul.f32 %v317, %v399
      %v405 = vmul.f32 %v320, %v399
      %v406 = vmul.f32 %v323, %v399
      %v407 = vmul.f32 %v326, %v399
      %v408 = vmul.f32 %v329, %v399
      %v409 = vmul.f32 %v332, %v399
      %v410 = vmul.f32 %v335, %v399
      %v411 = vmul.f32 %v338, %v399
      %v412 = vmul.f32 %v341, %v399
      %v413 = vmul.f32 %v344, %v399
      %v414 = vmul.f32 %v347, %v399
      %v415 = vmul.f32 %v350, %v399
      %v416 = vmul.f32 %v353, %v399
      %v417 = vmul.f32 %v356, %v399
      %v418 = vmul.f32 %v359, %v399
      %v419 = vmul.f32 %v362, %v399
      %v420 = vmul.f32 %v365, %v399
      %v421 = vmul.f32 %v368, %v399
      %v422 = vmul.f32 %v371, %v399
      %v423 = vmul.f32 %v374, %v399
      %v424 = vmul.f32 %v377, %v399
      %v425 = vmul.f32 %v380, %v399
      %v426 = vmul.f32 %v383, %v399
      %v427 = vmul.f32 %v386, %v399
      %v428 = vmul.f32 %v389, %v399
      %v429 = vmul.f32 %v392, %v399
      %v430 = vmul.f32 %v395, %v399
      %v431 = vmul.f32 %v398, %v399
      %v432 = vsub.f32 %v270, %v400
      %v433 = vsub.f32 %v271, %v401
      %v434 = vsub.f32 %v272, %v402
      %v435 = vsub.f32 %v273, %v403
      %v436 = vsub.f32 %v274, %v404
      %v437 = vsub.f32 %v275, %v405
      %v438 = vsub.f32 %v276, %v406
      %v439 = vsub.f32 %v277, %v407
      %v440 = vsub.f32 %v278, %v408
      %v441 = vsub.f32 %v279, %v409
      %v442 = vsub.f32 %v280, %v410
      %v443 = vsub.f32 %v281, %v411
      %v444 = vsub.f32 %v282, %v412
      %v445 = vsub.f32 %v283, %v413
      %v446 = vsub.f32 %v284, %v414
      %v447 = vsub.f32 %v285, %v415
      %v448 = vsub.f32 %v286, %v416
      %v449 = vsub.f32 %v287, %v417
      %v450 = vsub.f32 %v288, %v418
      %v451 = vsub.f32 %v289, %v419
      %v452 = vsub.f32 %v290, %v420
      %v453 = vsub.f32 %v291, %v421
      %v454 = vsub.f32 %v292, %v422
      %v455 = vsub.f32 %v293, %v423
      %v456 = vsub.f32 %v294, %v424
      %v457 = vsub.f32 %v295, %v425
      %v458 = vsub.f32 %v296, %v426
      %v459 = vsub.f32 %v297, %v427
      %v460 = vsub.f32 %v298, %v428
      %v461 = vsub.f32 %v299, %v429
      %v462 = vsub.f32 %v300, %v430
      %v463 = vsub.f32 %v301, %v431
      %v464 = vmul.f32 %v432, %v432
      %v465 = vmul.f32 %v433, %v433
      %v466 = vmul.f32 %v434, %v434
      %v467 = vmul.f32 %v435, %v435
      %v468 = vmul.f32 %v436, %v436
      %v469 = vmul.f32 %v437, %v437
      %v470 = vmul.f32 %v438, %v438
      %v471 = vmul.f32 %v439, %v439
      %v472 = vmul.f32 %v440, %v440
      %v473 = vmul.f32 %v441, %v441
      %v474 = vmul.f32 %v442, %v442
      %v475 = vmul.f32 %v443, %v443
      %v476 = vmul.f32 %v444, %v444
      %v477 = vmul.f32 %v445, %v445
      %v478 = vmul.f32 %v446, %v446
      %v479 = vmul.f32 %v447, %v447
      %v480 = vmul.f32 %v448, %v448
      %v481 = vmul.f32 %v449, %v449
      %v482 = vmul.f32 %v450, %v450
      %v483 = vmul.f32 %v451, %v451
      %v484 = vmul.f32 %v452, %v452
      %v485 = vmul.f32 %v453, %v453
      %v486 = vmul.f32 %v454, %v454
      %v487 = vmul.f32 %v455, %v455
      %v488 = vmul.f32 %v456, %v456
      %v489 = vmul.f32 %v457, %v457
      %v490 = vmul.f32 %v458, %v458
      %v491 = vmul.f32 %v459, %v459
      %v492 = vmul.f32 %v460, %v460
      %v493 = vmul.f32 %v461, %v461
      %v494 = vmul.f32 %v462, %v462
      %v495 = vmul.f32 %v463, %v463
      %v496 = vsel %vm302, %v464, 0.0
      %497 = vadd.xlane.f32.xlu0 %v496
      %v498 = vpop.xlane.xlu0 %497
      %v499 = vsel %vm302, %v465, 0.0
      %500 = vadd.xlane.f32.xlu0 %v499
      %v501 = vpop.xlane.xlu0 %500
      %v502 = vsel %vm302, %v466, 0.0
      %503 = vadd.xlane.f32.xlu0 %v502
      %v504 = vpop.xlane.xlu0 %503
      %v505 = vsel %vm302, %v467, 0.0
      %506 = vadd.xlane.f32.xlu0 %v505
      %v507 = vpop.xlane.xlu0 %506
      %v508 = vsel %vm302, %v468, 0.0
      %509 = vadd.xlane.f32.xlu0 %v508
      %v510 = vpop.xlane.xlu0 %509
      %v511 = vsel %vm302, %v469, 0.0
      %512 = vadd.xlane.f32.xlu0 %v511
      %v513 = vpop.xlane.xlu0 %512
      %v514 = vsel %vm302, %v470, 0.0
      %515 = vadd.xlane.f32.xlu0 %v514
      %v516 = vpop.xlane.xlu0 %515
      %v517 = vsel %vm302, %v471, 0.0
      %518 = vadd.xlane.f32.xlu0 %v517
      %v519 = vpop.xlane.xlu0 %518
      %v520 = vsel %vm302, %v472, 0.0
      %521 = vadd.xlane.f32.xlu0 %v520
      %v522 = vpop.xlane.xlu0 %521
      %v523 = vsel %vm302, %v473, 0.0
      %524 = vadd.xlane.f32.xlu0 %v523
      %v525 = vpop.xlane.xlu0 %524
      %v526 = vsel %vm302, %v474, 0.0
      %527 = vadd.xlane.f32.xlu0 %v526
      %v528 = vpop.xlane.xlu0 %527
      %v529 = vsel %vm302, %v475, 0.0
      %530 = vadd.xlane.f32.xlu0 %v529
      %v531 = vpop.xlane.xlu0 %530
      %v532 = vsel %vm302, %v476, 0.0
      %533 = vadd.xlane.f32.xlu0 %v532
      %v534 = vpop.xlane.xlu0 %533
      %v535 = vsel %vm302, %v477, 0.0
      %536 = vadd.xlane.f32.xlu0 %v535
      %v537 = vpop.xlane.xlu0 %536
      %v538 = vsel %vm302, %v478, 0.0
      %539 = vadd.xlane.f32.xlu0 %v538
      %v540 = vpop.xlane.xlu0 %539
      %v541 = vsel %vm302, %v479, 0.0
      %542 = vadd.xlane.f32.xlu0 %v541
      %v543 = vpop.xlane.xlu0 %542
      %v544 = vsel %vm302, %v480, 0.0
      %545 = vadd.xlane.f32.xlu0 %v544
      %v546 = vpop.xlane.xlu0 %545
      %v547 = vsel %vm302, %v481, 0.0
      %548 = vadd.xlane.f32.xlu0 %v547
      %v549 = vpop.xlane.xlu0 %548
      %v550 = vsel %vm302, %v482, 0.0
      %551 = vadd.xlane.f32.xlu0 %v550
      %v552 = vpop.xlane.xlu0 %551
      %v553 = vsel %vm302, %v483, 0.0
      %554 = vadd.xlane.f32.xlu0 %v553
      %v555 = vpop.xlane.xlu0 %554
      %v556 = vsel %vm302, %v484, 0.0
      %557 = vadd.xlane.f32.xlu0 %v556
      %v558 = vpop.xlane.xlu0 %557
      %v559 = vsel %vm302, %v485, 0.0
      %560 = vadd.xlane.f32.xlu0 %v559
      %v561 = vpop.xlane.xlu0 %560
      %v562 = vsel %vm302, %v486, 0.0
      %563 = vadd.xlane.f32.xlu0 %v562
      %v564 = vpop.xlane.xlu0 %563
      %v565 = vsel %vm302, %v487, 0.0
      %566 = vadd.xlane.f32.xlu0 %v565
      %v567 = vpop.xlane.xlu0 %566
      %v568 = vsel %vm302, %v488, 0.0
      %569 = vadd.xlane.f32.xlu0 %v568
      %v570 = vpop.xlane.xlu0 %569
      %v571 = vsel %vm302, %v489, 0.0
      %572 = vadd.xlane.f32.xlu0 %v571
      %v573 = vpop.xlane.xlu0 %572
      %v574 = vsel %vm302, %v490, 0.0
      %575 = vadd.xlane.f32.xlu0 %v574
      %v576 = vpop.xlane.xlu0 %575
      %v577 = vsel %vm302, %v491, 0.0
      %578 = vadd.xlane.f32.xlu0 %v577
      %v579 = vpop.xlane.xlu0 %578
      %v580 = vsel %vm302, %v492, 0.0
      %581 = vadd.xlane.f32.xlu0 %v580
      %v582 = vpop.xlane.xlu0 %581
      %v583 = vsel %vm302, %v493, 0.0
      %584 = vadd.xlane.f32.xlu0 %v583
      %v585 = vpop.xlane.xlu0 %584
      %v586 = vsel %vm302, %v494, 0.0
      %587 = vadd.xlane.f32.xlu0 %v586
      %v588 = vpop.xlane.xlu0 %587
      %v589 = vsel %vm302, %v495, 0.0
      %590 = vadd.xlane.f32.xlu0 %v589
      %v591 = vpop.xlane.xlu0 %590
      %v592 = vmul.f32 %v498, %v399
      %v593 = vmul.f32 %v501, %v399
      %v594 = vmul.f32 %v504, %v399
      %v595 = vmul.f32 %v507, %v399
      %v596 = vmul.f32 %v510, %v399
      %v597 = vmul.f32 %v513, %v399
      %v598 = vmul.f32 %v516, %v399
      %v599 = vmul.f32 %v519, %v399
      %v600 = vmul.f32 %v522, %v399
      %v601 = vmul.f32 %v525, %v399
      %v602 = vmul.f32 %v528, %v399
      %v603 = vmul.f32 %v531, %v399
      %v604 = vmul.f32 %v534, %v399
      %v605 = vmul.f32 %v537, %v399
      %v606 = vmul.f32 %v540, %v399
      %v607 = vmul.f32 %v543, %v399
      %v608 = vmul.f32 %v546, %v399
      %v609 = vmul.f32 %v549, %v399
      %v610 = vmul.f32 %v552, %v399
      %v611 = vmul.f32 %v555, %v399
      %v612 = vmul.f32 %v558, %v399
      %v613 = vmul.f32 %v561, %v399
      %v614 = vmul.f32 %v564, %v399
      %v615 = vmul.f32 %v567, %v399
      %v616 = vmul.f32 %v570, %v399
      %v617 = vmul.f32 %v573, %v399
      %v618 = vmul.f32 %v576, %v399
      %v619 = vmul.f32 %v579, %v399
      %v620 = vmul.f32 %v582, %v399
      %v621 = vmul.f32 %v585, %v399
      %v622 = vmul.f32 %v588, %v399
      %v623 = vmul.f32 %v591, %v399
      %v624 = vadd.f32 %v592, 1e-05
      %v625 = vadd.f32 %v593, 1e-05
      %v626 = vadd.f32 %v594, 1e-05
      %v627 = vadd.f32 %v595, 1e-05
      %v628 = vadd.f32 %v596, 1e-05
      %v629 = vadd.f32 %v597, 1e-05
      %v630 = vadd.f32 %v598, 1e-05
      %v631 = vadd.f32 %v599, 1e-05
      %v632 = vadd.f32 %v600, 1e-05
      %v633 = vadd.f32 %v601, 1e-05
      %v634 = vadd.f32 %v602, 1e-05
      %v635 = vadd.f32 %v603, 1e-05
      %v636 = vadd.f32 %v604, 1e-05
      %v637 = vadd.f32 %v605, 1e-05
      %v638 = vadd.f32 %v606, 1e-05
      %v639 = vadd.f32 %v607, 1e-05
      %v640 = vadd.f32 %v608, 1e-05
      %v641 = vadd.f32 %v609, 1e-05
      %v642 = vadd.f32 %v610, 1e-05
      %v643 = vadd.f32 %v611, 1e-05
      %v644 = vadd.f32 %v612, 1e-05
      %v645 = vadd.f32 %v613, 1e-05
      %v646 = vadd.f32 %v614, 1e-05
      %v647 = vadd.f32 %v615, 1e-05
      %v648 = vadd.f32 %v616, 1e-05
      %v649 = vadd.f32 %v617, 1e-05
      %v650 = vadd.f32 %v618, 1e-05
      %v651 = vadd.f32 %v619, 1e-05
      %v652 = vadd.f32 %v620, 1e-05
      %v653 = vadd.f32 %v621, 1e-05
      %v654 = vadd.f32 %v622, 1e-05
      %v655 = vadd.f32 %v623, 1e-05
      %v656 = vrsqrt.pop %v624
      %v657 = vrsqrt.pop %v625
      %v658 = vrsqrt.pop %v626
      %v659 = vrsqrt.pop %v627
      %v660 = vrsqrt.pop %v628
      %v661 = vrsqrt.pop %v629
      %v662 = vrsqrt.pop %v630
      %v663 = vrsqrt.pop %v631
      %v664 = vrsqrt.pop %v632
      %v665 = vrsqrt.pop %v633
      %v666 = vrsqrt.pop %v634
      %v667 = vrsqrt.pop %v635
      %v668 = vrsqrt.pop %v636
      %v669 = vrsqrt.pop %v637
      %v670 = vrsqrt.pop %v638
      %v671 = vrsqrt.pop %v639
      %v672 = vrsqrt.pop %v640
      %v673 = vrsqrt.pop %v641
      %v674 = vrsqrt.pop %v642
      %v675 = vrsqrt.pop %v643
      %v676 = vrsqrt.pop %v644
      %v677 = vrsqrt.pop %v645
      %v678 = vrsqrt.pop %v646
      %v679 = vrsqrt.pop %v647
      %v680 = vrsqrt.pop %v648
      %v681 = vrsqrt.pop %v649
      %v682 = vrsqrt.pop %v650
      %v683 = vrsqrt.pop %v651
      %v684 = vrsqrt.pop %v652
      %v685 = vrsqrt.pop %v653
      %v686 = vrsqrt.pop %v654
      %v687 = vrsqrt.pop %v655
      %v688 = vmul.f32 %v432, %v656
      %v689 = vmul.f32 %v433, %v657
      %v690 = vmul.f32 %v434, %v658
      %v691 = vmul.f32 %v435, %v659
      %v692 = vmul.f32 %v436, %v660
      %v693 = vmul.f32 %v437, %v661
      %v694 = vmul.f32 %v438, %v662
      %v695 = vmul.f32 %v439, %v663
      %v696 = vmul.f32 %v440, %v664
      %v697 = vmul.f32 %v441, %v665
      %v698 = vmul.f32 %v442, %v666
      %v699 = vmul.f32 %v443, %v667
      %v700 = vmul.f32 %v444, %v668
      %v701 = vmul.f32 %v445, %v669
      %v702 = vmul.f32 %v446, %v670
      %v703 = vmul.f32 %v447, %v671
      %v704 = vmul.f32 %v448, %v672
      %v705 = vmul.f32 %v449, %v673
      %v706 = vmul.f32 %v450, %v674
      %v707 = vmul.f32 %v451, %v675
      %v708 = vmul.f32 %v452, %v676
      %v709 = vmul.f32 %v453, %v677
      %v710 = vmul.f32 %v454, %v678
      %v711 = vmul.f32 %v455, %v679
      %v712 = vmul.f32 %v456, %v680
      %v713 = vmul.f32 %v457, %v681
      %v714 = vmul.f32 %v458, %v682
      %v715 = vmul.f32 %v459, %v683
      %v716 = vmul.f32 %v460, %v684
      %v717 = vmul.f32 %v461, %v685
      %v718 = vmul.f32 %v462, %v686
      %v719 = vmul.f32 %v463, %v687
      %v720 = vld [vmem:[%s1] sm:$0x1]
      %v722 = vlaneseq
      %v723 = vshrl.u32 %v722, 7
      %v724 = vsub.s32 0, %v723
      %v725 = vrot.slane %v720, %v724
      %v727 = vmul.f32 %v688, %v725
      %v728 = vmul.f32 %v689, %v725
      %v729 = vmul.f32 %v690, %v725
      %v730 = vmul.f32 %v691, %v725
      %v731 = vmul.f32 %v692, %v725
      %v732 = vmul.f32 %v693, %v725
      %v733 = vmul.f32 %v694, %v725
      %v734 = vmul.f32 %v695, %v725
      %v735 = vmul.f32 %v696, %v725
      %v736 = vmul.f32 %v697, %v725
      %v737 = vmul.f32 %v698, %v725
      %v738 = vmul.f32 %v699, %v725
      %v739 = vmul.f32 %v700, %v725
      %v740 = vmul.f32 %v701, %v725
      %v741 = vmul.f32 %v702, %v725
      %v742 = vmul.f32 %v703, %v725
      %v743 = vmul.f32 %v704, %v725
      %v744 = vmul.f32 %v705, %v725
      %v745 = vmul.f32 %v706, %v725
      %v746 = vmul.f32 %v707, %v725
      %v747 = vmul.f32 %v708, %v725
      %v748 = vmul.f32 %v709, %v725
      %v749 = vmul.f32 %v710, %v725
      %v750 = vmul.f32 %v711, %v725
      %v751 = vmul.f32 %v712, %v725
      %v752 = vmul.f32 %v713, %v725
      %v753 = vmul.f32 %v714, %v725
      %v754 = vmul.f32 %v715, %v725
      %v755 = vmul.f32 %v716, %v725
      %v756 = vmul.f32 %v717, %v725
      %v757 = vmul.f32 %v718, %v725
      %v758 = vmul.f32 %v719, %v725
      %v759 = vld [vmem:[%s2] sm:$0x1]
      %v761 = vlaneseq
      %v762 = vshrl.u32 %v761, 7
      %v763 = vsub.s32 0, %v762
      %v764 = vrot.slane %v759, %v763
      %v766 = vadd.f32 %v727, %v764
      %v767 = vadd.f32 %v728, %v764
      %v768 = vadd.f32 %v729, %v764
      %v769 = vadd.f32 %v730, %v764
      %v770 = vadd.f32 %v731, %v764
      %v771 = vadd.f32 %v732, %v764
      %v772 = vadd.f32 %v733, %v764
      %v773 = vadd.f32 %v734, %v764
      %v774 = vadd.f32 %v735, %v764
      %v775 = vadd.f32 %v736, %v764
      %v776 = vadd.f32 %v737, %v764
      %v777 = vadd.f32 %v738, %v764
      %v778 = vadd.f32 %v739, %v764
      %v779 = vadd.f32 %v740, %v764
      %v780 = vadd.f32 %v741, %v764
      %v781 = vadd.f32 %v742, %v764
      %v782 = vadd.f32 %v743, %v764
      %v783 = vadd.f32 %v744, %v764
      %v784 = vadd.f32 %v745, %v764
      %v785 = vadd.f32 %v746, %v764
      %v786 = vadd.f32 %v747, %v764
      %v787 = vadd.f32 %v748, %v764
      %v788 = vadd.f32 %v749, %v764
      %v789 = vadd.f32 %v750, %v764
      %v790 = vadd.f32 %v751, %v764
      %v791 = vadd.f32 %v752, %v764
      %v792 = vadd.f32 %v753, %v764
      %v793 = vadd.f32 %v754, %v764
      %v794 = vadd.f32 %v755, %v764
      %v795 = vadd.f32 %v756, %v764
      %v796 = vadd.f32 %v757, %v764
      %v797 = vadd.f32 %v758, %v764
      %v798 = vpack.c.bf16 %v767, %v766
      %v799 = vpack.c.bf16 %v769, %v768
      %v800 = vpack.c.bf16 %v771, %v770
      %v801 = vpack.c.bf16 %v773, %v772
      %v802 = vpack.c.bf16 %v775, %v774
      %v803 = vpack.c.bf16 %v777, %v776
      %v804 = vpack.c.bf16 %v779, %v778
      %v805 = vpack.c.bf16 %v781, %v780
      %v806 = vpack.c.bf16 %v783, %v782
      %v807 = vpack.c.bf16 %v785, %v784
      %v808 = vpack.c.bf16 %v787, %v786
      %v809 = vpack.c.bf16 %v789, %v788
      %v810 = vpack.c.bf16 %v791, %v790
      %v811 = vpack.c.bf16 %v793, %v792
      %v812 = vpack.c.bf16 %v795, %v794
      %v813 = vpack.c.bf16 %v797, %v796
      %v814 = vld [vmem:[%s3] sm:$0x3]
      %v815 = vld [vmem:[%s4] sm:$0x1]
      %v817 = vlaneseq
      %v818 = vshrl.u32 %v817, 7
      %v819 = vsub.s32 0, %v818
      %v820 = vrot.slane %v815, %v819
      %v823 = vsel %vm302, %v798, 0
      %v826 = vsel %vm302, %v799, 0
      %v829 = vsel %vm302, %v800, 0
      %v832 = vsel %vm302, %v801, 0
      %v835 = vsel %vm302, %v802, 0
      %v838 = vsel %vm302, %v803, 0
      %v841 = vsel %vm302, %v804, 0
      %v844 = vsel %vm302, %v805, 0
      %v847 = vsel %vm302, %v806, 0
      %v850 = vsel %vm302, %v807, 0
      %v853 = vsel %vm302, %v808, 0
      %v856 = vsel %vm302, %v809, 0
      %v859 = vsel %vm302, %v810, 0
      %v862 = vsel %vm302, %v811, 0
      %v865 = vsel %vm302, %v812, 0
      %v868 = vsel %vm302, %v813, 0
      %vm870 = vcmask 1041408
      %v872 = vsel %vm870, %v814, 0
      %874 = vmatprep.subr.bf16.mxu0 0
      %875 = vmatpush1.bf16.msra.mxu0 %v872
      %876 = vmatprep.subr.bf16.mxu0 0
      %877 = vmatpush1.bf16.msra.mxu0 0
      %878 = vmatprep.subr.bf16.mxu0 0
      %879 = vmatpush1.bf16.msra.mxu0 0
      %880 = vmatprep.subr.bf16.mxu0 0
      %881 = vmatpush1.bf16.msra.mxu0 0
      %882 = vmatprep.subr.bf16.mxu0 0
      %883 = vmatpush1.bf16.msra.mxu0 0
      %884 = vmatprep.subr.bf16.mxu0 0
      %885 = vmatpush1.bf16.msra.mxu0 0
      %886 = vmatprep.subr.bf16.mxu0 0
      %887 = vmatpush1.bf16.msra.mxu0 0
      %888 = vmatprep.subr.bf16.mxu0 0
      %889 = vmatpush1.bf16.msra.mxu0 0
      %890 = vmatprep.subr.bf16.mxu0 0
      %891 = vmatpush1.bf16.msra.mxu0 0
      %892 = vmatprep.subr.bf16.mxu0 0
      %893 = vmatpush1.bf16.msra.mxu0 0
      %894 = vmatprep.subr.bf16.mxu0 0
      %895 = vmatpush1.bf16.msra.mxu0 0
      %896 = vmatprep.subr.bf16.mxu0 0
      %897 = vmatpush1.bf16.msra.mxu0 0
      %898 = vmatprep.subr.bf16.mxu0 0
      %899 = vmatpush1.bf16.msra.mxu0 0
      %900 = vmatprep.subr.bf16.mxu0 0
      %901 = vmatpush1.bf16.msra.mxu0 0
      %902 = vmatprep.subr.bf16.mxu0 0
      %903 = vmatpush1.bf16.msra.mxu0 0
      %904 = vmatprep.subr.bf16.mxu0 0
      %905 = vmatpush1.bf16.msra.mxu0 0
      %906 = vmatprep.mubr.bf16.mxu0 0
      %907 = vmatmul.mubr.bf16.gmra.mrb[0].mxu0 %v823
      %v908 = vpop.f32.mrb[0].mxu0
      %v909 = vadd.f32 %v820, %v908
      %v910 = vpop.f32.mrb[0].mxu0
      %v911 = vpop.f32.mrb[0].mxu0
      %v912 = vadd.f32 %v820, %v911
      %v913 = vpop.f32.mrb[0].mxu0
      %914 = vmatprep.mubr.bf16.mxu0 0
      %915 = vmatmul.mubr.bf16.gmra.mrb[0].mxu0 %v826
      %v916 = vpop.f32.mrb[0].mxu0
      %v917 = vadd.f32 %v820, %v916
      %v918 = vpop.f32.mrb[0].mxu0
      %v919 = vpop.f32.mrb[0].mxu0
      %v920 = vadd.f32 %v820, %v919
      %v921 = vpop.f32.mrb[0].mxu0
      %922 = vmatprep.mubr.bf16.mxu0 0
      %923 = vmatmul.mubr.bf16.gmra.mrb[0].mxu0 %v829
      %v924 = vpop.f32.mrb[0].mxu0
      %v925 = vadd.f32 %v820, %v924
      %v926 = vpop.f32.mrb[0].mxu0
      %v927 = vpop.f32.mrb[0].mxu0
      %v928 = vadd.f32 %v820, %v927
      %v929 = vpop.f32.mrb[0].mxu0
      %930 = vmatprep.mubr.bf16.mxu0 0
      %931 = vmatmul.mubr.bf16.gmra.mrb[0].mxu0 %v832
      %v932 = vpop.f32.mrb[0].mxu0
      %v933 = vadd.f32 %v820, %v932
      %v934 = vpop.f32.mrb[0].mxu0
      %v935 = vpop.f32.mrb[0].mxu0
      %v936 = vadd.f32 %v820, %v935
      %v937 = vpop.f32.mrb[0].mxu0
      %938 = vmatprep.mubr.bf16.mxu0 0
      %939 = vmatmul.mubr.bf16.gmra.mrb[0].mxu0 %v835
      %v940 = vpop.f32.mrb[0].mxu0
      %v941 = vadd.f32 %v820, %v940
      %v942 = vpop.f32.mrb[0].mxu0
      %v943 = vpop.f32.mrb[0].mxu0
      %v944 = vadd.f32 %v820, %v943
      %v945 = vpop.f32.mrb[0].mxu0
      %946 = vmatprep.mubr.bf16.mxu0 0
      %947 = vmatmul.mubr.bf16.gmra.mrb[0].mxu0 %v838
      %v948 = vpop.f32.mrb[0].mxu0
      %v949 = vadd.f32 %v820, %v948
      %v950 = vpop.f32.mrb[0].mxu0
      %v951 = vpop.f32.mrb[0].mxu0
      %v952 = vadd.f32 %v820, %v951
      %v953 = vpop.f32.mrb[0].mxu0
      %954 = vmatprep.mubr.bf16.mxu0 0
      %955 = vmatmul.mubr.bf16.gmra.mrb[0].mxu0 %v841
      %v956 = vpop.f32.mrb[0].mxu0
      %v957 = vadd.f32 %v820, %v956
      %v958 = vpop.f32.mrb[0].mxu0
      %v959 = vpop.f32.mrb[0].mxu0
      %v960 = vadd.f32 %v820, %v959
      %v961 = vpop.f32.mrb[0].mxu0
      %962 = vmatprep.mubr.bf16.mxu0 0
      %963 = vmatmul.mubr.bf16.gmra.mrb[0].mxu0 %v844
      %v964 = vpop.f32.mrb[0].mxu0
      %v965 = vadd.f32 %v820, %v964
      %v966 = vpop.f32.mrb[0].mxu0
      %v967 = vpop.f32.mrb[0].mxu0
      %v968 = vadd.f32 %v820, %v967
      %v969 = vpop.f32.mrb[0].mxu0
      %970 = vmatprep.mubr.bf16.mxu0 0
      %971 = vmatmul.mubr.bf16.gmra.mrb[0].mxu0 %v847
      %v972 = vpop.f32.mrb[0].mxu0
      %v973 = vadd.f32 %v820, %v972
      %v974 = vpop.f32.mrb[0].mxu0
      %v975 = vpop.f32.mrb[0].mxu0
      %v976 = vadd.f32 %v820, %v975
      %v977 = vpop.f32.mrb[0].mxu0
      %978 = vmatprep.mubr.bf16.mxu0 0
      %979 = vmatmul.mubr.bf16.gmra.mrb[0].mxu0 %v850
      %v980 = vpop.f32.mrb[0].mxu0
      %v981 = vadd.f32 %v820, %v980
      %v982 = vpop.f32.mrb[0].mxu0
      %v983 = vpop.f32.mrb[0].mxu0
      %v984 = vadd.f32 %v820, %v983
      %v985 = vpop.f32.mrb[0].mxu0
      %986 = vmatprep.mubr.bf16.mxu0 0
      %987 = vmatmul.mubr.bf16.gmra.mrb[0].mxu0 %v853
      %v988 = vpop.f32.mrb[0].mxu0
      %v989 = vadd.f32 %v820, %v988
      %v990 = vpop.f32.mrb[0].mxu0
      %v991 = vpop.f32.mrb[0].mxu0
      %v992 = vadd.f32 %v820, %v991
      %v993 = vpop.f32.mrb[0].mxu0
      %994 = vmatprep.mubr.bf16.mxu0 0
      %995 = vmatmul.mubr.bf16.gmra.mrb[0].mxu0 %v856
      %v996 = vpop.f32.mrb[0].mxu0
      %v997 = vadd.f32 %v820, %v996
      %v998 = vpop.f32.mrb[0].mxu0
      %v999 = vpop.f32.mrb[0].mxu0
      %v1000 = vadd.f32 %v820, %v999
      %v1001 = vpop.f32.mrb[0].mxu0
      %1002 = vmatprep.mubr.bf16.mxu0 0
      %1003 = vmatmul.mubr.bf16.gmra.mrb[0].mxu0 %v859
      %v1004 = vpop.f32.mrb[0].mxu0
      %v1005 = vadd.f32 %v820, %v1004
      %v1006 = vpop.f32.mrb[0].mxu0
      %v1007 = vpop.f32.mrb[0].mxu0
      %v1008 = vadd.f32 %v820, %v1007
      %v1009 = vpop.f32.mrb[0].mxu0
      %1010 = vmatprep.mubr.bf16.mxu0 0
      %1011 = vmatmul.mubr.bf16.gmra.mrb[0].mxu0 %v862
      %v1012 = vpop.f32.mrb[0].mxu0
      %v1013 = vadd.f32 %v820, %v1012
      %v1014 = vpop.f32.mrb[0].mxu0
      %v1015 = vpop.f32.mrb[0].mxu0
      %v1016 = vadd.f32 %v820, %v1015
      %v1017 = vpop.f32.mrb[0].mxu0
      %1018 = vmatprep.mubr.bf16.mxu0 0
      %1019 = vmatmul.mubr.bf16.gmra.mrb[0].mxu0 %v865
      %v1020 = vpop.f32.mrb[0].mxu0
      %v1021 = vadd.f32 %v820, %v1020
      %v1022 = vpop.f32.mrb[0].mxu0
      %v1023 = vpop.f32.mrb[0].mxu0
      %v1024 = vadd.f32 %v820, %v1023
      %v1025 = vpop.f32.mrb[0].mxu0
      %1026 = vmatprep.mubr.bf16.mxu0 0
      %1027 = vmatmul.mubr.bf16.gmra.mrb[0].mxu0 %v868
      %v1028 = vpop.f32.mrb[0].mxu0
      %v1029 = vadd.f32 %v820, %v1028
      %v1030 = vpop.f32.mrb[0].mxu0
      %v1031 = vpop.f32.mrb[0].mxu0
      %v1032 = vadd.f32 %v820, %v1031
      %v1033 = vpop.f32.mrb[0].mxu0
      %1034 = vdwg.mxu0
      %v1035 = vpack.c.bf16 %v912, %v909
      %v1036 = vpack.c.bf16 %v920, %v917
      %v1037 = vpack.c.bf16 %v928, %v925
      %v1038 = vpack.c.bf16 %v936, %v933
      %v1039 = vpack.c.bf16 %v944, %v941
      %v1040 = vpack.c.bf16 %v952, %v949
      %v1041 = vpack.c.bf16 %v960, %v957
      %v1042 = vpack.c.bf16 %v968, %v965
      %v1043 = vpack.c.bf16 %v976, %v973
      %v1044 = vpack.c.bf16 %v984, %v981
      %v1045 = vpack.c.bf16 %v992, %v989
      %v1046 = vpack.c.bf16 %v1000, %v997
      %v1047 = vpack.c.bf16 %v1008, %v1005
      %v1048 = vpack.c.bf16 %v1016, %v1013
      %v1049 = vpack.c.bf16 %v1024, %v1021
      %v1050 = vpack.c.bf16 %v1032, %v1029
      %v1067 = vunpack.c.l.b16 %v1035
      %v1068 = vunpack.c.h.b16 %v1035
      %v1069 = vunpack.c.l.b16 %v1036
      %v1070 = vunpack.c.h.b16 %v1036
      %v1071 = vunpack.c.l.b16 %v1037
      %v1072 = vunpack.c.h.b16 %v1037
      %v1073 = vunpack.c.l.b16 %v1038
      %v1074 = vunpack.c.h.b16 %v1038
      %v1075 = vunpack.c.l.b16 %v1039
      %v1076 = vunpack.c.h.b16 %v1039
      %v1077 = vunpack.c.l.b16 %v1040
      %v1078 = vunpack.c.h.b16 %v1040
      %v1079 = vunpack.c.l.b16 %v1041
      %v1080 = vunpack.c.h.b16 %v1041
      %v1081 = vunpack.c.l.b16 %v1042
      %v1082 = vunpack.c.h.b16 %v1042
      %v1083 = vunpack.c.l.b16 %v1043
      %v1084 = vunpack.c.h.b16 %v1043
      %v1085 = vunpack.c.l.b16 %v1044
      %v1086 = vunpack.c.h.b16 %v1044
      %v1087 = vunpack.c.l.b16 %v1045
      %v1088 = vunpack.c.h.b16 %v1045
      %v1089 = vunpack.c.l.b16 %v1046
      %v1090 = vunpack.c.h.b16 %v1046
      %v1091 = vunpack.c.l.b16 %v1047
      %v1092 = vunpack.c.h.b16 %v1047
      %v1093 = vunpack.c.l.b16 %v1048
      %v1094 = vunpack.c.h.b16 %v1048
      %v1095 = vunpack.c.l.b16 %v1049
      %v1096 = vunpack.c.h.b16 %v1049
      %v1097 = vunpack.c.l.b16 %v1050
      %v1098 = vunpack.c.h.b16 %v1050
      %v1099 = vpack.c.b16 %v1067, %v1067
      %v1100 = vpack.c.b16 %v1068, %v1068
      %v1101 = vpack.c.b16 %v1069, %v1069
      %v1102 = vpack.c.b16 %v1070, %v1070
      %v1103 = vpack.c.b16 %v1071, %v1071
      %v1104 = vpack.c.b16 %v1072, %v1072
      %v1105 = vpack.c.b16 %v1073, %v1073
      %v1106 = vpack.c.b16 %v1074, %v1074
      %v1107 = vpack.c.b16 %v1075, %v1075
      %v1108 = vpack.c.b16 %v1076, %v1076
      %v1109 = vpack.c.b16 %v1077, %v1077
      %v1110 = vpack.c.b16 %v1078, %v1078
      %v1111 = vpack.c.b16 %v1079, %v1079
      %v1112 = vpack.c.b16 %v1080, %v1080
      %v1113 = vpack.c.b16 %v1081, %v1081
      %v1114 = vpack.c.b16 %v1082, %v1082
      %v1115 = vpack.c.b16 %v1083, %v1083
      %v1116 = vpack.c.b16 %v1084, %v1084
      %v1117 = vpack.c.b16 %v1085, %v1085
      %v1118 = vpack.c.b16 %v1086, %v1086
      %v1119 = vpack.c.b16 %v1087, %v1087
      %v1120 = vpack.c.b16 %v1088, %v1088
      %v1121 = vpack.c.b16 %v1089, %v1089
      %v1122 = vpack.c.b16 %v1090, %v1090
      %v1123 = vpack.c.b16 %v1091, %v1091
      %v1124 = vpack.c.b16 %v1092, %v1092
      %v1125 = vpack.c.b16 %v1093, %v1093
      %v1126 = vpack.c.b16 %v1094, %v1094
      %v1127 = vpack.c.b16 %v1095, %v1095
      %v1128 = vpack.c.b16 %v1096, %v1096
      %v1129 = vpack.c.b16 %v1097, %v1097
      %v1130 = vpack.c.b16 %v1098, %v1098
      %vm1163 = vcmask 93184
      %1164 = vst.msk [vmem:[%s267] sm:$0xf] %vm1163, %v1099
      %1165 = vst.msk [vmem:[%s267 + $0x4] sm:$0xf] %vm1163, %v1100
      %1166 = vst.msk [vmem:[%s267 + $0x8] sm:$0xf] %vm1163, %v1101
      %1167 = vst.msk [vmem:[%s267 + $0xc] sm:$0xf] %vm1163, %v1102
      %1168 = vst.msk [vmem:[%s267 + $0x10] sm:$0xf] %vm1163, %v1103
      %1169 = vst.msk [vmem:[%s267 + $0x14] sm:$0xf] %vm1163, %v1104
      %1170 = vst.msk [vmem:[%s267 + $0x18] sm:$0xf] %vm1163, %v1105
      %1171 = vst.msk [vmem:[%s267 + $0x1c] sm:$0xf] %vm1163, %v1106
      %1172 = vst.msk [vmem:[%s267 + $0x20] sm:$0xf] %vm1163, %v1107
      %1173 = vst.msk [vmem:[%s267 + $0x24] sm:$0xf] %vm1163, %v1108
      %1174 = vst.msk [vmem:[%s267 + $0x28] sm:$0xf] %vm1163, %v1109
      %1175 = vst.msk [vmem:[%s267 + $0x2c] sm:$0xf] %vm1163, %v1110
      %1176 = vst.msk [vmem:[%s267 + $0x30] sm:$0xf] %vm1163, %v1111
      %1177 = vst.msk [vmem:[%s267 + $0x34] sm:$0xf] %vm1163, %v1112
      %1178 = vst.msk [vmem:[%s267 + $0x38] sm:$0xf] %vm1163, %v1113
      %1179 = vst.msk [vmem:[%s267 + $0x3c] sm:$0xf] %vm1163, %v1114
      %1180 = vst.msk [vmem:[%s267 + $0x40] sm:$0xf] %vm1163, %v1115
      %1181 = vst.msk [vmem:[%s267 + $0x44] sm:$0xf] %vm1163, %v1116
      %1182 = vst.msk [vmem:[%s267 + $0x48] sm:$0xf] %vm1163, %v1117
      %1183 = vst.msk [vmem:[%s267 + $0x4c] sm:$0xf] %vm1163, %v1118
      %1184 = vst.msk [vmem:[%s267 + $0x50] sm:$0xf] %vm1163, %v1119
      %1185 = vst.msk [vmem:[%s267 + $0x54] sm:$0xf] %vm1163, %v1120
      %1186 = vst.msk [vmem:[%s267 + $0x58] sm:$0xf] %vm1163, %v1121
      %1187 = vst.msk [vmem:[%s267 + $0x5c] sm:$0xf] %vm1163, %v1122
      %1188 = vst.msk [vmem:[%s267 + $0x60] sm:$0xf] %vm1163, %v1123
      %1189 = vst.msk [vmem:[%s267 + $0x64] sm:$0xf] %vm1163, %v1124
      %1190 = vst.msk [vmem:[%s267 + $0x68] sm:$0xf] %vm1163, %v1125
      %1191 = vst.msk [vmem:[%s267 + $0x6c] sm:$0xf] %vm1163, %v1126
      %1192 = vst.msk [vmem:[%s267 + $0x70] sm:$0xf] %vm1163, %v1127
      %1193 = vst.msk [vmem:[%s267 + $0x74] sm:$0xf] %vm1163, %v1128
      %1194 = vst.msk [vmem:[%s267 + $0x78] sm:$0xf] %vm1163, %v1129
      %1195 = vst.msk [vmem:[%s267 + $0x7c] sm:$0xf] %vm1163, %v1130
      %s1196 = smul.u32 16, %s21
      %p1197 = scmp.lt.s32.totalorder %s20, 1
      %s1198 = scalar_select %p1197, %s20, 1
      %p1199 = scmp.lt.s32.totalorder %s1196, 15
      %s1200 = scalar_select %p1199, %s1196, 15
      %s1201 = smul.addr %s1200, 2
      %s1202 = smul.addr %s1198, 32
      %s1203 = sadd.s32 %s1201, %s1202
      %s1204 = smul.addr %s1203, 4
      %s1205 = scalar_lea.vmem %s5, %s1204
      // Predicated region
      $region41: #{lsab_forward.2} parent=39 // pred_check
        %p1206 = pneg %p160
      $region42: #{lsab_forward.2} parent=39 // pred_check_branch
        %1208 = sbr.rel (%p1206) target = $region44
      $region43: #{lsab_forward.2} parent=39 // pred_region
        %s1209 = smul.u32 16, %s21
      $region44: #{lsab_forward.2} parent=39 // pred_fallthru
        _
    $region40: #{lsab_forward.2} parent=5 // pred_fallthru
      _
    %p1210 = scmp.le.s32.totalorder 2, %s11
    // Predicated region
    $region45: #{lsab_forward.2} parent=5 // pred_check
      %p1211 = pneg %p1210
    $region46: #{lsab_forward.2} parent=5 // pred_check_branch
      %1213 = sbr.rel (%p1211) target = $region48
    $region47: #{lsab_forward.2} parent=5 // pred_region
      %s1214 = ssub.s32 %s11, 2
      // Predicated region
      $region49: #{lsab_forward.2} parent=47 // pred_check
        %p1215 = pneg %p166
      $region50: #{lsab_forward.2} parent=47 // pred_check_branch
        %1217 = sbr.rel (%p1215) target = $region52
      $region51: #{lsab_forward.2} parent=47 // pred_region
        %s1218 = smul.u32 16, %s23
        %p1219 = scmp.lt.s32.totalorder %s22, 1
        %s1220 = scalar_select %p1219, %s22, 1
        %p1221 = scmp.lt.s32.totalorder %s1218, 15
        %s1222 = scalar_select %p1221, %s1218, 15
        %s1223 = smul.addr %s1222, 2
        %s1224 = smul.addr %s1220, 32
        %s1225 = sadd.s32 %s1223, %s1224
        %s1226 = smul.addr %s1225, 4
        %s1227 = scalar_lea.vmem %s5, %s1226
      $region52: #{lsab_forward.2} parent=47 // pred_fallthru
        _
    $region48: #{lsab_forward.2} parent=5 // pred_fallthru
      _
  $region6: #{lsab_forward.2} parent=0 // loop_footer
    %s15 = sadd.s32 1, %s11
  $region7: #{lsab_forward.2} parent=0 // loop_footer_branch
    %10 = sbr.rel target = $region3
  $region8: #{lsab_forward.2} parent=0 // loop_exit
    _

// kernel: lsab_forward.3
$region0: #{lsab_forward.3}
  #allocation0 [shape = 'u32[]', space=smem, size = 0x4, offset = 0x4, fixed_abs, tag = 'smem constant byte address 0x4 - core index']
  #allocation1 [shape = 'u32[144,128]{1,0:T(1,128)}', space=vmem, size = 0x12000, scoped, tag = 'internal scratch']
  #allocation2 [shape = 'bf16[20,18,12]{2,1,0:T(8,128)(2,1)}', space=vmem, size = 0x1e000, scoped, tag = 'scratch operand']
  #allocation3 [shape = 'f32[18,18,12]{2,1,0:T(8,128)}', space=vmem, size = 0x36000, scoped, tag = 'scratch operand']
  #allocation4 [shape = 'f32[1,1]{1,0:T(1,128)S(6)}', space=smem, size = 0x200, scoped, tag = 'scoped memory for lsab_forward.3']
  %s0 = inlined_call_operand.<no memory space> [shape: f32[1,1], index: 0, kind: input, shape index: {}]
  %s1 = inlined_call_operand.vmem [shape: bf16[2,16,16,12], index: 1, kind: input, shape index: {}, may-alias: {1,2,3,4,5}]
  %s2 = inlined_call_operand.vmem [shape: bf16[2,16,16,12], index: 2, kind: input, shape index: {}, may-alias: {1,2,3,4,5}]
  %s3 = inlined_call_operand.vmem [shape: bf16[2,16,16,12], index: 3, kind: input, shape index: {}, may-alias: {1,2,3,4,5}]
  %s4 = inlined_call_operand.vmem [shape: bf16[2,16,16,12], index: 4, kind: input, shape index: {}, may-alias: {1,2,3,4,5}]
  %s5 = inlined_call_operand.vmem [shape: bf16[2,16,16,12], index: 5, kind: input, shape index: {}, may-alias: {1,2,3,4,5}]
  %s6 = inlined_call_operand.vmem [shape: f32[2,16,16,4], index: 6, kind: input, shape index: {}, may-alias: {6,13}]
  %s7 = inlined_call_operand.vmem [shape: f32[3,3,12], index: 7, kind: input, shape index: {}]
  %s8 = inlined_call_operand.vmem [shape: f32[1,12], index: 8, kind: input, shape index: {}]
  %s9 = inlined_call_operand.vmem [shape: f32[3,3,12], index: 9, kind: input, shape index: {}]
  %s10 = inlined_call_operand.vmem [shape: f32[1,12], index: 10, kind: input, shape index: {}]
  %s11 = inlined_call_operand.vmem [shape: bf16[4,4], index: 11, kind: input, shape index: {}]
  %s12 = inlined_call_operand.vmem [shape: f32[1,4], index: 12, kind: input, shape index: {}]
  %s13 = inlined_call_operand.vmem [shape: f32[2,16,16,4], index: 13, kind: output, shape index: {}, may-alias: {6,13}]
  %s14 = sld [smem:[#allocation0]]
  $region85: #{lsab_forward.3} parent=0
    _
  %s16 = ssub.s32 1, %s14
  %s17 = scalar_select 0, %s16, %s14
  %18 = sst [smem:[#allocation4]] %s0
  loop: start=0, step=1, limit=4
  $region2: #{lsab_forward.3} parent=0 // loop_pre_header
    _
  $region3: #{lsab_forward.3} parent=0 // loop_header
    %s20 = sphi 0, %s24
    %p21 = scmp.ge.s32.totalorder %s20, 4
    %s27 = sphi 0, %s39
    %s28 = sphi 0, %s35
    %s29 = sphi 0, %s27
    %s30 = sphi 0, %s28
    %s31 = sphi 0, %s29
    %s32 = sphi 0, %s30
    %s40 = sphi 0, %s40
    %s42 = sphi 0, %s40
    %s43 = sphi 0, %s42
    %s57 = sphi 0, %s43
    %s65 = sphi 0, %s67
    %s68 = sphi 0, %s65
    %s69 = sphi 0, %s68
    %s85 = sphi 0, %s69
    %s101 = sphi 0, %s103
    %s104 = sphi 0, %s101
    %s105 = sphi 0, %s104
    %s121 = sphi 0, %s105
    %s137 = sphi 0, %s139
    %s140 = sphi 0, %s137
    %s141 = sphi 0, %s140
    %s157 = sphi 0, %s141
    %s173 = sphi 0, %s175
    %s176 = sphi 0, %s173
    %s177 = sphi 0, %s176
    %s193 = sphi 0, %s177
    %s209 = sphi 0, %s211
    %s212 = sphi 0, %s209
    %s213 = sphi 0, %s212
    %s229 = sphi 0, %s213
    %s237 = sphi 0, %s239
    %s240 = sphi 0, %s237
    %s241 = sphi 0, %s240
    %s257 = sphi 0, %s241
    %s261 = sphi 0, %s261
    %s263 = sphi 0, %s261
    %s264 = sphi 0, %s263
    %s278 = sphi 0, %s264
    %s282 = sphi 0, %s282
    %s284 = sphi 0, %s282
    %s285 = sphi 0, %s284
    %s299 = sphi 0, %s285
    %s303 = sphi 0, %s303
    %s305 = sphi 0, %s303
    %s306 = sphi 0, %s305
    %s320 = sphi 0, %s306
    %s324 = sphi 0, %s324
    %s326 = sphi 0, %s324
    %s327 = sphi 0, %s326
    %s341 = sphi 0, %s327
    %s345 = sphi 0, %s345
    %s347 = sphi 0, %s345
    %s348 = sphi 0, %s347
    %s362 = sphi 0, %s348
    %s366 = sphi 0, %s366
    %s368 = sphi 0, %s366
    %s369 = sphi 0, %s368
    %s383 = sphi 0, %s369
    %s391 = sphi 0, %s393
    %s394 = sphi 0, %s391
    %s395 = sphi 0, %s394
    %s411 = sphi 0, %s395
  $region4: #{lsab_forward.3} parent=0 // loop_header_branch
    %23 = sbr.rel (%p21) target = $region8
  $region5: #{lsab_forward.3} parent=0 // loop_body
    %s25 = ssub.s32 %s20, 1
    %s26 = ssub.s32 %s20, 2
    %s33 = sadd.s32 1, %s28
    %p34 = scmp.ge.s32.totalorder %s33, 1
    %s35 = scalar_select %p34, 0, %s33
    %s36 = sadd.s32 1, %s27
    %s37 = scalar_select %p34, %s36, %s27
    %p38 = scmp.ge.s32.totalorder %s37, 2
    %s39 = scalar_select %p38, 0, %s37
    %s41 = sadd.s32 %s40, 1
    %p44 = scmp.eq.s32.totalorder %s20, 1
    %p45 = scmp.ne.s32.totalorder %s40, %s42
    %p46 = scmp.eq.s32.totalorder %s20, 0
    %p47 = por %p45, %p46
    %p48 = scmp.ne.s32.totalorder %s40, %s42
    %p49 = scmp.eq.s32.totalorder %s25, 1
    %p50 = por %p48, %p49
    %p51 = scmp.ne.s32.totalorder %s42, %s43
    %p52 = scmp.eq.s32.totalorder %s25, 0
    %p53 = por %p51, %p52
    %p54 = scmp.ne.s32.totalorder %s42, %s43
    %p55 = scmp.eq.s32.totalorder %s26, 1
    %p56 = por %p54, %p55
    %p58 = scmp.ne.s32.totalorder %s43, %s57
    %p59 = scmp.eq.s32.totalorder %s26, 0
    %p60 = por %p58, %p59
    %s61 = ssub.s32 %s27, %s39
    %s62 = ssub.s32 %s28, %s35
    %s63 = sor.u32 %s61, %s62
    %p64 = scmp.eq.s32.totalorder %s63, 0
    %s66 = sadd.s32 %s65, 1
    %s67 = scalar_select %p64, %s65, %s66
    %p70 = pneg %p64
    %p71 = scmp.eq.s32.totalorder %s20, 1
    %p72 = por %p70, %p71
    %p73 = scmp.ne.s32.totalorder %s65, %s68
    %p74 = scmp.eq.s32.totalorder %s20, 0
    %p75 = por %p73, %p74
    %p76 = scmp.ne.s32.totalorder %s65, %s68
    %p77 = scmp.eq.s32.totalorder %s25, 1
    %p78 = por %p76, %p77
    %p79 = scmp.ne.s32.totalorder %s68, %s69
    %p80 = scmp.eq.s32.totalorder %s25, 0
    %p81 = por %p79, %p80
    %p82 = scmp.ne.s32.totalorder %s68, %s69
    %p83 = scmp.eq.s32.totalorder %s26, 1
    %p84 = por %p82, %p83
    %p86 = scmp.ne.s32.totalorder %s69, %s85
    %p87 = scmp.eq.s32.totalorder %s26, 0
    %p88 = por %p86, %p87
    %s89 = smul.u32 %s28, 16
    %s90 = ssub.s32 %s89, 2
    %p91 = scmp.gt.s32.totalorder %s90, 0
    %s92 = scalar_select %p91, %s90, 0
    %s93 = smul.u32 %s35, 16
    %s94 = ssub.s32 %s93, 2
    %p95 = scmp.gt.s32.totalorder %s94, 0
    %s96 = scalar_select %p95, %s94, 0
    %s97 = ssub.s32 %s27, %s39
    %s98 = ssub.s32 %s92, %s96
    %s99 = sor.u32 %s97, %s98
    %p100 = scmp.eq.s32.totalorder %s99, 0
    %s102 = sadd.s32 %s101, 1
    %s103 = scalar_select %p100, %s101, %s102
    %p106 = pneg %p100
    %p107 = scmp.eq.s32.totalorder %s20, 1
    %p108 = por %p106, %p107
    %p109 = scmp.ne.s32.totalorder %s101, %s104
    %p110 = scmp.eq.s32.totalorder %s20, 0
    %p111 = por %p109, %p110
    %p112 = scmp.ne.s32.totalorder %s101, %s104
    %p113 = scmp.eq.s32.totalorder %s25, 1
    %p114 = por %p112, %p113
    %p115 = scmp.ne.s32.totalorder %s104, %s105
    %p116 = scmp.eq.s32.totalorder %s25, 0
    %p117 = por %p115, %p116
    %p118 = scmp.ne.s32.totalorder %s104, %s105
    %p119 = scmp.eq.s32.totalorder %s26, 1
    %p120 = por %p118, %p119
    %p122 = scmp.ne.s32.totalorder %s105, %s121
    %p123 = scmp.eq.s32.totalorder %s26, 0
    %p124 = por %p122, %p123
    %s125 = smul.u32 %s28, 16
    %s126 = ssub.s32 %s125, 1
    %p127 = scmp.gt.s32.totalorder %s126, 0
    %s128 = scalar_select %p127, %s126, 0
    %s129 = smul.u32 %s35, 16
    %s130 = ssub.s32 %s129, 1
    %p131 = scmp.gt.s32.totalorder %s130, 0
    %s132 = scalar_select %p131, %s130, 0
    %s133 = ssub.s32 %s27, %s39
    %s134 = ssub.s32 %s128, %s132
    %s135 = sor.u32 %s133, %s134
    %p136 = scmp.eq.s32.totalorder %s135, 0
    %s138 = sadd.s32 %s137, 1
    %s139 = scalar_select %p136, %s137, %s138
    %p142 = pneg %p136
    %p143 = scmp.eq.s32.totalorder %s20, 1
    %p144 = por %p142, %p143
    %p145 = scmp.ne.s32.totalorder %s137, %s140
    %p146 = scmp.eq.s32.totalorder %s20, 0
    %p147 = por %p145, %p146
    %p148 = scmp.ne.s32.totalorder %s137, %s140
    %p149 = scmp.eq.s32.totalorder %s25, 1
    %p150 = por %p148, %p149
    %p151 = scmp.ne.s32.totalorder %s140, %s141
    %p152 = scmp.eq.s32.totalorder %s25, 0
    %p153 = por %p151, %p152
    %p154 = scmp.ne.s32.totalorder %s140, %s141
    %p155 = scmp.eq.s32.totalorder %s26, 1
    %p156 = por %p154, %p155
    %p158 = scmp.ne.s32.totalorder %s141, %s157
    %p159 = scmp.eq.s32.totalorder %s26, 0
    %p160 = por %p158, %p159
    %s161 = smul.u32 %s28, 16
    %s162 = sadd.s32 %s161, 16
    %p163 = scmp.lt.s32.totalorder %s162, 15
    %s164 = scalar_select %p163, %s162, 15
    %s165 = smul.u32 %s35, 16
    %s166 = sadd.s32 %s165, 16
    %p167 = scmp.lt.s32.totalorder %s166, 15
    %s168 = scalar_select %p167, %s166, 15
    %s169 = ssub.s32 %s27, %s39
    %s170 = ssub.s32 %s164, %s168
    %s171 = sor.u32 %s169, %s170
    %p172 = scmp.eq.s32.totalorder %s171, 0
    %s174 = sadd.s32 %s173, 1
    %s175 = scalar_select %p172, %s173, %s174
    %p178 = pneg %p172
    %p179 = scmp.eq.s32.totalorder %s20, 1
    %p180 = por %p178, %p179
    %p181 = scmp.ne.s32.totalorder %s173, %s176
    %p182 = scmp.eq.s32.totalorder %s20, 0
    %p183 = por %p181, %p182
    %p184 = scmp.ne.s32.totalorder %s173, %s176
    %p185 = scmp.eq.s32.totalorder %s25, 1
    %p186 = por %p184, %p185
    %p187 = scmp.ne.s32.totalorder %s176, %s177
    %p188 = scmp.eq.s32.totalorder %s25, 0
    %p189 = por %p187, %p188
    %p190 = scmp.ne.s32.totalorder %s176, %s177
    %p191 = scmp.eq.s32.totalorder %s26, 1
    %p192 = por %p190, %p191
    %p194 = scmp.ne.s32.totalorder %s177, %s193
    %p195 = scmp.eq.s32.totalorder %s26, 0
    %p196 = por %p194, %p195
    %s197 = smul.u32 %s28, 16
    %s198 = sadd.s32 %s197, 17
    %p199 = scmp.lt.s32.totalorder %s198, 15
    %s200 = scalar_select %p199, %s198, 15
    %s201 = smul.u32 %s35, 16
    %s202 = sadd.s32 %s201, 17
    %p203 = scmp.lt.s32.totalorder %s202, 15
    %s204 = scalar_select %p203, %s202, 15
    %s205 = ssub.s32 %s27, %s39
    %s206 = ssub.s32 %s200, %s204
    %s207 = sor.u32 %s205, %s206
    %p208 = scmp.eq.s32.totalorder %s207, 0
    %s210 = sadd.s32 %s209, 1
    %s211 = scalar_select %p208, %s209, %s210
    %p214 = pneg %p208
    %p215 = scmp.eq.s32.totalorder %s20, 1
    %p216 = por %p214, %p215
    %p217 = scmp.ne.s32.totalorder %s209, %s212
    %p218 = scmp.eq.s32.totalorder %s20, 0
    %p219 = por %p217, %p218
    %p220 = scmp.ne.s32.totalorder %s209, %s212
    %p221 = scmp.eq.s32.totalorder %s25, 1
    %p222 = por %p220, %p221
    %p223 = scmp.ne.s32.totalorder %s212, %s213
    %p224 = scmp.eq.s32.totalorder %s25, 0
    %p225 = por %p223, %p224
    %p226 = scmp.ne.s32.totalorder %s212, %s213
    %p227 = scmp.eq.s32.totalorder %s26, 1
    %p228 = por %p226, %p227
    %p230 = scmp.ne.s32.totalorder %s213, %s229
    %p231 = scmp.eq.s32.totalorder %s26, 0
    %p232 = por %p230, %p231
    %s233 = ssub.s32 %s27, %s39
    %s234 = ssub.s32 %s28, %s35
    %s235 = sor.u32 %s233, %s234
    %p236 = scmp.eq.s32.totalorder %s235, 0
    %s238 = sadd.s32 %s237, 1
    %s239 = scalar_select %p236, %s237, %s238
    %p242 = pneg %p236
    %p243 = scmp.eq.s32.totalorder %s20, 1
    %p244 = por %p242, %p243
    %p245 = scmp.ne.s32.totalorder %s237, %s240
    %p246 = scmp.eq.s32.totalorder %s20, 0
    %p247 = por %p245, %p246
    %p248 = scmp.ne.s32.totalorder %s237, %s240
    %p249 = scmp.eq.s32.totalorder %s25, 1
    %p250 = por %p248, %p249
    %p251 = scmp.ne.s32.totalorder %s240, %s241
    %p252 = scmp.eq.s32.totalorder %s25, 0
    %p253 = por %p251, %p252
    %p254 = scmp.ne.s32.totalorder %s240, %s241
    %p255 = scmp.eq.s32.totalorder %s26, 1
    %p256 = por %p254, %p255
    %p258 = scmp.ne.s32.totalorder %s241, %s257
    %p259 = scmp.eq.s32.totalorder %s26, 0
    %p260 = por %p258, %p259
    %s262 = sadd.s32 %s261, 1
    %p265 = scmp.eq.s32.totalorder %s20, 1
    %p266 = scmp.ne.s32.totalorder %s261, %s263
    %p267 = scmp.eq.s32.totalorder %s20, 0
    %p268 = por %p266, %p267
    %p269 = scmp.ne.s32.totalorder %s261, %s263
    %p270 = scmp.eq.s32.totalorder %s25, 1
    %p271 = por %p269, %p270
    %p272 = scmp.ne.s32.totalorder %s263, %s264
    %p273 = scmp.eq.s32.totalorder %s25, 0
    %p274 = por %p272, %p273
    %p275 = scmp.ne.s32.totalorder %s263, %s264
    %p276 = scmp.eq.s32.totalorder %s26, 1
    %p277 = por %p275, %p276
    %p279 = scmp.ne.s32.totalorder %s264, %s278
    %p280 = scmp.eq.s32.totalorder %s26, 0
    %p281 = por %p279, %p280
    %s283 = sadd.s32 %s282, 1
    %p286 = scmp.eq.s32.totalorder %s20, 1
    %p287 = scmp.ne.s32.totalorder %s282, %s284
    %p288 = scmp.eq.s32.totalorder %s20, 0
    %p289 = por %p287, %p288
    %p290 = scmp.ne.s32.totalorder %s282, %s284
    %p291 = scmp.eq.s32.totalorder %s25, 1
    %p292 = por %p290, %p291
    %p293 = scmp.ne.s32.totalorder %s284, %s285
    %p294 = scmp.eq.s32.totalorder %s25, 0
    %p295 = por %p293, %p294
    %p296 = scmp.ne.s32.totalorder %s284, %s285
    %p297 = scmp.eq.s32.totalorder %s26, 1
    %p298 = por %p296, %p297
    %p300 = scmp.ne.s32.totalorder %s285, %s299
    %p301 = scmp.eq.s32.totalorder %s26, 0
    %p302 = por %p300, %p301
    %s304 = sadd.s32 %s303, 1
    %p307 = scmp.eq.s32.totalorder %s20, 1
    %p308 = scmp.ne.s32.totalorder %s303, %s305
    %p309 = scmp.eq.s32.totalorder %s20, 0
    %p310 = por %p308, %p309
    %p311 = scmp.ne.s32.totalorder %s303, %s305
    %p312 = scmp.eq.s32.totalorder %s25, 1
    %p313 = por %p311, %p312
    %p314 = scmp.ne.s32.totalorder %s305, %s306
    %p315 = scmp.eq.s32.totalorder %s25, 0
    %p316 = por %p314, %p315
    %p317 = scmp.ne.s32.totalorder %s305, %s306
    %p318 = scmp.eq.s32.totalorder %s26, 1
    %p319 = por %p317, %p318
    %p321 = scmp.ne.s32.totalorder %s306, %s320
    %p322 = scmp.eq.s32.totalorder %s26, 0
    %p323 = por %p321, %p322
    %s325 = sadd.s32 %s324, 1
    %p328 = scmp.eq.s32.totalorder %s20, 1
    %p329 = scmp.ne.s32.totalorder %s324, %s326
    %p330 = scmp.eq.s32.totalorder %s20, 0
    %p331 = por %p329, %p330
    %p332 = scmp.ne.s32.totalorder %s324, %s326
    %p333 = scmp.eq.s32.totalorder %s25, 1
    %p334 = por %p332, %p333
    %p335 = scmp.ne.s32.totalorder %s326, %s327
    %p336 = scmp.eq.s32.totalorder %s25, 0
    %p337 = por %p335, %p336
    %p338 = scmp.ne.s32.totalorder %s326, %s327
    %p339 = scmp.eq.s32.totalorder %s26, 1
    %p340 = por %p338, %p339
    %p342 = scmp.ne.s32.totalorder %s327, %s341
    %p343 = scmp.eq.s32.totalorder %s26, 0
    %p344 = por %p342, %p343
    %s346 = sadd.s32 %s345, 1
    %p349 = scmp.eq.s32.totalorder %s20, 1
    %p350 = scmp.ne.s32.totalorder %s345, %s347
    %p351 = scmp.eq.s32.totalorder %s20, 0
    %p352 = por %p350, %p351
    %p353 = scmp.ne.s32.totalorder %s345, %s347
    %p354 = scmp.eq.s32.totalorder %s25, 1
    %p355 = por %p353, %p354
    %p356 = scmp.ne.s32.totalorder %s347, %s348
    %p357 = scmp.eq.s32.totalorder %s25, 0
    %p358 = por %p356, %p357
    %p359 = scmp.ne.s32.totalorder %s347, %s348
    %p360 = scmp.eq.s32.totalorder %s26, 1
    %p361 = por %p359, %p360
    %p363 = scmp.ne.s32.totalorder %s348, %s362
    %p364 = scmp.eq.s32.totalorder %s26, 0
    %p365 = por %p363, %p364
    %s367 = sadd.s32 %s366, 1
    %p370 = scmp.eq.s32.totalorder %s20, 1
    %p371 = scmp.ne.s32.totalorder %s366, %s368
    %p372 = scmp.eq.s32.totalorder %s20, 0
    %p373 = por %p371, %p372
    %p374 = scmp.ne.s32.totalorder %s366, %s368
    %p375 = scmp.eq.s32.totalorder %s25, 1
    %p376 = por %p374, %p375
    %p377 = scmp.ne.s32.totalorder %s368, %s369
    %p378 = scmp.eq.s32.totalorder %s25, 0
    %p379 = por %p377, %p378
    %p380 = scmp.ne.s32.totalorder %s368, %s369
    %p381 = scmp.eq.s32.totalorder %s26, 1
    %p382 = por %p380, %p381
    %p384 = scmp.ne.s32.totalorder %s369, %s383
    %p385 = scmp.eq.s32.totalorder %s26, 0
    %p386 = por %p384, %p385
    %s387 = ssub.s32 %s27, %s39
    %s388 = ssub.s32 %s28, %s35
    %s389 = sor.u32 %s387, %s388
    %p390 = scmp.eq.s32.totalorder %s389, 0
    %s392 = sadd.s32 %s391, 1
    %s393 = scalar_select %p390, %s391, %s392
    %p396 = pneg %p390
    %p397 = scmp.eq.s32.totalorder %s20, 1
    %p398 = por %p396, %p397
    %p399 = scmp.ne.s32.totalorder %s391, %s394
    %p400 = scmp.eq.s32.totalorder %s20, 0
    %p401 = por %p399, %p400
    %p402 = scmp.ne.s32.totalorder %s391, %s394
    %p403 = scmp.eq.s32.totalorder %s25, 1
    %p404 = por %p402, %p403
    %p405 = scmp.ne.s32.totalorder %s394, %s395
    %p406 = scmp.eq.s32.totalorder %s25, 0
    %p407 = por %p405, %p406
    %p408 = scmp.ne.s32.totalorder %s394, %s395
    %p409 = scmp.eq.s32.totalorder %s26, 1
    %p410 = por %p408, %p409
    %p412 = scmp.ne.s32.totalorder %s395, %s411
    %p413 = scmp.eq.s32.totalorder %s26, 0
    %p414 = por %p412, %p413
    %p415 = scmp.le.s32.totalorder 1, %s20
    %p416 = scmp.lt.s32.totalorder %s20, 3
    %p417 = pnand %p415, %p416
    %p418 = pneg %p417
    // Predicated region
    $region9: #{lsab_forward.3} parent=5 // pred_check
      _
    $region10: #{lsab_forward.3} parent=5 // pred_check_branch
      %420 = sbr.rel (%p417) target = $region12
    $region11: #{lsab_forward.3} parent=5 // pred_region
      %s421 = ssub.s32 %s20, 1
      // Predicated region
      $region13: #{lsab_forward.3} parent=11 // pred_check
        %p422 = pneg %p53
      $region14: #{lsab_forward.3} parent=11 // pred_check_branch
        %424 = sbr.rel (%p422) target = $region16
      $region15: #{lsab_forward.3} parent=11 // pred_region
        _
      $region16: #{lsab_forward.3} parent=11 // pred_fallthru
        _
      // Predicated region
      $region17: #{lsab_forward.3} parent=11 // pred_check
        %p425 = pneg %p274
      $region18: #{lsab_forward.3} parent=11 // pred_check_branch
        %427 = sbr.rel (%p425) target = $region20
      $region19: #{lsab_forward.3} parent=11 // pred_region
        _
      $region20: #{lsab_forward.3} parent=11 // pred_fallthru
        _
      // Predicated region
      $region21: #{lsab_forward.3} parent=11 // pred_check
        %p428 = pneg %p295
      $region22: #{lsab_forward.3} parent=11 // pred_check_branch
        %430 = sbr.rel (%p428) target = $region24
      $region23: #{lsab_forward.3} parent=11 // pred_region
        _
      $region24: #{lsab_forward.3} parent=11 // pred_fallthru
        _
      // Predicated region
      $region25: #{lsab_forward.3} parent=11 // pred_check
        %p431 = pneg %p316
      $region26: #{lsab_forward.3} parent=11 // pred_check_branch
        %433 = sbr.rel (%p431) target = $region28
      $region27: #{lsab_forward.3} parent=11 // pred_region
        _
      $region28: #{lsab_forward.3} parent=11 // pred_fallthru
        _
      // Predicated region
      $region29: #{lsab_forward.3} parent=11 // pred_check
        %p434 = pneg %p337
      $region30: #{lsab_forward.3} parent=11 // pred_check_branch
        %436 = sbr.rel (%p434) target = $region32
      $region31: #{lsab_forward.3} parent=11 // pred_region
        _
      $region32: #{lsab_forward.3} parent=11 // pred_fallthru
        _
      // Predicated region
      $region33: #{lsab_forward.3} parent=11 // pred_check
        %p437 = pneg %p358
      $region34: #{lsab_forward.3} parent=11 // pred_check_branch
        %439 = sbr.rel (%p437) target = $region36
      $region35: #{lsab_forward.3} parent=11 // pred_region
        _
      $region36: #{lsab_forward.3} parent=11 // pred_fallthru
        _
      // Predicated region
      $region37: #{lsab_forward.3} parent=11 // pred_check
        %p440 = pneg %p379
      $region38: #{lsab_forward.3} parent=11 // pred_check_branch
        %442 = sbr.rel (%p440) target = $region40
      $region39: #{lsab_forward.3} parent=11 // pred_region
        _
      $region40: #{lsab_forward.3} parent=11 // pred_fallthru
        _
    $region12: #{lsab_forward.3} parent=5 // pred_fallthru
      _
    %p443 = scmp.lt.s32.totalorder %s20, 2
    // Predicated region
    $region41: #{lsab_forward.3} parent=5 // pred_check
      %p444 = pneg %p443
    $region42: #{lsab_forward.3} parent=5 // pred_check_branch
      %446 = sbr.rel (%p444) target = $region44
    $region43: #{lsab_forward.3} parent=5 // pred_region
      // Predicated region
      $region45: #{lsab_forward.3} parent=43 // pred_check
        %p447 = pneg %p75
      $region46: #{lsab_forward.3} parent=43 // pred_check_branch
        %449 = sbr.rel (%p447) target = $region48
      $region47: #{lsab_forward.3} parent=43 // pred_region
        %s450 = smul.u32 16, %s28
        %p451 = scmp.lt.s32.totalorder %s27, 1
        %s452 = scalar_select %p451, %s27, 1
        %p453 = scmp.lt.s32.totalorder %s450, 15
        %s454 = scalar_select %p453, %s450, 15
        %s455 = smul.addr %s454, 2
        %s456 = smul.addr %s452, 32
        %s457 = sadd.s32 %s455, %s456
        %s458 = smul.addr %s457, 4
        %s459 = scalar_lea.vmem %s1, %s458
        %s460 = smul.u32 16, %s28
      $region48: #{lsab_forward.3} parent=43 // pred_fallthru
        _
      // Predicated region
      $region49: #{lsab_forward.3} parent=43 // pred_check
        %p461 = pneg %p111
      $region50: #{lsab_forward.3} parent=43 // pred_check_branch
        %463 = sbr.rel (%p461) target = $region52
      $region51: #{lsab_forward.3} parent=43 // pred_region
        %s464 = smul.u32 %s28, 16
        %s465 = ssub.s32 %s464, 2
        %p466 = scmp.gt.s32.totalorder %s465, 0
        %s467 = scalar_select %p466, %s465, 0
        %p468 = scmp.lt.s32.totalorder %s27, 1
        %s469 = scalar_select %p468, %s27, 1
        %p470 = scmp.lt.s32.totalorder %s467, 15
        %s471 = scalar_select %p470, %s467, 15
        %s472 = smul.addr %s471, 2
        %s473 = smul.addr %s469, 32
        %s474 = sadd.s32 %s472, %s473
        %s475 = smul.addr %s474, 4
        %s476 = scalar_lea.vmem %s2, %s475
        %s477 = smul.u32 %s28, 16
        %s478 = ssub.s32 %s477, 2
        %p479 = scmp.gt.s32.totalorder %s478, 0
        %s480 = scalar_select %p479, %s478, 0
      $region52: #{lsab_forward.3} parent=43 // pred_fallthru
        _
      // Predicated region
      $region53: #{lsab_forward.3} parent=43 // pred_check
        %p481 = pneg %p147
      $region54: #{lsab_forward.3} parent=43 // pred_check_branch
        %483 = sbr.rel (%p481) target = $region56
      $region55: #{lsab_forward.3} parent=43 // pred_region
        %s484 = smul.u32 %s28, 16
        %s485 = ssub.s32 %s484, 1
        %p486 = scmp.gt.s32.totalorder %s485, 0
        %s487 = scalar_select %p486, %s485, 0
        %p488 = scmp.lt.s32.totalorder %s27, 1
        %s489 = scalar_select %p488, %s27, 1
        %p490 = scmp.lt.s32.totalorder %s487, 15
        %s491 = scalar_select %p490, %s487, 15
        %s492 = smul.addr %s491, 2
        %s493 = smul.addr %s489, 32
        %s494 = sadd.s32 %s492, %s493
        %s495 = smul.addr %s494, 4
        %s496 = scalar_lea.vmem %s3, %s495
        %s497 = smul.u32 %s28, 16
        %s498 = ssub.s32 %s497, 1
        %p499 = scmp.gt.s32.totalorder %s498, 0
        %s500 = scalar_select %p499, %s498, 0
      $region56: #{lsab_forward.3} parent=43 // pred_fallthru
        _
      // Predicated region
      $region57: #{lsab_forward.3} parent=43 // pred_check
        %p501 = pneg %p183
      $region58: #{lsab_forward.3} parent=43 // pred_check_branch
        %503 = sbr.rel (%p501) target = $region60
      $region59: #{lsab_forward.3} parent=43 // pred_region
        %s504 = smul.u32 %s28, 16
        %s505 = sadd.s32 %s504, 16
        %p506 = scmp.lt.s32.totalorder %s505, 15
        %s507 = scalar_select %p506, %s505, 15
        %p508 = scmp.lt.s32.totalorder %s27, 1
        %s509 = scalar_select %p508, %s27, 1
        %p510 = scmp.lt.s32.totalorder %s507, 15
        %s511 = scalar_select %p510, %s507, 15
        %s512 = smul.addr %s511, 2
        %s513 = smul.addr %s509, 32
        %s514 = sadd.s32 %s512, %s513
        %s515 = smul.addr %s514, 4
        %s516 = scalar_lea.vmem %s4, %s515
        %s517 = smul.u32 %s28, 16
        %s518 = sadd.s32 %s517, 16
        %p519 = scmp.lt.s32.totalorder %s518, 15
        %s520 = scalar_select %p519, %s518, 15
      $region60: #{lsab_forward.3} parent=43 // pred_fallthru
        _
      // Predicated region
      $region61: #{lsab_forward.3} parent=43 // pred_check
        %p521 = pneg %p219
      $region62: #{lsab_forward.3} parent=43 // pred_check_branch
        %523 = sbr.rel (%p521) target = $region64
      $region63: #{lsab_forward.3} parent=43 // pred_region
        %s524 = smul.u32 %s28, 16
        %s525 = sadd.s32 %s524, 17
        %p526 = scmp.lt.s32.totalorder %s525, 15
        %s527 = scalar_select %p526, %s525, 15
        %p528 = scmp.lt.s32.totalorder %s27, 1
        %s529 = scalar_select %p528, %s27, 1
        %p530 = scmp.lt.s32.totalorder %s527, 15
        %s531 = scalar_select %p530, %s527, 15
        %s532 = smul.addr %s531, 2
        %s533 = smul.addr %s529, 32
        %s534 = sadd.s32 %s532, %s533
        %s535 = smul.addr %s534, 4
        %s536 = scalar_lea.vmem %s5, %s535
        %s537 = smul.u32 %s28, 16
        %s538 = sadd.s32 %s537, 17
        %p539 = scmp.lt.s32.totalorder %s538, 15
        %s540 = scalar_select %p539, %s538, 15
      $region64: #{lsab_forward.3} parent=43 // pred_fallthru
        _
      // Predicated region
      $region65: #{lsab_forward.3} parent=43 // pred_check
        %p541 = pneg %p247
      $region66: #{lsab_forward.3} parent=43 // pred_check_branch
        %543 = sbr.rel (%p541) target = $region68
      $region67: #{lsab_forward.3} parent=43 // pred_region
        %s544 = smul.u32 16, %s28
        %p545 = scmp.lt.s32.totalorder %s27, 1
        %s546 = scalar_select %p545, %s27, 1
        %p547 = scmp.lt.s32.totalorder %s544, 15
        %s548 = scalar_select %p547, %s544, 15
        %s549 = smul.addr %s548, 2
        %s550 = smul.addr %s546, 32
        %s551 = sadd.s32 %s549, %s550
        %s552 = smul.addr %s551, 8
        %s553 = scalar_lea.vmem %s6, %s552
        %s554 = smul.u32 16, %s28
      $region68: #{lsab_forward.3} parent=43 // pred_fallthru
        _
    $region44: #{lsab_forward.3} parent=5 // pred_fallthru
      _
    %p555 = scmp.le.s32.totalorder 1, %s20
    %p556 = scmp.lt.s32.totalorder %s20, 3
    %p557 = pnand %p555, %p556
    %p558 = pneg %p557
    // Predicated region
    $region69: #{lsab_forward.3} parent=5 // pred_check
      _
    $region70: #{lsab_forward.3} parent=5 // pred_check_branch
      %560 = sbr.rel (%p557) target = $region72
    $region71: #{lsab_forward.3} parent=5 // pred_region
      %s561 = ssub.s32 %s20, 1
      %p562 = pneg %p53
      %p563 = pneg %p50
      %s564 = smul.u32 16, %s30
      %p565 = scmp.lt.s32.totalorder %s29, 1
      %s566 = scalar_select %p565, %s29, 1
      %p567 = scmp.lt.s32.totalorder %s564, 15
      %s568 = scalar_select %p567, %s564, 15
      %s569 = smul.addr %s568, 2
      %s570 = smul.addr %s566, 32
      %s571 = sadd.s32 %s569, %s570
      %s572 = smul.addr %s571, 4
      %s573 = scalar_lea.vmem %s1, %s572
      %p574 = pneg %p81
      %p575 = pneg %p78
      %s576 = smul.u32 %s30, 16
      %s577 = ssub.s32 %s576, 2
      %p578 = scmp.gt.s32.totalorder %s577, 0
      %s579 = scalar_select %p578, %s577, 0
      %p580 = scmp.lt.s32.totalorder %s29, 1
      %s581 = scalar_select %p580, %s29, 1
      %p582 = scmp.lt.s32.totalorder %s579, 15
      %s583 = scalar_select %p582, %s579, 15
      %s584 = smul.addr %s583, 2
      %s585 = smul.addr %s581, 32
      %s586 = sadd.s32 %s584, %s585
      %s587 = smul.addr %s586, 4
      %s588 = scalar_lea.vmem %s2, %s587
      %p589 = pneg %p117
      %p590 = pneg %p114
      %s591 = smul.u32 %s30, 16
      %s592 = ssub.s32 %s591, 1
      %p593 = scmp.gt.s32.totalorder %s592, 0
      %s594 = scalar_select %p593, %s592, 0
      %p595 = scmp.lt.s32.totalorder %s29, 1
      %s596 = scalar_select %p595, %s29, 1
      %p597 = scmp.lt.s32.totalorder %s594, 15
      %s598 = scalar_select %p597, %s594, 15
      %s599 = smul.addr %s598, 2
      %s600 = smul.addr %s596, 32
      %s601 = sadd.s32 %s599, %s600
      %s602 = smul.addr %s601, 4
      %s603 = scalar_lea.vmem %s3, %s602
      %p604 = pneg %p153
      %p605 = pneg %p150
      %s606 = smul.u32 %s30, 16
      %s607 = sadd.s32 %s606, 16
      %p608 = scmp.lt.s32.totalorder %s607, 15
      %s609 = scalar_select %p608, %s607, 15
      %p610 = scmp.lt.s32.totalorder %s29, 1
      %s611 = scalar_select %p610, %s29, 1
      %p612 = scmp.lt.s32.totalorder %s609, 15
      %s613 = scalar_select %p612, %s609, 15
      %s614 = smul.addr %s613, 2
      %s615 = smul.addr %s611, 32
      %s616 = sadd.s32 %s614, %s615
      %s617 = smul.addr %s616, 4
      %s618 = scalar_lea.vmem %s4, %s617
      %p619 = pneg %p189
      %p620 = pneg %p186
      %s621 = smul.u32 %s30, 16
      %s622 = sadd.s32 %s621, 17
      %p623 = scmp.lt.s32.totalorder %s622, 15
      %s624 = scalar_select %p623, %s622, 15
      %p625 = scmp.lt.s32.totalorder %s29, 1
      %s626 = scalar_select %p625, %s29, 1
      %p627 = scmp.lt.s32.totalorder %s624, 15
      %s628 = scalar_select %p627, %s624, 15
      %s629 = smul.addr %s628, 2
      %s630 = smul.addr %s626, 32
      %s631 = sadd.s32 %s629, %s630
      %s632 = smul.addr %s631, 4
      %s633 = scalar_lea.vmem %s5, %s632
      %p634 = pneg %p225
      %p635 = pneg %p222
      %s636 = smul.u32 16, %s30
      %p637 = scmp.lt.s32.totalorder %s29, 1
      %s638 = scalar_select %p637, %s29, 1
      %p639 = scmp.lt.s32.totalorder %s636, 15
      %s640 = scalar_select %p639, %s636, 15
      %s641 = smul.addr %s640, 2
      %s642 = smul.addr %s638, 32
      %s643 = sadd.s32 %s641, %s642
      %s644 = smul.addr %s643, 8
      %s645 = scalar_lea.vmem %s6, %s644
      %p646 = pneg %p253
      %p647 = pneg %p250
      %p648 = pneg %p274
      %p649 = pneg %p271
      %p650 = pneg %p295
      %p651 = pneg %p292
      %p652 = pneg %p316
      %p653 = pneg %p313
      %p654 = pneg %p337
      %p655 = pneg %p334
      %p656 = pneg %p358
      %p657 = pneg %p355
      %p658 = pneg %p379
      %p659 = pneg %p376
      %p660 = pneg %p407
      %p661 = pneg %p404
      %s662 = smul.u32 16, %s30
      %p663 = scmp.lt.s32.totalorder %s29, 1
      %s664 = scalar_select %p663, %s29, 1
      %p665 = scmp.lt.s32.totalorder %s662, 15
      %s666 = scalar_select %p665, %s662, 15
      %s667 = smul.addr %s666, 2
      %s668 = smul.addr %s664, 32
      %s669 = sadd.s32 %s667, %s668
      %s670 = smul.addr %s669, 8
      %s671 = scalar_lea.vmem %s13, %s670
      %s672 = smul.u32 16, %s30
      %p673 = scmp.lt.s32.totalorder %s29, 1
      %s674 = scalar_select %p673, %s29, 1
      %p675 = scmp.lt.s32.totalorder %s672, 15
      %s676 = scalar_select %p675, %s672, 15
      %s677 = smul.addr %s676, 2
      %s678 = smul.addr %s674, 32
      %s679 = sadd.s32 %s677, %s678
      %s680 = smul.addr %s679, 4
      %s681 = scalar_lea.vmem %s1, %s680
      %s682 = smul.u32 16, %s30
      %s683 = smul.u32 %s30, 16
      %s684 = ssub.s32 %s683, 2
      %p685 = scmp.gt.s32.totalorder %s684, 0
      %s686 = scalar_select %p685, %s684, 0
      %p687 = scmp.lt.s32.totalorder %s29, 1
      %s688 = scalar_select %p687, %s29, 1
      %p689 = scmp.lt.s32.totalorder %s686, 15
      %s690 = scalar_select %p689, %s686, 15
      %s691 = smul.addr %s690, 2
      %s692 = smul.addr %s688, 32
      %s693 = sadd.s32 %s691, %s692
      %s694 = smul.addr %s693, 4
      %s695 = scalar_lea.vmem %s2, %s694
      %s696 = smul.u32 %s30, 16
      %s697 = ssub.s32 %s696, 2
      %p698 = scmp.gt.s32.totalorder %s697, 0
      %s699 = scalar_select %p698, %s697, 0
      %s700 = smul.u32 %s30, 16
      %s701 = ssub.s32 %s700, 1
      %p702 = scmp.gt.s32.totalorder %s701, 0
      %s703 = scalar_select %p702, %s701, 0
      %p704 = scmp.lt.s32.totalorder %s29, 1
      %s705 = scalar_select %p704, %s29, 1
      %p706 = scmp.lt.s32.totalorder %s703, 15
      %s707 = scalar_select %p706, %s703, 15
      %s708 = smul.addr %s707, 2
      %s709 = smul.addr %s705, 32
      %s710 = sadd.s32 %s708, %s709
      %s711 = smul.addr %s710, 4
      %s712 = scalar_lea.vmem %s3, %s711
      %s713 = smul.u32 %s30, 16
      %s714 = ssub.s32 %s713, 1
      %p715 = scmp.gt.s32.totalorder %s714, 0
      %s716 = scalar_select %p715, %s714, 0
      %s717 = smul.u32 %s30, 16
      %s718 = sadd.s32 %s717, 16
      %p719 = scmp.lt.s32.totalorder %s718, 15
      %s720 = scalar_select %p719, %s718, 15
      %p721 = scmp.lt.s32.totalorder %s29, 1
      %s722 = scalar_select %p721, %s29, 1
      %p723 = scmp.lt.s32.totalorder %s720, 15
      %s724 = scalar_select %p723, %s720, 15
      %s725 = smul.addr %s724, 2
      %s726 = smul.addr %s722, 32
      %s727 = sadd.s32 %s725, %s726
      %s728 = smul.addr %s727, 4
      %s729 = scalar_lea.vmem %s4, %s728
      %s730 = smul.u32 %s30, 16
      %s731 = sadd.s32 %s730, 16
      %p732 = scmp.lt.s32.totalorder %s731, 15
      %s733 = scalar_select %p732, %s731, 15
      %s734 = smul.u32 %s30, 16
      %s735 = sadd.s32 %s734, 17
      %p736 = scmp.lt.s32.totalorder %s735, 15
      %s737 = scalar_select %p736, %s735, 15
      %p738 = scmp.lt.s32.totalorder %s29, 1
      %s739 = scalar_select %p738, %s29, 1
      %p740 = scmp.lt.s32.totalorder %s737, 15
      %s741 = scalar_select %p740, %s737, 15
      %s742 = smul.addr %s741, 2
      %s743 = smul.addr %s739, 32
      %s744 = sadd.s32 %s742, %s743
      %s745 = smul.addr %s744, 4
      %s746 = scalar_lea.vmem %s5, %s745
      %s747 = smul.u32 %s30, 16
      %s748 = sadd.s32 %s747, 17
      %p749 = scmp.lt.s32.totalorder %s748, 15
      %s750 = scalar_select %p749, %s748, 15
      %s751 = smul.u32 16, %s30
      %p752 = scmp.lt.s32.totalorder %s29, 1
      %s753 = scalar_select %p752, %s29, 1
      %p754 = scmp.lt.s32.totalorder %s751, 15
      %s755 = scalar_select %p754, %s751, 15
      %s756 = smul.addr %s755, 2
      %s757 = smul.addr %s753, 32
      %s758 = sadd.s32 %s756, %s757
      %s759 = smul.addr %s758, 8
      %s760 = scalar_lea.vmem %s6, %s759
      %s761 = smul.u32 16, %s30
      %s762 = smul.u32 16, %s30
      %p763 = scmp.lt.s32.totalorder %s29, 1
      %s764 = scalar_select %p763, %s29, 1
      %p765 = scmp.lt.s32.totalorder %s762, 15
      %s766 = scalar_select %p765, %s762, 15
      %s767 = smul.addr %s766, 2
      %s768 = smul.addr %s764, 32
      %s769 = sadd.s32 %s767, %s768
      %s770 = smul.addr %s769, 8
      %s771 = scalar_lea.vmem %s13, %s770
      %s772 = smul.u32 16, %s30
      %s774 = smul.u32 %s30, 16
      %vm775 = vcmask 90112
      %vm776 = vsmask.f32 256
      %vm777 = vmand %vm775, %vm776
      %v778 = vld [vmem:[#allocation2] sm:$0x1]
      %v779 = vsel %vm777, 0, %v778
      %780 = vst [vmem:[#allocation2] sm:$0x1] %v779
      %v781 = vld [vmem:[#allocation2 + $0xc] sm:$0x1]
      %v782 = vsel %vm777, 0, %v781
      %783 = vst [vmem:[#allocation2 + $0xc] sm:$0x1] %v782
      %v784 = vld [vmem:[#allocation2 + $0x18] sm:$0x1]
      %v785 = vsel %vm777, 0, %v784
      %786 = vst [vmem:[#allocation2 + $0x18] sm:$0x1] %v785
      %v787 = vld [vmem:[#allocation2 + $0x24] sm:$0x1]
      %v788 = vsel %vm777, 0, %v787
      %789 = vst [vmem:[#allocation2 + $0x24] sm:$0x1] %v788
      %v790 = vld [vmem:[#allocation2 + $0x30] sm:$0x1]
      %v791 = vsel %vm777, 0, %v790
      %792 = vst [vmem:[#allocation2 + $0x30] sm:$0x1] %v791
      %v793 = vld [vmem:[#allocation2 + $0x3c] sm:$0x1]
      %v794 = vsel %vm777, 0, %v793
      %795 = vst [vmem:[#allocation2 + $0x3c] sm:$0x1] %v794
      %v796 = vld [vmem:[#allocation2 + $0x48] sm:$0x1]
      %v797 = vsel %vm777, 0, %v796
      %798 = vst [vmem:[#allocation2 + $0x48] sm:$0x1] %v797
      %v799 = vld [vmem:[#allocation2 + $0x54] sm:$0x1]
      %v800 = vsel %vm777, 0, %v799
      %801 = vst [vmem:[#allocation2 + $0x54] sm:$0x1] %v800
      %v802 = vld [vmem:[#allocation2 + $0x60] sm:$0x1]
      %v803 = vsel %vm777, 0, %v802
      %804 = vst [vmem:[#allocation2 + $0x60] sm:$0x1] %v803
      %v805 = vld [vmem:[#allocation2 + $0x6c] sm:$0x1]
      %v806 = vsel %vm777, 0, %v805
      %807 = vst [vmem:[#allocation2 + $0x6c] sm:$0x1] %v806
      %v808 = vld [vmem:[#allocation2 + $0x78] sm:$0x1]
      %v809 = vsel %vm777, 0, %v808
      %810 = vst [vmem:[#allocation2 + $0x78] sm:$0x1] %v809
      %v811 = vld [vmem:[#allocation2 + $0x84] sm:$0x1]
      %v812 = vsel %vm777, 0, %v811
      %813 = vst [vmem:[#allocation2 + $0x84] sm:$0x1] %v812
      %v814 = vld [vmem:[#allocation2 + $0x90] sm:$0x1]
      %v815 = vsel %vm777, 0, %v814
      %816 = vst [vmem:[#allocation2 + $0x90] sm:$0x1] %v815
      %v817 = vld [vmem:[#allocation2 + $0x9c] sm:$0x1]
      %v818 = vsel %vm777, 0, %v817
      %819 = vst [vmem:[#allocation2 + $0x9c] sm:$0x1] %v818
      %v820 = vld [vmem:[#allocation2 + $0xa8] sm:$0x1]
      %v821 = vsel %vm777, 0, %v820
      %822 = vst [vmem:[#allocation2 + $0xa8] sm:$0x1] %v821
      %v823 = vld [vmem:[#allocation2 + $0xb4] sm:$0x1]
      %v824 = vsel %vm777, 0, %v823
      %825 = vst [vmem:[#allocation2 + $0xb4] sm:$0x1] %v824
      %v826 = vld [vmem:[#allocation2 + $0xc0] sm:$0x1]
      %v827 = vsel %vm777, 0, %v826
      %828 = vst [vmem:[#allocation2 + $0xc0] sm:$0x1] %v827
      %v829 = vld [vmem:[#allocation2 + $0xcc] sm:$0x1]
      %v830 = vsel %vm777, 0, %v829
      %831 = vst [vmem:[#allocation2 + $0xcc] sm:$0x1] %v830
      %v832 = vld [vmem:[#allocation2 + $0xd8] sm:$0x1]
      %v833 = vsel %vm777, 0, %v832
      %834 = vst [vmem:[#allocation2 + $0xd8] sm:$0x1] %v833
      %v835 = vld [vmem:[#allocation2 + $0xe4] sm:$0x1]
      %v836 = vsel %vm777, 0, %v835
      %837 = vst [vmem:[#allocation2 + $0xe4] sm:$0x1] %v836
      %vm838 = vsmask.f32 7938
      %vm839 = vmand %vm775, %vm838
      %v840 = vld [vmem:[#allocation2 + $0x8] sm:$0x1]
      %v841 = vsel %vm839, 0, %v840
      %842 = vst [vmem:[#allocation2 + $0x8] sm:$0x1] %v841
      %v843 = vld [vmem:[#allocation2 + $0x14] sm:$0x1]
      %v844 = vsel %vm839, 0, %v843
      %845 = vst [vmem:[#allocation2 + $0x14] sm:$0x1] %v844
      %v846 = vld [vmem:[#allocation2 + $0x20] sm:$0x1]
      %v847 = vsel %vm839, 0, %v846
      %848 = vst [vmem:[#allocation2 + $0x20] sm:$0x1] %v847
      %v849 = vld [vmem:[#allocation2 + $0x2c] sm:$0x1]
      %v850 = vsel %vm839, 0, %v849
      %851 = vst [vmem:[#allocation2 + $0x2c] sm:$0x1] %v850
      %v852 = vld [vmem:[#allocation2 + $0x38] sm:$0x1]
      %v853 = vsel %vm839, 0, %v852
      %854 = vst [vmem:[#allocation2 + $0x38] sm:$0x1] %v853
      %v855 = vld [vmem:[#allocation2 + $0x44] sm:$0x1]
      %v856 = vsel %vm839, 0, %v855
      %857 = vst [vmem:[#allocation2 + $0x44] sm:$0x1] %v856
      %v858 = vld [vmem:[#allocation2 + $0x50] sm:$0x1]
      %v859 = vsel %vm839, 0, %v858
      %860 = vst [vmem:[#allocation2 + $0x50] sm:$0x1] %v859
      %v861 = vld [vmem:[#allocation2 + $0x5c] sm:$0x1]
      %v862 = vsel %vm839, 0, %v861
      %863 = vst [vmem:[#allocation2 + $0x5c] sm:$0x1] %v862
      %v864 = vld [vmem:[#allocation2 + $0x68] sm:$0x1]
      %v865 = vsel %vm839, 0, %v864
      %866 = vst [vmem:[#allocation2 + $0x68] sm:$0x1] %v865
      %v867 = vld [vmem:[#allocation2 + $0x74] sm:$0x1]
      %v868 = vsel %vm839, 0, %v867
      %869 = vst [vmem:[#allocation2 + $0x74] sm:$0x1] %v868
      %v870 = vld [vmem:[#allocation2 + $0x80] sm:$0x1]
      %v871 = vsel %vm839, 0, %v870
      %872 = vst [vmem:[#allocation2 + $0x80] sm:$0x1] %v871
      %v873 = vld [vmem:[#allocation2 + $0x8c] sm:$0x1]
      %v874 = vsel %vm839, 0, %v873
      %875 = vst [vmem:[#allocation2 + $0x8c] sm:$0x1] %v874
      %v876 = vld [vmem:[#allocation2 + $0x98] sm:$0x1]
      %v877 = vsel %vm839, 0, %v876
      %878 = vst [vmem:[#allocation2 + $0x98] sm:$0x1] %v877
      %v879 = vld [vmem:[#allocation2 + $0xa4] sm:$0x1]
      %v880 = vsel %vm839, 0, %v879
      %881 = vst [vmem:[#allocation2 + $0xa4] sm:$0x1] %v880
      %v882 = vld [vmem:[#allocation2 + $0xb0] sm:$0x1]
      %v883 = vsel %vm839, 0, %v882
      %884 = vst [vmem:[#allocation2 + $0xb0] sm:$0x1] %v883
      %v885 = vld [vmem:[#allocation2 + $0xbc] sm:$0x1]
      %v886 = vsel %vm839, 0, %v885
      %887 = vst [vmem:[#allocation2 + $0xbc] sm:$0x1] %v886
      %v888 = vld [vmem:[#allocation2 + $0xc8] sm:$0x1]
      %v889 = vsel %vm839, 0, %v888
      %890 = vst [vmem:[#allocation2 + $0xc8] sm:$0x1] %v889
      %v891 = vld [vmem:[#allocation2 + $0xd4] sm:$0x1]
      %v892 = vsel %vm839, 0, %v891
      %893 = vst [vmem:[#allocation2 + $0xd4] sm:$0x1] %v892
      %v894 = vld [vmem:[#allocation2 + $0xe0] sm:$0x1]
      %v895 = vsel %vm839, 0, %v894
      %896 = vst [vmem:[#allocation2 + $0xe0] sm:$0x1] %v895
      %v897 = vld [vmem:[#allocation2 + $0xec] sm:$0x1]
      %v898 = vsel %vm839, 0, %v897
      %899 = vst [vmem:[#allocation2 + $0xec] sm:$0x1] %v898
      %v900 = vld [vmem:[%s695] sm:$0xf]
      %v901 = vld [vmem:[%s695 + $0x4] sm:$0xf]
      %v902 = vld [vmem:[%s712] sm:$0xf]
      %v903 = vld [vmem:[%s712 + $0x4] sm:$0xf]
      %v904 = vld [vmem:[%s729] sm:$0xf]
      %v905 = vld [vmem:[%s729 + $0x4] sm:$0xf]
      %v906 = vld [vmem:[%s746] sm:$0xf]
      %v907 = vld [vmem:[%s746 + $0x4] sm:$0xf]
      %s908 = ssub.s32 %s774, 2
      %p909 = scmp.ge.s32.totalorder %s908, 0
      %s910 = scalar_select %p909, 1, 0
      %v911 = vstv %s910
      %vm912 = vcmp.eq.s32.totalorder %v911, 1
      %v913 = vsel %vm912, %v900, 0
      %v914 = vsel %vm912, %v901, 0
      %vm915 = vsmask.f32 4368
      %vm916 = vmor %vm776, %vm915
      %v918 = vshrl.u32 %v913, 16
      %v920 = vrot.slane %v918, 7
      %v921 = vshll.u32 %v913, 16
      %v923 = vor.u32 %v920, %v921
      %v924 = vrot.slane %v920, 4
      %v926 = vshrl.u32 %v914, 16
      %v928 = vrot.slane %v926, 7
      %v929 = vshll.u32 %v914, 16
      %v931 = vor.u32 %v928, %v929
      %v932 = vsel %vm916, %v924, %v931
      %v933 = vrot.slane %v928, 4
      %vm937 = vcmask 93184
      %vm938 = vmand %vm937, %vm838
      %v939 = vld [vmem:[#allocation2] sm:$0xf]
      %v940 = vsel %vm938, %v923, %v939
      %941 = vst [vmem:[#allocation2] sm:$0xf] %v940
      %vm942 = vcmask 93184
      %943 = vst.msk [vmem:[#allocation2 + $0x4] sm:$0xf] %vm942, %v932
      %v944 = vld [vmem:[#allocation2 + $0x8] sm:$0x1]
      %v945 = vsel %vm777, %v933, %v944
      %946 = vst [vmem:[#allocation2 + $0x8] sm:$0x1] %v945
      %s947 = ssub.s32 %s774, 1
      %p948 = scmp.ge.s32.totalorder %s947, 0
      %s949 = scalar_select %p948, 1, 0
      %v950 = vstv %s949
      %vm951 = vcmp.eq.s32.totalorder %v950, 1
      %v952 = vsel %vm951, %v902, 0
      %v953 = vsel %vm951, %v903, 0
      %v955 = vshrl.u32 %v952, 16
      %v957 = vrot.slane %v955, 7
      %v958 = vshll.u32 %v952, 16
      %v960 = vor.u32 %v957, %v958
      %v961 = vrot.slane %v957, 4
      %v963 = vshrl.u32 %v953, 16
      %v965 = vrot.slane %v963, 7
      %v966 = vshll.u32 %v953, 16
      %v968 = vor.u32 %v965, %v966
      %v969 = vsel %vm916, %v961, %v968
      %v970 = vrot.slane %v965, 4
      %s974 = scalar_lea.vmem [#allocation2], 12
      %v975 = vld [vmem:[%s974] sm:$0xf]
      %v976 = vsel %vm938, %v960, %v975
      %977 = vst [vmem:[%s974] sm:$0xf] %v976
      %978 = vst.msk [vmem:[%s974 + $0x4] sm:$0xf] %vm942, %v969
      %v979 = vld [vmem:[%s974 + $0x8] sm:$0x1]
      %v980 = vsel %vm777, %v970, %v979
      %981 = vst [vmem:[%s974 + $0x8] sm:$0x1] %v980
      %v982 = vld [vmem:[%s681] sm:$0xf]
      %v983 = vld [vmem:[%s681 + $0x4] sm:$0xf]
      %v984 = vld [vmem:[%s681 + $0x8] sm:$0xf]
      %v985 = vld [vmem:[%s681 + $0xc] sm:$0xf]
      %v986 = vld [vmem:[%s681 + $0x10] sm:$0xf]
      %v987 = vld [vmem:[%s681 + $0x14] sm:$0xf]
      %v988 = vld [vmem:[%s681 + $0x18] sm:$0xf]
      %v989 = vld [vmem:[%s681 + $0x1c] sm:$0xf]
      %v990 = vld [vmem:[%s681 + $0x20] sm:$0xf]
      %v991 = vld [vmem:[%s681 + $0x24] sm:$0xf]
      %v992 = vld [vmem:[%s681 + $0x28] sm:$0xf]
      %v993 = vld [vmem:[%s681 + $0x2c] sm:$0xf]
      %v994 = vld [vmem:[%s681 + $0x30] sm:$0xf]
      %v995 = vld [vmem:[%s681 + $0x34] sm:$0xf]
      %v996 = vld [vmem:[%s681 + $0x38] sm:$0xf]
      %v997 = vld [vmem:[%s681 + $0x3c] sm:$0xf]
      %v998 = vld [vmem:[%s681 + $0x40] sm:$0xf]
      %v999 = vld [vmem:[%s681 + $0x44] sm:$0xf]
      %v1000 = vld [vmem:[%s681 + $0x48] sm:$0xf]
      %v1001 = vld [vmem:[%s681 + $0x4c] sm:$0xf]
      %v1002 = vld [vmem:[%s681 + $0x50] sm:$0xf]
      %v1003 = vld [vmem:[%s681 + $0x54] sm:$0xf]
      %v1004 = vld [vmem:[%s681 + $0x58] sm:$0xf]
      %v1005 = vld [vmem:[%s681 + $0x5c] sm:$0xf]
      %v1006 = vld [vmem:[%s681 + $0x60] sm:$0xf]
      %v1007 = vld [vmem:[%s681 + $0x64] sm:$0xf]
      %v1008 = vld [vmem:[%s681 + $0x68] sm:$0xf]
      %v1009 = vld [vmem:[%s681 + $0x6c] sm:$0xf]
      %v1010 = vld [vmem:[%s681 + $0x70] sm:$0xf]
      %v1011 = vld [vmem:[%s681 + $0x74] sm:$0xf]
      %v1012 = vld [vmem:[%s681 + $0x78] sm:$0xf]
      %v1013 = vld [vmem:[%s681 + $0x7c] sm:$0xf]
      %v1015 = vshrl.u32 %v982, 16
      %v1017 = vrot.slane %v1015, 7
      %v1018 = vshll.u32 %v982, 16
      %v1020 = vor.u32 %v1017, %v1018
      %v1021 = vrot.slane %v1017, 4
      %v1023 = vshrl.u32 %v983, 16
      %v1025 = vrot.slane %v1023, 7
      %v1026 = vshll.u32 %v983, 16
      %v1028 = vor.u32 %v1025, %v1026
      %v1029 = vsel %vm916, %v1021, %v1028
      %v1030 = vrot.slane %v1025, 4
      %v1032 = vshrl.u32 %v984, 16
      %v1034 = vrot.slane %v1032, 7
      %v1035 = vshll.u32 %v984, 16
      %v1037 = vor.u32 %v1034, %v1035
      %v1038 = vrot.slane %v1034, 4
      %v1040 = vshrl.u32 %v985, 16
      %v1042 = vrot.slane %v1040, 7
      %v1043 = vshll.u32 %v985, 16
      %v1045 = vor.u32 %v1042, %v1043
      %v1046 = vsel %vm916, %v1038, %v1045
      %v1047 = vrot.slane %v1042, 4
      %v1049 = vshrl.u32 %v986, 16
      %v1051 = vrot.slane %v1049, 7
      %v1052 = vshll.u32 %v986, 16
      %v1054 = vor.u32 %v1051, %v1052
      %v1055 = vrot.slane %v1051, 4
      %v1057 = vshrl.u32 %v987, 16
      %v1059 = vrot.slane %v1057, 7
      %v1060 = vshll.u32 %v987, 16
      %v1062 = vor.u32 %v1059, %v1060
      %v1063 = vsel %vm916, %v1055, %v1062
      %v1064 = vrot.slane %v1059, 4
      %v1066 = vshrl.u32 %v988, 16
      %v1068 = vrot.slane %v1066, 7
      %v1069 = vshll.u32 %v988, 16
      %v1071 = vor.u32 %v1068, %v1069
      %v1072 = vrot.slane %v1068, 4
      %v1074 = vshrl.u32 %v989, 16
      %v1076 = vrot.slane %v1074, 7
      %v1077 = vshll.u32 %v989, 16
      %v1079 = vor.u32 %v1076, %v1077
      %v1080 = vsel %vm916, %v1072, %v1079
      %v1081 = vrot.slane %v1076, 4
      %v1083 = vshrl.u32 %v990, 16
      %v1085 = vrot.slane %v1083, 7
      %v1086 = vshll.u32 %v990, 16
      %v1088 = vor.u32 %v1085, %v1086
      %v1089 = vrot.slane %v1085, 4
      %v1091 = vshrl.u32 %v991, 16
      %v1093 = vrot.slane %v1091, 7
      %v1094 = vshll.u32 %v991, 16
      %v1096 = vor.u32 %v1093, %v1094
      %v1097 = vsel %vm916, %v1089, %v1096
      %v1098 = vrot.slane %v1093, 4
      %v1100 = vshrl.u32 %v992, 16
      %v1102 = vrot.slane %v1100, 7
      %v1103 = vshll.u32 %v992, 16
      %v1105 = vor.u32 %v1102, %v1103
      %v1106 = vrot.slane %v1102, 4
      %v1108 = vshrl.u32 %v993, 16
      %v1110 = vrot.slane %v1108, 7
      %v1111 = vshll.u32 %v993, 16
      %v1113 = vor.u32 %v1110, %v1111
      %v1114 = vsel %vm916, %v1106, %v1113
      %v1115 = vrot.slane %v1110, 4
      %v1117 = vshrl.u32 %v994, 16
      %v1119 = vrot.slane %v1117, 7
      %v1120 = vshll.u32 %v994, 16
      %v1122 = vor.u32 %v1119, %v1120
      %v1123 = vrot.slane %v1119, 4
      %v1125 = vshrl.u32 %v995, 16
      %v1127 = vrot.slane %v1125, 7
      %v1128 = vshll.u32 %v995, 16
      %v1130 = vor.u32 %v1127, %v1128
      %v1131 = vsel %vm916, %v1123, %v1130
      %v1132 = vrot.slane %v1127, 4
      %v1134 = vshrl.u32 %v996, 16
      %v1136 = vrot.slane %v1134, 7
      %v1137 = vshll.u32 %v996, 16
      %v1139 = vor.u32 %v1136, %v1137
      %v1140 = vrot.slane %v1136, 4
      %v1142 = vshrl.u32 %v997, 16
      %v1144 = vrot.slane %v1142, 7
      %v1145 = vshll.u32 %v997, 16
      %v1147 = vor.u32 %v1144, %v1145
      %v1148 = vsel %vm916, %v1140, %v1147
      %v1149 = vrot.slane %v1144, 4
      %v1151 = vshrl.u32 %v998, 16
      %v1153 = vrot.slane %v1151, 7
      %v1154 = vshll.u32 %v998, 16
      %v1156 = vor.u32 %v1153, %v1154
      %v1157 = vrot.slane %v1153, 4
      %v1159 = vshrl.u32 %v999, 16
      %v1161 = vrot.slane %v1159, 7
      %v1162 = vshll.u32 %v999, 16
      %v1164 = vor.u32 %v1161, %v1162
      %v1165 = vsel %vm916, %v1157, %v1164
      %v1166 = vrot.slane %v1161, 4
      %v1168 = vshrl.u32 %v1000, 16
      %v1170 = vrot.slane %v1168, 7
      %v1171 = vshll.u32 %v1000, 16
      %v1173 = vor.u32 %v1170, %v1171
      %v1174 = vrot.slane %v1170, 4
      %v1176 = vshrl.u32 %v1001, 16
      %v1178 = vrot.slane %v1176, 7
      %v1179 = vshll.u32 %v1001, 16
      %v1181 = vor.u32 %v1178, %v1179
      %v1182 = vsel %vm916, %v1174, %v1181
      %v1183 = vrot.slane %v1178, 4
      %v1185 = vshrl.u32 %v1002, 16
      %v1187 = vrot.slane %v1185, 7
      %v1188 = vshll.u32 %v1002, 16
      %v1190 = vor.u32 %v1187, %v1188
      %v1191 = vrot.slane %v1187, 4
      %v1193 = vshrl.u32 %v1003, 16
      %v1195 = vrot.slane %v1193, 7
      %v1196 = vshll.u32 %v1003, 16
      %v1198 = vor.u32 %v1195, %v1196
      %v1199 = vsel %vm916, %v1191, %v1198
      %v1200 = vrot.slane %v1195, 4
      %v1202 = vshrl.u32 %v1004, 16
      %v1204 = vrot.slane %v1202, 7
      %v1205 = vshll.u32 %v1004, 16
      %v1207 = vor.u32 %v1204, %v1205
      %v1208 = vrot.slane %v1204, 4
      %v1210 = vshrl.u32 %v1005, 16
      %v1212 = vrot.slane %v1210, 7
      %v1213 = vshll.u32 %v1005, 16
      %v1215 = vor.u32 %v1212, %v1213
      %v1216 = vsel %vm916, %v1208, %v1215
      %v1217 = vrot.slane %v1212, 4
      %v1219 = vshrl.u32 %v1006, 16
      %v1221 = vrot.slane %v1219, 7
      %v1222 = vshll.u32 %v1006, 16
      %v1224 = vor.u32 %v1221, %v1222
      %v1225 = vrot.slane %v1221, 4
      %v1227 = vshrl.u32 %v1007, 16
      %v1229 = vrot.slane %v1227, 7
      %v1230 = vshll.u32 %v1007, 16
      %v1232 = vor.u32 %v1229, %v1230
      %v1233 = vsel %vm916, %v1225, %v1232
      %v1234 = vrot.slane %v1229, 4
      %v1236 = vshrl.u32 %v1008, 16
      %v1238 = vrot.slane %v1236, 7
      %v1239 = vshll.u32 %v1008, 16
      %v1241 = vor.u32 %v1238, %v1239
      %v1242 = vrot.slane %v1238, 4
      %v1244 = vshrl.u32 %v1009, 16
      %v1246 = vrot.slane %v1244, 7
      %v1247 = vshll.u32 %v1009, 16
      %v1249 = vor.u32 %v1246, %v1247
      %v1250 = vsel %vm916, %v1242, %v1249
      %v1251 = vrot.slane %v1246, 4
      %v1253 = vshrl.u32 %v1010, 16
      %v1255 = vrot.slane %v1253, 7
      %v1256 = vshll.u32 %v1010, 16
      %v1258 = vor.u32 %v1255, %v1256
      %v1259 = vrot.slane %v1255, 4
      %v1261 = vshrl.u32 %v1011, 16
      %v1263 = vrot.slane %v1261, 7
      %v1264 = vshll.u32 %v1011, 16
      %v1266 = vor.u32 %v1263, %v1264
      %v1267 = vsel %vm916, %v1259, %v1266
      %v1268 = vrot.slane %v1263, 4
      %v1270 = vshrl.u32 %v1012, 16
      %v1272 = vrot.slane %v1270, 7
      %v1273 = vshll.u32 %v1012, 16
      %v1275 = vor.u32 %v1272, %v1273
      %v1276 = vrot.slane %v1272, 4
      %v1278 = vshrl.u32 %v1013, 16
      %v1280 = vrot.slane %v1278, 7
      %v1281 = vshll.u32 %v1013, 16
      %v1283 = vor.u32 %v1280, %v1281
      %v1284 = vsel %vm916, %v1276, %v1283
      %v1285 = vrot.slane %v1280, 4
      %s1334 = scalar_lea.vmem [#allocation2], 24
      %v1335 = vld [vmem:[%s1334] sm:$0xf]
      %v1336 = vsel %vm938, %v1020, %v1335
      %1337 = vst [vmem:[%s1334] sm:$0xf] %v1336
      %1338 = vst.msk [vmem:[%s1334 + $0x4] sm:$0xf] %vm942, %v1029
      %v1339 = vld [vmem:[%s1334 + $0x8] sm:$0x1]
      %v1340 = vsel %vm777, %v1030, %v1339
      %1341 = vst [vmem:[%s1334 + $0x8] sm:$0x1] %v1340
      %v1342 = vld [vmem:[%s1334 + $0xc] sm:$0xf]
      %v1343 = vsel %vm938, %v1037, %v1342
      %1344 = vst [vmem:[%s1334 + $0xc] sm:$0xf] %v1343
      %1345 = vst.msk [vmem:[%s1334 + $0x10] sm:$0xf] %vm942, %v1046
      %v1346 = vld [vmem:[%s1334 + $0x14] sm:$0x1]
      %v1347 = vsel %vm777, %v1047, %v1346
      %1348 = vst [vmem:[%s1334 + $0x14] sm:$0x1] %v1347
      %v1349 = vld [vmem:[%s1334 + $0x18] sm:$0xf]
      %v1350 = vsel %vm938, %v1054, %v1349
      %1351 = vst [vmem:[%s1334 + $0x18] sm:$0xf] %v1350
      %1352 = vst.msk [vmem:[%s1334 + $0x1c] sm:$0xf] %vm942, %v1063
      %v1353 = vld [vmem:[%s1334 + $0x20] sm:$0x1]
      %v1354 = vsel %vm777, %v1064, %v1353
      %1355 = vst [vmem:[%s1334 + $0x20] sm:$0x1] %v1354
      %v1356 = vld [vmem:[%s1334 + $0x24] sm:$0xf]
      %v1357 = vsel %vm938, %v1071, %v1356
      %1358 = vst [vmem:[%s1334 + $0x24] sm:$0xf] %v1357
      %1359 = vst.msk [vmem:[%s1334 + $0x28] sm:$0xf] %vm942, %v1080
      %v1360 = vld [vmem:[%s1334 + $0x2c] sm:$0x1]
      %v1361 = vsel %vm777, %v1081, %v1360
      %1362 = vst [vmem:[%s1334 + $0x2c] sm:$0x1] %v1361
      %v1363 = vld [vmem:[%s1334 + $0x30] sm:$0xf]
      %v1364 = vsel %vm938, %v1088, %v1363
      %1365 = vst [vmem:[%s1334 + $0x30] sm:$0xf] %v1364
      %1366 = vst.msk [vmem:[%s1334 + $0x34] sm:$0xf] %vm942, %v1097
      %v1367 = vld [vmem:[%s1334 + $0x38] sm:$0x1]
      %v1368 = vsel %vm777, %v1098, %v1367
      %1369 = vst [vmem:[%s1334 + $0x38] sm:$0x1] %v1368
      %v1370 = vld [vmem:[%s1334 + $0x3c] sm:$0xf]
      %v1371 = vsel %vm938, %v1105, %v1370
      %1372 = vst [vmem:[%s1334 + $0x3c] sm:$0xf] %v1371
      %1373 = vst.msk [vmem:[%s1334 + $0x40] sm:$0xf] %vm942, %v1114
      %v1374 = vld [vmem:[%s1334 + $0x44] sm:$0x1]
      %v1375 = vsel %vm777, %v1115, %v1374
      %1376 = vst [vmem:[%s1334 + $0x44] sm:$0x1] %v1375
      %v1377 = vld [vmem:[%s1334 + $0x48] sm:$0xf]
      %v1378 = vsel %vm938, %v1122, %v1377
      %1379 = vst [vmem:[%s1334 + $0x48] sm:$0xf] %v1378
      %1380 = vst.msk [vmem:[%s1334 + $0x4c] sm:$0xf] %vm942, %v1131
      %v1381 = vld [vmem:[%s1334 + $0x50] sm:$0x1]
      %v1382 = vsel %vm777, %v1132, %v1381
      %1383 = vst [vmem:[%s1334 + $0x50] sm:$0x1] %v1382
      %v1384 = vld [vmem:[%s1334 + $0x54] sm:$0xf]
      %v1385 = vsel %vm938, %v1139, %v1384
      %1386 = vst [vmem:[%s1334 + $0x54] sm:$0xf] %v1385
      %1387 = vst.msk [vmem:[%s1334 + $0x58] sm:$0xf] %vm942, %v1148
      %v1388 = vld [vmem:[%s1334 + $0x5c] sm:$0x1]
      %v1389 = vsel %vm777, %v1149, %v1388
      %1390 = vst [vmem:[%s1334 + $0x5c] sm:$0x1] %v1389
      %v1391 = vld [vmem:[%s1334 + $0x60] sm:$0xf]
      %v1392 = vsel %vm938, %v1156, %v1391
      %1393 = vst [vmem:[%s1334 + $0x60] sm:$0xf] %v1392
      %1394 = vst.msk [vmem:[%s1334 + $0x64] sm:$0xf] %vm942, %v1165
      %v1395 = vld [vmem:[%s1334 + $0x68] sm:$0x1]
      %v1396 = vsel %vm777, %v1166, %v1395
      %1397 = vst [vmem:[%s1334 + $0x68] sm:$0x1] %v1396
      %v1398 = vld [vmem:[%s1334 + $0x6c] sm:$0xf]
      %v1399 = vsel %vm938, %v1173, %v1398
      %1400 = vst [vmem:[%s1334 + $0x6c] sm:$0xf] %v1399
      %1401 = vst.msk [vmem:[%s1334 + $0x70] sm:$0xf] %vm942, %v1182
      %v1402 = vld [vmem:[%s1334 + $0x74] sm:$0x1]
      %v1403 = vsel %vm777, %v1183, %v1402
      %1404 = vst [vmem:[%s1334 + $0x74] sm:$0x1] %v1403
      %v1405 = vld [vmem:[%s1334 + $0x78] sm:$0xf]
      %v1406 = vsel %vm938, %v1190, %v1405
      %1407 = vst [vmem:[%s1334 + $0x78] sm:$0xf] %v1406
      %1408 = vst.msk [vmem:[%s1334 + $0x7c] sm:$0xf] %vm942, %v1199
      %v1409 = vld [vmem:[%s1334 + $0x80] sm:$0x1]
      %v1410 = vsel %vm777, %v1200, %v1409
      %1411 = vst [vmem:[%s1334 + $0x80] sm:$0x1] %v1410
      %v1412 = vld [vmem:[%s1334 + $0x84] sm:$0xf]
      %v1413 = vsel %vm938, %v1207, %v1412
      %1414 = vst [vmem:[%s1334 + $0x84] sm:$0xf] %v1413
      %1415 = vst.msk [vmem:[%s1334 + $0x88] sm:$0xf] %vm942, %v1216
      %v1416 = vld [vmem:[%s1334 + $0x8c] sm:$0x1]
      %v1417 = vsel %vm777, %v1217, %v1416
      %1418 = vst [vmem:[%s1334 + $0x8c] sm:$0x1] %v1417
      %v1419 = vld [vmem:[%s1334 + $0x90] sm:$0xf]
      %v1420 = vsel %vm938, %v1224, %v1419
      %1421 = vst [vmem:[%s1334 + $0x90] sm:$0xf] %v1420
      %1422 = vst.msk [vmem:[%s1334 + $0x94] sm:$0xf] %vm942, %v1233
      %v1423 = vld [vmem:[%s1334 + $0x98] sm:$0x1]
      %v1424 = vsel %vm777, %v1234, %v1423
      %1425 = vst [vmem:[%s1334 + $0x98] sm:$0x1] %v1424
      %v1426 = vld [vmem:[%s1334 + $0x9c] sm:$0xf]
      %v1427 = vsel %vm938, %v1241, %v1426
      %1428 = vst [vmem:[%s1334 + $0x9c] sm:$0xf] %v1427
      %1429 = vst.msk [vmem:[%s1334 + $0xa0] sm:$0xf] %vm942, %v1250
      %v1430 = vld [vmem:[%s1334 + $0xa4] sm:$0x1]
      %v1431 = vsel %vm777, %v1251, %v1430
      %1432 = vst [vmem:[%s1334 + $0xa4] sm:$0x1] %v1431
      %v1433 = vld [vmem:[%s1334 + $0xa8] sm:$0xf]
      %v1434 = vsel %vm938, %v1258, %v1433
      %1435 = vst [vmem:[%s1334 + $0xa8] sm:$0xf] %v1434
      %1436 = vst.msk [vmem:[%s1334 + $0xac] sm:$0xf] %vm942, %v1267
      %v1437 = vld [vmem:[%s1334 + $0xb0] sm:$0x1]
      %v1438 = vsel %vm777, %v1268, %v1437
      %1439 = vst [vmem:[%s1334 + $0xb0] sm:$0x1] %v1438
      %v1440 = vld [vmem:[%s1334 + $0xb4] sm:$0xf]
      %v1441 = vsel %vm938, %v1275, %v1440
      %1442 = vst [vmem:[%s1334 + $0xb4] sm:$0xf] %v1441
      %1443 = vst.msk [vmem:[%s1334 + $0xb8] sm:$0xf] %vm942, %v1284
      %v1444 = vld [vmem:[%s1334 + $0xbc] sm:$0x1]
      %v1445 = vsel %vm777, %v1285, %v1444
      %1446 = vst [vmem:[%s1334 + $0xbc] sm:$0x1] %v1445
      %s1447 = sadd.s32 %s774, 16
      %p1448 = scmp.le.s32.totalorder %s1447, 15
      %s1449 = scalar_select %p1448, 1, 0
      %v1450 = vstv %s1449
      %vm1451 = vcmp.eq.s32.totalorder %v1450, 1
      %v1452 = vsel %vm1451, %v904, 0
      %v1453 = vsel %vm1451, %v905, 0
      %v1455 = vshrl.u32 %v1452, 16
      %v1457 = vrot.slane %v1455, 7
      %v1458 = vshll.u32 %v1452, 16
      %v1460 = vor.u32 %v1457, %v1458
      %v1461 = vrot.slane %v1457, 4
      %v1463 = vshrl.u32 %v1453, 16
      %v1465 = vrot.slane %v1463, 7
      %v1466 = vshll.u32 %v1453, 16
      %v1468 = vor.u32 %v1465, %v1466
      %v1469 = vsel %vm916, %v1461, %v1468
      %v1470 = vrot.slane %v1465, 4
      %s1474 = scalar_lea.vmem [#allocation2], 216
      %v1475 = vld [vmem:[%s1474] sm:$0xf]
      %v1476 = vsel %vm938, %v1460, %v1475
      %1477 = vst [vmem:[%s1474] sm:$0xf] %v1476
      %1478 = vst.msk [vmem:[%s1474 + $0x4] sm:$0xf] %vm942, %v1469
      %v1479 = vld [vmem:[%s1474 + $0x8] sm:$0x1]
      %v1480 = vsel %vm777, %v1470, %v1479
      %1481 = vst [vmem:[%s1474 + $0x8] sm:$0x1] %v1480
      %s1482 = sadd.s32 %s774, 17
      %p1483 = scmp.le.s32.totalorder %s1482, 15
      %s1484 = scalar_select %p1483, 1, 0
      %v1485 = vstv %s1484
      %vm1486 = vcmp.eq.s32.totalorder %v1485, 1
      %v1487 = vsel %vm1486, %v906, 0
      %v1488 = vsel %vm1486, %v907, 0
      %v1490 = vshrl.u32 %v1487, 16
      %v1492 = vrot.slane %v1490, 7
      %v1493 = vshll.u32 %v1487, 16
      %v1495 = vor.u32 %v1492, %v1493
      %v1496 = vrot.slane %v1492, 4
      %v1498 = vshrl.u32 %v1488, 16
      %v1500 = vrot.slane %v1498, 7
      %v1501 = vshll.u32 %v1488, 16
      %v1503 = vor.u32 %v1500, %v1501
      %v1504 = vsel %vm916, %v1496, %v1503
      %v1505 = vrot.slane %v1500, 4
      %s1509 = scalar_lea.vmem [#allocation2], 228
      %v1510 = vld [vmem:[%s1509] sm:$0xf]
      %v1511 = vsel %vm938, %v1495, %v1510
      %1512 = vst [vmem:[%s1509] sm:$0xf] %v1511
      %1513 = vst.msk [vmem:[%s1509 + $0x4] sm:$0xf] %vm942, %v1504
      %v1514 = vld [vmem:[%s1509 + $0x8] sm:$0x1]
      %v1515 = vsel %vm777, %v1505, %v1514
      %1516 = vst [vmem:[%s1509 + $0x8] sm:$0x1] %v1515
      %v1517 = vld [vmem:[#allocation2] sm:$0xf]
      %v1518 = vld [vmem:[#allocation2 + $0x4] sm:$0xf]
      %v1519 = vld [vmem:[#allocation2 + $0xc] sm:$0xf]
      %v1520 = vld [vmem:[#allocation2 + $0x10] sm:$0xf]
      %v1521 = vld [vmem:[#allocation2 + $0x18] sm:$0xf]
      %v1522 = vld [vmem:[#allocation2 + $0x1c] sm:$0xf]
      %v1523 = vld [vmem:[#allocation2 + $0x24] sm:$0xf]
      %v1524 = vld [vmem:[#allocation2 + $0x28] sm:$0xf]
      %v1525 = vld [vmem:[#allocation2 + $0x30] sm:$0xf]
      %v1526 = vld [vmem:[#allocation2 + $0x34] sm:$0xf]
      %v1527 = vld [vmem:[#allocation2 + $0x3c] sm:$0xf]
      %v1528 = vld [vmem:[#allocation2 + $0x40] sm:$0xf]
      %v1529 = vld [vmem:[#allocation2 + $0x48] sm:$0xf]
      %v1530 = vld [vmem:[#allocation2 + $0x4c] sm:$0xf]
      %v1531 = vld [vmem:[#allocation2 + $0x54] sm:$0xf]
      %v1532 = vld [vmem:[#allocation2 + $0x58] sm:$0xf]
      %v1533 = vld [vmem:[#allocation2 + $0x60] sm:$0xf]
      %v1534 = vld [vmem:[#allocation2 + $0x64] sm:$0xf]
      %v1535 = vld [vmem:[#allocation2 + $0x6c] sm:$0xf]
      %v1536 = vld [vmem:[#allocation2 + $0x70] sm:$0xf]
      %v1537 = vld [vmem:[#allocation2 + $0x78] sm:$0xf]
      %v1538 = vld [vmem:[#allocation2 + $0x7c] sm:$0xf]
      %v1539 = vld [vmem:[#allocation2 + $0x84] sm:$0xf]
      %v1540 = vld [vmem:[#allocation2 + $0x88] sm:$0xf]
      %v1541 = vld [vmem:[#allocation2 + $0x90] sm:$0xf]
      %v1542 = vld [vmem:[#allocation2 + $0x94] sm:$0xf]
      %v1543 = vld [vmem:[#allocation2 + $0x9c] sm:$0xf]
      %v1544 = vld [vmem:[#allocation2 + $0xa0] sm:$0xf]
      %v1545 = vld [vmem:[#allocation2 + $0xa8] sm:$0xf]
      %v1546 = vld [vmem:[#allocation2 + $0xac] sm:$0xf]
      %v1547 = vld [vmem:[#allocation2 + $0xb4] sm:$0xf]
      %v1548 = vld [vmem:[#allocation2 + $0xb8] sm:$0xf]
      %v1549 = vld [vmem:[#allocation2 + $0xc0] sm:$0xf]
      %v1550 = vld [vmem:[#allocation2 + $0xc4] sm:$0xf]
      %v1551 = vld [vmem:[#allocation2 + $0xcc] sm:$0xf]
      %v1552 = vld [vmem:[#allocation2 + $0xd0] sm:$0xf]
      %v1553 = vunpack.c.l.bf16 %v1517
      %v1554 = vunpack.c.l.bf16 %v1518
      %v1555 = vunpack.c.l.bf16 %v1519
      %v1556 = vunpack.c.l.bf16 %v1520
      %v1557 = vunpack.c.l.bf16 %v1521
      %v1558 = vunpack.c.l.bf16 %v1522
      %v1559 = vunpack.c.l.bf16 %v1523
      %v1560 = vunpack.c.l.bf16 %v1524
      %v1561 = vunpack.c.l.bf16 %v1525
      %v1562 = vunpack.c.l.bf16 %v1526
      %v1563 = vunpack.c.l.bf16 %v1527
      %v1564 = vunpack.c.l.bf16 %v1528
      %v1565 = vunpack.c.l.bf16 %v1529
      %v1566 = vunpack.c.l.bf16 %v1530
      %v1567 = vunpack.c.l.bf16 %v1531
      %v1568 = vunpack.c.l.bf16 %v1532
      %v1569 = vunpack.c.l.bf16 %v1533
      %v1570 = vunpack.c.l.bf16 %v1534
      %v1571 = vunpack.c.l.bf16 %v1535
      %v1572 = vunpack.c.l.bf16 %v1536
      %v1573 = vunpack.c.l.bf16 %v1537
      %v1574 = vunpack.c.l.bf16 %v1538
      %v1575 = vunpack.c.l.bf16 %v1539
      %v1576 = vunpack.c.l.bf16 %v1540
      %v1577 = vunpack.c.l.bf16 %v1541
      %v1578 = vunpack.c.l.bf16 %v1542
      %v1579 = vunpack.c.l.bf16 %v1543
      %v1580 = vunpack.c.l.bf16 %v1544
      %v1581 = vunpack.c.l.bf16 %v1545
      %v1582 = vunpack.c.l.bf16 %v1546
      %v1583 = vunpack.c.l.bf16 %v1547
      %v1584 = vunpack.c.l.bf16 %v1548
      %v1585 = vunpack.c.l.bf16 %v1549
      %v1586 = vunpack.c.l.bf16 %v1550
      %v1587 = vunpack.c.l.bf16 %v1551
      %v1588 = vunpack.c.l.bf16 %v1552
      %v1589 = vld [vmem:[%s7] sm:$0x1]
      %v1590 = vlaneseq
      %v1591 = vshrl.u32 %v1590, 7
      %v1592 = vsub.s32 0, %v1591
      %v1593 = vrot.slane %v1589, %v1592
      %v1594 = vmul.f32 %v1553, %v1593
      %v1595 = vmul.f32 %v1554, %v1593
      %v1596 = vmul.f32 %v1555, %v1593
      %v1597 = vmul.f32 %v1556, %v1593
      %v1598 = vmul.f32 %v1557, %v1593
      %v1599 = vmul.f32 %v1558, %v1593
      %v1600 = vmul.f32 %v1559, %v1593
      %v1601 = vmul.f32 %v1560, %v1593
      %v1602 = vmul.f32 %v1561, %v1593
      %v1603 = vmul.f32 %v1562, %v1593
      %v1604 = vmul.f32 %v1563, %v1593
      %v1605 = vmul.f32 %v1564, %v1593
      %v1606 = vmul.f32 %v1565, %v1593
      %v1607 = vmul.f32 %v1566, %v1593
      %v1608 = vmul.f32 %v1567, %v1593
      %v1609 = vmul.f32 %v1568, %v1593
      %v1610 = vmul.f32 %v1569, %v1593
      %v1611 = vmul.f32 %v1570, %v1593
      %v1612 = vmul.f32 %v1571, %v1593
      %v1613 = vmul.f32 %v1572, %v1593
      %v1614 = vmul.f32 %v1573, %v1593
      %v1615 = vmul.f32 %v1574, %v1593
      %v1616 = vmul.f32 %v1575, %v1593
      %v1617 = vmul.f32 %v1576, %v1593
      %v1618 = vmul.f32 %v1577, %v1593
      %v1619 = vmul.f32 %v1578, %v1593
      %v1620 = vmul.f32 %v1579, %v1593
      %v1621 = vmul.f32 %v1580, %v1593
      %v1622 = vmul.f32 %v1581, %v1593
      %v1623 = vmul.f32 %v1582, %v1593
      %v1624 = vmul.f32 %v1583, %v1593
      %v1625 = vmul.f32 %v1584, %v1593
      %v1626 = vmul.f32 %v1585, %v1593
      %v1627 = vmul.f32 %v1586, %v1593
      %v1628 = vmul.f32 %v1587, %v1593
      %v1629 = vmul.f32 %v1588, %v1593
      %v1630 = vadd.f32 %v1594, 0.0
      %v1631 = vadd.f32 %v1595, 0.0
      %v1632 = vadd.f32 %v1596, 0.0
      %v1633 = vadd.f32 %v1597, 0.0
      %v1634 = vadd.f32 %v1598, 0.0
      %v1635 = vadd.f32 %v1599, 0.0
      %v1636 = vadd.f32 %v1600, 0.0
      %v1637 = vadd.f32 %v1601, 0.0
      %v1638 = vadd.f32 %v1602, 0.0
      %v1639 = vadd.f32 %v1603, 0.0
      %v1640 = vadd.f32 %v1604, 0.0
      %v1641 = vadd.f32 %v1605, 0.0
      %v1642 = vadd.f32 %v1606, 0.0
      %v1643 = vadd.f32 %v1607, 0.0
      %v1644 = vadd.f32 %v1608, 0.0
      %v1645 = vadd.f32 %v1609, 0.0
      %v1646 = vadd.f32 %v1610, 0.0
      %v1647 = vadd.f32 %v1611, 0.0
      %v1648 = vadd.f32 %v1612, 0.0
      %v1649 = vadd.f32 %v1613, 0.0
      %v1650 = vadd.f32 %v1614, 0.0
      %v1651 = vadd.f32 %v1615, 0.0
      %v1652 = vadd.f32 %v1616, 0.0
      %v1653 = vadd.f32 %v1617, 0.0
      %v1654 = vadd.f32 %v1618, 0.0
      %v1655 = vadd.f32 %v1619, 0.0
      %v1656 = vadd.f32 %v1620, 0.0
      %v1657 = vadd.f32 %v1621, 0.0
      %v1658 = vadd.f32 %v1622, 0.0
      %v1659 = vadd.f32 %v1623, 0.0
      %v1660 = vadd.f32 %v1624, 0.0
      %v1661 = vadd.f32 %v1625, 0.0
      %v1662 = vadd.f32 %v1626, 0.0
      %v1663 = vadd.f32 %v1627, 0.0
      %v1664 = vadd.f32 %v1628, 0.0
      %v1665 = vadd.f32 %v1629, 0.0
      %v1666 = vld [vmem:[#allocation2 + $0x8] sm:$0x1]
      %v1667 = vld [vmem:[#allocation2 + $0x14] sm:$0x1]
      %v1668 = vld [vmem:[#allocation2 + $0x20] sm:$0x1]
      %v1669 = vld [vmem:[#allocation2 + $0x2c] sm:$0x1]
      %v1670 = vld [vmem:[#allocation2 + $0x38] sm:$0x1]
      %v1671 = vld [vmem:[#allocation2 + $0x44] sm:$0x1]
      %v1672 = vld [vmem:[#allocation2 + $0x50] sm:$0x1]
      %v1673 = vld [vmem:[#allocation2 + $0x5c] sm:$0x1]
      %v1674 = vld [vmem:[#allocation2 + $0x68] sm:$0x1]
      %v1675 = vld [vmem:[#allocation2 + $0x74] sm:$0x1]
      %v1676 = vld [vmem:[#allocation2 + $0x80] sm:$0x1]
      %v1677 = vld [vmem:[#allocation2 + $0x8c] sm:$0x1]
      %v1678 = vld [vmem:[#allocation2 + $0x98] sm:$0x1]
      %v1679 = vld [vmem:[#allocation2 + $0xa4] sm:$0x1]
      %v1680 = vld [vmem:[#allocation2 + $0xb0] sm:$0x1]
      %v1681 = vld [vmem:[#allocation2 + $0xbc] sm:$0x1]
      %v1682 = vld [vmem:[#allocation2 + $0xc8] sm:$0x1]
      %v1683 = vld [vmem:[#allocation2 + $0xd4] sm:$0x1]
      %v1684 = vunpack.c.l.bf16 %v1666
      %v1685 = vunpack.c.l.bf16 %v1667
      %v1686 = vunpack.c.l.bf16 %v1668
      %v1687 = vunpack.c.l.bf16 %v1669
      %v1688 = vunpack.c.l.bf16 %v1670
      %v1689 = vunpack.c.l.bf16 %v1671
      %v1690 = vunpack.c.l.bf16 %v1672
      %v1691 = vunpack.c.l.bf16 %v1673
      %v1692 = vunpack.c.l.bf16 %v1674
      %v1693 = vunpack.c.l.bf16 %v1675
      %v1694 = vunpack.c.l.bf16 %v1676
      %v1695 = vunpack.c.l.bf16 %v1677
      %v1696 = vunpack.c.l.bf16 %v1678
      %v1697 = vunpack.c.l.bf16 %v1679
      %v1698 = vunpack.c.l.bf16 %v1680
      %v1699 = vunpack.c.l.bf16 %v1681
      %v1700 = vunpack.c.l.bf16 %v1682
      %v1701 = vunpack.c.l.bf16 %v1683
      %v1702 = vld [vmem:[%s7 + $0x1] sm:$0x1]
      %v1703 = vlaneseq
      %v1704 = vshrl.u32 %v1703, 7
      %v1705 = vsub.s32 0, %v1704
      %v1706 = vrot.slane %v1702, %v1705
      %v1707 = vmul.f32 %v1553, %v1706
      %v1708 = vmul.f32 %v1554, %v1706
      %v1709 = vmul.f32 %v1684, %v1706
      %v1710 = vmul.f32 %v1555, %v1706
      %v1711 = vmul.f32 %v1556, %v1706
      %v1712 = vmul.f32 %v1685, %v1706
      %v1713 = vmul.f32 %v1557, %v1706
      %v1714 = vmul.f32 %v1558, %v1706
      %v1715 = vmul.f32 %v1686, %v1706
      %v1716 = vmul.f32 %v1559, %v1706
      %v1717 = vmul.f32 %v1560, %v1706
      %v1718 = vmul.f32 %v1687, %v1706
      %v1719 = vmul.f32 %v1561, %v1706
      %v1720 = vmul.f32 %v1562, %v1706
      %v1721 = vmul.f32 %v1688, %v1706
      %v1722 = vmul.f32 %v1563, %v1706
      %v1723 = vmul.f32 %v1564, %v1706
      %v1724 = vmul.f32 %v1689, %v1706
      %v1725 = vmul.f32 %v1565, %v1706
      %v1726 = vmul.f32 %v1566, %v1706
      %v1727 = vmul.f32 %v1690, %v1706
      %v1728 = vmul.f32 %v1567, %v1706
      %v1729 = vmul.f32 %v1568, %v1706
      %v1730 = vmul.f32 %v1691, %v1706
      %v1731 = vmul.f32 %v1569, %v1706
      %v1732 = vmul.f32 %v1570, %v1706
      %v1733 = vmul.f32 %v1692, %v1706
      %v1734 = vmul.f32 %v1571, %v1706
      %v1735 = vmul.f32 %v1572, %v1706
      %v1736 = vmul.f32 %v1693, %v1706
      %v1737 = vmul.f32 %v1573, %v1706
      %v1738 = vmul.f32 %v1574, %v1706
      %v1739 = vmul.f32 %v1694, %v1706
      %v1740 = vmul.f32 %v1575, %v1706
      %v1741 = vmul.f32 %v1576, %v1706
      %v1742 = vmul.f32 %v1695, %v1706
      %v1743 = vmul.f32 %v1577, %v1706
      %v1744 = vmul.f32 %v1578, %v1706
      %v1745 = vmul.f32 %v1696, %v1706
      %v1746 = vmul.f32 %v1579, %v1706
      %v1747 = vmul.f32 %v1580, %v1706
      %v1748 = vmul.f32 %v1697, %v1706
      %v1749 = vmul.f32 %v1581, %v1706
      %v1750 = vmul.f32 %v1582, %v1706
      %v1751 = vmul.f32 %v1698, %v1706
      %v1752 = vmul.f32 %v1583, %v1706
      %v1753 = vmul.f32 %v1584, %v1706
      %v1754 = vmul.f32 %v1699, %v1706
      %v1755 = vmul.f32 %v1585, %v1706
      %v1756 = vmul.f32 %v1586, %v1706
      %v1757 = vmul.f32 %v1700, %v1706
      %v1758 = vmul.f32 %v1587, %v1706
      %v1759 = vmul.f32 %v1588, %v1706
      %v1760 = vmul.f32 %v1701, %v1706
      %vm1815 = vcmask 1046528
      %v1816 = vrot.slane %v1707, 1
      %v1817 = vrot.slane %v1708, 1
      %v1818 = vsel %vm1815, %v1816, %v1817
      %v1819 = vrot.slane %v1709, 1
      %v1820 = vsel %vm1815, %v1817, %v1819
      %v1821 = vrot.slane %v1710, 1
      %v1822 = vrot.slane %v1711, 1
      %v1823 = vsel %vm1815, %v1821, %v1822
      %v1824 = vrot.slane %v1712, 1
      %v1825 = vsel %vm1815, %v1822, %v1824
      %v1826 = vrot.slane %v1713, 1
      %v1827 = vrot.slane %v1714, 1
      %v1828 = vsel %vm1815, %v1826, %v1827
      %v1829 = vrot.slane %v1715, 1
      %v1830 = vsel %vm1815, %v1827, %v1829
      %v1831 = vrot.slane %v1716, 1
      %v1832 = vrot.slane %v1717, 1
      %v1833 = vsel %vm1815, %v1831, %v1832
      %v1834 = vrot.slane %v1718, 1
      %v1835 = vsel %vm1815, %v1832, %v1834
      %v1836 = vrot.slane %v1719, 1
      %v1837 = vrot.slane %v1720, 1
      %v1838 = vsel %vm1815, %v1836, %v1837
      %v1839 = vrot.slane %v1721, 1
      %v1840 = vsel %vm1815, %v1837, %v1839
      %v1841 = vrot.slane %v1722, 1
      %v1842 = vrot.slane %v1723, 1
      %v1843 = vsel %vm1815, %v1841, %v1842
      %v1844 = vrot.slane %v1724, 1
      %v1845 = vsel %vm1815, %v1842, %v1844
      %v1846 = vrot.slane %v1725, 1
      %v1847 = vrot.slane %v1726, 1
      %v1848 = vsel %vm1815, %v1846, %v1847
      %v1849 = vrot.slane %v1727, 1
      %v1850 = vsel %vm1815, %v1847, %v1849
      %v1851 = vrot.slane %v1728, 1
      %v1852 = vrot.slane %v1729, 1
      %v1853 = vsel %vm1815, %v1851, %v1852
      %v1854 = vrot.slane %v1730, 1
      %v1855 = vsel %vm1815, %v1852, %v1854
      %v1856 = vrot.slane %v1731, 1
      %v1857 = vrot.slane %v1732, 1
      %v1858 = vsel %vm1815, %v1856, %v1857
      %v1859 = vrot.slane %v1733, 1
      %v1860 = vsel %vm1815, %v1857, %v1859
      %v1861 = vrot.slane %v1734, 1
      %v1862 = vrot.slane %v1735, 1
      %v1863 = vsel %vm1815, %v1861, %v1862
      %v1864 = vrot.slane %v1736, 1
      %v1865 = vsel %vm1815, %v1862, %v1864
      %v1866 = vrot.slane %v1737, 1
      %v1867 = vrot.slane %v1738, 1
      %v1868 = vsel %vm1815, %v1866, %v1867
      %v1869 = vrot.slane %v1739, 1
      %v1870 = vsel %vm1815, %v1867, %v1869
      %v1871 = vrot.slane %v1740, 1
      %v1872 = vrot.slane %v1741, 1
      %v1873 = vsel %vm1815, %v1871, %v1872
      %v1874 = vrot.slane %v1742, 1
      %v1875 = vsel %vm1815, %v1872, %v1874
      %v1876 = vrot.slane %v1743, 1
      %v1877 = vrot.slane %v1744, 1
      %v1878 = vsel %vm1815, %v1876, %v1877
      %v1879 = vrot.slane %v1745, 1
      %v1880 = vsel %vm1815, %v1877, %v1879
      %v1881 = vrot.slane %v1746, 1
      %v1882 = vrot.slane %v1747, 1
      %v1883 = vsel %vm1815, %v1881, %v1882
      %v1884 = vrot.slane %v1748, 1
      %v1885 = vsel %vm1815, %v1882, %v1884
      %v1886 = vrot.slane %v1749, 1
      %v1887 = vrot.slane %v1750, 1
      %v1888 = vsel %vm1815, %v1886, %v1887
      %v1889 = vrot.slane %v1751, 1
      %v1890 = vsel %vm1815, %v1887, %v1889
      %v1891 = vrot.slane %v1752, 1
      %v1892 = vrot.slane %v1753, 1
      %v1893 = vsel %vm1815, %v1891, %v1892
      %v1894 = vrot.slane %v1754, 1
      %v1895 = vsel %vm1815, %v1892, %v1894
      %v1896 = vrot.slane %v1755, 1
      %v1897 = vrot.slane %v1756, 1
      %v1898 = vsel %vm1815, %v1896, %v1897
      %v1899 = vrot.slane %v1757, 1
      %v1900 = vsel %vm1815, %v1897, %v1899
      %v1901 = vrot.slane %v1758, 1
      %v1902 = vrot.slane %v1759, 1
      %v1903 = vsel %vm1815, %v1901, %v1902
      %v1904 = vrot.slane %v1760, 1
      %v1905 = vsel %vm1815, %v1902, %v1904
      %v1942 = vadd.f32 %v1630, %v1818
      %v1943 = vadd.f32 %v1631, %v1820
      %v1944 = vadd.f32 %v1632, %v1823
      %v1945 = vadd.f32 %v1633, %v1825
      %v1946 = vadd.f32 %v1634, %v1828
      %v1947 = vadd.f32 %v1635, %v1830
      %v1948 = vadd.f32 %v1636, %v1833
      %v1949 = vadd.f32 %v1637, %v1835
      %v1950 = vadd.f32 %v1638, %v1838
      %v1951 = vadd.f32 %v1639, %v1840
      %v1952 = vadd.f32 %v1640, %v1843
      %v1953 = vadd.f32 %v1641, %v1845
      %v1954 = vadd.f32 %v1642, %v1848
      %v1955 = vadd.f32 %v1643, %v1850
      %v1956 = vadd.f32 %v1644, %v1853
      %v1957 = vadd.f32 %v1645, %v1855
      %v1958 = vadd.f32 %v1646, %v1858
      %v1959 = vadd.f32 %v1647, %v1860
      %v1960 = vadd.f32 %v1648, %v1863
      %v1961 = vadd.f32 %v1649, %v1865
      %v1962 = vadd.f32 %v1650, %v1868
      %v1963 = vadd.f32 %v1651, %v1870
      %v1964 = vadd.f32 %v1652, %v1873
      %v1965 = vadd.f32 %v1653, %v1875
      %v1966 = vadd.f32 %v1654, %v1878
      %v1967 = vadd.f32 %v1655, %v1880
      %v1968 = vadd.f32 %v1656, %v1883
      %v1969 = vadd.f32 %v1657, %v1885
      %v1970 = vadd.f32 %v1658, %v1888
      %v1971 = vadd.f32 %v1659, %v1890
      %v1972 = vadd.f32 %v1660, %v1893
      %v1973 = vadd.f32 %v1661, %v1895
      %v1974 = vadd.f32 %v1662, %v1898
      %v1975 = vadd.f32 %v1663, %v1900
      %v1976 = vadd.f32 %v1664, %v1903
      %v1977 = vadd.f32 %v1665, %v1905
      %v1978 = vld [vmem:[#allocation2] sm:$0xe]
      %v1979 = vld [vmem:[#allocation2 + $0xc] sm:$0xe]
      %v1980 = vld [vmem:[#allocation2 + $0x18] sm:$0xe]
      %v1981 = vld [vmem:[#allocation2 + $0x24] sm:$0xe]
      %v1982 = vld [vmem:[#allocation2 + $0x30] sm:$0xe]
      %v1983 = vld [vmem:[#allocation2 + $0x3c] sm:$0xe]
      %v1984 = vld [vmem:[#allocation2 + $0x48] sm:$0xe]
      %v1985 = vld [vmem:[#allocation2 + $0x54] sm:$0xe]
      %v1986 = vld [vmem:[#allocation2 + $0x60] sm:$0xe]
      %v1987 = vld [vmem:[#allocation2 + $0x6c] sm:$0xe]
      %v1988 = vld [vmem:[#allocation2 + $0x78] sm:$0xe]
      %v1989 = vld [vmem:[#allocation2 + $0x84] sm:$0xe]
      %v1990 = vld [vmem:[#allocation2 + $0x90] sm:$0xe]
      %v1991 = vld [vmem:[#allocation2 + $0x9c] sm:$0xe]
      %v1992 = vld [vmem:[#allocation2 + $0xa8] sm:$0xe]
      %v1993 = vld [vmem:[#allocation2 + $0xb4] sm:$0xe]
      %v1994 = vld [vmem:[#allocation2 + $0xc0] sm:$0xe]
      %v1995 = vld [vmem:[#allocation2 + $0xcc] sm:$0xe]
      %v1996 = vunpack.c.l.bf16 %v1978
      %v1997 = vunpack.c.l.bf16 %v1979
      %v1998 = vunpack.c.l.bf16 %v1980
      %v1999 = vunpack.c.l.bf16 %v1981
      %v2000 = vunpack.c.l.bf16 %v1982
      %v2001 = vunpack.c.l.bf16 %v1983
      %v2002 = vunpack.c.l.bf16 %v1984
      %v2003 = vunpack.c.l.bf16 %v1985
      %v2004 = vunpack.c.l.bf16 %v1986
      %v2005 = vunpack.c.l.bf16 %v1987
      %v2006 = vunpack.c.l.bf16 %v1988
      %v2007 = vunpack.c.l.bf16 %v1989
      %v2008 = vunpack.c.l.bf16 %v1990
      %v2009 = vunpack.c.l.bf16 %v1991
      %v2010 = vunpack.c.l.bf16 %v1992
      %v2011 = vunpack.c.l.bf16 %v1993
      %v2012 = vunpack.c.l.bf16 %v1994
      %v2013 = vunpack.c.l.bf16 %v1995
      %v2014 = vld [vmem:[%s7 + $0x2] sm:$0x1]
      %v2015 = vlaneseq
      %v2016 = vshrl.u32 %v2015, 7
      %v2017 = vsub.s32 0, %v2016
      %v2018 = vrot.slane %v2014, %v2017
      %v2019 = vmul.f32 %v1996, %v2018
      %v2020 = vmul.f32 %v1554, %v2018
      %v2021 = vmul.f32 %v1684, %v2018
      %v2022 = vmul.f32 %v1997, %v2018
      %v2023 = vmul.f32 %v1556, %v2018
      %v2024 = vmul.f32 %v1685, %v2018
      %v2025 = vmul.f32 %v1998, %v2018
      %v2026 = vmul.f32 %v1558, %v2018
      %v2027 = vmul.f32 %v1686, %v2018
      %v2028 = vmul.f32 %v1999, %v2018
      %v2029 = vmul.f32 %v1560, %v2018
      %v2030 = vmul.f32 %v1687, %v2018
      %v2031 = vmul.f32 %v2000, %v2018
      %v2032 = vmul.f32 %v1562, %v2018
      %v2033 = vmul.f32 %v1688, %v2018
      %v2034 = vmul.f32 %v2001, %v2018
      %v2035 = vmul.f32 %v1564, %v2018
      %v2036 = vmul.f32 %v1689, %v2018
      %v2037 = vmul.f32 %v2002, %v2018
      %v2038 = vmul.f32 %v1566, %v2018
      %v2039 = vmul.f32 %v1690, %v2018
      %v2040 = vmul.f32 %v2003, %v2018
      %v2041 = vmul.f32 %v1568, %v2018
      %v2042 = vmul.f32 %v1691, %v2018
      %v2043 = vmul.f32 %v2004, %v2018
      %v2044 = vmul.f32 %v1570, %v2018
      %v2045 = vmul.f32 %v1692, %v2018
      %v2046 = vmul.f32 %v2005, %v2018
      %v2047 = vmul.f32 %v1572, %v2018
      %v2048 = vmul.f32 %v1693, %v2018
      %v2049 = vmul.f32 %v2006, %v2018
      %v2050 = vmul.f32 %v1574, %v2018
      %v2051 = vmul.f32 %v1694, %v2018
      %v2052 = vmul.f32 %v2007, %v2018
      %v2053 = vmul.f32 %v1576, %v2018
      %v2054 = vmul.f32 %v1695, %v2018
      %v2055 = vmul.f32 %v2008, %v2018
      %v2056 = vmul.f32 %v1578, %v2018
      %v2057 = vmul.f32 %v1696, %v2018
      %v2058 = vmul.f32 %v2009, %v2018
      %v2059 = vmul.f32 %v1580, %v2018
      %v2060 = vmul.f32 %v1697, %v2018
      %v2061 = vmul.f32 %v2010, %v2018
      %v2062 = vmul.f32 %v1582, %v2018
      %v2063 = vmul.f32 %v1698, %v2018
      %v2064 = vmul.f32 %v2011, %v2018
      %v2065 = vmul.f32 %v1584, %v2018
      %v2066 = vmul.f32 %v1699, %v2018
      %v2067 = vmul.f32 %v2012, %v2018
      %v2068 = vmul.f32 %v1586, %v2018
      %v2069 = vmul.f32 %v1700, %v2018
      %v2070 = vmul.f32 %v2013, %v2018
      %v2071 = vmul.f32 %v1588, %v2018
      %v2072 = vmul.f32 %v1701, %v2018
      %vm2127 = vcmask 1045504
      %v2128 = vrot.slane %v2019, 2
      %v2129 = vrot.slane %v2020, 2
      %v2130 = vsel %vm2127, %v2128, %v2129
      %v2131 = vrot.slane %v2021, 2
      %v2132 = vsel %vm2127, %v2129, %v2131
      %v2133 = vrot.slane %v2022, 2
      %v2134 = vrot.slane %v2023, 2
      %v2135 = vsel %vm2127, %v2133, %v2134
      %v2136 = vrot.slane %v2024, 2
      %v2137 = vsel %vm2127, %v2134, %v2136
      %v2138 = vrot.slane %v2025, 2
      %v2139 = vrot.slane %v2026, 2
      %v2140 = vsel %vm2127, %v2138, %v2139
      %v2141 = vrot.slane %v2027, 2
      %v2142 = vsel %vm2127, %v2139, %v2141
      %v2143 = vrot.slane %v2028, 2
      %v2144 = vrot.slane %v2029, 2
      %v2145 = vsel %vm2127, %v2143, %v2144
      %v2146 = vrot.slane %v2030, 2
      %v2147 = vsel %vm2127, %v2144, %v2146
      %v2148 = vrot.slane %v2031, 2
      %v2149 = vrot.slane %v2032, 2
      %v2150 = vsel %vm2127, %v2148, %v2149
      %v2151 = vrot.slane %v2033, 2
      %v2152 = vsel %vm2127, %v2149, %v2151
      %v2153 = vrot.slane %v2034, 2
      %v2154 = vrot.slane %v2035, 2
      %v2155 = vsel %vm2127, %v2153, %v2154
      %v2156 = vrot.slane %v2036, 2
      %v2157 = vsel %vm2127, %v2154, %v2156
      %v2158 = vrot.slane %v2037, 2
      %v2159 = vrot.slane %v2038, 2
      %v2160 = vsel %vm2127, %v2158, %v2159
      %v2161 = vrot.slane %v2039, 2
      %v2162 = vsel %vm2127, %v2159, %v2161
      %v2163 = vrot.slane %v2040, 2
      %v2164 = vrot.slane %v2041, 2
      %v2165 = vsel %vm2127, %v2163, %v2164
      %v2166 = vrot.slane %v2042, 2
      %v2167 = vsel %vm2127, %v2164, %v2166
      %v2168 = vrot.slane %v2043, 2
      %v2169 = vrot.slane %v2044, 2
      %v2170 = vsel %vm2127, %v2168, %v2169
      %v2171 = vrot.slane %v2045, 2
      %v2172 = vsel %vm2127, %v2169, %v2171
      %v2173 = vrot.slane %v2046, 2
      %v2174 = vrot.slane %v2047, 2
      %v2175 = vsel %vm2127, %v2173, %v2174
      %v2176 = vrot.slane %v2048, 2
      %v2177 = vsel %vm2127, %v2174, %v2176
      %v2178 = vrot.slane %v2049, 2
      %v2179 = vrot.slane %v2050, 2
      %v2180 = vsel %vm2127, %v2178, %v2179
      %v2181 = vrot.slane %v2051, 2
      %v2182 = vsel %vm2127, %v2179, %v2181
      %v2183 = vrot.slane %v2052, 2
      %v2184 = vrot.slane %v2053, 2
      %v2185 = vsel %vm2127, %v2183, %v2184
      %v2186 = vrot.slane %v2054, 2
      %v2187 = vsel %vm2127, %v2184, %v2186
      %v2188 = vrot.slane %v2055, 2
      %v2189 = vrot.slane %v2056, 2
      %v2190 = vsel %vm2127, %v2188, %v2189
      %v2191 = vrot.slane %v2057, 2
      %v2192 = vsel %vm2127, %v2189, %v2191
      %v2193 = vrot.slane %v2058, 2
      %v2194 = vrot.slane %v2059, 2
      %v2195 = vsel %vm2127, %v2193, %v2194
      %v2196 = vrot.slane %v2060, 2
      %v2197 = vsel %vm2127, %v2194, %v2196
      %v2198 = vrot.slane %v2061, 2
      %v2199 = vrot.slane %v2062, 2
      %v2200 = vsel %vm2127, %v2198, %v2199
      %v2201 = vrot.slane %v2063, 2
      %v2202 = vsel %vm2127, %v2199, %v2201
      %v2203 = vrot.slane %v2064, 2
      %v2204 = vrot.slane %v2065, 2
      %v2205 = vsel %vm2127, %v2203, %v2204
      %v2206 = vrot.slane %v2066, 2
      %v2207 = vsel %vm2127, %v2204, %v2206
      %v2208 = vrot.slane %v2067, 2
      %v2209 = vrot.slane %v2068, 2
      %v2210 = vsel %vm2127, %v2208, %v2209
      %v2211 = vrot.slane %v2069, 2
      %v2212 = vsel %vm2127, %v2209, %v2211
      %v2213 = vrot.slane %v2070, 2
      %v2214 = vrot.slane %v2071, 2
      %v2215 = vsel %vm2127, %v2213, %v2214
      %v2216 = vrot.slane %v2072, 2
      %v2217 = vsel %vm2127, %v2214, %v2216
      %v2254 = vadd.f32 %v1942, %v2130
      %v2255 = vadd.f32 %v1943, %v2132
      %v2256 = vadd.f32 %v1944, %v2135
      %v2257 = vadd.f32 %v1945, %v2137
      %v2258 = vadd.f32 %v1946, %v2140
      %v2259 = vadd.f32 %v1947, %v2142
      %v2260 = vadd.f32 %v1948, %v2145
      %v2261 = vadd.f32 %v1949, %v2147
      %v2262 = vadd.f32 %v1950, %v2150
      %v2263 = vadd.f32 %v1951, %v2152
      %v2264 = vadd.f32 %v1952, %v2155
      %v2265 = vadd.f32 %v1953, %v2157
      %v2266 = vadd.f32 %v1954, %v2160
      %v2267 = vadd.f32 %v1955, %v2162
      %v2268 = vadd.f32 %v1956, %v2165
      %v2269 = vadd.f32 %v1957, %v2167
      %v2270 = vadd.f32 %v1958, %v2170
      %v2271 = vadd.f32 %v1959, %v2172
      %v2272 = vadd.f32 %v1960, %v2175
      %v2273 = vadd.f32 %v1961, %v2177
      %v2274 = vadd.f32 %v1962, %v2180
      %v2275 = vadd.f32 %v1963, %v2182
      %v2276 = vadd.f32 %v1964, %v2185
      %v2277 = vadd.f32 %v1965, %v2187
      %v2278 = vadd.f32 %v1966, %v2190
      %v2279 = vadd.f32 %v1967, %v2192
      %v2280 = vadd.f32 %v1968, %v2195
      %v2281 = vadd.f32 %v1969, %v2197
      %v2282 = vadd.f32 %v1970, %v2200
      %v2283 = vadd.f32 %v1971, %v2202
      %v2284 = vadd.f32 %v1972, %v2205
      %v2285 = vadd.f32 %v1973, %v2207
      %v2286 = vadd.f32 %v1974, %v2210
      %v2287 = vadd.f32 %v1975, %v2212
      %v2288 = vadd.f32 %v1976, %v2215
      %v2289 = vadd.f32 %v1977, %v2217
      %v2290 = vld [vmem:[%s974] sm:$0xf]
      %v2291 = vld [vmem:[%s974 + $0x4] sm:$0xf]
      %v2292 = vld [vmem:[%s974 + $0xc] sm:$0xf]
      %v2293 = vld [vmem:[%s974 + $0x10] sm:$0xf]
      %v2294 = vld [vmem:[%s974 + $0x18] sm:$0xf]
      %v2295 = vld [vmem:[%s974 + $0x1c] sm:$0xf]
      %v2296 = vld [vmem:[%s974 + $0x24] sm:$0xf]
      %v2297 = vld [vmem:[%s974 + $0x28] sm:$0xf]
      %v2298 = vld [vmem:[%s974 + $0x30] sm:$0xf]
      %v2299 = vld [vmem:[%s974 + $0x34] sm:$0xf]
      %v2300 = vld [vmem:[%s974 + $0x3c] sm:$0xf]
      %v2301 = vld [vmem:[%s974 + $0x40] sm:$0xf]
      %v2302 = vld [vmem:[%s974 + $0x48] sm:$0xf]
      %v2303 = vld [vmem:[%s974 + $0x4c] sm:$0xf]
      %v2304 = vld [vmem:[%s974 + $0x54] sm:$0xf]
      %v2305 = vld [vmem:[%s974 + $0x58] sm:$0xf]
      %v2306 = vld [vmem:[%s974 + $0x60] sm:$0xf]
      %v2307 = vld [vmem:[%s974 + $0x64] sm:$0xf]
      %v2308 = vld [vmem:[%s974 + $0x6c] sm:$0xf]
      %v2309 = vld [vmem:[%s974 + $0x70] sm:$0xf]
      %v2310 = vld [vmem:[%s974 + $0x78] sm:$0xf]
      %v2311 = vld [vmem:[%s974 + $0x7c] sm:$0xf]
      %v2312 = vld [vmem:[%s974 + $0x84] sm:$0xf]
      %v2313 = vld [vmem:[%s974 + $0x88] sm:$0xf]
      %v2314 = vld [vmem:[%s974 + $0x90] sm:$0xf]
      %v2315 = vld [vmem:[%s974 + $0x94] sm:$0xf]
      %v2316 = vld [vmem:[%s974 + $0x9c] sm:$0xf]
      %v2317 = vld [vmem:[%s974 + $0xa0] sm:$0xf]
      %v2318 = vld [vmem:[%s974 + $0xa8] sm:$0xf]
      %v2319 = vld [vmem:[%s974 + $0xac] sm:$0xf]
      %v2320 = vld [vmem:[%s974 + $0xb4] sm:$0xf]
      %v2321 = vld [vmem:[%s974 + $0xb8] sm:$0xf]
      %v2322 = vld [vmem:[%s974 + $0xc0] sm:$0xf]
      %v2323 = vld [vmem:[%s974 + $0xc4] sm:$0xf]
      %v2324 = vld [vmem:[%s974 + $0xcc] sm:$0xf]
      %v2325 = vld [vmem:[%s974 + $0xd0] sm:$0xf]
      %v2326 = vunpack.c.l.bf16 %v2290
      %v2327 = vunpack.c.l.bf16 %v2291
      %v2328 = vunpack.c.l.bf16 %v2292
      %v2329 = vunpack.c.l.bf16 %v2293
      %v2330 = vunpack.c.l.bf16 %v2294
      %v2331 = vunpack.c.l.bf16 %v2295
      %v2332 = vunpack.c.l.bf16 %v2296
      %v2333 = vunpack.c.l.bf16 %v2297
      %v2334 = vunpack.c.l.bf16 %v2298
      %v2335 = vunpack.c.l.bf16 %v2299
      %v2336 = vunpack.c.l.bf16 %v2300
      %v2337 = vunpack.c.l.bf16 %v2301
      %v2338 = vunpack.c.l.bf16 %v2302
      %v2339 = vunpack.c.l.bf16 %v2303
      %v2340 = vunpack.c.l.bf16 %v2304
      %v2341 = vunpack.c.l.bf16 %v2305
      %v2342 = vunpack.c.l.bf16 %v2306
      %v2343 = vunpack.c.l.bf16 %v2307
      %v2344 = vunpack.c.l.bf16 %v2308
      %v2345 = vunpack.c.l.bf16 %v2309
      %v2346 = vunpack.c.l.bf16 %v2310
      %v2347 = vunpack.c.l.bf16 %v2311
      %v2348 = vunpack.c.l.bf16 %v2312
      %v2349 = vunpack.c.l.bf16 %v2313
      %v2350 = vunpack.c.l.bf16 %v2314
      %v2351 = vunpack.c.l.bf16 %v2315
      %v2352 = vunpack.c.l.bf16 %v2316
      %v2353 = vunpack.c.l.bf16 %v2317
      %v2354 = vunpack.c.l.bf16 %v2318
      %v2355 = vunpack.c.l.bf16 %v2319
      %v2356 = vunpack.c.l.bf16 %v2320
      %v2357 = vunpack.c.l.bf16 %v2321
      %v2358 = vunpack.c.l.bf16 %v2322
      %v2359 = vunpack.c.l.bf16 %v2323
      %v2360 = vunpack.c.l.bf16 %v2324
      %v2361 = vunpack.c.l.bf16 %v2325
      %s2362 = scalar_lea.vmem %s7, 4
      %v2363 = vld [vmem:[%s2362] sm:$0x1]
      %v2364 = vlaneseq
      %v2365 = vshrl.u32 %v2364, 7
      %v2366 = vsub.s32 0, %v2365
      %v2367 = vrot.slane %v2363, %v2366
      %v2368 = vmul.f32 %v2326, %v2367
      %v2369 = vmul.f32 %v2327, %v2367
      %v2370 = vmul.f32 %v2328, %v2367
      %v2371 = vmul.f32 %v2329, %v2367
      %v2372 = vmul.f32 %v2330, %v2367
      %v2373 = vmul.f32 %v2331, %v2367
      %v2374 = vmul.f32 %v2332, %v2367
      %v2375 = vmul.f32 %v2333, %v2367
      %v2376 = vmul.f32 %v2334, %v2367
      %v2377 = vmul.f32 %v2335, %v2367
      %v2378 = vmul.f32 %v2336, %v2367
      %v2379 = vmul.f32 %v2337, %v2367
      %v2380 = vmul.f32 %v2338, %v2367
      %v2381 = vmul.f32 %v2339, %v2367
      %v2382 = vmul.f32 %v2340, %v2367
      %v2383 = vmul.f32 %v2341, %v2367
      %v2384 = vmul.f32 %v2342, %v2367
      %v2385 = vmul.f32 %v2343, %v2367
      %v2386 = vmul.f32 %v2344, %v2367
      %v2387 = vmul.f32 %v2345, %v2367
      %v2388 = vmul.f32 %v2346, %v2367
      %v2389 = vmul.f32 %v2347, %v2367
      %v2390 = vmul.f32 %v2348, %v2367
      %v2391 = vmul.f32 %v2349, %v2367
      %v2392 = vmul.f32 %v2350, %v2367
      %v2393 = vmul.f32 %v2351, %v2367
      %v2394 = vmul.f32 %v2352, %v2367
      %v2395 = vmul.f32 %v2353, %v2367
      %v2396 = vmul.f32 %v2354, %v2367
      %v2397 = vmul.f32 %v2355, %v2367
      %v2398 = vmul.f32 %v2356, %v2367
      %v2399 = vmul.f32 %v2357, %v2367
      %v2400 = vmul.f32 %v2358, %v2367
      %v2401 = vmul.f32 %v2359, %v2367
      %v2402 = vmul.f32 %v2360, %v2367
      %v2403 = vmul.f32 %v2361, %v2367
      %v2404 = vadd.f32 %v2254, %v2368
      %v2405 = vadd.f32 %v2255, %v2369
      %v2406 = vadd.f32 %v2256, %v2370
      %v2407 = vadd.f32 %v2257, %v2371
      %v2408 = vadd.f32 %v2258, %v2372
      %v2409 = vadd.f32 %v2259, %v2373
      %v2410 = vadd.f32 %v2260, %v2374
      %v2411 = vadd.f32 %v2261, %v2375
      %v2412 = vadd.f32 %v2262, %v2376
      %v2413 = vadd.f32 %v2263, %v2377
      %v2414 = vadd.f32 %v2264, %v2378
      %v2415 = vadd.f32 %v2265, %v2379
      %v2416 = vadd.f32 %v2266, %v2380
      %v2417 = vadd.f32 %v2267, %v2381
      %v2418 = vadd.f32 %v2268, %v2382
      %v2419 = vadd.f32 %v2269, %v2383
      %v2420 = vadd.f32 %v2270, %v2384
      %v2421 = vadd.f32 %v2271, %v2385
      %v2422 = vadd.f32 %v2272, %v2386
      %v2423 = vadd.f32 %v2273, %v2387
      %v2424 = vadd.f32 %v2274, %v2388
      %v2425 = vadd.f32 %v2275, %v2389
      %v2426 = vadd.f32 %v2276, %v2390
      %v2427 = vadd.f32 %v2277, %v2391
      %v2428 = vadd.f32 %v2278, %v2392
      %v2429 = vadd.f32 %v2279, %v2393
      %v2430 = vadd.f32 %v2280, %v2394
      %v2431 = vadd.f32 %v2281, %v2395
      %v2432 = vadd.f32 %v2282, %v2396
      %v2433 = vadd.f32 %v2283, %v2397
      %v2434 = vadd.f32 %v2284, %v2398
      %v2435 = vadd.f32 %v2285, %v2399
      %v2436 = vadd.f32 %v2286, %v2400
      %v2437 = vadd.f32 %v2287, %v2401
      %v2438 = vadd.f32 %v2288, %v2402
      %v2439 = vadd.f32 %v2289, %v2403
      %v2440 = vld [vmem:[%s974 + $0x8] sm:$0x1]
      %v2441 = vld [vmem:[%s974 + $0x14] sm:$0x1]
      %v2442 = vld [vmem:[%s974 + $0x20] sm:$0x1]
      %v2443 = vld [vmem:[%s974 + $0x2c] sm:$0x1]
      %v2444 = vld [vmem:[%s974 + $0x38] sm:$0x1]
      %v2445 = vld [vmem:[%s974 + $0x44] sm:$0x1]
      %v2446 = vld [vmem:[%s974 + $0x50] sm:$0x1]
      %v2447 = vld [vmem:[%s974 + $0x5c] sm:$0x1]
      %v2448 = vld [vmem:[%s974 + $0x68] sm:$0x1]
      %v2449 = vld [vmem:[%s974 + $0x74] sm:$0x1]
      %v2450 = vld [vmem:[%s974 + $0x80] sm:$0x1]
      %v2451 = vld [vmem:[%s974 + $0x8c] sm:$0x1]
      %v2452 = vld [vmem:[%s974 + $0x98] sm:$0x1]
      %v2453 = vld [vmem:[%s974 + $0xa4] sm:$0x1]
      %v2454 = vld [vmem:[%s974 + $0xb0] sm:$0x1]
      %v2455 = vld [vmem:[%s974 + $0xbc] sm:$0x1]
      %v2456 = vld [vmem:[%s974 + $0xc8] sm:$0x1]
      %v2457 = vld [vmem:[%s974 + $0xd4] sm:$0x1]
      %v2458 = vunpack.c.l.bf16 %v2440
      %v2459 = vunpack.c.l.bf16 %v2441
      %v2460 = vunpack.c.l.bf16 %v2442
      %v2461 = vunpack.c.l.bf16 %v2443
      %v2462 = vunpack.c.l.bf16 %v2444
      %v2463 = vunpack.c.l.bf16 %v2445
      %v2464 = vunpack.c.l.bf16 %v2446
      %v2465 = vunpack.c.l.bf16 %v2447
      %v2466 = vunpack.c.l.bf16 %v2448
      %v2467 = vunpack.c.l.bf16 %v2449
      %v2468 = vunpack.c.l.bf16 %v2450
      %v2469 = vunpack.c.l.bf16 %v2451
      %v2470 = vunpack.c.l.bf16 %v2452
      %v2471 = vunpack.c.l.bf16 %v2453
      %v2472 = vunpack.c.l.bf16 %v2454
      %v2473 = vunpack.c.l.bf16 %v2455
      %v2474 = vunpack.c.l.bf16 %v2456
      %v2475 = vunpack.c.l.bf16 %v2457
      %v2476 = vld [vmem:[%s2362 + $0x1] sm:$0x1]
      %v2477 = vlaneseq
      %v2478 = vshrl.u32 %v2477, 7
      %v2479 = vsub.s32 0, %v2478
      %v2480 = vrot.slane %v2476, %v2479
      %v2481 = vmul.f32 %v2326, %v2480
      %v2482 = vmul.f32 %v2327, %v2480
      %v2483 = vmul.f32 %v2458, %v2480
      %v2484 = vmul.f32 %v2328, %v2480
      %v2485 = vmul.f32 %v2329, %v2480
      %v2486 = vmul.f32 %v2459, %v2480
      %v2487 = vmul.f32 %v2330, %v2480
      %v2488 = vmul.f32 %v2331, %v2480
      %v2489 = vmul.f32 %v2460, %v2480
      %v2490 = vmul.f32 %v2332, %v2480
      %v2491 = vmul.f32 %v2333, %v2480
      %v2492 = vmul.f32 %v2461, %v2480
      %v2493 = vmul.f32 %v2334, %v2480
      %v2494 = vmul.f32 %v2335, %v2480
      %v2495 = vmul.f32 %v2462, %v2480
      %v2496 = vmul.f32 %v2336, %v2480
      %v2497 = vmul.f32 %v2337, %v2480
      %v2498 = vmul.f32 %v2463, %v2480
      %v2499 = vmul.f32 %v2338, %v2480
      %v2500 = vmul.f32 %v2339, %v2480
      %v2501 = vmul.f32 %v2464, %v2480
      %v2502 = vmul.f32 %v2340, %v2480
      %v2503 = vmul.f32 %v2341, %v2480
      %v2504 = vmul.f32 %v2465, %v2480
      %v2505 = vmul.f32 %v2342, %v2480
      %v2506 = vmul.f32 %v2343, %v2480
      %v2507 = vmul.f32 %v2466, %v2480
      %v2508 = vmul.f32 %v2344, %v2480
      %v2509 = vmul.f32 %v2345, %v2480
      %v2510 = vmul.f32 %v2467, %v2480
      %v2511 = vmul.f32 %v2346, %v2480
      %v2512 = vmul.f32 %v2347, %v2480
      %v2513 = vmul.f32 %v2468, %v2480
      %v2514 = vmul.f32 %v2348, %v2480
      %v2515 = vmul.f32 %v2349, %v2480
      %v2516 = vmul.f32 %v2469, %v2480
      %v2517 = vmul.f32 %v2350, %v2480
      %v2518 = vmul.f32 %v2351, %v2480
      %v2519 = vmul.f32 %v2470, %v2480
      %v2520 = vmul.f32 %v2352, %v2480
      %v2521 = vmul.f32 %v2353, %v2480
      %v2522 = vmul.f32 %v2471, %v2480
      %v2523 = vmul.f32 %v2354, %v2480
      %v2524 = vmul.f32 %v2355, %v2480
      %v2525 = vmul.f32 %v2472, %v2480
      %v2526 = vmul.f32 %v2356, %v2480
      %v2527 = vmul.f32 %v2357, %v2480
      %v2528 = vmul.f32 %v2473, %v2480
      %v2529 = vmul.f32 %v2358, %v2480
      %v2530 = vmul.f32 %v2359, %v2480
      %v2531 = vmul.f32 %v2474, %v2480
      %v2532 = vmul.f32 %v2360, %v2480
      %v2533 = vmul.f32 %v2361, %v2480
      %v2534 = vmul.f32 %v2475, %v2480
      %v2589 = vrot.slane %v2481, 1
      %v2590 = vrot.slane %v2482, 1
      %v2591 = vsel %vm1815, %v2589, %v2590
      %v2592 = vrot.slane %v2483, 1
      %v2593 = vsel %vm1815, %v2590, %v2592
      %v2594 = vrot.slane %v2484, 1
      %v2595 = vrot.slane %v2485, 1
      %v2596 = vsel %vm1815, %v2594, %v2595
      %v2597 = vrot.slane %v2486, 1
      %v2598 = vsel %vm1815, %v2595, %v2597
      %v2599 = vrot.slane %v2487, 1
      %v2600 = vrot.slane %v2488, 1
      %v2601 = vsel %vm1815, %v2599, %v2600
      %v2602 = vrot.slane %v2489, 1
      %v2603 = vsel %vm1815, %v2600, %v2602
      %v2604 = vrot.slane %v2490, 1
      %v2605 = vrot.slane %v2491, 1
      %v2606 = vsel %vm1815, %v2604, %v2605
      %v2607 = vrot.slane %v2492, 1
      %v2608 = vsel %vm1815, %v2605, %v2607
      %v2609 = vrot.slane %v2493, 1
      %v2610 = vrot.slane %v2494, 1
      %v2611 = vsel %vm1815, %v2609, %v2610
      %v2612 = vrot.slane %v2495, 1
      %v2613 = vsel %vm1815, %v2610, %v2612
      %v2614 = vrot.slane %v2496, 1
      %v2615 = vrot.slane %v2497, 1
      %v2616 = vsel %vm1815, %v2614, %v2615
      %v2617 = vrot.slane %v2498, 1
      %v2618 = vsel %vm1815, %v2615, %v2617
      %v2619 = vrot.slane %v2499, 1
      %v2620 = vrot.slane %v2500, 1
      %v2621 = vsel %vm1815, %v2619, %v2620
      %v2622 = vrot.slane %v2501, 1
      %v2623 = vsel %vm1815, %v2620, %v2622
      %v2624 = vrot.slane %v2502, 1
      %v2625 = vrot.slane %v2503, 1
      %v2626 = vsel %vm1815, %v2624, %v2625
      %v2627 = vrot.slane %v2504, 1
      %v2628 = vsel %vm1815, %v2625, %v2627
      %v2629 = vrot.slane %v2505, 1
      %v2630 = vrot.slane %v2506, 1
      %v2631 = vsel %vm1815, %v2629, %v2630
      %v2632 = vrot.slane %v2507, 1
      %v2633 = vsel %vm1815, %v2630, %v2632
      %v2634 = vrot.slane %v2508, 1
      %v2635 = vrot.slane %v2509, 1
      %v2636 = vsel %vm1815, %v2634, %v2635
      %v2637 = vrot.slane %v2510, 1
      %v2638 = vsel %vm1815, %v2635, %v2637
      %v2639 = vrot.slane %v2511, 1
      %v2640 = vrot.slane %v2512, 1
      %v2641 = vsel %vm1815, %v2639, %v2640
      %v2642 = vrot.slane %v2513, 1
      %v2643 = vsel %vm1815, %v2640, %v2642
      %v2644 = vrot.slane %v2514, 1
      %v2645 = vrot.slane %v2515, 1
      %v2646 = vsel %vm1815, %v2644, %v2645
      %v2647 = vrot.slane %v2516, 1
      %v2648 = vsel %vm1815, %v2645, %v2647
      %v2649 = vrot.slane %v2517, 1
      %v2650 = vrot.slane %v2518, 1
      %v2651 = vsel %vm1815, %v2649, %v2650
      %v2652 = vrot.slane %v2519, 1
      %v2653 = vsel %vm1815, %v2650, %v2652
      %v2654 = vrot.slane %v2520, 1
      %v2655 = vrot.slane %v2521, 1
      %v2656 = vsel %vm1815, %v2654, %v2655
      %v2657 = vrot.slane %v2522, 1
      %v2658 = vsel %vm1815, %v2655, %v2657
      %v2659 = vrot.slane %v2523, 1
      %v2660 = vrot.slane %v2524, 1
      %v2661 = vsel %vm1815, %v2659, %v2660
      %v2662 = vrot.slane %v2525, 1
      %v2663 = vsel %vm1815, %v2660, %v2662
      %v2664 = vrot.slane %v2526, 1
      %v2665 = vrot.slane %v2527, 1
      %v2666 = vsel %vm1815, %v2664, %v2665
      %v2667 = vrot.slane %v2528, 1
      %v2668 = vsel %vm1815, %v2665, %v2667
      %v2669 = vrot.slane %v2529, 1
      %v2670 = vrot.slane %v2530, 1
      %v2671 = vsel %vm1815, %v2669, %v2670
      %v2672 = vrot.slane %v2531, 1
      %v2673 = vsel %vm1815, %v2670, %v2672
      %v2674 = vrot.slane %v2532, 1
      %v2675 = vrot.slane %v2533, 1
      %v2676 = vsel %vm1815, %v2674, %v2675
      %v2677 = vrot.slane %v2534, 1
      %v2678 = vsel %vm1815, %v2675, %v2677
      %v2715 = vadd.f32 %v2404, %v2591
      %v2716 = vadd.f32 %v2405, %v2593
      %v2717 = vadd.f32 %v2406, %v2596
      %v2718 = vadd.f32 %v2407, %v2598
      %v2719 = vadd.f32 %v2408, %v2601
      %v2720 = vadd.f32 %v2409, %v2603
      %v2721 = vadd.f32 %v2410, %v2606
      %v2722 = vadd.f32 %v2411, %v2608
      %v2723 = vadd.f32 %v2412, %v2611
      %v2724 = vadd.f32 %v2413, %v2613
      %v2725 = vadd.f32 %v2414, %v2616
      %v2726 = vadd.f32 %v2415, %v2618
      %v2727 = vadd.f32 %v2416, %v2621
      %v2728 = vadd.f32 %v2417, %v2623
      %v2729 = vadd.f32 %v2418, %v2626
      %v2730 = vadd.f32 %v2419, %v2628
      %v2731 = vadd.f32 %v2420, %v2631
      %v2732 = vadd.f32 %v2421, %v2633
      %v2733 = vadd.f32 %v2422, %v2636
      %v2734 = vadd.f32 %v2423, %v2638
      %v2735 = vadd.f32 %v2424, %v2641
      %v2736 = vadd.f32 %v2425, %v2643
      %v2737 = vadd.f32 %v2426, %v2646
      %v2738 = vadd.f32 %v2427, %v2648
      %v2739 = vadd.f32 %v2428, %v2651
      %v2740 = vadd.f32 %v2429, %v2653
      %v2741 = vadd.f32 %v2430, %v2656
      %v2742 = vadd.f32 %v2431, %v2658
      %v2743 = vadd.f32 %v2432, %v2661
      %v2744 = vadd.f32 %v2433, %v2663
      %v2745 = vadd.f32 %v2434, %v2666
      %v2746 = vadd.f32 %v2435, %v2668
      %v2747 = vadd.f32 %v2436, %v2671
      %v2748 = vadd.f32 %v2437, %v2673
      %v2749 = vadd.f32 %v2438, %v2676
      %v2750 = vadd.f32 %v2439, %v2678
      %v2751 = vld [vmem:[%s974] sm:$0xe]
      %v2752 = vld [vmem:[%s974 + $0xc] sm:$0xe]
      %v2753 = vld [vmem:[%s974 + $0x18] sm:$0xe]
      %v2754 = vld [vmem:[%s974 + $0x24] sm:$0xe]
      %v2755 = vld [vmem:[%s974 + $0x30] sm:$0xe]
      %v2756 = vld [vmem:[%s974 + $0x3c] sm:$0xe]
      %v2757 = vld [vmem:[%s974 + $0x48] sm:$0xe]
      %v2758 = vld [vmem:[%s974 + $0x54] sm:$0xe]
      %v2759 = vld [vmem:[%s974 + $0x60] sm:$0xe]
      %v2760 = vld [vmem:[%s974 + $0x6c] sm:$0xe]
      %v2761 = vld [vmem:[%s974 + $0x78] sm:$0xe]
      %v2762 = vld [vmem:[%s974 + $0x84] sm:$0xe]
      %v2763 = vld [vmem:[%s974 + $0x90] sm:$0xe]
      %v2764 = vld [vmem:[%s974 + $0x9c] sm:$0xe]
      %v2765 = vld [vmem:[%s974 + $0xa8] sm:$0xe]
      %v2766 = vld [vmem:[%s974 + $0xb4] sm:$0xe]
      %v2767 = vld [vmem:[%s974 + $0xc0] sm:$0xe]
      %v2768 = vld [vmem:[%s974 + $0xcc] sm:$0xe]
      %v2769 = vunpack.c.l.bf16 %v2751
      %v2770 = vunpack.c.l.bf16 %v2752
      %v2771 = vunpack.c.l.bf16 %v2753
      %v2772 = vunpack.c.l.bf16 %v2754
      %v2773 = vunpack.c.l.bf16 %v2755
      %v2774 = vunpack.c.l.bf16 %v2756
      %v2775 = vunpack.c.l.bf16 %v2757
      %v2776 = vunpack.c.l.bf16 %v2758
      %v2777 = vunpack.c.l.bf16 %v2759
      %v2778 = vunpack.c.l.bf16 %v2760
      %v2779 = vunpack.c.l.bf16 %v2761
      %v2780 = vunpack.c.l.bf16 %v2762
      %v2781 = vunpack.c.l.bf16 %v2763
      %v2782 = vunpack.c.l.bf16 %v2764
      %v2783 = vunpack.c.l.bf16 %v2765
      %v2784 = vunpack.c.l.bf16 %v2766
      %v2785 = vunpack.c.l.bf16 %v2767
      %v2786 = vunpack.c.l.bf16 %v2768
      %v2787 = vld [vmem:[%s2362 + $0x2] sm:$0x1]
      %v2788 = vlaneseq
      %v2789 = vshrl.u32 %v2788, 7
      %v2790 = vsub.s32 0, %v2789
      %v2791 = vrot.slane %v2787, %v2790
      %v2792 = vmul.f32 %v2769, %v2791
      %v2793 = vmul.f32 %v2327, %v2791
      %v2794 = vmul.f32 %v2458, %v2791
      %v2795 = vmul.f32 %v2770, %v2791
      %v2796 = vmul.f32 %v2329, %v2791
      %v2797 = vmul.f32 %v2459, %v2791
      %v2798 = vmul.f32 %v2771, %v2791
      %v2799 = vmul.f32 %v2331, %v2791
      %v2800 = vmul.f32 %v2460, %v2791
      %v2801 = vmul.f32 %v2772, %v2791
      %v2802 = vmul.f32 %v2333, %v2791
      %v2803 = vmul.f32 %v2461, %v2791
      %v2804 = vmul.f32 %v2773, %v2791
      %v2805 = vmul.f32 %v2335, %v2791
      %v2806 = vmul.f32 %v2462, %v2791
      %v2807 = vmul.f32 %v2774, %v2791
      %v2808 = vmul.f32 %v2337, %v2791
      %v2809 = vmul.f32 %v2463, %v2791
      %v2810 = vmul.f32 %v2775, %v2791
      %v2811 = vmul.f32 %v2339, %v2791
      %v2812 = vmul.f32 %v2464, %v2791
      %v2813 = vmul.f32 %v2776, %v2791
      %v2814 = vmul.f32 %v2341, %v2791
      %v2815 = vmul.f32 %v2465, %v2791
      %v2816 = vmul.f32 %v2777, %v2791
      %v2817 = vmul.f32 %v2343, %v2791
      %v2818 = vmul.f32 %v2466, %v2791
      %v2819 = vmul.f32 %v2778, %v2791
      %v2820 = vmul.f32 %v2345, %v2791
      %v2821 = vmul.f32 %v2467, %v2791
      %v2822 = vmul.f32 %v2779, %v2791
      %v2823 = vmul.f32 %v2347, %v2791
      %v2824 = vmul.f32 %v2468, %v2791
      %v2825 = vmul.f32 %v2780, %v2791
      %v2826 = vmul.f32 %v2349, %v2791
      %v2827 = vmul.f32 %v2469, %v2791
      %v2828 = vmul.f32 %v2781, %v2791
      %v2829 = vmul.f32 %v2351, %v2791
      %v2830 = vmul.f32 %v2470, %v2791
      %v2831 = vmul.f32 %v2782, %v2791
      %v2832 = vmul.f32 %v2353, %v2791
      %v2833 = vmul.f32 %v2471, %v2791
      %v2834 = vmul.f32 %v2783, %v2791
      %v2835 = vmul.f32 %v2355, %v2791
      %v2836 = vmul.f32 %v2472, %v2791
      %v2837 = vmul.f32 %v2784, %v2791
      %v2838 = vmul.f32 %v2357, %v2791
      %v2839 = vmul.f32 %v2473, %v2791
      %v2840 = vmul.f32 %v2785, %v2791
      %v2841 = vmul.f32 %v2359, %v2791
      %v2842 = vmul.f32 %v2474, %v2791
      %v2843 = vmul.f32 %v2786, %v2791
      %v2844 = vmul.f32 %v2361, %v2791
      %v2845 = vmul.f32 %v2475, %v2791
      %v2900 = vrot.slane %v2792, 2
      %v2901 = vrot.slane %v2793, 2
      %v2902 = vsel %vm2127, %v2900, %v2901
      %v2903 = vrot.slane %v2794, 2
      %v2904 = vsel %vm2127, %v2901, %v2903
      %v2905 = vrot.slane %v2795, 2
      %v2906 = vrot.slane %v2796, 2
      %v2907 = vsel %vm2127, %v2905, %v2906
      %v2908 = vrot.slane %v2797, 2
      %v2909 = vsel %vm2127, %v2906, %v2908
      %v2910 = vrot.slane %v2798, 2
      %v2911 = vrot.slane %v2799, 2
      %v2912 = vsel %vm2127, %v2910, %v2911
      %v2913 = vrot.slane %v2800, 2
      %v2914 = vsel %vm2127, %v2911, %v2913
      %v2915 = vrot.slane %v2801, 2
      %v2916 = vrot.slane %v2802, 2
      %v2917 = vsel %vm2127, %v2915, %v2916
      %v2918 = vrot.slane %v2803, 2
      %v2919 = vsel %vm2127, %v2916, %v2918
      %v2920 = vrot.slane %v2804, 2
      %v2921 = vrot.slane %v2805, 2
      %v2922 = vsel %vm2127, %v2920, %v2921
      %v2923 = vrot.slane %v2806, 2
      %v2924 = vsel %vm2127, %v2921, %v2923
      %v2925 = vrot.slane %v2807, 2
      %v2926 = vrot.slane %v2808, 2
      %v2927 = vsel %vm2127, %v2925, %v2926
      %v2928 = vrot.slane %v2809, 2
      %v2929 = vsel %vm2127, %v2926, %v2928
      %v2930 = vrot.slane %v2810, 2
      %v2931 = vrot.slane %v2811, 2
      %v2932 = vsel %vm2127, %v2930, %v2931
      %v2933 = vrot.slane %v2812, 2
      %v2934 = vsel %vm2127, %v2931, %v2933
      %v2935 = vrot.slane %v2813, 2
      %v2936 = vrot.slane %v2814, 2
      %v2937 = vsel %vm2127, %v2935, %v2936
      %v2938 = vrot.slane %v2815, 2
      %v2939 = vsel %vm2127, %v2936, %v2938
      %v2940 = vrot.slane %v2816, 2
      %v2941 = vrot.slane %v2817, 2
      %v2942 = vsel %vm2127, %v2940, %v2941
      %v2943 = vrot.slane %v2818, 2
      %v2944 = vsel %vm2127, %v2941, %v2943
      %v2945 = vrot.slane %v2819, 2
      %v2946 = vrot.slane %v2820, 2
      %v2947 = vsel %vm2127, %v2945, %v2946
      %v2948 = vrot.slane %v2821, 2
      %v2949 = vsel %vm2127, %v2946, %v2948
      %v2950 = vrot.slane %v2822, 2
      %v2951 = vrot.slane %v2823, 2
      %v2952 = vsel %vm2127, %v2950, %v2951
      %v2953 = vrot.slane %v2824, 2
      %v2954 = vsel %vm2127, %v2951, %v2953
      %v2955 = vrot.slane %v2825, 2
      %v2956 = vrot.slane %v2826, 2
      %v2957 = vsel %vm2127, %v2955, %v2956
      %v2958 = vrot.slane %v2827, 2
      %v2959 = vsel %vm2127, %v2956, %v2958
      %v2960 = vrot.slane %v2828, 2
      %v2961 = vrot.slane %v2829, 2
      %v2962 = vsel %vm2127, %v2960, %v2961
      %v2963 = vrot.slane %v2830, 2
      %v2964 = vsel %vm2127, %v2961, %v2963
      %v2965 = vrot.slane %v2831, 2
      %v2966 = vrot.slane %v2832, 2
      %v2967 = vsel %vm2127, %v2965, %v2966
      %v2968 = vrot.slane %v2833, 2
      %v2969 = vsel %vm2127, %v2966, %v2968
      %v2970 = vrot.slane %v2834, 2
      %v2971 = vrot.slane %v2835, 2
      %v2972 = vsel %vm2127, %v2970, %v2971
      %v2973 = vrot.slane %v2836, 2
      %v2974 = vsel %vm2127, %v2971, %v2973
      %v2975 = vrot.slane %v2837, 2
      %v2976 = vrot.slane %v2838, 2
      %v2977 = vsel %vm2127, %v2975, %v2976
      %v2978 = vrot.slane %v2839, 2
      %v2979 = vsel %vm2127, %v2976, %v2978
      %v2980 = vrot.slane %v2840, 2
      %v2981 = vrot.slane %v2841, 2
      %v2982 = vsel %vm2127, %v2980, %v2981
      %v2983 = vrot.slane %v2842, 2
      %v2984 = vsel %vm2127, %v2981, %v2983
      %v2985 = vrot.slane %v2843, 2
      %v2986 = vrot.slane %v2844, 2
      %v2987 = vsel %vm2127, %v2985, %v2986
      %v2988 = vrot.slane %v2845, 2
      %v2989 = vsel %vm2127, %v2986, %v2988
      %v3026 = vadd.f32 %v2715, %v2902
      %v3027 = vadd.f32 %v2716, %v2904
      %v3028 = vadd.f32 %v2717, %v2907
      %v3029 = vadd.f32 %v2718, %v2909
      %v3030 = vadd.f32 %v2719, %v2912
      %v3031 = vadd.f32 %v2720, %v2914
      %v3032 = vadd.f32 %v2721, %v2917
      %v3033 = vadd.f32 %v2722, %v2919
      %v3034 = vadd.f32 %v2723, %v2922
      %v3035 = vadd.f32 %v2724, %v2924
      %v3036 = vadd.f32 %v2725, %v2927
      %v3037 = vadd.f32 %v2726, %v2929
      %v3038 = vadd.f32 %v2727, %v2932
      %v3039 = vadd.f32 %v2728, %v2934
      %v3040 = vadd.f32 %v2729, %v2937
      %v3041 = vadd.f32 %v2730, %v2939
      %v3042 = vadd.f32 %v2731, %v2942
      %v3043 = vadd.f32 %v2732, %v2944
      %v3044 = vadd.f32 %v2733, %v2947
      %v3045 = vadd.f32 %v2734, %v2949
      %v3046 = vadd.f32 %v2735, %v2952
      %v3047 = vadd.f32 %v2736, %v2954
      %v3048 = vadd.f32 %v2737, %v2957
      %v3049 = vadd.f32 %v2738, %v2959
      %v3050 = vadd.f32 %v2739, %v2962
      %v3051 = vadd.f32 %v2740, %v2964
      %v3052 = vadd.f32 %v2741, %v2967
      %v3053 = vadd.f32 %v2742, %v2969
      %v3054 = vadd.f32 %v2743, %v2972
      %v3055 = vadd.f32 %v2744, %v2974
      %v3056 = vadd.f32 %v2745, %v2977
      %v3057 = vadd.f32 %v2746, %v2979
      %v3058 = vadd.f32 %v2747, %v2982
      %v3059 = vadd.f32 %v2748, %v2984
      %v3060 = vadd.f32 %v2749, %v2987
      %v3061 = vadd.f32 %v2750, %v2989
      %v3062 = vld [vmem:[%s1334] sm:$0xf]
      %v3063 = vld [vmem:[%s1334 + $0x4] sm:$0xf]
      %v3064 = vld [vmem:[%s1334 + $0xc] sm:$0xf]
      %v3065 = vld [vmem:[%s1334 + $0x10] sm:$0xf]
      %v3066 = vld [vmem:[%s1334 + $0x18] sm:$0xf]
      %v3067 = vld [vmem:[%s1334 + $0x1c] sm:$0xf]
      %v3068 = vld [vmem:[%s1334 + $0x24] sm:$0xf]
      %v3069 = vld [vmem:[%s1334 + $0x28] sm:$0xf]
      %v3070 = vld [vmem:[%s1334 + $0x30] sm:$0xf]
      %v3071 = vld [vmem:[%s1334 + $0x34] sm:$0xf]
      %v3072 = vld [vmem:[%s1334 + $0x3c] sm:$0xf]
      %v3073 = vld [vmem:[%s1334 + $0x40] sm:$0xf]
      %v3074 = vld [vmem:[%s1334 + $0x48] sm:$0xf]
      %v3075 = vld [vmem:[%s1334 + $0x4c] sm:$0xf]
      %v3076 = vld [vmem:[%s1334 + $0x54] sm:$0xf]
      %v3077 = vld [vmem:[%s1334 + $0x58] sm:$0xf]
      %v3078 = vld [vmem:[%s1334 + $0x60] sm:$0xf]
      %v3079 = vld [vmem:[%s1334 + $0x64] sm:$0xf]
      %v3080 = vld [vmem:[%s1334 + $0x6c] sm:$0xf]
      %v3081 = vld [vmem:[%s1334 + $0x70] sm:$0xf]
      %v3082 = vld [vmem:[%s1334 + $0x78] sm:$0xf]
      %v3083 = vld [vmem:[%s1334 + $0x7c] sm:$0xf]
      %v3084 = vld [vmem:[%s1334 + $0x84] sm:$0xf]
      %v3085 = vld [vmem:[%s1334 + $0x88] sm:$0xf]
      %v3086 = vld [vmem:[%s1334 + $0x90] sm:$0xf]
      %v3087 = vld [vmem:[%s1334 + $0x94] sm:$0xf]
      %v3088 = vld [vmem:[%s1334 + $0x9c] sm:$0xf]
      %v3089 = vld [vmem:[%s1334 + $0xa0] sm:$0xf]
      %v3090 = vld [vmem:[%s1334 + $0xa8] sm:$0xf]
      %v3091 = vld [vmem:[%s1334 + $0xac] sm:$0xf]
      %v3092 = vld [vmem:[%s1334 + $0xb4] sm:$0xf]
      %v3093 = vld [vmem:[%s1334 + $0xb8] sm:$0xf]
      %v3094 = vld [vmem:[%s1334 + $0xc0] sm:$0xf]
      %v3095 = vld [vmem:[%s1334 + $0xc4] sm:$0xf]
      %v3096 = vld [vmem:[%s1334 + $0xcc] sm:$0xf]
      %v3097 = vld [vmem:[%s1334 + $0xd0] sm:$0xf]
      %v3098 = vunpack.c.l.bf16 %v3062
      %v3099 = vunpack.c.l.bf16 %v3063
      %v3100 = vunpack.c.l.bf16 %v3064
      %v3101 = vunpack.c.l.bf16 %v3065
      %v3102 = vunpack.c.l.bf16 %v3066
      %v3103 = vunpack.c.l.bf16 %v3067
      %v3104 = vunpack.c.l.bf16 %v3068
      %v3105 = vunpack.c.l.bf16 %v3069
      %v3106 = vunpack.c.l.bf16 %v3070
      %v3107 = vunpack.c.l.bf16 %v3071
      %v3108 = vunpack.c.l.bf16 %v3072
      %v3109 = vunpack.c.l.bf16 %v3073
      %v3110 = vunpack.c.l.bf16 %v3074
      %v3111 = vunpack.c.l.bf16 %v3075
      %v3112 = vunpack.c.l.bf16 %v3076
      %v3113 = vunpack.c.l.bf16 %v3077
      %v3114 = vunpack.c.l.bf16 %v3078
      %v3115 = vunpack.c.l.bf16 %v3079
      %v3116 = vunpack.c.l.bf16 %v3080
      %v3117 = vunpack.c.l.bf16 %v3081
      %v3118 = vunpack.c.l.bf16 %v3082
      %v3119 = vunpack.c.l.bf16 %v3083
      %v3120 = vunpack.c.l.bf16 %v3084
      %v3121 = vunpack.c.l.bf16 %v3085
      %v3122 = vunpack.c.l.bf16 %v3086
      %v3123 = vunpack.c.l.bf16 %v3087
      %v3124 = vunpack.c.l.bf16 %v3088
      %v3125 = vunpack.c.l.bf16 %v3089
      %v3126 = vunpack.c.l.bf16 %v3090
      %v3127 = vunpack.c.l.bf16 %v3091
      %v3128 = vunpack.c.l.bf16 %v3092
      %v3129 = vunpack.c.l.bf16 %v3093
      %v3130 = vunpack.c.l.bf16 %v3094
      %v3131 = vunpack.c.l.bf16 %v3095
      %v3132 = vunpack.c.l.bf16 %v3096
      %v3133 = vunpack.c.l.bf16 %v3097
      %s3134 = scalar_lea.vmem %s7, 8
      %v3135 = vld [vmem:[%s3134] sm:$0x1]
      %v3136 = vlaneseq
      %v3137 = vshrl.u32 %v3136, 7
      %v3138 = vsub.s32 0, %v3137
      %v3139 = vrot.slane %v3135, %v3138
      %v3140 = vmul.f32 %v3098, %v3139
      %v3141 = vmul.f32 %v3099, %v3139
      %v3142 = vmul.f32 %v3100, %v3139
      %v3143 = vmul.f32 %v3101, %v3139
      %v3144 = vmul.f32 %v3102, %v3139
      %v3145 = vmul.f32 %v3103, %v3139
      %v3146 = vmul.f32 %v3104, %v3139
      %v3147 = vmul.f32 %v3105, %v3139
      %v3148 = vmul.f32 %v3106, %v3139
      %v3149 = vmul.f32 %v3107, %v3139
      %v3150 = vmul.f32 %v3108, %v3139
      %v3151 = vmul.f32 %v3109, %v3139
      %v3152 = vmul.f32 %v3110, %v3139
      %v3153 = vmul.f32 %v3111, %v3139
      %v3154 = vmul.f32 %v3112, %v3139
      %v3155 = vmul.f32 %v3113, %v3139
      %v3156 = vmul.f32 %v3114, %v3139
      %v3157 = vmul.f32 %v3115, %v3139
      %v3158 = vmul.f32 %v3116, %v3139
      %v3159 = vmul.f32 %v3117, %v3139
      %v3160 = vmul.f32 %v3118, %v3139
      %v3161 = vmul.f32 %v3119, %v3139
      %v3162 = vmul.f32 %v3120, %v3139
      %v3163 = vmul.f32 %v3121, %v3139
      %v3164 = vmul.f32 %v3122, %v3139
      %v3165 = vmul.f32 %v3123, %v3139
      %v3166 = vmul.f32 %v3124, %v3139
      %v3167 = vmul.f32 %v3125, %v3139
      %v3168 = vmul.f32 %v3126, %v3139
      %v3169 = vmul.f32 %v3127, %v3139
      %v3170 = vmul.f32 %v3128, %v3139
      %v3171 = vmul.f32 %v3129, %v3139
      %v3172 = vmul.f32 %v3130, %v3139
      %v3173 = vmul.f32 %v3131, %v3139
      %v3174 = vmul.f32 %v3132, %v3139
      %v3175 = vmul.f32 %v3133, %v3139
      %v3176 = vadd.f32 %v3026, %v3140
      %v3177 = vadd.f32 %v3027, %v3141
      %v3178 = vadd.f32 %v3028, %v3142
      %v3179 = vadd.f32 %v3029, %v3143
      %v3180 = vadd.f32 %v3030, %v3144
      %v3181 = vadd.f32 %v3031, %v3145
      %v3182 = vadd.f32 %v3032, %v3146
      %v3183 = vadd.f32 %v3033, %v3147
      %v3184 = vadd.f32 %v3034, %v3148
      %v3185 = vadd.f32 %v3035, %v3149
      %v3186 = vadd.f32 %v3036, %v3150
      %v3187 = vadd.f32 %v3037, %v3151
      %v3188 = vadd.f32 %v3038, %v3152
      %v3189 = vadd.f32 %v3039, %v3153
      %v3190 = vadd.f32 %v3040, %v3154
      %v3191 = vadd.f32 %v3041, %v3155
      %v3192 = vadd.f32 %v3042, %v3156
      %v3193 = vadd.f32 %v3043, %v3157
      %v3194 = vadd.f32 %v3044, %v3158
      %v3195 = vadd.f32 %v3045, %v3159
      %v3196 = vadd.f32 %v3046, %v3160
      %v3197 = vadd.f32 %v3047, %v3161
      %v3198 = vadd.f32 %v3048, %v3162
      %v3199 = vadd.f32 %v3049, %v3163
      %v3200 = vadd.f32 %v3050, %v3164
      %v3201 = vadd.f32 %v3051, %v3165
      %v3202 = vadd.f32 %v3052, %v3166
      %v3203 = vadd.f32 %v3053, %v3167
      %v3204 = vadd.f32 %v3054, %v3168
      %v3205 = vadd.f32 %v3055, %v3169
      %v3206 = vadd.f32 %v3056, %v3170
      %v3207 = vadd.f32 %v3057, %v3171
      %v3208 = vadd.f32 %v3058, %v3172
      %v3209 = vadd.f32 %v3059, %v3173
      %v3210 = vadd.f32 %v3060, %v3174
      %v3211 = vadd.f32 %v3061, %v3175
      %v3212 = vld [vmem:[%s1334 + $0x8] sm:$0x1]
      %v3213 = vld [vmem:[%s1334 + $0x14] sm:$0x1]
      %v3214 = vld [vmem:[%s1334 + $0x20] sm:$0x1]
      %v3215 = vld [vmem:[%s1334 + $0x2c] sm:$0x1]
      %v3216 = vld [vmem:[%s1334 + $0x38] sm:$0x1]
      %v3217 = vld [vmem:[%s1334 + $0x44] sm:$0x1]
      %v3218 = vld [vmem:[%s1334 + $0x50] sm:$0x1]
      %v3219 = vld [vmem:[%s1334 + $0x5c] sm:$0x1]
      %v3220 = vld [vmem:[%s1334 + $0x68] sm:$0x1]
      %v3221 = vld [vmem:[%s1334 + $0x74] sm:$0x1]
      %v3222 = vld [vmem:[%s1334 + $0x80] sm:$0x1]
      %v3223 = vld [vmem:[%s1334 + $0x8c] sm:$0x1]
      %v3224 = vld [vmem:[%s1334 + $0x98] sm:$0x1]
      %v3225 = vld [vmem:[%s1334 + $0xa4] sm:$0x1]
      %v3226 = vld [vmem:[%s1334 + $0xb0] sm:$0x1]
      %v3227 = vld [vmem:[%s1334 + $0xbc] sm:$0x1]
      %v3228 = vld [vmem:[%s1334 + $0xc8] sm:$0x1]
      %v3229 = vld [vmem:[%s1334 + $0xd4] sm:$0x1]
      %v3230 = vunpack.c.l.bf16 %v3212
      %v3231 = vunpack.c.l.bf16 %v3213
      %v3232 = vunpack.c.l.bf16 %v3214
      %v3233 = vunpack.c.l.bf16 %v3215
      %v3234 = vunpack.c.l.bf16 %v3216
      %v3235 = vunpack.c.l.bf16 %v3217
      %v3236 = vunpack.c.l.bf16 %v3218
      %v3237 = vunpack.c.l.bf16 %v3219
      %v3238 = vunpack.c.l.bf16 %v3220
      %v3239 = vunpack.c.l.bf16 %v3221
      %v3240 = vunpack.c.l.bf16 %v3222
      %v3241 = vunpack.c.l.bf16 %v3223
      %v3242 = vunpack.c.l.bf16 %v3224
      %v3243 = vunpack.c.l.bf16 %v3225
      %v3244 = vunpack.c.l.bf16 %v3226
      %v3245 = vunpack.c.l.bf16 %v3227
      %v3246 = vunpack.c.l.bf16 %v3228
      %v3247 = vunpack.c.l.bf16 %v3229
      %v3248 = vld [vmem:[%s3134 + $0x1] sm:$0x1]
      %v3249 = vlaneseq
      %v3250 = vshrl.u32 %v3249, 7
      %v3251 = vsub.s32 0, %v3250
      %v3252 = vrot.slane %v3248, %v3251
      %v3253 = vmul.f32 %v3098, %v3252
      %v3254 = vmul.f32 %v3099, %v3252
      %v3255 = vmul.f32 %v3230, %v3252
      %v3256 = vmul.f32 %v3100, %v3252
      %v3257 = vmul.f32 %v3101, %v3252
      %v3258 = vmul.f32 %v3231, %v3252
      %v3259 = vmul.f32 %v3102, %v3252
      %v3260 = vmul.f32 %v3103, %v3252
      %v3261 = vmul.f32 %v3232, %v3252
      %v3262 = vmul.f32 %v3104, %v3252
      %v3263 = vmul.f32 %v3105, %v3252
      %v3264 = vmul.f32 %v3233, %v3252
      %v3265 = vmul.f32 %v3106, %v3252
      %v3266 = vmul.f32 %v3107, %v3252
      %v3267 = vmul.f32 %v3234, %v3252
      %v3268 = vmul.f32 %v3108, %v3252
      %v3269 = vmul.f32 %v3109, %v3252
      %v3270 = vmul.f32 %v3235, %v3252
      %v3271 = vmul.f32 %v3110, %v3252
      %v3272 = vmul.f32 %v3111, %v3252
      %v3273 = vmul.f32 %v3236, %v3252
      %v3274 = vmul.f32 %v3112, %v3252
      %v3275 = vmul.f32 %v3113, %v3252
      %v3276 = vmul.f32 %v3237, %v3252
      %v3277 = vmul.f32 %v3114, %v3252
      %v3278 = vmul.f32 %v3115, %v3252
      %v3279 = vmul.f32 %v3238, %v3252
      %v3280 = vmul.f32 %v3116, %v3252
      %v3281 = vmul.f32 %v3117, %v3252
      %v3282 = vmul.f32 %v3239, %v3252
      %v3283 = vmul.f32 %v3118, %v3252
      %v3284 = vmul.f32 %v3119, %v3252
      %v3285 = vmul.f32 %v3240, %v3252
      %v3286 = vmul.f32 %v3120, %v3252
      %v3287 = vmul.f32 %v3121, %v3252
      %v3288 = vmul.f32 %v3241, %v3252
      %v3289 = vmul.f32 %v3122, %v3252
      %v3290 = vmul.f32 %v3123, %v3252
      %v3291 = vmul.f32 %v3242, %v3252
      %v3292 = vmul.f32 %v3124, %v3252
      %v3293 = vmul.f32 %v3125, %v3252
      %v3294 = vmul.f32 %v3243, %v3252
      %v3295 = vmul.f32 %v3126, %v3252
      %v3296 = vmul.f32 %v3127, %v3252
      %v3297 = vmul.f32 %v3244, %v3252
      %v3298 = vmul.f32 %v3128, %v3252
      %v3299 = vmul.f32 %v3129, %v3252
      %v3300 = vmul.f32 %v3245, %v3252
      %v3301 = vmul.f32 %v3130, %v3252
      %v3302 = vmul.f32 %v3131, %v3252
      %v3303 = vmul.f32 %v3246, %v3252
      %v3304 = vmul.f32 %v3132, %v3252
      %v3305 = vmul.f32 %v3133, %v3252
      %v3306 = vmul.f32 %v3247, %v3252
      %v3361 = vrot.slane %v3253, 1
      %v3362 = vrot.slane %v3254, 1
      %v3363 = vsel %vm1815, %v3361, %v3362
      %v3364 = vrot.slane %v3255, 1
      %v3365 = vsel %vm1815, %v3362, %v3364
      %v3366 = vrot.slane %v3256, 1
      %v3367 = vrot.slane %v3257, 1
      %v3368 = vsel %vm1815, %v3366, %v3367
      %v3369 = vrot.slane %v3258, 1
      %v3370 = vsel %vm1815, %v3367, %v3369
      %v3371 = vrot.slane %v3259, 1
      %v3372 = vrot.slane %v3260, 1
      %v3373 = vsel %vm1815, %v3371, %v3372
      %v3374 = vrot.slane %v3261, 1
      %v3375 = vsel %vm1815, %v3372, %v3374
      %v3376 = vrot.slane %v3262, 1
      %v3377 = vrot.slane %v3263, 1
      %v3378 = vsel %vm1815, %v3376, %v3377
      %v3379 = vrot.slane %v3264, 1
      %v3380 = vsel %vm1815, %v3377, %v3379
      %v3381 = vrot.slane %v3265, 1
      %v3382 = vrot.slane %v3266, 1
      %v3383 = vsel %vm1815, %v3381, %v3382
      %v3384 = vrot.slane %v3267, 1
      %v3385 = vsel %vm1815, %v3382, %v3384
      %v3386 = vrot.slane %v3268, 1
      %v3387 = vrot.slane %v3269, 1
      %v3388 = vsel %vm1815, %v3386, %v3387
      %v3389 = vrot.slane %v3270, 1
      %v3390 = vsel %vm1815, %v3387, %v3389
      %v3391 = vrot.slane %v3271, 1
      %v3392 = vrot.slane %v3272, 1
      %v3393 = vsel %vm1815, %v3391, %v3392
      %v3394 = vrot.slane %v3273, 1
      %v3395 = vsel %vm1815, %v3392, %v3394
      %v3396 = vrot.slane %v3274, 1
      %v3397 = vrot.slane %v3275, 1
      %v3398 = vsel %vm1815, %v3396, %v3397
      %v3399 = vrot.slane %v3276, 1
      %v3400 = vsel %vm1815, %v3397, %v3399
      %v3401 = vrot.slane %v3277, 1
      %v3402 = vrot.slane %v3278, 1
      %v3403 = vsel %vm1815, %v3401, %v3402
      %v3404 = vrot.slane %v3279, 1
      %v3405 = vsel %vm1815, %v3402, %v3404
      %v3406 = vrot.slane %v3280, 1
      %v3407 = vrot.slane %v3281, 1
      %v3408 = vsel %vm1815, %v3406, %v3407
      %v3409 = vrot.slane %v3282, 1
      %v3410 = vsel %vm1815, %v3407, %v3409
      %v3411 = vrot.slane %v3283, 1
      %v3412 = vrot.slane %v3284, 1
      %v3413 = vsel %vm1815, %v3411, %v3412
      %v3414 = vrot.slane %v3285, 1
      %v3415 = vsel %vm1815, %v3412, %v3414
      %v3416 = vrot.slane %v3286, 1
      %v3417 = vrot.slane %v3287, 1
      %v3418 = vsel %vm1815, %v3416, %v3417
      %v3419 = vrot.slane %v3288, 1
      %v3420 = vsel %vm1815, %v3417, %v3419
      %v3421 = vrot.slane %v3289, 1
      %v3422 = vrot.slane %v3290, 1
      %v3423 = vsel %vm1815, %v3421, %v3422
      %v3424 = vrot.slane %v3291, 1
      %v3425 = vsel %vm1815, %v3422, %v3424
      %v3426 = vrot.slane %v3292, 1
      %v3427 = vrot.slane %v3293, 1
      %v3428 = vsel %vm1815, %v3426, %v3427
      %v3429 = vrot.slane %v3294, 1
      %v3430 = vsel %vm1815, %v3427, %v3429
      %v3431 = vrot.slane %v3295, 1
      %v3432 = vrot.slane %v3296, 1
      %v3433 = vsel %vm1815, %v3431, %v3432
      %v3434 = vrot.slane %v3297, 1
      %v3435 = vsel %vm1815, %v3432, %v3434
      %v3436 = vrot.slane %v3298, 1
      %v3437 = vrot.slane %v3299, 1
      %v3438 = vsel %vm1815, %v3436, %v3437
      %v3439 = vrot.slane %v3300, 1
      %v3440 = vsel %vm1815, %v3437, %v3439
      %v3441 = vrot.slane %v3301, 1
      %v3442 = vrot.slane %v3302, 1
      %v3443 = vsel %vm1815, %v3441, %v3442
      %v3444 = vrot.slane %v3303, 1
      %v3445 = vsel %vm1815, %v3442, %v3444
      %v3446 = vrot.slane %v3304, 1
      %v3447 = vrot.slane %v3305, 1
      %v3448 = vsel %vm1815, %v3446, %v3447
      %v3449 = vrot.slane %v3306, 1
      %v3450 = vsel %vm1815, %v3447, %v3449
      %v3487 = vadd.f32 %v3176, %v3363
      %v3488 = vadd.f32 %v3177, %v3365
      %v3489 = vadd.f32 %v3178, %v3368
      %v3490 = vadd.f32 %v3179, %v3370
      %v3491 = vadd.f32 %v3180, %v3373
      %v3492 = vadd.f32 %v3181, %v3375
      %v3493 = vadd.f32 %v3182, %v3378
      %v3494 = vadd.f32 %v3183, %v3380
      %v3495 = vadd.f32 %v3184, %v3383
      %v3496 = vadd.f32 %v3185, %v3385
      %v3497 = vadd.f32 %v3186, %v3388
      %v3498 = vadd.f32 %v3187, %v3390
      %v3499 = vadd.f32 %v3188, %v3393
      %v3500 = vadd.f32 %v3189, %v3395
      %v3501 = vadd.f32 %v3190, %v3398
      %v3502 = vadd.f32 %v3191, %v3400
      %v3503 = vadd.f32 %v3192, %v3403
      %v3504 = vadd.f32 %v3193, %v3405
      %v3505 = vadd.f32 %v3194, %v3408
      %v3506 = vadd.f32 %v3195, %v3410
      %v3507 = vadd.f32 %v3196, %v3413
      %v3508 = vadd.f32 %v3197, %v3415
      %v3509 = vadd.f32 %v3198, %v3418
      %v3510 = vadd.f32 %v3199, %v3420
      %v3511 = vadd.f32 %v3200, %v3423
      %v3512 = vadd.f32 %v3201, %v3425
      %v3513 = vadd.f32 %v3202, %v3428
      %v3514 = vadd.f32 %v3203, %v3430
      %v3515 = vadd.f32 %v3204, %v3433
      %v3516 = vadd.f32 %v3205, %v3435
      %v3517 = vadd.f32 %v3206, %v3438
      %v3518 = vadd.f32 %v3207, %v3440
      %v3519 = vadd.f32 %v3208, %v3443
      %v3520 = vadd.f32 %v3209, %v3445
      %v3521 = vadd.f32 %v3210, %v3448
      %v3522 = vadd.f32 %v3211, %v3450
      %v3523 = vld [vmem:[%s1334] sm:$0xe]
      %v3524 = vld [vmem:[%s1334 + $0xc] sm:$0xe]
      %v3525 = vld [vmem:[%s1334 + $0x18] sm:$0xe]
      %v3526 = vld [vmem:[%s1334 + $0x24] sm:$0xe]
      %v3527 = vld [vmem:[%s1334 + $0x30] sm:$0xe]
      %v3528 = vld [vmem:[%s1334 + $0x3c] sm:$0xe]
      %v3529 = vld [vmem:[%s1334 + $0x48] sm:$0xe]
      %v3530 = vld [vmem:[%s1334 + $0x54] sm:$0xe]
      %v3531 = vld [vmem:[%s1334 + $0x60] sm:$0xe]
      %v3532 = vld [vmem:[%s1334 + $0x6c] sm:$0xe]
      %v3533 = vld [vmem:[%s1334 + $0x78] sm:$0xe]
      %v3534 = vld [vmem:[%s1334 + $0x84] sm:$0xe]
      %v3535 = vld [vmem:[%s1334 + $0x90] sm:$0xe]
      %v3536 = vld [vmem:[%s1334 + $0x9c] sm:$0xe]
      %v3537 = vld [vmem:[%s1334 + $0xa8] sm:$0xe]
      %v3538 = vld [vmem:[%s1334 + $0xb4] sm:$0xe]
      %v3539 = vld [vmem:[%s1334 + $0xc0] sm:$0xe]
      %v3540 = vld [vmem:[%s1334 + $0xcc] sm:$0xe]
      %v3541 = vunpack.c.l.bf16 %v3523
      %v3542 = vunpack.c.l.bf16 %v3524
      %v3543 = vunpack.c.l.bf16 %v3525
      %v3544 = vunpack.c.l.bf16 %v3526
      %v3545 = vunpack.c.l.bf16 %v3527
      %v3546 = vunpack.c.l.bf16 %v3528
      %v3547 = vunpack.c.l.bf16 %v3529
      %v3548 = vunpack.c.l.bf16 %v3530
      %v3549 = vunpack.c.l.bf16 %v3531
      %v3550 = vunpack.c.l.bf16 %v3532
      %v3551 = vunpack.c.l.bf16 %v3533
      %v3552 = vunpack.c.l.bf16 %v3534
      %v3553 = vunpack.c.l.bf16 %v3535
      %v3554 = vunpack.c.l.bf16 %v3536
      %v3555 = vunpack.c.l.bf16 %v3537
      %v3556 = vunpack.c.l.bf16 %v3538
      %v3557 = vunpack.c.l.bf16 %v3539
      %v3558 = vunpack.c.l.bf16 %v3540
      %v3559 = vld [vmem:[%s3134 + $0x2] sm:$0x1]
      %v3560 = vlaneseq
      %v3561 = vshrl.u32 %v3560, 7
      %v3562 = vsub.s32 0, %v3561
      %v3563 = vrot.slane %v3559, %v3562
      %v3564 = vmul.f32 %v3541, %v3563
      %v3565 = vmul.f32 %v3099, %v3563
      %v3566 = vmul.f32 %v3230, %v3563
      %v3567 = vmul.f32 %v3542, %v3563
      %v3568 = vmul.f32 %v3101, %v3563
      %v3569 = vmul.f32 %v3231, %v3563
      %v3570 = vmul.f32 %v3543, %v3563
      %v3571 = vmul.f32 %v3103, %v3563
      %v3572 = vmul.f32 %v3232, %v3563
      %v3573 = vmul.f32 %v3544, %v3563
      %v3574 = vmul.f32 %v3105, %v3563
      %v3575 = vmul.f32 %v3233, %v3563
      %v3576 = vmul.f32 %v3545, %v3563
      %v3577 = vmul.f32 %v3107, %v3563
      %v3578 = vmul.f32 %v3234, %v3563
      %v3579 = vmul.f32 %v3546, %v3563
      %v3580 = vmul.f32 %v3109, %v3563
      %v3581 = vmul.f32 %v3235, %v3563
      %v3582 = vmul.f32 %v3547, %v3563
      %v3583 = vmul.f32 %v3111, %v3563
      %v3584 = vmul.f32 %v3236, %v3563
      %v3585 = vmul.f32 %v3548, %v3563
      %v3586 = vmul.f32 %v3113, %v3563
      %v3587 = vmul.f32 %v3237, %v3563
      %v3588 = vmul.f32 %v3549, %v3563
      %v3589 = vmul.f32 %v3115, %v3563
      %v3590 = vmul.f32 %v3238, %v3563
      %v3591 = vmul.f32 %v3550, %v3563
      %v3592 = vmul.f32 %v3117, %v3563
      %v3593 = vmul.f32 %v3239, %v3563
      %v3594 = vmul.f32 %v3551, %v3563
      %v3595 = vmul.f32 %v3119, %v3563
      %v3596 = vmul.f32 %v3240, %v3563
      %v3597 = vmul.f32 %v3552, %v3563
      %v3598 = vmul.f32 %v3121, %v3563
      %v3599 = vmul.f32 %v3241, %v3563
      %v3600 = vmul.f32 %v3553, %v3563
      %v3601 = vmul.f32 %v3123, %v3563
      %v3602 = vmul.f32 %v3242, %v3563
      %v3603 = vmul.f32 %v3554, %v3563
      %v3604 = vmul.f32 %v3125, %v3563
      %v3605 = vmul.f32 %v3243, %v3563
      %v3606 = vmul.f32 %v3555, %v3563
      %v3607 = vmul.f32 %v3127, %v3563
      %v3608 = vmul.f32 %v3244, %v3563
      %v3609 = vmul.f32 %v3556, %v3563
      %v3610 = vmul.f32 %v3129, %v3563
      %v3611 = vmul.f32 %v3245, %v3563
      %v3612 = vmul.f32 %v3557, %v3563
      %v3613 = vmul.f32 %v3131, %v3563
      %v3614 = vmul.f32 %v3246, %v3563
      %v3615 = vmul.f32 %v3558, %v3563
      %v3616 = vmul.f32 %v3133, %v3563
      %v3617 = vmul.f32 %v3247, %v3563
      %v3672 = vrot.slane %v3564, 2
      %v3673 = vrot.slane %v3565, 2
      %v3674 = vsel %vm2127, %v3672, %v3673
      %v3675 = vrot.slane %v3566, 2
      %v3676 = vsel %vm2127, %v3673, %v3675
      %v3677 = vrot.slane %v3567, 2
      %v3678 = vrot.slane %v3568, 2
      %v3679 = vsel %vm2127, %v3677, %v3678
      %v3680 = vrot.slane %v3569, 2
      %v3681 = vsel %vm2127, %v3678, %v3680
      %v3682 = vrot.slane %v3570, 2
      %v3683 = vrot.slane %v3571, 2
      %v3684 = vsel %vm2127, %v3682, %v3683
      %v3685 = vrot.slane %v3572, 2
      %v3686 = vsel %vm2127, %v3683, %v3685
      %v3687 = vrot.slane %v3573, 2
      %v3688 = vrot.slane %v3574, 2
      %v3689 = vsel %vm2127, %v3687, %v3688
      %v3690 = vrot.slane %v3575, 2
      %v3691 = vsel %vm2127, %v3688, %v3690
      %v3692 = vrot.slane %v3576, 2
      %v3693 = vrot.slane %v3577, 2
      %v3694 = vsel %vm2127, %v3692, %v3693
      %v3695 = vrot.slane %v3578, 2
      %v3696 = vsel %vm2127, %v3693, %v3695
      %v3697 = vrot.slane %v3579, 2
      %v3698 = vrot.slane %v3580, 2
      %v3699 = vsel %vm2127, %v3697, %v3698
      %v3700 = vrot.slane %v3581, 2
      %v3701 = vsel %vm2127, %v3698, %v3700
      %v3702 = vrot.slane %v3582, 2
      %v3703 = vrot.slane %v3583, 2
      %v3704 = vsel %vm2127, %v3702, %v3703
      %v3705 = vrot.slane %v3584, 2
      %v3706 = vsel %vm2127, %v3703, %v3705
      %v3707 = vrot.slane %v3585, 2
      %v3708 = vrot.slane %v3586, 2
      %v3709 = vsel %vm2127, %v3707, %v3708
      %v3710 = vrot.slane %v3587, 2
      %v3711 = vsel %vm2127, %v3708, %v3710
      %v3712 = vrot.slane %v3588, 2
      %v3713 = vrot.slane %v3589, 2
      %v3714 = vsel %vm2127, %v3712, %v3713
      %v3715 = vrot.slane %v3590, 2
      %v3716 = vsel %vm2127, %v3713, %v3715
      %v3717 = vrot.slane %v3591, 2
      %v3718 = vrot.slane %v3592, 2
      %v3719 = vsel %vm2127, %v3717, %v3718
      %v3720 = vrot.slane %v3593, 2
      %v3721 = vsel %vm2127, %v3718, %v3720
      %v3722 = vrot.slane %v3594, 2
      %v3723 = vrot.slane %v3595, 2
      %v3724 = vsel %vm2127, %v3722, %v3723
      %v3725 = vrot.slane %v3596, 2
      %v3726 = vsel %vm2127, %v3723, %v3725
      %v3727 = vrot.slane %v3597, 2
      %v3728 = vrot.slane %v3598, 2
      %v3729 = vsel %vm2127, %v3727, %v3728
      %v3730 = vrot.slane %v3599, 2
      %v3731 = vsel %vm2127, %v3728, %v3730
      %v3732 = vrot.slane %v3600, 2
      %v3733 = vrot.slane %v3601, 2
      %v3734 = vsel %vm2127, %v3732, %v3733
      %v3735 = vrot.slane %v3602, 2
      %v3736 = vsel %vm2127, %v3733, %v3735
      %v3737 = vrot.slane %v3603, 2
      %v3738 = vrot.slane %v3604, 2
      %v3739 = vsel %vm2127, %v3737, %v3738
      %v3740 = vrot.slane %v3605, 2
      %v3741 = vsel %vm2127, %v3738, %v3740
      %v3742 = vrot.slane %v3606, 2
      %v3743 = vrot.slane %v3607, 2
      %v3744 = vsel %vm2127, %v3742, %v3743
      %v3745 = vrot.slane %v3608, 2
      %v3746 = vsel %vm2127, %v3743, %v3745
      %v3747 = vrot.slane %v3609, 2
      %v3748 = vrot.slane %v3610, 2
      %v3749 = vsel %vm2127, %v3747, %v3748
      %v3750 = vrot.slane %v3611, 2
      %v3751 = vsel %vm2127, %v3748, %v3750
      %v3752 = vrot.slane %v3612, 2
      %v3753 = vrot.slane %v3613, 2
      %v3754 = vsel %vm2127, %v3752, %v3753
      %v3755 = vrot.slane %v3614, 2
      %v3756 = vsel %vm2127, %v3753, %v3755
      %v3757 = vrot.slane %v3615, 2
      %v3758 = vrot.slane %v3616, 2
      %v3759 = vsel %vm2127, %v3757, %v3758
      %v3760 = vrot.slane %v3617, 2
      %v3761 = vsel %vm2127, %v3758, %v3760
      %v3798 = vadd.f32 %v3487, %v3674
      %v3799 = vadd.f32 %v3488, %v3676
      %v3800 = vadd.f32 %v3489, %v3679
      %v3801 = vadd.f32 %v3490, %v3681
      %v3802 = vadd.f32 %v3491, %v3684
      %v3803 = vadd.f32 %v3492, %v3686
      %v3804 = vadd.f32 %v3493, %v3689
      %v3805 = vadd.f32 %v3494, %v3691
      %v3806 = vadd.f32 %v3495, %v3694
      %v3807 = vadd.f32 %v3496, %v3696
      %v3808 = vadd.f32 %v3497, %v3699
      %v3809 = vadd.f32 %v3498, %v3701
      %v3810 = vadd.f32 %v3499, %v3704
      %v3811 = vadd.f32 %v3500, %v3706
      %v3812 = vadd.f32 %v3501, %v3709
      %v3813 = vadd.f32 %v3502, %v3711
      %v3814 = vadd.f32 %v3503, %v3714
      %v3815 = vadd.f32 %v3504, %v3716
      %v3816 = vadd.f32 %v3505, %v3719
      %v3817 = vadd.f32 %v3506, %v3721
      %v3818 = vadd.f32 %v3507, %v3724
      %v3819 = vadd.f32 %v3508, %v3726
      %v3820 = vadd.f32 %v3509, %v3729
      %v3821 = vadd.f32 %v3510, %v3731
      %v3822 = vadd.f32 %v3511, %v3734
      %v3823 = vadd.f32 %v3512, %v3736
      %v3824 = vadd.f32 %v3513, %v3739
      %v3825 = vadd.f32 %v3514, %v3741
      %v3826 = vadd.f32 %v3515, %v3744
      %v3827 = vadd.f32 %v3516, %v3746
      %v3828 = vadd.f32 %v3517, %v3749
      %v3829 = vadd.f32 %v3518, %v3751
      %v3830 = vadd.f32 %v3519, %v3754
      %v3831 = vadd.f32 %v3520, %v3756
      %v3832 = vadd.f32 %v3521, %v3759
      %v3833 = vadd.f32 %v3522, %v3761
      %v3834 = vld [vmem:[%s8] sm:$0x1]
      %v3836 = vlaneseq
      %v3837 = vshrl.u32 %v3836, 7
      %v3838 = vsub.s32 0, %v3837
      %v3839 = vrot.slane %v3834, %v3838
      %v3841 = vadd.f32 %v3798, %v3839
      %v3842 = vadd.f32 %v3799, %v3839
      %v3843 = vadd.f32 %v3800, %v3839
      %v3844 = vadd.f32 %v3801, %v3839
      %v3845 = vadd.f32 %v3802, %v3839
      %v3846 = vadd.f32 %v3803, %v3839
      %v3847 = vadd.f32 %v3804, %v3839
      %v3848 = vadd.f32 %v3805, %v3839
      %v3849 = vadd.f32 %v3806, %v3839
      %v3850 = vadd.f32 %v3807, %v3839
      %v3851 = vadd.f32 %v3808, %v3839
      %v3852 = vadd.f32 %v3809, %v3839
      %v3853 = vadd.f32 %v3810, %v3839
      %v3854 = vadd.f32 %v3811, %v3839
      %v3855 = vadd.f32 %v3812, %v3839
      %v3856 = vadd.f32 %v3813, %v3839
      %v3857 = vadd.f32 %v3814, %v3839
      %v3858 = vadd.f32 %v3815, %v3839
      %v3859 = vadd.f32 %v3816, %v3839
      %v3860 = vadd.f32 %v3817, %v3839
      %v3861 = vadd.f32 %v3818, %v3839
      %v3862 = vadd.f32 %v3819, %v3839
      %v3863 = vadd.f32 %v3820, %v3839
      %v3864 = vadd.f32 %v3821, %v3839
      %v3865 = vadd.f32 %v3822, %v3839
      %v3866 = vadd.f32 %v3823, %v3839
      %v3867 = vadd.f32 %v3824, %v3839
      %v3868 = vadd.f32 %v3825, %v3839
      %v3869 = vadd.f32 %v3826, %v3839
      %v3870 = vadd.f32 %v3827, %v3839
      %v3871 = vadd.f32 %v3828, %v3839
      %v3872 = vadd.f32 %v3829, %v3839
      %v3873 = vadd.f32 %v3830, %v3839
      %v3874 = vadd.f32 %v3831, %v3839
      %v3875 = vadd.f32 %v3832, %v3839
      %v3876 = vadd.f32 %v3833, %v3839
      %v3877 = vstv %s947
      %v3878 = vadd.s32 %v3877, 1
      %v3879 = vadd.s32 %v3877, 2
      %v3880 = vadd.s32 %v3877, 3
      %v3881 = vadd.s32 %v3877, 4
      %v3882 = vadd.s32 %v3877, 5
      %v3883 = vadd.s32 %v3877, 6
      %v3884 = vadd.s32 %v3877, 7
      %v3885 = vadd.s32 %v3877, 8
      %v3886 = vadd.s32 %v3877, 9
      %v3887 = vadd.s32 %v3877, 10
      %v3888 = vadd.s32 %v3877, 11
      %v3889 = vadd.s32 %v3877, 12
      %v3890 = vadd.s32 %v3877, 13
      %v3891 = vadd.s32 %v3877, 14
      %v3892 = vadd.s32 %v3877, 15
      %v3893 = vadd.s32 %v3877, 16
      %v3894 = vadd.s32 %v3877, 17
      %vm3895 = vcmp.ge.s32.totalorder %v3877, 0
      %vm3896 = vcmp.ge.s32.totalorder %v3878, 0
      %vm3897 = vcmp.ge.s32.totalorder %v3879, 0
      %vm3898 = vcmp.ge.s32.totalorder %v3880, 0
      %vm3899 = vcmp.ge.s32.totalorder %v3881, 0
      %vm3900 = vcmp.ge.s32.totalorder %v3882, 0
      %vm3901 = vcmp.ge.s32.totalorder %v3883, 0
      %vm3902 = vcmp.ge.s32.totalorder %v3884, 0
      %vm3903 = vcmp.ge.s32.totalorder %v3885, 0
      %vm3904 = vcmp.ge.s32.totalorder %v3886, 0
      %vm3905 = vcmp.ge.s32.totalorder %v3887, 0
      %vm3906 = vcmp.ge.s32.totalorder %v3888, 0
      %vm3907 = vcmp.ge.s32.totalorder %v3889, 0
      %vm3908 = vcmp.ge.s32.totalorder %v3890, 0
      %vm3909 = vcmp.ge.s32.totalorder %v3891, 0
      %vm3910 = vcmp.ge.s32.totalorder %v3892, 0
      %vm3911 = vcmp.ge.s32.totalorder %v3893, 0
      %vm3912 = vcmp.ge.s32.totalorder %v3894, 0
      %vm3913 = vcmp.lt.s32.totalorder %v3877, 16
      %vm3914 = vcmp.lt.s32.totalorder %v3878, 16
      %vm3915 = vcmp.lt.s32.totalorder %v3879, 16
      %vm3916 = vcmp.lt.s32.totalorder %v3880, 16
      %vm3917 = vcmp.lt.s32.totalorder %v3881, 16
      %vm3918 = vcmp.lt.s32.totalorder %v3882, 16
      %vm3919 = vcmp.lt.s32.totalorder %v3883, 16
      %vm3920 = vcmp.lt.s32.totalorder %v3884, 16
      %vm3921 = vcmp.lt.s32.totalorder %v3885, 16
      %vm3922 = vcmp.lt.s32.totalorder %v3886, 16
      %vm3923 = vcmp.lt.s32.totalorder %v3887, 16
      %vm3924 = vcmp.lt.s32.totalorder %v3888, 16
      %vm3925 = vcmp.lt.s32.totalorder %v3889, 16
      %vm3926 = vcmp.lt.s32.totalorder %v3890, 16
      %vm3927 = vcmp.lt.s32.totalorder %v3891, 16
      %vm3928 = vcmp.lt.s32.totalorder %v3892, 16
      %vm3929 = vcmp.lt.s32.totalorder %v3893, 16
      %vm3930 = vcmp.lt.s32.totalorder %v3894, 16
      %vm3931 = vmand %vm3895, %vm3913
      %vm3932 = vmand %vm3896, %vm3914
      %vm3933 = vmand %vm3897, %vm3915
      %vm3934 = vmand %vm3898, %vm3916
      %vm3935 = vmand %vm3899, %vm3917
      %vm3936 = vmand %vm3900, %vm3918
      %vm3937 = vmand %vm3901, %vm3919
      %vm3938 = vmand %vm3902, %vm3920
      %vm3939 = vmand %vm3903, %vm3921
      %vm3940 = vmand %vm3904, %vm3922
      %vm3941 = vmand %vm3905, %vm3923
      %vm3942 = vmand %vm3906, %vm3924
      %vm3943 = vmand %vm3907, %vm3925
      %vm3944 = vmand %vm3908, %vm3926
      %vm3945 = vmand %vm3909, %vm3927
      %vm3946 = vmand %vm3910, %vm3928
      %vm3947 = vmand %vm3911, %vm3929
      %vm3948 = vmand %vm3912, %vm3930
      %v3949 = vsel %vm3931, 1, 0
      %v3950 = vsel %vm3932, 1, 0
      %v3951 = vsel %vm3933, 1, 0
      %v3952 = vsel %vm3934, 1, 0
      %v3953 = vsel %vm3935, 1, 0
      %v3954 = vsel %vm3936, 1, 0
      %v3955 = vsel %vm3937, 1, 0
      %v3956 = vsel %vm3938, 1, 0
      %v3957 = vsel %vm3939, 1, 0
      %v3958 = vsel %vm3940, 1, 0
      %v3959 = vsel %vm3941, 1, 0
      %v3960 = vsel %vm3942, 1, 0
      %v3961 = vsel %vm3943, 1, 0
      %v3962 = vsel %vm3944, 1, 0
      %v3963 = vsel %vm3945, 1, 0
      %v3964 = vsel %vm3946, 1, 0
      %v3965 = vsel %vm3947, 1, 0
      %v3966 = vsel %vm3948, 1, 0
      %vm3967 = vcmp.eq.s32.totalorder %v3949, 1
      %vm3968 = vcmp.eq.s32.totalorder %v3950, 1
      %vm3969 = vcmp.eq.s32.totalorder %v3951, 1
      %vm3970 = vcmp.eq.s32.totalorder %v3952, 1
      %vm3971 = vcmp.eq.s32.totalorder %v3953, 1
      %vm3972 = vcmp.eq.s32.totalorder %v3954, 1
      %vm3973 = vcmp.eq.s32.totalorder %v3955, 1
      %vm3974 = vcmp.eq.s32.totalorder %v3956, 1
      %vm3975 = vcmp.eq.s32.totalorder %v3957, 1
      %vm3976 = vcmp.eq.s32.totalorder %v3958, 1
      %vm3977 = vcmp.eq.s32.totalorder %v3959, 1
      %vm3978 = vcmp.eq.s32.totalorder %v3960, 1
      %vm3979 = vcmp.eq.s32.totalorder %v3961, 1
      %vm3980 = vcmp.eq.s32.totalorder %v3962, 1
      %vm3981 = vcmp.eq.s32.totalorder %v3963, 1
      %vm3982 = vcmp.eq.s32.totalorder %v3964, 1
      %vm3983 = vcmp.eq.s32.totalorder %v3965, 1
      %vm3984 = vcmp.eq.s32.totalorder %v3966, 1
      %v3985 = vsel %vm3967, %v3841, 0.0
      %v3986 = vsel %vm3967, %v3842, 0.0
      %v3987 = vsel %vm3968, %v3843, 0.0
      %v3988 = vsel %vm3968, %v3844, 0.0
      %v3989 = vsel %vm3969, %v3845, 0.0
      %v3990 = vsel %vm3969, %v3846, 0.0
      %v3991 = vsel %vm3970, %v3847, 0.0
      %v3992 = vsel %vm3970, %v3848, 0.0
      %v3993 = vsel %vm3971, %v3849, 0.0
      %v3994 = vsel %vm3971, %v3850, 0.0
      %v3995 = vsel %vm3972, %v3851, 0.0
      %v3996 = vsel %vm3972, %v3852, 0.0
      %v3997 = vsel %vm3973, %v3853, 0.0
      %v3998 = vsel %vm3973, %v3854, 0.0
      %v3999 = vsel %vm3974, %v3855, 0.0
      %v4000 = vsel %vm3974, %v3856, 0.0
      %v4001 = vsel %vm3975, %v3857, 0.0
      %v4002 = vsel %vm3975, %v3858, 0.0
      %v4003 = vsel %vm3976, %v3859, 0.0
      %v4004 = vsel %vm3976, %v3860, 0.0
      %v4005 = vsel %vm3977, %v3861, 0.0
      %v4006 = vsel %vm3977, %v3862, 0.0
      %v4007 = vsel %vm3978, %v3863, 0.0
      %v4008 = vsel %vm3978, %v3864, 0.0
      %v4009 = vsel %vm3979, %v3865, 0.0
      %v4010 = vsel %vm3979, %v3866, 0.0
      %v4011 = vsel %vm3980, %v3867, 0.0
      %v4012 = vsel %vm3980, %v3868, 0.0
      %v4013 = vsel %vm3981, %v3869, 0.0
      %v4014 = vsel %vm3981, %v3870, 0.0
      %v4015 = vsel %vm3982, %v3871, 0.0
      %v4016 = vsel %vm3982, %v3872, 0.0
      %v4017 = vsel %vm3983, %v3873, 0.0
      %v4018 = vsel %vm3983, %v3874, 0.0
      %v4019 = vsel %vm3984, %v3875, 0.0
      %v4020 = vsel %vm3984, %v3876, 0.0
      %vm4021 = vcmask 90112
      %4022 = vst.msk [vmem:[#allocation3] sm:$0x1] %vm4021, 0.0
      %4023 = vst.msk [vmem:[#allocation3 + $0x18] sm:$0x1] %vm4021, 0.0
      %4024 = vst.msk [vmem:[#allocation3 + $0x30] sm:$0x1] %vm4021, 0.0
      %4025 = vst.msk [vmem:[#allocation3 + $0x48] sm:$0x1] %vm4021, 0.0
      %4026 = vst.msk [vmem:[#allocation3 + $0x60] sm:$0x1] %vm4021, 0.0
      %4027 = vst.msk [vmem:[#allocation3 + $0x78] sm:$0x1] %vm4021, 0.0
      %4028 = vst.msk [vmem:[#allocation3 + $0x90] sm:$0x1] %vm4021, 0.0
      %4029 = vst.msk [vmem:[#allocation3 + $0xa8] sm:$0x1] %vm4021, 0.0
      %4030 = vst.msk [vmem:[#allocation3 + $0xc0] sm:$0x1] %vm4021, 0.0
      %4031 = vst.msk [vmem:[#allocation3 + $0xd8] sm:$0x1] %vm4021, 0.0
      %4032 = vst.msk [vmem:[#allocation3 + $0xf0] sm:$0x1] %vm4021, 0.0
      %4033 = vst.msk [vmem:[#allocation3 + $0x108] sm:$0x1] %vm4021, 0.0
      %4034 = vst.msk [vmem:[#allocation3 + $0x120] sm:$0x1] %vm4021, 0.0
      %4035 = vst.msk [vmem:[#allocation3 + $0x138] sm:$0x1] %vm4021, 0.0
      %4036 = vst.msk [vmem:[#allocation3 + $0x150] sm:$0x1] %vm4021, 0.0
      %4037 = vst.msk [vmem:[#allocation3 + $0x168] sm:$0x1] %vm4021, 0.0
      %4038 = vst.msk [vmem:[#allocation3 + $0x180] sm:$0x1] %vm4021, 0.0
      %4039 = vst.msk [vmem:[#allocation3 + $0x198] sm:$0x1] %vm4021, 0.0
      %4040 = vst.msk [vmem:[#allocation3 + $0x11] sm:$0x1] %vm4021, 0.0
      %4041 = vst.msk [vmem:[#allocation3 + $0x29] sm:$0x1] %vm4021, 0.0
      %4042 = vst.msk [vmem:[#allocation3 + $0x41] sm:$0x1] %vm4021, 0.0
      %4043 = vst.msk [vmem:[#allocation3 + $0x59] sm:$0x1] %vm4021, 0.0
      %4044 = vst.msk [vmem:[#allocation3 + $0x71] sm:$0x1] %vm4021, 0.0
      %4045 = vst.msk [vmem:[#allocation3 + $0x89] sm:$0x1] %vm4021, 0.0
      %4046 = vst.msk [vmem:[#allocation3 + $0xa1] sm:$0x1] %vm4021, 0.0
      %4047 = vst.msk [vmem:[#allocation3 + $0xb9] sm:$0x1] %vm4021, 0.0
      %4048 = vst.msk [vmem:[#allocation3 + $0xd1] sm:$0x1] %vm4021, 0.0
      %4049 = vst.msk [vmem:[#allocation3 + $0xe9] sm:$0x1] %vm4021, 0.0
      %4050 = vst.msk [vmem:[#allocation3 + $0x101] sm:$0x1] %vm4021, 0.0
      %4051 = vst.msk [vmem:[#allocation3 + $0x119] sm:$0x1] %vm4021, 0.0
      %4052 = vst.msk [vmem:[#allocation3 + $0x131] sm:$0x1] %vm4021, 0.0
      %4053 = vst.msk [vmem:[#allocation3 + $0x149] sm:$0x1] %vm4021, 0.0
      %4054 = vst.msk [vmem:[#allocation3 + $0x161] sm:$0x1] %vm4021, 0.0
      %4055 = vst.msk [vmem:[#allocation3 + $0x179] sm:$0x1] %vm4021, 0.0
      %4056 = vst.msk [vmem:[#allocation3 + $0x191] sm:$0x1] %vm4021, 0.0
      %4057 = vst.msk [vmem:[#allocation3 + $0x1a9] sm:$0x1] %vm4021, 0.0
      %vm4058 = vcmask 97280
      %4059 = vst.msk [vmem:[#allocation3 + $0x1] sm:$0xff] %vm4058, %v3985
      %4060 = vst.msk [vmem:[#allocation3 + $0x9] sm:$0xff] %vm4058, %v3986
      %4061 = vst.msk [vmem:[#allocation3 + $0x19] sm:$0xff] %vm4058, %v3987
      %4062 = vst.msk [vmem:[#allocation3 + $0x21] sm:$0xff] %vm4058, %v3988
      %4063 = vst.msk [vmem:[#allocation3 + $0x31] sm:$0xff] %vm4058, %v3989
      %4064 = vst.msk [vmem:[#allocation3 + $0x39] sm:$0xff] %vm4058, %v3990
      %4065 = vst.msk [vmem:[#allocation3 + $0x49] sm:$0xff] %vm4058, %v3991
      %4066 = vst.msk [vmem:[#allocation3 + $0x51] sm:$0xff] %vm4058, %v3992
      %4067 = vst.msk [vmem:[#allocation3 + $0x61] sm:$0xff] %vm4058, %v3993
      %4068 = vst.msk [vmem:[#allocation3 + $0x69] sm:$0xff] %vm4058, %v3994
      %4069 = vst.msk [vmem:[#allocation3 + $0x79] sm:$0xff] %vm4058, %v3995
      %4070 = vst.msk [vmem:[#allocation3 + $0x81] sm:$0xff] %vm4058, %v3996
      %4071 = vst.msk [vmem:[#allocation3 + $0x91] sm:$0xff] %vm4058, %v3997
      %4072 = vst.msk [vmem:[#allocation3 + $0x99] sm:$0xff] %vm4058, %v3998
      %4073 = vst.msk [vmem:[#allocation3 + $0xa9] sm:$0xff] %vm4058, %v3999
      %4074 = vst.msk [vmem:[#allocation3 + $0xb1] sm:$0xff] %vm4058, %v4000
      %4075 = vst.msk [vmem:[#allocation3 + $0xc1] sm:$0xff] %vm4058, %v4001
      %4076 = vst.msk [vmem:[#allocation3 + $0xc9] sm:$0xff] %vm4058, %v4002
      %4077 = vst.msk [vmem:[#allocation3 + $0xd9] sm:$0xff] %vm4058, %v4003
      %4078 = vst.msk [vmem:[#allocation3 + $0xe1] sm:$0xff] %vm4058, %v4004
      %4079 = vst.msk [vmem:[#allocation3 + $0xf1] sm:$0xff] %vm4058, %v4005
      %4080 = vst.msk [vmem:[#allocation3 + $0xf9] sm:$0xff] %vm4058, %v4006
      %4081 = vst.msk [vmem:[#allocation3 + $0x109] sm:$0xff] %vm4058, %v4007
      %4082 = vst.msk [vmem:[#allocation3 + $0x111] sm:$0xff] %vm4058, %v4008
      %4083 = vst.msk [vmem:[#allocation3 + $0x121] sm:$0xff] %vm4058, %v4009
      %4084 = vst.msk [vmem:[#allocation3 + $0x129] sm:$0xff] %vm4058, %v4010
      %4085 = vst.msk [vmem:[#allocation3 + $0x139] sm:$0xff] %vm4058, %v4011
      %4086 = vst.msk [vmem:[#allocation3 + $0x141] sm:$0xff] %vm4058, %v4012
      %4087 = vst.msk [vmem:[#allocation3 + $0x151] sm:$0xff] %vm4058, %v4013
      %4088 = vst.msk [vmem:[#allocation3 + $0x159] sm:$0xff] %vm4058, %v4014
      %4089 = vst.msk [vmem:[#allocation3 + $0x169] sm:$0xff] %vm4058, %v4015
      %4090 = vst.msk [vmem:[#allocation3 + $0x171] sm:$0xff] %vm4058, %v4016
      %4091 = vst.msk [vmem:[#allocation3 + $0x181] sm:$0xff] %vm4058, %v4017
      %4092 = vst.msk [vmem:[#allocation3 + $0x189] sm:$0xff] %vm4058, %v4018
      %4093 = vst.msk [vmem:[#allocation3 + $0x199] sm:$0xff] %vm4058, %v4019
      %4094 = vst.msk [vmem:[#allocation3 + $0x1a1] sm:$0xff] %vm4058, %v4020
      %v4095 = vld [vmem:[#allocation3] sm:$0xff]
      %v4096 = vld [vmem:[#allocation3 + $0x8] sm:$0xff]
      %v4097 = vld [vmem:[#allocation3 + $0x18] sm:$0xff]
      %v4098 = vld [vmem:[#allocation3 + $0x20] sm:$0xff]
      %v4099 = vld [vmem:[#allocation3 + $0x30] sm:$0xff]
      %v4100 = vld [vmem:[#allocation3 + $0x38] sm:$0xff]
      %v4101 = vld [vmem:[#allocation3 + $0x48] sm:$0xff]
      %v4102 = vld [vmem:[#allocation3 + $0x50] sm:$0xff]
      %v4103 = vld [vmem:[#allocation3 + $0x60] sm:$0xff]
      %v4104 = vld [vmem:[#allocation3 + $0x68] sm:$0xff]
      %v4105 = vld [vmem:[#allocation3 + $0x78] sm:$0xff]
      %v4106 = vld [vmem:[#allocation3 + $0x80] sm:$0xff]
      %v4107 = vld [vmem:[#allocation3 + $0x90] sm:$0xff]
      %v4108 = vld [vmem:[#allocation3 + $0x98] sm:$0xff]
      %v4109 = vld [vmem:[#allocation3 + $0xa8] sm:$0xff]
      %v4110 = vld [vmem:[#allocation3 + $0xb0] sm:$0xff]
      %v4111 = vld [vmem:[#allocation3 + $0xc0] sm:$0xff]
      %v4112 = vld [vmem:[#allocation3 + $0xc8] sm:$0xff]
      %v4113 = vld [vmem:[#allocation3 + $0xd8] sm:$0xff]
      %v4114 = vld [vmem:[#allocation3 + $0xe0] sm:$0xff]
      %v4115 = vld [vmem:[#allocation3 + $0xf0] sm:$0xff]
      %v4116 = vld [vmem:[#allocation3 + $0xf8] sm:$0xff]
      %v4117 = vld [vmem:[#allocation3 + $0x108] sm:$0xff]
      %v4118 = vld [vmem:[#allocation3 + $0x110] sm:$0xff]
      %v4119 = vld [vmem:[#allocation3 + $0x120] sm:$0xff]
      %v4120 = vld [vmem:[#allocation3 + $0x128] sm:$0xff]
      %v4121 = vld [vmem:[#allocation3 + $0x138] sm:$0xff]
      %v4122 = vld [vmem:[#allocation3 + $0x140] sm:$0xff]
      %v4123 = vld [vmem:[#allocation3 + $0x150] sm:$0xff]
      %v4124 = vld [vmem:[#allocation3 + $0x158] sm:$0xff]
      %v4125 = vld [vmem:[#allocation3 + $0x168] sm:$0xff]
      %v4126 = vld [vmem:[#allocation3 + $0x170] sm:$0xff]
      %v4127 = vld [vmem:[%s9] sm:$0x1]
      %v4128 = vlaneseq
      %v4129 = vshrl.u32 %v4128, 7
      %v4130 = vsub.s32 0, %v4129
      %v4131 = vrot.slane %v4127, %v4130
      %v4132 = vmul.f32 %v4095, %v4131
      %v4133 = vmul.f32 %v4096, %v4131
      %v4134 = vmul.f32 %v4097, %v4131
      %v4135 = vmul.f32 %v4098, %v4131
      %v4136 = vmul.f32 %v4099, %v4131
      %v4137 = vmul.f32 %v4100, %v4131
      %v4138 = vmul.f32 %v4101, %v4131
      %v4139 = vmul.f32 %v4102, %v4131
      %v4140 = vmul.f32 %v4103, %v4131
      %v4141 = vmul.f32 %v4104, %v4131
      %v4142 = vmul.f32 %v4105, %v4131
      %v4143 = vmul.f32 %v4106, %v4131
      %v4144 = vmul.f32 %v4107, %v4131
      %v4145 = vmul.f32 %v4108, %v4131
      %v4146 = vmul.f32 %v4109, %v4131
      %v4147 = vmul.f32 %v4110, %v4131
      %v4148 = vmul.f32 %v4111, %v4131
      %v4149 = vmul.f32 %v4112, %v4131
      %v4150 = vmul.f32 %v4113, %v4131
      %v4151 = vmul.f32 %v4114, %v4131
      %v4152 = vmul.f32 %v4115, %v4131
      %v4153 = vmul.f32 %v4116, %v4131
      %v4154 = vmul.f32 %v4117, %v4131
      %v4155 = vmul.f32 %v4118, %v4131
      %v4156 = vmul.f32 %v4119, %v4131
      %v4157 = vmul.f32 %v4120, %v4131
      %v4158 = vmul.f32 %v4121, %v4131
      %v4159 = vmul.f32 %v4122, %v4131
      %v4160 = vmul.f32 %v4123, %v4131
      %v4161 = vmul.f32 %v4124, %v4131
      %v4162 = vmul.f32 %v4125, %v4131
      %v4163 = vmul.f32 %v4126, %v4131
      %v4164 = vadd.f32 %v4132, 0.0
      %v4165 = vadd.f32 %v4133, 0.0
      %v4166 = vadd.f32 %v4134, 0.0
      %v4167 = vadd.f32 %v4135, 0.0
      %v4168 = vadd.f32 %v4136, 0.0
      %v4169 = vadd.f32 %v4137, 0.0
      %v4170 = vadd.f32 %v4138, 0.0
      %v4171 = vadd.f32 %v4139, 0.0
      %v4172 = vadd.f32 %v4140, 0.0
      %v4173 = vadd.f32 %v4141, 0.0
      %v4174 = vadd.f32 %v4142, 0.0
      %v4175 = vadd.f32 %v4143, 0.0
      %v4176 = vadd.f32 %v4144, 0.0
      %v4177 = vadd.f32 %v4145, 0.0
      %v4178 = vadd.f32 %v4146, 0.0
      %v4179 = vadd.f32 %v4147, 0.0
      %v4180 = vadd.f32 %v4148, 0.0
      %v4181 = vadd.f32 %v4149, 0.0
      %v4182 = vadd.f32 %v4150, 0.0
      %v4183 = vadd.f32 %v4151, 0.0
      %v4184 = vadd.f32 %v4152, 0.0
      %v4185 = vadd.f32 %v4153, 0.0
      %v4186 = vadd.f32 %v4154, 0.0
      %v4187 = vadd.f32 %v4155, 0.0
      %v4188 = vadd.f32 %v4156, 0.0
      %v4189 = vadd.f32 %v4157, 0.0
      %v4190 = vadd.f32 %v4158, 0.0
      %v4191 = vadd.f32 %v4159, 0.0
      %v4192 = vadd.f32 %v4160, 0.0
      %v4193 = vadd.f32 %v4161, 0.0
      %v4194 = vadd.f32 %v4162, 0.0
      %v4195 = vadd.f32 %v4163, 0.0
      %v4196 = vld [vmem:[#allocation3 + $0x1] sm:$0xff]
      %v4197 = vld [vmem:[#allocation3 + $0x9] sm:$0xff]
      %v4198 = vld [vmem:[#allocation3 + $0x19] sm:$0xff]
      %v4199 = vld [vmem:[#allocation3 + $0x21] sm:$0xff]
      %v4200 = vld [vmem:[#allocation3 + $0x31] sm:$0xff]
      %v4201 = vld [vmem:[#allocation3 + $0x39] sm:$0xff]
      %v4202 = vld [vmem:[#allocation3 + $0x49] sm:$0xff]
      %v4203 = vld [vmem:[#allocation3 + $0x51] sm:$0xff]
      %v4204 = vld [vmem:[#allocation3 + $0x61] sm:$0xff]
      %v4205 = vld [vmem:[#allocation3 + $0x69] sm:$0xff]
      %v4206 = vld [vmem:[#allocation3 + $0x79] sm:$0xff]
      %v4207 = vld [vmem:[#allocation3 + $0x81] sm:$0xff]
      %v4208 = vld [vmem:[#allocation3 + $0x91] sm:$0xff]
      %v4209 = vld [vmem:[#allocation3 + $0x99] sm:$0xff]
      %v4210 = vld [vmem:[#allocation3 + $0xa9] sm:$0xff]
      %v4211 = vld [vmem:[#allocation3 + $0xb1] sm:$0xff]
      %v4212 = vld [vmem:[#allocation3 + $0xc1] sm:$0xff]
      %v4213 = vld [vmem:[#allocation3 + $0xc9] sm:$0xff]
      %v4214 = vld [vmem:[#allocation3 + $0xd9] sm:$0xff]
      %v4215 = vld [vmem:[#allocation3 + $0xe1] sm:$0xff]
      %v4216 = vld [vmem:[#allocation3 + $0xf1] sm:$0xff]
      %v4217 = vld [vmem:[#allocation3 + $0xf9] sm:$0xff]
      %v4218 = vld [vmem:[#allocation3 + $0x109] sm:$0xff]
      %v4219 = vld [vmem:[#allocation3 + $0x111] sm:$0xff]
      %v4220 = vld [vmem:[#allocation3 + $0x121] sm:$0xff]
      %v4221 = vld [vmem:[#allocation3 + $0x129] sm:$0xff]
      %v4222 = vld [vmem:[#allocation3 + $0x139] sm:$0xff]
      %v4223 = vld [vmem:[#allocation3 + $0x141] sm:$0xff]
      %v4224 = vld [vmem:[#allocation3 + $0x151] sm:$0xff]
      %v4225 = vld [vmem:[#allocation3 + $0x159] sm:$0xff]
      %v4226 = vld [vmem:[#allocation3 + $0x169] sm:$0xff]
      %v4227 = vld [vmem:[#allocation3 + $0x171] sm:$0xff]
      %v4228 = vld [vmem:[%s9 + $0x1] sm:$0x1]
      %v4229 = vlaneseq
      %v4230 = vshrl.u32 %v4229, 7
      %v4231 = vsub.s32 0, %v4230
      %v4232 = vrot.slane %v4228, %v4231
      %v4233 = vmul.f32 %v4196, %v4232
      %v4234 = vmul.f32 %v4197, %v4232
      %v4235 = vmul.f32 %v4198, %v4232
      %v4236 = vmul.f32 %v4199, %v4232
      %v4237 = vmul.f32 %v4200, %v4232
      %v4238 = vmul.f32 %v4201, %v4232
      %v4239 = vmul.f32 %v4202, %v4232
      %v4240 = vmul.f32 %v4203, %v4232
      %v4241 = vmul.f32 %v4204, %v4232
      %v4242 = vmul.f32 %v4205, %v4232
      %v4243 = vmul.f32 %v4206, %v4232
      %v4244 = vmul.f32 %v4207, %v4232
      %v4245 = vmul.f32 %v4208, %v4232
      %v4246 = vmul.f32 %v4209, %v4232
      %v4247 = vmul.f32 %v4210, %v4232
      %v4248 = vmul.f32 %v4211, %v4232
      %v4249 = vmul.f32 %v4212, %v4232
      %v4250 = vmul.f32 %v4213, %v4232
      %v4251 = vmul.f32 %v4214, %v4232
      %v4252 = vmul.f32 %v4215, %v4232
      %v4253 = vmul.f32 %v4216, %v4232
      %v4254 = vmul.f32 %v4217, %v4232
      %v4255 = vmul.f32 %v4218, %v4232
      %v4256 = vmul.f32 %v4219, %v4232
      %v4257 = vmul.f32 %v4220, %v4232
      %v4258 = vmul.f32 %v4221, %v4232
      %v4259 = vmul.f32 %v4222, %v4232
      %v4260 = vmul.f32 %v4223, %v4232
      %v4261 = vmul.f32 %v4224, %v4232
      %v4262 = vmul.f32 %v4225, %v4232
      %v4263 = vmul.f32 %v4226, %v4232
      %v4264 = vmul.f32 %v4227, %v4232
      %v4265 = vadd.f32 %v4164, %v4233
      %v4266 = vadd.f32 %v4165, %v4234
      %v4267 = vadd.f32 %v4166, %v4235
      %v4268 = vadd.f32 %v4167, %v4236
      %v4269 = vadd.f32 %v4168, %v4237
      %v4270 = vadd.f32 %v4169, %v4238
      %v4271 = vadd.f32 %v4170, %v4239
      %v4272 = vadd.f32 %v4171, %v4240
      %v4273 = vadd.f32 %v4172, %v4241
      %v4274 = vadd.f32 %v4173, %v4242
      %v4275 = vadd.f32 %v4174, %v4243
      %v4276 = vadd.f32 %v4175, %v4244
      %v4277 = vadd.f32 %v4176, %v4245
      %v4278 = vadd.f32 %v4177, %v4246
      %v4279 = vadd.f32 %v4178, %v4247
      %v4280 = vadd.f32 %v4179, %v4248
      %v4281 = vadd.f32 %v4180, %v4249
      %v4282 = vadd.f32 %v4181, %v4250
      %v4283 = vadd.f32 %v4182, %v4251
      %v4284 = vadd.f32 %v4183, %v4252
      %v4285 = vadd.f32 %v4184, %v4253
      %v4286 = vadd.f32 %v4185, %v4254
      %v4287 = vadd.f32 %v4186, %v4255
      %v4288 = vadd.f32 %v4187, %v4256
      %v4289 = vadd.f32 %v4188, %v4257
      %v4290 = vadd.f32 %v4189, %v4258
      %v4291 = vadd.f32 %v4190, %v4259
      %v4292 = vadd.f32 %v4191, %v4260
      %v4293 = vadd.f32 %v4192, %v4261
      %v4294 = vadd.f32 %v4193, %v4262
      %v4295 = vadd.f32 %v4194, %v4263
      %v4296 = vadd.f32 %v4195, %v4264
      %v4297 = vld [vmem:[#allocation3 + $0x2] sm:$0xff]
      %v4298 = vld [vmem:[#allocation3 + $0xa] sm:$0xff]
      %v4299 = vld [vmem:[#allocation3 + $0x1a] sm:$0xff]
      %v4300 = vld [vmem:[#allocation3 + $0x22] sm:$0xff]
      %v4301 = vld [vmem:[#allocation3 + $0x32] sm:$0xff]
      %v4302 = vld [vmem:[#allocation3 + $0x3a] sm:$0xff]
      %v4303 = vld [vmem:[#allocation3 + $0x4a] sm:$0xff]
      %v4304 = vld [vmem:[#allocation3 + $0x52] sm:$0xff]
      %v4305 = vld [vmem:[#allocation3 + $0x62] sm:$0xff]
      %v4306 = vld [vmem:[#allocation3 + $0x6a] sm:$0xff]
      %v4307 = vld [vmem:[#allocation3 + $0x7a] sm:$0xff]
      %v4308 = vld [vmem:[#allocation3 + $0x82] sm:$0xff]
      %v4309 = vld [vmem:[#allocation3 + $0x92] sm:$0xff]
      %v4310 = vld [vmem:[#allocation3 + $0x9a] sm:$0xff]
      %v4311 = vld [vmem:[#allocation3 + $0xaa] sm:$0xff]
      %v4312 = vld [vmem:[#allocation3 + $0xb2] sm:$0xff]
      %v4313 = vld [vmem:[#allocation3 + $0xc2] sm:$0xff]
      %v4314 = vld [vmem:[#allocation3 + $0xca] sm:$0xff]
      %v4315 = vld [vmem:[#allocation3 + $0xda] sm:$0xff]
      %v4316 = vld [vmem:[#allocation3 + $0xe2] sm:$0xff]
      %v4317 = vld [vmem:[#allocation3 + $0xf2] sm:$0xff]
      %v4318 = vld [vmem:[#allocation3 + $0xfa] sm:$0xff]
      %v4319 = vld [vmem:[#allocation3 + $0x10a] sm:$0xff]
      %v4320 = vld [vmem:[#allocation3 + $0x112] sm:$0xff]
      %v4321 = vld [vmem:[#allocation3 + $0x122] sm:$0xff]
      %v4322 = vld [vmem:[#allocation3 + $0x12a] sm:$0xff]
      %v4323 = vld [vmem:[#allocation3 + $0x13a] sm:$0xff]
      %v4324 = vld [vmem:[#allocation3 + $0x142] sm:$0xff]
      %v4325 = vld [vmem:[#allocation3 + $0x152] sm:$0xff]
      %v4326 = vld [vmem:[#allocation3 + $0x15a] sm:$0xff]
      %v4327 = vld [vmem:[#allocation3 + $0x16a] sm:$0xff]
      %v4328 = vld [vmem:[#allocation3 + $0x172] sm:$0xff]
      %v4329 = vld [vmem:[%s9 + $0x2] sm:$0x1]
      %v4330 = vlaneseq
      %v4331 = vshrl.u32 %v4330, 7
      %v4332 = vsub.s32 0, %v4331
      %v4333 = vrot.slane %v4329, %v4332
      %v4334 = vmul.f32 %v4297, %v4333
      %v4335 = vmul.f32 %v4298, %v4333
      %v4336 = vmul.f32 %v4299, %v4333
      %v4337 = vmul.f32 %v4300, %v4333
      %v4338 = vmul.f32 %v4301, %v4333
      %v4339 = vmul.f32 %v4302, %v4333
      %v4340 = vmul.f32 %v4303, %v4333
      %v4341 = vmul.f32 %v4304, %v4333
      %v4342 = vmul.f32 %v4305, %v4333
      %v4343 = vmul.f32 %v4306, %v4333
      %v4344 = vmul.f32 %v4307, %v4333
      %v4345 = vmul.f32 %v4308, %v4333
      %v4346 = vmul.f32 %v4309, %v4333
      %v4347 = vmul.f32 %v4310, %v4333
      %v4348 = vmul.f32 %v4311, %v4333
      %v4349 = vmul.f32 %v4312, %v4333
      %v4350 = vmul.f32 %v4313, %v4333
      %v4351 = vmul.f32 %v4314, %v4333
      %v4352 = vmul.f32 %v4315, %v4333
      %v4353 = vmul.f32 %v4316, %v4333
      %v4354 = vmul.f32 %v4317, %v4333
      %v4355 = vmul.f32 %v4318, %v4333
      %v4356 = vmul.f32 %v4319, %v4333
      %v4357 = vmul.f32 %v4320, %v4333
      %v4358 = vmul.f32 %v4321, %v4333
      %v4359 = vmul.f32 %v4322, %v4333
      %v4360 = vmul.f32 %v4323, %v4333
      %v4361 = vmul.f32 %v4324, %v4333
      %v4362 = vmul.f32 %v4325, %v4333
      %v4363 = vmul.f32 %v4326, %v4333
      %v4364 = vmul.f32 %v4327, %v4333
      %v4365 = vmul.f32 %v4328, %v4333
      %v4366 = vadd.f32 %v4265, %v4334
      %v4367 = vadd.f32 %v4266, %v4335
      %v4368 = vadd.f32 %v4267, %v4336
      %v4369 = vadd.f32 %v4268, %v4337
      %v4370 = vadd.f32 %v4269, %v4338
      %v4371 = vadd.f32 %v4270, %v4339
      %v4372 = vadd.f32 %v4271, %v4340
      %v4373 = vadd.f32 %v4272, %v4341
      %v4374 = vadd.f32 %v4273, %v4342
      %v4375 = vadd.f32 %v4274, %v4343
      %v4376 = vadd.f32 %v4275, %v4344
      %v4377 = vadd.f32 %v4276, %v4345
      %v4378 = vadd.f32 %v4277, %v4346
      %v4379 = vadd.f32 %v4278, %v4347
      %v4380 = vadd.f32 %v4279, %v4348
      %v4381 = vadd.f32 %v4280, %v4349
      %v4382 = vadd.f32 %v4281, %v4350
      %v4383 = vadd.f32 %v4282, %v4351
      %v4384 = vadd.f32 %v4283, %v4352
      %v4385 = vadd.f32 %v4284, %v4353
      %v4386 = vadd.f32 %v4285, %v4354
      %v4387 = vadd.f32 %v4286, %v4355
      %v4388 = vadd.f32 %v4287, %v4356
      %v4389 = vadd.f32 %v4288, %v4357
      %v4390 = vadd.f32 %v4289, %v4358
      %v4391 = vadd.f32 %v4290, %v4359
      %v4392 = vadd.f32 %v4291, %v4360
      %v4393 = vadd.f32 %v4292, %v4361
      %v4394 = vadd.f32 %v4293, %v4362
      %v4395 = vadd.f32 %v4294, %v4363
      %v4396 = vadd.f32 %v4295, %v4364
      %v4397 = vadd.f32 %v4296, %v4365
      %s4398 = scalar_lea.vmem [#allocation3], 24
      %v4399 = vld [vmem:[%s4398] sm:$0xff]
      %v4400 = vld [vmem:[%s4398 + $0x8] sm:$0xff]
      %v4401 = vld [vmem:[%s4398 + $0x18] sm:$0xff]
      %v4402 = vld [vmem:[%s4398 + $0x20] sm:$0xff]
      %v4403 = vld [vmem:[%s4398 + $0x30] sm:$0xff]
      %v4404 = vld [vmem:[%s4398 + $0x38] sm:$0xff]
      %v4405 = vld [vmem:[%s4398 + $0x48] sm:$0xff]
      %v4406 = vld [vmem:[%s4398 + $0x50] sm:$0xff]
      %v4407 = vld [vmem:[%s4398 + $0x60] sm:$0xff]
      %v4408 = vld [vmem:[%s4398 + $0x68] sm:$0xff]
      %v4409 = vld [vmem:[%s4398 + $0x78] sm:$0xff]
      %v4410 = vld [vmem:[%s4398 + $0x80] sm:$0xff]
      %v4411 = vld [vmem:[%s4398 + $0x90] sm:$0xff]
      %v4412 = vld [vmem:[%s4398 + $0x98] sm:$0xff]
      %v4413 = vld [vmem:[%s4398 + $0xa8] sm:$0xff]
      %v4414 = vld [vmem:[%s4398 + $0xb0] sm:$0xff]
      %v4415 = vld [vmem:[%s4398 + $0xc0] sm:$0xff]
      %v4416 = vld [vmem:[%s4398 + $0xc8] sm:$0xff]
      %v4417 = vld [vmem:[%s4398 + $0xd8] sm:$0xff]
      %v4418 = vld [vmem:[%s4398 + $0xe0] sm:$0xff]
      %v4419 = vld [vmem:[%s4398 + $0xf0] sm:$0xff]
      %v4420 = vld [vmem:[%s4398 + $0xf8] sm:$0xff]
      %v4421 = vld [vmem:[%s4398 + $0x108] sm:$0xff]
      %v4422 = vld [vmem:[%s4398 + $0x110] sm:$0xff]
      %v4423 = vld [vmem:[%s4398 + $0x120] sm:$0xff]
      %v4424 = vld [vmem:[%s4398 + $0x128] sm:$0xff]
      %v4425 = vld [vmem:[%s4398 + $0x138] sm:$0xff]
      %v4426 = vld [vmem:[%s4398 + $0x140] sm:$0xff]
      %v4427 = vld [vmem:[%s4398 + $0x150] sm:$0xff]
      %v4428 = vld [vmem:[%s4398 + $0x158] sm:$0xff]
      %v4429 = vld [vmem:[%s4398 + $0x168] sm:$0xff]
      %v4430 = vld [vmem:[%s4398 + $0x170] sm:$0xff]
      %s4431 = scalar_lea.vmem %s9, 4
      %v4432 = vld [vmem:[%s4431] sm:$0x1]
      %v4433 = vlaneseq
      %v4434 = vshrl.u32 %v4433, 7
      %v4435 = vsub.s32 0, %v4434
      %v4436 = vrot.slane %v4432, %v4435
      %v4437 = vmul.f32 %v4399, %v4436
      %v4438 = vmul.f32 %v4400, %v4436
      %v4439 = vmul.f32 %v4401, %v4436
      %v4440 = vmul.f32 %v4402, %v4436
      %v4441 = vmul.f32 %v4403, %v4436
      %v4442 = vmul.f32 %v4404, %v4436
      %v4443 = vmul.f32 %v4405, %v4436
      %v4444 = vmul.f32 %v4406, %v4436
      %v4445 = vmul.f32 %v4407, %v4436
      %v4446 = vmul.f32 %v4408, %v4436
      %v4447 = vmul.f32 %v4409, %v4436
      %v4448 = vmul.f32 %v4410, %v4436
      %v4449 = vmul.f32 %v4411, %v4436
      %v4450 = vmul.f32 %v4412, %v4436
      %v4451 = vmul.f32 %v4413, %v4436
      %v4452 = vmul.f32 %v4414, %v4436
      %v4453 = vmul.f32 %v4415, %v4436
      %v4454 = vmul.f32 %v4416, %v4436
      %v4455 = vmul.f32 %v4417, %v4436
      %v4456 = vmul.f32 %v4418, %v4436
      %v4457 = vmul.f32 %v4419, %v4436
      %v4458 = vmul.f32 %v4420, %v4436
      %v4459 = vmul.f32 %v4421, %v4436
      %v4460 = vmul.f32 %v4422, %v4436
      %v4461 = vmul.f32 %v4423, %v4436
      %v4462 = vmul.f32 %v4424, %v4436
      %v4463 = vmul.f32 %v4425, %v4436
      %v4464 = vmul.f32 %v4426, %v4436
      %v4465 = vmul.f32 %v4427, %v4436
      %v4466 = vmul.f32 %v4428, %v4436
      %v4467 = vmul.f32 %v4429, %v4436
      %v4468 = vmul.f32 %v4430, %v4436
      %v4469 = vadd.f32 %v4366, %v4437
      %v4470 = vadd.f32 %v4367, %v4438
      %v4471 = vadd.f32 %v4368, %v4439
      %v4472 = vadd.f32 %v4369, %v4440
      %v4473 = vadd.f32 %v4370, %v4441
      %v4474 = vadd.f32 %v4371, %v4442
      %v4475 = vadd.f32 %v4372, %v4443
      %v4476 = vadd.f32 %v4373, %v4444
      %v4477 = vadd.f32 %v4374, %v4445
      %v4478 = vadd.f32 %v4375, %v4446
      %v4479 = vadd.f32 %v4376, %v4447
      %v4480 = vadd.f32 %v4377, %v4448
      %v4481 = vadd.f32 %v4378, %v4449
      %v4482 = vadd.f32 %v4379, %v4450
      %v4483 = vadd.f32 %v4380, %v4451
      %v4484 = vadd.f32 %v4381, %v4452
      %v4485 = vadd.f32 %v4382, %v4453
      %v4486 = vadd.f32 %v4383, %v4454
      %v4487 = vadd.f32 %v4384, %v4455
      %v4488 = vadd.f32 %v4385, %v4456
      %v4489 = vadd.f32 %v4386, %v4457
      %v4490 = vadd.f32 %v4387, %v4458
      %v4491 = vadd.f32 %v4388, %v4459
      %v4492 = vadd.f32 %v4389, %v4460
      %v4493 = vadd.f32 %v4390, %v4461
      %v4494 = vadd.f32 %v4391, %v4462
      %v4495 = vadd.f32 %v4392, %v4463
      %v4496 = vadd.f32 %v4393, %v4464
      %v4497 = vadd.f32 %v4394, %v4465
      %v4498 = vadd.f32 %v4395, %v4466
      %v4499 = vadd.f32 %v4396, %v4467
      %v4500 = vadd.f32 %v4397, %v4468
      %v4501 = vld [vmem:[%s4398 + $0x1] sm:$0xff]
      %v4502 = vld [vmem:[%s4398 + $0x9] sm:$0xff]
      %v4503 = vld [vmem:[%s4398 + $0x19] sm:$0xff]
      %v4504 = vld [vmem:[%s4398 + $0x21] sm:$0xff]
      %v4505 = vld [vmem:[%s4398 + $0x31] sm:$0xff]
      %v4506 = vld [vmem:[%s4398 + $0x39] sm:$0xff]
      %v4507 = vld [vmem:[%s4398 + $0x49] sm:$0xff]
      %v4508 = vld [vmem:[%s4398 + $0x51] sm:$0xff]
      %v4509 = vld [vmem:[%s4398 + $0x61] sm:$0xff]
      %v4510 = vld [vmem:[%s4398 + $0x69] sm:$0xff]
      %v4511 = vld [vmem:[%s4398 + $0x79] sm:$0xff]
      %v4512 = vld [vmem:[%s4398 + $0x81] sm:$0xff]
      %v4513 = vld [vmem:[%s4398 + $0x91] sm:$0xff]
      %v4514 = vld [vmem:[%s4398 + $0x99] sm:$0xff]
      %v4515 = vld [vmem:[%s4398 + $0xa9] sm:$0xff]
      %v4516 = vld [vmem:[%s4398 + $0xb1] sm:$0xff]
      %v4517 = vld [vmem:[%s4398 + $0xc1] sm:$0xff]
      %v4518 = vld [vmem:[%s4398 + $0xc9] sm:$0xff]
      %v4519 = vld [vmem:[%s4398 + $0xd9] sm:$0xff]
      %v4520 = vld [vmem:[%s4398 + $0xe1] sm:$0xff]
      %v4521 = vld [vmem:[%s4398 + $0xf1] sm:$0xff]
      %v4522 = vld [vmem:[%s4398 + $0xf9] sm:$0xff]
      %v4523 = vld [vmem:[%s4398 + $0x109] sm:$0xff]
      %v4524 = vld [vmem:[%s4398 + $0x111] sm:$0xff]
      %v4525 = vld [vmem:[%s4398 + $0x121] sm:$0xff]
      %v4526 = vld [vmem:[%s4398 + $0x129] sm:$0xff]
      %v4527 = vld [vmem:[%s4398 + $0x139] sm:$0xff]
      %v4528 = vld [vmem:[%s4398 + $0x141] sm:$0xff]
      %v4529 = vld [vmem:[%s4398 + $0x151] sm:$0xff]
      %v4530 = vld [vmem:[%s4398 + $0x159] sm:$0xff]
      %v4531 = vld [vmem:[%s4398 + $0x169] sm:$0xff]
      %v4532 = vld [vmem:[%s4398 + $0x171] sm:$0xff]
      %v4533 = vld [vmem:[%s4431 + $0x1] sm:$0x1]
      %v4534 = vlaneseq
      %v4535 = vshrl.u32 %v4534, 7
      %v4536 = vsub.s32 0, %v4535
      %v4537 = vrot.slane %v4533, %v4536
      %v4538 = vmul.f32 %v4501, %v4537
      %v4539 = vmul.f32 %v4502, %v4537
      %v4540 = vmul.f32 %v4503, %v4537
      %v4541 = vmul.f32 %v4504, %v4537
      %v4542 = vmul.f32 %v4505, %v4537
      %v4543 = vmul.f32 %v4506, %v4537
      %v4544 = vmul.f32 %v4507, %v4537
      %v4545 = vmul.f32 %v4508, %v4537
      %v4546 = vmul.f32 %v4509, %v4537
      %v4547 = vmul.f32 %v4510, %v4537
      %v4548 = vmul.f32 %v4511, %v4537
      %v4549 = vmul.f32 %v4512, %v4537
      %v4550 = vmul.f32 %v4513, %v4537
      %v4551 = vmul.f32 %v4514, %v4537
      %v4552 = vmul.f32 %v4515, %v4537
      %v4553 = vmul.f32 %v4516, %v4537
      %v4554 = vmul.f32 %v4517, %v4537
      %v4555 = vmul.f32 %v4518, %v4537
      %v4556 = vmul.f32 %v4519, %v4537
      %v4557 = vmul.f32 %v4520, %v4537
      %v4558 = vmul.f32 %v4521, %v4537
      %v4559 = vmul.f32 %v4522, %v4537
      %v4560 = vmul.f32 %v4523, %v4537
      %v4561 = vmul.f32 %v4524, %v4537
      %v4562 = vmul.f32 %v4525, %v4537
      %v4563 = vmul.f32 %v4526, %v4537
      %v4564 = vmul.f32 %v4527, %v4537
      %v4565 = vmul.f32 %v4528, %v4537
      %v4566 = vmul.f32 %v4529, %v4537
      %v4567 = vmul.f32 %v4530, %v4537
      %v4568 = vmul.f32 %v4531, %v4537
      %v4569 = vmul.f32 %v4532, %v4537
      %v4570 = vadd.f32 %v4469, %v4538
      %v4571 = vadd.f32 %v4470, %v4539
      %v4572 = vadd.f32 %v4471, %v4540
      %v4573 = vadd.f32 %v4472, %v4541
      %v4574 = vadd.f32 %v4473, %v4542
      %v4575 = vadd.f32 %v4474, %v4543
      %v4576 = vadd.f32 %v4475, %v4544
      %v4577 = vadd.f32 %v4476, %v4545
      %v4578 = vadd.f32 %v4477, %v4546
      %v4579 = vadd.f32 %v4478, %v4547
      %v4580 = vadd.f32 %v4479, %v4548
      %v4581 = vadd.f32 %v4480, %v4549
      %v4582 = vadd.f32 %v4481, %v4550
      %v4583 = vadd.f32 %v4482, %v4551
      %v4584 = vadd.f32 %v4483, %v4552
      %v4585 = vadd.f32 %v4484, %v4553
      %v4586 = vadd.f32 %v4485, %v4554
      %v4587 = vadd.f32 %v4486, %v4555
      %v4588 = vadd.f32 %v4487, %v4556
      %v4589 = vadd.f32 %v4488, %v4557
      %v4590 = vadd.f32 %v4489, %v4558
      %v4591 = vadd.f32 %v4490, %v4559
      %v4592 = vadd.f32 %v4491, %v4560
      %v4593 = vadd.f32 %v4492, %v4561
      %v4594 = vadd.f32 %v4493, %v4562
      %v4595 = vadd.f32 %v4494, %v4563
      %v4596 = vadd.f32 %v4495, %v4564
      %v4597 = vadd.f32 %v4496, %v4565
      %v4598 = vadd.f32 %v4497, %v4566
      %v4599 = vadd.f32 %v4498, %v4567
      %v4600 = vadd.f32 %v4499, %v4568
      %v4601 = vadd.f32 %v4500, %v4569
      %v4602 = vld [vmem:[%s4398 + $0x2] sm:$0xff]
      %v4603 = vld [vmem:[%s4398 + $0xa] sm:$0xff]
      %v4604 = vld [vmem:[%s4398 + $0x1a] sm:$0xff]
      %v4605 = vld [vmem:[%s4398 + $0x22] sm:$0xff]
      %v4606 = vld [vmem:[%s4398 + $0x32] sm:$0xff]
      %v4607 = vld [vmem:[%s4398 + $0x3a] sm:$0xff]
      %v4608 = vld [vmem:[%s4398 + $0x4a] sm:$0xff]
      %v4609 = vld [vmem:[%s4398 + $0x52] sm:$0xff]
      %v4610 = vld [vmem:[%s4398 + $0x62] sm:$0xff]
      %v4611 = vld [vmem:[%s4398 + $0x6a] sm:$0xff]
      %v4612 = vld [vmem:[%s4398 + $0x7a] sm:$0xff]
      %v4613 = vld [vmem:[%s4398 + $0x82] sm:$0xff]
      %v4614 = vld [vmem:[%s4398 + $0x92] sm:$0xff]
      %v4615 = vld [vmem:[%s4398 + $0x9a] sm:$0xff]
      %v4616 = vld [vmem:[%s4398 + $0xaa] sm:$0xff]
      %v4617 = vld [vmem:[%s4398 + $0xb2] sm:$0xff]
      %v4618 = vld [vmem:[%s4398 + $0xc2] sm:$0xff]
      %v4619 = vld [vmem:[%s4398 + $0xca] sm:$0xff]
      %v4620 = vld [vmem:[%s4398 + $0xda] sm:$0xff]
      %v4621 = vld [vmem:[%s4398 + $0xe2] sm:$0xff]
      %v4622 = vld [vmem:[%s4398 + $0xf2] sm:$0xff]
      %v4623 = vld [vmem:[%s4398 + $0xfa] sm:$0xff]
      %v4624 = vld [vmem:[%s4398 + $0x10a] sm:$0xff]
      %v4625 = vld [vmem:[%s4398 + $0x112] sm:$0xff]
      %v4626 = vld [vmem:[%s4398 + $0x122] sm:$0xff]
      %v4627 = vld [vmem:[%s4398 + $0x12a] sm:$0xff]
      %v4628 = vld [vmem:[%s4398 + $0x13a] sm:$0xff]
      %v4629 = vld [vmem:[%s4398 + $0x142] sm:$0xff]
      %v4630 = vld [vmem:[%s4398 + $0x152] sm:$0xff]
      %v4631 = vld [vmem:[%s4398 + $0x15a] sm:$0xff]
      %v4632 = vld [vmem:[%s4398 + $0x16a] sm:$0xff]
      %v4633 = vld [vmem:[%s4398 + $0x172] sm:$0xff]
      %v4634 = vld [vmem:[%s4431 + $0x2] sm:$0x1]
      %v4635 = vlaneseq
      %v4636 = vshrl.u32 %v4635, 7
      %v4637 = vsub.s32 0, %v4636
      %v4638 = vrot.slane %v4634, %v4637
      %v4639 = vmul.f32 %v4602, %v4638
      %v4640 = vmul.f32 %v4603, %v4638
      %v4641 = vmul.f32 %v4604, %v4638
      %v4642 = vmul.f32 %v4605, %v4638
      %v4643 = vmul.f32 %v4606, %v4638
      %v4644 = vmul.f32 %v4607, %v4638
      %v4645 = vmul.f32 %v4608, %v4638
      %v4646 = vmul.f32 %v4609, %v4638
      %v4647 = vmul.f32 %v4610, %v4638
      %v4648 = vmul.f32 %v4611, %v4638
      %v4649 = vmul.f32 %v4612, %v4638
      %v4650 = vmul.f32 %v4613, %v4638
      %v4651 = vmul.f32 %v4614, %v4638
      %v4652 = vmul.f32 %v4615, %v4638
      %v4653 = vmul.f32 %v4616, %v4638
      %v4654 = vmul.f32 %v4617, %v4638
      %v4655 = vmul.f32 %v4618, %v4638
      %v4656 = vmul.f32 %v4619, %v4638
      %v4657 = vmul.f32 %v4620, %v4638
      %v4658 = vmul.f32 %v4621, %v4638
      %v4659 = vmul.f32 %v4622, %v4638
      %v4660 = vmul.f32 %v4623, %v4638
      %v4661 = vmul.f32 %v4624, %v4638
      %v4662 = vmul.f32 %v4625, %v4638
      %v4663 = vmul.f32 %v4626, %v4638
      %v4664 = vmul.f32 %v4627, %v4638
      %v4665 = vmul.f32 %v4628, %v4638
      %v4666 = vmul.f32 %v4629, %v4638
      %v4667 = vmul.f32 %v4630, %v4638
      %v4668 = vmul.f32 %v4631, %v4638
      %v4669 = vmul.f32 %v4632, %v4638
      %v4670 = vmul.f32 %v4633, %v4638
      %v4671 = vadd.f32 %v4570, %v4639
      %v4672 = vadd.f32 %v4571, %v4640
      %v4673 = vadd.f32 %v4572, %v4641
      %v4674 = vadd.f32 %v4573, %v4642
      %v4675 = vadd.f32 %v4574, %v4643
      %v4676 = vadd.f32 %v4575, %v4644
      %v4677 = vadd.f32 %v4576, %v4645
      %v4678 = vadd.f32 %v4577, %v4646
      %v4679 = vadd.f32 %v4578, %v4647
      %v4680 = vadd.f32 %v4579, %v4648
      %v4681 = vadd.f32 %v4580, %v4649
      %v4682 = vadd.f32 %v4581, %v4650
      %v4683 = vadd.f32 %v4582, %v4651
      %v4684 = vadd.f32 %v4583, %v4652
      %v4685 = vadd.f32 %v4584, %v4653
      %v4686 = vadd.f32 %v4585, %v4654
      %v4687 = vadd.f32 %v4586, %v4655
      %v4688 = vadd.f32 %v4587, %v4656
      %v4689 = vadd.f32 %v4588, %v4657
      %v4690 = vadd.f32 %v4589, %v4658
      %v4691 = vadd.f32 %v4590, %v4659
      %v4692 = vadd.f32 %v4591, %v4660
      %v4693 = vadd.f32 %v4592, %v4661
      %v4694 = vadd.f32 %v4593, %v4662
      %v4695 = vadd.f32 %v4594, %v4663
      %v4696 = vadd.f32 %v4595, %v4664
      %v4697 = vadd.f32 %v4596, %v4665
      %v4698 = vadd.f32 %v4597, %v4666
      %v4699 = vadd.f32 %v4598, %v4667
      %v4700 = vadd.f32 %v4599, %v4668
      %v4701 = vadd.f32 %v4600, %v4669
      %v4702 = vadd.f32 %v4601, %v4670
      %s4703 = scalar_lea.vmem [#allocation3], 48
      %v4704 = vld [vmem:[%s4703] sm:$0xff]
      %v4705 = vld [vmem:[%s4703 + $0x8] sm:$0xff]
      %v4706 = vld [vmem:[%s4703 + $0x18] sm:$0xff]
      %v4707 = vld [vmem:[%s4703 + $0x20] sm:$0xff]
      %v4708 = vld [vmem:[%s4703 + $0x30] sm:$0xff]
      %v4709 = vld [vmem:[%s4703 + $0x38] sm:$0xff]
      %v4710 = vld [vmem:[%s4703 + $0x48] sm:$0xff]
      %v4711 = vld [vmem:[%s4703 + $0x50] sm:$0xff]
      %v4712 = vld [vmem:[%s4703 + $0x60] sm:$0xff]
      %v4713 = vld [vmem:[%s4703 + $0x68] sm:$0xff]
      %v4714 = vld [vmem:[%s4703 + $0x78] sm:$0xff]
      %v4715 = vld [vmem:[%s4703 + $0x80] sm:$0xff]
      %v4716 = vld [vmem:[%s4703 + $0x90] sm:$0xff]
      %v4717 = vld [vmem:[%s4703 + $0x98] sm:$0xff]
      %v4718 = vld [vmem:[%s4703 + $0xa8] sm:$0xff]
      %v4719 = vld [vmem:[%s4703 + $0xb0] sm:$0xff]
      %v4720 = vld [vmem:[%s4703 + $0xc0] sm:$0xff]
      %v4721 = vld [vmem:[%s4703 + $0xc8] sm:$0xff]
      %v4722 = vld [vmem:[%s4703 + $0xd8] sm:$0xff]
      %v4723 = vld [vmem:[%s4703 + $0xe0] sm:$0xff]
      %v4724 = vld [vmem:[%s4703 + $0xf0] sm:$0xff]
      %v4725 = vld [vmem:[%s4703 + $0xf8] sm:$0xff]
      %v4726 = vld [vmem:[%s4703 + $0x108] sm:$0xff]
      %v4727 = vld [vmem:[%s4703 + $0x110] sm:$0xff]
      %v4728 = vld [vmem:[%s4703 + $0x120] sm:$0xff]
      %v4729 = vld [vmem:[%s4703 + $0x128] sm:$0xff]
      %v4730 = vld [vmem:[%s4703 + $0x138] sm:$0xff]
      %v4731 = vld [vmem:[%s4703 + $0x140] sm:$0xff]
      %v4732 = vld [vmem:[%s4703 + $0x150] sm:$0xff]
      %v4733 = vld [vmem:[%s4703 + $0x158] sm:$0xff]
      %v4734 = vld [vmem:[%s4703 + $0x168] sm:$0xff]
      %v4735 = vld [vmem:[%s4703 + $0x170] sm:$0xff]
      %s4736 = scalar_lea.vmem %s9, 8
      %v4737 = vld [vmem:[%s4736] sm:$0x1]
      %v4738 = vlaneseq
      %v4739 = vshrl.u32 %v4738, 7
      %v4740 = vsub.s32 0, %v4739
      %v4741 = vrot.slane %v4737, %v4740
      %v4742 = vmul.f32 %v4704, %v4741
      %v4743 = vmul.f32 %v4705, %v4741
      %v4744 = vmul.f32 %v4706, %v4741
      %v4745 = vmul.f32 %v4707, %v4741
      %v4746 = vmul.f32 %v4708, %v4741
      %v4747 = vmul.f32 %v4709, %v4741
      %v4748 = vmul.f32 %v4710, %v4741
      %v4749 = vmul.f32 %v4711, %v4741
      %v4750 = vmul.f32 %v4712, %v4741
      %v4751 = vmul.f32 %v4713, %v4741
      %v4752 = vmul.f32 %v4714, %v4741
      %v4753 = vmul.f32 %v4715, %v4741
      %v4754 = vmul.f32 %v4716, %v4741
      %v4755 = vmul.f32 %v4717, %v4741
      %v4756 = vmul.f32 %v4718, %v4741
      %v4757 = vmul.f32 %v4719, %v4741
      %v4758 = vmul.f32 %v4720, %v4741
      %v4759 = vmul.f32 %v4721, %v4741
      %v4760 = vmul.f32 %v4722, %v4741
      %v4761 = vmul.f32 %v4723, %v4741
      %v4762 = vmul.f32 %v4724, %v4741
      %v4763 = vmul.f32 %v4725, %v4741
      %v4764 = vmul.f32 %v4726, %v4741
      %v4765 = vmul.f32 %v4727, %v4741
      %v4766 = vmul.f32 %v4728, %v4741
      %v4767 = vmul.f32 %v4729, %v4741
      %v4768 = vmul.f32 %v4730, %v4741
      %v4769 = vmul.f32 %v4731, %v4741
      %v4770 = vmul.f32 %v4732, %v4741
      %v4771 = vmul.f32 %v4733, %v4741
      %v4772 = vmul.f32 %v4734, %v4741
      %v4773 = vmul.f32 %v4735, %v4741
      %v4774 = vadd.f32 %v4671, %v4742
      %v4775 = vadd.f32 %v4672, %v4743
      %v4776 = vadd.f32 %v4673, %v4744
      %v4777 = vadd.f32 %v4674, %v4745
      %v4778 = vadd.f32 %v4675, %v4746
      %v4779 = vadd.f32 %v4676, %v4747
      %v4780 = vadd.f32 %v4677, %v4748
      %v4781 = vadd.f32 %v4678, %v4749
      %v4782 = vadd.f32 %v4679, %v4750
      %v4783 = vadd.f32 %v4680, %v4751
      %v4784 = vadd.f32 %v4681, %v4752
      %v4785 = vadd.f32 %v4682, %v4753
      %v4786 = vadd.f32 %v4683, %v4754
      %v4787 = vadd.f32 %v4684, %v4755
      %v4788 = vadd.f32 %v4685, %v4756
      %v4789 = vadd.f32 %v4686, %v4757
      %v4790 = vadd.f32 %v4687, %v4758
      %v4791 = vadd.f32 %v4688, %v4759
      %v4792 = vadd.f32 %v4689, %v4760
      %v4793 = vadd.f32 %v4690, %v4761
      %v4794 = vadd.f32 %v4691, %v4762
      %v4795 = vadd.f32 %v4692, %v4763
      %v4796 = vadd.f32 %v4693, %v4764
      %v4797 = vadd.f32 %v4694, %v4765
      %v4798 = vadd.f32 %v4695, %v4766
      %v4799 = vadd.f32 %v4696, %v4767
      %v4800 = vadd.f32 %v4697, %v4768
      %v4801 = vadd.f32 %v4698, %v4769
      %v4802 = vadd.f32 %v4699, %v4770
      %v4803 = vadd.f32 %v4700, %v4771
      %v4804 = vadd.f32 %v4701, %v4772
      %v4805 = vadd.f32 %v4702, %v4773
      %v4806 = vld [vmem:[%s4703 + $0x1] sm:$0xff]
      %v4807 = vld [vmem:[%s4703 + $0x9] sm:$0xff]
      %v4808 = vld [vmem:[%s4703 + $0x19] sm:$0xff]
      %v4809 = vld [vmem:[%s4703 + $0x21] sm:$0xff]
      %v4810 = vld [vmem:[%s4703 + $0x31] sm:$0xff]
      %v4811 = vld [vmem:[%s4703 + $0x39] sm:$0xff]
      %v4812 = vld [vmem:[%s4703 + $0x49] sm:$0xff]
      %v4813 = vld [vmem:[%s4703 + $0x51] sm:$0xff]
      %v4814 = vld [vmem:[%s4703 + $0x61] sm:$0xff]
      %v4815 = vld [vmem:[%s4703 + $0x69] sm:$0xff]
      %v4816 = vld [vmem:[%s4703 + $0x79] sm:$0xff]
      %v4817 = vld [vmem:[%s4703 + $0x81] sm:$0xff]
      %v4818 = vld [vmem:[%s4703 + $0x91] sm:$0xff]
      %v4819 = vld [vmem:[%s4703 + $0x99] sm:$0xff]
      %v4820 = vld [vmem:[%s4703 + $0xa9] sm:$0xff]
      %v4821 = vld [vmem:[%s4703 + $0xb1] sm:$0xff]
      %v4822 = vld [vmem:[%s4703 + $0xc1] sm:$0xff]
      %v4823 = vld [vmem:[%s4703 + $0xc9] sm:$0xff]
      %v4824 = vld [vmem:[%s4703 + $0xd9] sm:$0xff]
      %v4825 = vld [vmem:[%s4703 + $0xe1] sm:$0xff]
      %v4826 = vld [vmem:[%s4703 + $0xf1] sm:$0xff]
      %v4827 = vld [vmem:[%s4703 + $0xf9] sm:$0xff]
      %v4828 = vld [vmem:[%s4703 + $0x109] sm:$0xff]
      %v4829 = vld [vmem:[%s4703 + $0x111] sm:$0xff]
      %v4830 = vld [vmem:[%s4703 + $0x121] sm:$0xff]
      %v4831 = vld [vmem:[%s4703 + $0x129] sm:$0xff]
      %v4832 = vld [vmem:[%s4703 + $0x139] sm:$0xff]
      %v4833 = vld [vmem:[%s4703 + $0x141] sm:$0xff]
      %v4834 = vld [vmem:[%s4703 + $0x151] sm:$0xff]
      %v4835 = vld [vmem:[%s4703 + $0x159] sm:$0xff]
      %v4836 = vld [vmem:[%s4703 + $0x169] sm:$0xff]
      %v4837 = vld [vmem:[%s4703 + $0x171] sm:$0xff]
      %v4838 = vld [vmem:[%s4736 + $0x1] sm:$0x1]
      %v4839 = vlaneseq
      %v4840 = vshrl.u32 %v4839, 7
      %v4841 = vsub.s32 0, %v4840
      %v4842 = vrot.slane %v4838, %v4841
      %v4843 = vmul.f32 %v4806, %v4842
      %v4844 = vmul.f32 %v4807, %v4842
      %v4845 = vmul.f32 %v4808, %v4842
      %v4846 = vmul.f32 %v4809, %v4842
      %v4847 = vmul.f32 %v4810, %v4842
      %v4848 = vmul.f32 %v4811, %v4842
      %v4849 = vmul.f32 %v4812, %v4842
      %v4850 = vmul.f32 %v4813, %v4842
      %v4851 = vmul.f32 %v4814, %v4842
      %v4852 = vmul.f32 %v4815, %v4842
      %v4853 = vmul.f32 %v4816, %v4842
      %v4854 = vmul.f32 %v4817, %v4842
      %v4855 = vmul.f32 %v4818, %v4842
      %v4856 = vmul.f32 %v4819, %v4842
      %v4857 = vmul.f32 %v4820, %v4842
      %v4858 = vmul.f32 %v4821, %v4842
      %v4859 = vmul.f32 %v4822, %v4842
      %v4860 = vmul.f32 %v4823, %v4842
      %v4861 = vmul.f32 %v4824, %v4842
      %v4862 = vmul.f32 %v4825, %v4842
      %v4863 = vmul.f32 %v4826, %v4842
      %v4864 = vmul.f32 %v4827, %v4842
      %v4865 = vmul.f32 %v4828, %v4842
      %v4866 = vmul.f32 %v4829, %v4842
      %v4867 = vmul.f32 %v4830, %v4842
      %v4868 = vmul.f32 %v4831, %v4842
      %v4869 = vmul.f32 %v4832, %v4842
      %v4870 = vmul.f32 %v4833, %v4842
      %v4871 = vmul.f32 %v4834, %v4842
      %v4872 = vmul.f32 %v4835, %v4842
      %v4873 = vmul.f32 %v4836, %v4842
      %v4874 = vmul.f32 %v4837, %v4842
      %v4875 = vadd.f32 %v4774, %v4843
      %v4876 = vadd.f32 %v4775, %v4844
      %v4877 = vadd.f32 %v4776, %v4845
      %v4878 = vadd.f32 %v4777, %v4846
      %v4879 = vadd.f32 %v4778, %v4847
      %v4880 = vadd.f32 %v4779, %v4848
      %v4881 = vadd.f32 %v4780, %v4849
      %v4882 = vadd.f32 %v4781, %v4850
      %v4883 = vadd.f32 %v4782, %v4851
      %v4884 = vadd.f32 %v4783, %v4852
      %v4885 = vadd.f32 %v4784, %v4853
      %v4886 = vadd.f32 %v4785, %v4854
      %v4887 = vadd.f32 %v4786, %v4855
      %v4888 = vadd.f32 %v4787, %v4856
      %v4889 = vadd.f32 %v4788, %v4857
      %v4890 = vadd.f32 %v4789, %v4858
      %v4891 = vadd.f32 %v4790, %v4859
      %v4892 = vadd.f32 %v4791, %v4860
      %v4893 = vadd.f32 %v4792, %v4861
      %v4894 = vadd.f32 %v4793, %v4862
      %v4895 = vadd.f32 %v4794, %v4863
      %v4896 = vadd.f32 %v4795, %v4864
      %v4897 = vadd.f32 %v4796, %v4865
      %v4898 = vadd.f32 %v4797, %v4866
      %v4899 = vadd.f32 %v4798, %v4867
      %v4900 = vadd.f32 %v4799, %v4868
      %v4901 = vadd.f32 %v4800, %v4869
      %v4902 = vadd.f32 %v4801, %v4870
      %v4903 = vadd.f32 %v4802, %v4871
      %v4904 = vadd.f32 %v4803, %v4872
      %v4905 = vadd.f32 %v4804, %v4873
      %v4906 = vadd.f32 %v4805, %v4874
      %v4907 = vld [vmem:[%s4703 + $0x2] sm:$0xff]
      %v4908 = vld [vmem:[%s4703 + $0xa] sm:$0xff]
      %v4909 = vld [vmem:[%s4703 + $0x1a] sm:$0xff]
      %v4910 = vld [vmem:[%s4703 + $0x22] sm:$0xff]
      %v4911 = vld [vmem:[%s4703 + $0x32] sm:$0xff]
      %v4912 = vld [vmem:[%s4703 + $0x3a] sm:$0xff]
      %v4913 = vld [vmem:[%s4703 + $0x4a] sm:$0xff]
      %v4914 = vld [vmem:[%s4703 + $0x52] sm:$0xff]
      %v4915 = vld [vmem:[%s4703 + $0x62] sm:$0xff]
      %v4916 = vld [vmem:[%s4703 + $0x6a] sm:$0xff]
      %v4917 = vld [vmem:[%s4703 + $0x7a] sm:$0xff]
      %v4918 = vld [vmem:[%s4703 + $0x82] sm:$0xff]
      %v4919 = vld [vmem:[%s4703 + $0x92] sm:$0xff]
      %v4920 = vld [vmem:[%s4703 + $0x9a] sm:$0xff]
      %v4921 = vld [vmem:[%s4703 + $0xaa] sm:$0xff]
      %v4922 = vld [vmem:[%s4703 + $0xb2] sm:$0xff]
      %v4923 = vld [vmem:[%s4703 + $0xc2] sm:$0xff]
      %v4924 = vld [vmem:[%s4703 + $0xca] sm:$0xff]
      %v4925 = vld [vmem:[%s4703 + $0xda] sm:$0xff]
      %v4926 = vld [vmem:[%s4703 + $0xe2] sm:$0xff]
      %v4927 = vld [vmem:[%s4703 + $0xf2] sm:$0xff]
      %v4928 = vld [vmem:[%s4703 + $0xfa] sm:$0xff]
      %v4929 = vld [vmem:[%s4703 + $0x10a] sm:$0xff]
      %v4930 = vld [vmem:[%s4703 + $0x112] sm:$0xff]
      %v4931 = vld [vmem:[%s4703 + $0x122] sm:$0xff]
      %v4932 = vld [vmem:[%s4703 + $0x12a] sm:$0xff]
      %v4933 = vld [vmem:[%s4703 + $0x13a] sm:$0xff]
      %v4934 = vld [vmem:[%s4703 + $0x142] sm:$0xff]
      %v4935 = vld [vmem:[%s4703 + $0x152] sm:$0xff]
      %v4936 = vld [vmem:[%s4703 + $0x15a] sm:$0xff]
      %v4937 = vld [vmem:[%s4703 + $0x16a] sm:$0xff]
      %v4938 = vld [vmem:[%s4703 + $0x172] sm:$0xff]
      %v4939 = vld [vmem:[%s4736 + $0x2] sm:$0x1]
      %v4940 = vlaneseq
      %v4941 = vshrl.u32 %v4940, 7
      %v4942 = vsub.s32 0, %v4941
      %v4943 = vrot.slane %v4939, %v4942
      %v4944 = vmul.f32 %v4907, %v4943
      %v4945 = vmul.f32 %v4908, %v4943
      %v4946 = vmul.f32 %v4909, %v4943
      %v4947 = vmul.f32 %v4910, %v4943
      %v4948 = vmul.f32 %v4911, %v4943
      %v4949 = vmul.f32 %v4912, %v4943
      %v4950 = vmul.f32 %v4913, %v4943
      %v4951 = vmul.f32 %v4914, %v4943
      %v4952 = vmul.f32 %v4915, %v4943
      %v4953 = vmul.f32 %v4916, %v4943
      %v4954 = vmul.f32 %v4917, %v4943
      %v4955 = vmul.f32 %v4918, %v4943
      %v4956 = vmul.f32 %v4919, %v4943
      %v4957 = vmul.f32 %v4920, %v4943
      %v4958 = vmul.f32 %v4921, %v4943
      %v4959 = vmul.f32 %v4922, %v4943
      %v4960 = vmul.f32 %v4923, %v4943
      %v4961 = vmul.f32 %v4924, %v4943
      %v4962 = vmul.f32 %v4925, %v4943
      %v4963 = vmul.f32 %v4926, %v4943
      %v4964 = vmul.f32 %v4927, %v4943
      %v4965 = vmul.f32 %v4928, %v4943
      %v4966 = vmul.f32 %v4929, %v4943
      %v4967 = vmul.f32 %v4930, %v4943
      %v4968 = vmul.f32 %v4931, %v4943
      %v4969 = vmul.f32 %v4932, %v4943
      %v4970 = vmul.f32 %v4933, %v4943
      %v4971 = vmul.f32 %v4934, %v4943
      %v4972 = vmul.f32 %v4935, %v4943
      %v4973 = vmul.f32 %v4936, %v4943
      %v4974 = vmul.f32 %v4937, %v4943
      %v4975 = vmul.f32 %v4938, %v4943
      %v4976 = vadd.f32 %v4875, %v4944
      %v4977 = vadd.f32 %v4876, %v4945
      %v4978 = vadd.f32 %v4877, %v4946
      %v4979 = vadd.f32 %v4878, %v4947
      %v4980 = vadd.f32 %v4879, %v4948
      %v4981 = vadd.f32 %v4880, %v4949
      %v4982 = vadd.f32 %v4881, %v4950
      %v4983 = vadd.f32 %v4882, %v4951
      %v4984 = vadd.f32 %v4883, %v4952
      %v4985 = vadd.f32 %v4884, %v4953
      %v4986 = vadd.f32 %v4885, %v4954
      %v4987 = vadd.f32 %v4886, %v4955
      %v4988 = vadd.f32 %v4887, %v4956
      %v4989 = vadd.f32 %v4888, %v4957
      %v4990 = vadd.f32 %v4889, %v4958
      %v4991 = vadd.f32 %v4890, %v4959
      %v4992 = vadd.f32 %v4891, %v4960
      %v4993 = vadd.f32 %v4892, %v4961
      %v4994 = vadd.f32 %v4893, %v4962
      %v4995 = vadd.f32 %v4894, %v4963
      %v4996 = vadd.f32 %v4895, %v4964
      %v4997 = vadd.f32 %v4896, %v4965
      %v4998 = vadd.f32 %v4897, %v4966
      %v4999 = vadd.f32 %v4898, %v4967
      %v5000 = vadd.f32 %v4899, %v4968
      %v5001 = vadd.f32 %v4900, %v4969
      %v5002 = vadd.f32 %v4901, %v4970
      %v5003 = vadd.f32 %v4902, %v4971
      %v5004 = vadd.f32 %v4903, %v4972
      %v5005 = vadd.f32 %v4904, %v4973
      %v5006 = vadd.f32 %v4905, %v4974
      %v5007 = vadd.f32 %v4906, %v4975
      %v5008 = vld [vmem:[%s10] sm:$0x1]
      %v5010 = vlaneseq
      %v5011 = vshrl.u32 %v5010, 7
      %v5012 = vsub.s32 0, %v5011
      %v5013 = vrot.slane %v5008, %v5012
      %v5015 = vadd.f32 %v4976, %v5013
      %v5016 = vadd.f32 %v4977, %v5013
      %v5017 = vadd.f32 %v4978, %v5013
      %v5018 = vadd.f32 %v4979, %v5013
      %v5019 = vadd.f32 %v4980, %v5013
      %v5020 = vadd.f32 %v4981, %v5013
      %v5021 = vadd.f32 %v4982, %v5013
      %v5022 = vadd.f32 %v4983, %v5013
      %v5023 = vadd.f32 %v4984, %v5013
      %v5024 = vadd.f32 %v4985, %v5013
      %v5025 = vadd.f32 %v4986, %v5013
      %v5026 = vadd.f32 %v4987, %v5013
      %v5027 = vadd.f32 %v4988, %v5013
      %v5028 = vadd.f32 %v4989, %v5013
      %v5029 = vadd.f32 %v4990, %v5013
      %v5030 = vadd.f32 %v4991, %v5013
      %v5031 = vadd.f32 %v4992, %v5013
      %v5032 = vadd.f32 %v4993, %v5013
      %v5033 = vadd.f32 %v4994, %v5013
      %v5034 = vadd.f32 %v4995, %v5013
      %v5035 = vadd.f32 %v4996, %v5013
      %v5036 = vadd.f32 %v4997, %v5013
      %v5037 = vadd.f32 %v4998, %v5013
      %v5038 = vadd.f32 %v4999, %v5013
      %v5039 = vadd.f32 %v5000, %v5013
      %v5040 = vadd.f32 %v5001, %v5013
      %v5041 = vadd.f32 %v5002, %v5013
      %v5042 = vadd.f32 %v5003, %v5013
      %v5043 = vadd.f32 %v5004, %v5013
      %v5044 = vadd.f32 %v5005, %v5013
      %v5045 = vadd.f32 %v5006, %v5013
      %v5046 = vadd.f32 %v5007, %v5013
      %s5047 = sld [smem:[#allocation4]]
      %v5048 = vmul.f32 %v5015, %v5015
      %v5049 = vmul.f32 %v5016, %v5016
      %v5050 = vmul.f32 %v5017, %v5017
      %v5051 = vmul.f32 %v5018, %v5018
      %v5052 = vmul.f32 %v5019, %v5019
      %v5053 = vmul.f32 %v5020, %v5020
      %v5054 = vmul.f32 %v5021, %v5021
      %v5055 = vmul.f32 %v5022, %v5022
      %v5056 = vmul.f32 %v5023, %v5023
      %v5057 = vmul.f32 %v5024, %v5024
      %v5058 = vmul.f32 %v5025, %v5025
      %v5059 = vmul.f32 %v5026, %v5026
      %v5060 = vmul.f32 %v5027, %v5027
      %v5061 = vmul.f32 %v5028, %v5028
      %v5062 = vmul.f32 %v5029, %v5029
      %v5063 = vmul.f32 %v5030, %v5030
      %v5064 = vmul.f32 %v5031, %v5031
      %v5065 = vmul.f32 %v5032, %v5032
      %v5066 = vmul.f32 %v5033, %v5033
      %v5067 = vmul.f32 %v5034, %v5034
      %v5068 = vmul.f32 %v5035, %v5035
      %v5069 = vmul.f32 %v5036, %v5036
      %v5070 = vmul.f32 %v5037, %v5037
      %v5071 = vmul.f32 %v5038, %v5038
      %v5072 = vmul.f32 %v5039, %v5039
      %v5073 = vmul.f32 %v5040, %v5040
      %v5074 = vmul.f32 %v5041, %v5041
      %v5075 = vmul.f32 %v5042, %v5042
      %v5076 = vmul.f32 %v5043, %v5043
      %v5077 = vmul.f32 %v5044, %v5044
      %v5078 = vmul.f32 %v5045, %v5045
      %v5079 = vmul.f32 %v5046, %v5046
      %vm5080 = vcmask 31744
      %v5081 = vsel %vm5080, %v5048, 0.0
      %5082 = vadd.xlane.f32.xlu0 %v5081
      %v5083 = vpop.xlane.xlu0 %5082
      %v5084 = vsel %vm5080, %v5049, 0.0
      %5085 = vadd.xlane.f32.xlu0 %v5084
      %v5086 = vpop.xlane.xlu0 %5085
      %v5087 = vsel %vm5080, %v5050, 0.0
      %5088 = vadd.xlane.f32.xlu0 %v5087
      %v5089 = vpop.xlane.xlu0 %5088
      %v5090 = vsel %vm5080, %v5051, 0.0
      %5091 = vadd.xlane.f32.xlu0 %v5090
      %v5092 = vpop.xlane.xlu0 %5091
      %v5093 = vsel %vm5080, %v5052, 0.0
      %5094 = vadd.xlane.f32.xlu0 %v5093
      %v5095 = vpop.xlane.xlu0 %5094
      %v5096 = vsel %vm5080, %v5053, 0.0
      %5097 = vadd.xlane.f32.xlu0 %v5096
      %v5098 = vpop.xlane.xlu0 %5097
      %v5099 = vsel %vm5080, %v5054, 0.0
      %5100 = vadd.xlane.f32.xlu0 %v5099
      %v5101 = vpop.xlane.xlu0 %5100
      %v5102 = vsel %vm5080, %v5055, 0.0
      %5103 = vadd.xlane.f32.xlu0 %v5102
      %v5104 = vpop.xlane.xlu0 %5103
      %v5105 = vsel %vm5080, %v5056, 0.0
      %5106 = vadd.xlane.f32.xlu0 %v5105
      %v5107 = vpop.xlane.xlu0 %5106
      %v5108 = vsel %vm5080, %v5057, 0.0
      %5109 = vadd.xlane.f32.xlu0 %v5108
      %v5110 = vpop.xlane.xlu0 %5109
      %v5111 = vsel %vm5080, %v5058, 0.0
      %5112 = vadd.xlane.f32.xlu0 %v5111
      %v5113 = vpop.xlane.xlu0 %5112
      %v5114 = vsel %vm5080, %v5059, 0.0
      %5115 = vadd.xlane.f32.xlu0 %v5114
      %v5116 = vpop.xlane.xlu0 %5115
      %v5117 = vsel %vm5080, %v5060, 0.0
      %5118 = vadd.xlane.f32.xlu0 %v5117
      %v5119 = vpop.xlane.xlu0 %5118
      %v5120 = vsel %vm5080, %v5061, 0.0
      %5121 = vadd.xlane.f32.xlu0 %v5120
      %v5122 = vpop.xlane.xlu0 %5121
      %v5123 = vsel %vm5080, %v5062, 0.0
      %5124 = vadd.xlane.f32.xlu0 %v5123
      %v5125 = vpop.xlane.xlu0 %5124
      %v5126 = vsel %vm5080, %v5063, 0.0
      %5127 = vadd.xlane.f32.xlu0 %v5126
      %v5128 = vpop.xlane.xlu0 %5127
      %v5129 = vsel %vm5080, %v5064, 0.0
      %5130 = vadd.xlane.f32.xlu0 %v5129
      %v5131 = vpop.xlane.xlu0 %5130
      %v5132 = vsel %vm5080, %v5065, 0.0
      %5133 = vadd.xlane.f32.xlu0 %v5132
      %v5134 = vpop.xlane.xlu0 %5133
      %v5135 = vsel %vm5080, %v5066, 0.0
      %5136 = vadd.xlane.f32.xlu0 %v5135
      %v5137 = vpop.xlane.xlu0 %5136
      %v5138 = vsel %vm5080, %v5067, 0.0
      %5139 = vadd.xlane.f32.xlu0 %v5138
      %v5140 = vpop.xlane.xlu0 %5139
      %v5141 = vsel %vm5080, %v5068, 0.0
      %5142 = vadd.xlane.f32.xlu0 %v5141
      %v5143 = vpop.xlane.xlu0 %5142
      %v5144 = vsel %vm5080, %v5069, 0.0
      %5145 = vadd.xlane.f32.xlu0 %v5144
      %v5146 = vpop.xlane.xlu0 %5145
      %v5147 = vsel %vm5080, %v5070, 0.0
      %5148 = vadd.xlane.f32.xlu0 %v5147
      %v5149 = vpop.xlane.xlu0 %5148
      %v5150 = vsel %vm5080, %v5071, 0.0
      %5151 = vadd.xlane.f32.xlu0 %v5150
      %v5152 = vpop.xlane.xlu0 %5151
      %v5153 = vsel %vm5080, %v5072, 0.0
      %5154 = vadd.xlane.f32.xlu0 %v5153
      %v5155 = vpop.xlane.xlu0 %5154
      %v5156 = vsel %vm5080, %v5073, 0.0
      %5157 = vadd.xlane.f32.xlu0 %v5156
      %v5158 = vpop.xlane.xlu0 %5157
      %v5159 = vsel %vm5080, %v5074, 0.0
      %5160 = vadd.xlane.f32.xlu0 %v5159
      %v5161 = vpop.xlane.xlu0 %5160
      %v5162 = vsel %vm5080, %v5075, 0.0
      %5163 = vadd.xlane.f32.xlu0 %v5162
      %v5164 = vpop.xlane.xlu0 %5163
      %v5165 = vsel %vm5080, %v5076, 0.0
      %5166 = vadd.xlane.f32.xlu0 %v5165
      %v5167 = vpop.xlane.xlu0 %5166
      %v5168 = vsel %vm5080, %v5077, 0.0
      %5169 = vadd.xlane.f32.xlu0 %v5168
      %v5170 = vpop.xlane.xlu0 %5169
      %v5171 = vsel %vm5080, %v5078, 0.0
      %5172 = vadd.xlane.f32.xlu0 %v5171
      %v5173 = vpop.xlane.xlu0 %5172
      %v5174 = vsel %vm5080, %v5079, 0.0
      %5175 = vadd.xlane.f32.xlu0 %v5174
      %v5176 = vpop.xlane.xlu0 %5175
      %v5177 = vmax.f32 %v5083, 1e-24
      %v5178 = vmax.f32 %v5086, 1e-24
      %v5179 = vmax.f32 %v5089, 1e-24
      %v5180 = vmax.f32 %v5092, 1e-24
      %v5181 = vmax.f32 %v5095, 1e-24
      %v5182 = vmax.f32 %v5098, 1e-24
      %v5183 = vmax.f32 %v5101, 1e-24
      %v5184 = vmax.f32 %v5104, 1e-24
      %v5185 = vmax.f32 %v5107, 1e-24
      %v5186 = vmax.f32 %v5110, 1e-24
      %v5187 = vmax.f32 %v5113, 1e-24
      %v5188 = vmax.f32 %v5116, 1e-24
      %v5189 = vmax.f32 %v5119, 1e-24
      %v5190 = vmax.f32 %v5122, 1e-24
      %v5191 = vmax.f32 %v5125, 1e-24
      %v5192 = vmax.f32 %v5128, 1e-24
      %v5193 = vmax.f32 %v5131, 1e-24
      %v5194 = vmax.f32 %v5134, 1e-24
      %v5195 = vmax.f32 %v5137, 1e-24
      %v5196 = vmax.f32 %v5140, 1e-24
      %v5197 = vmax.f32 %v5143, 1e-24
      %v5198 = vmax.f32 %v5146, 1e-24
      %v5199 = vmax.f32 %v5149, 1e-24
      %v5200 = vmax.f32 %v5152, 1e-24
      %v5201 = vmax.f32 %v5155, 1e-24
      %v5202 = vmax.f32 %v5158, 1e-24
      %v5203 = vmax.f32 %v5161, 1e-24
      %v5204 = vmax.f32 %v5164, 1e-24
      %v5205 = vmax.f32 %v5167, 1e-24
      %v5206 = vmax.f32 %v5170, 1e-24
      %v5207 = vmax.f32 %v5173, 1e-24
      %v5208 = vmax.f32 %v5176, 1e-24
      %v5209 = vrsqrt.pop %v5177
      %v5210 = vrsqrt.pop %v5178
      %v5211 = vrsqrt.pop %v5179
      %v5212 = vrsqrt.pop %v5180
      %v5213 = vrsqrt.pop %v5181
      %v5214 = vrsqrt.pop %v5182
      %v5215 = vrsqrt.pop %v5183
      %v5216 = vrsqrt.pop %v5184
      %v5217 = vrsqrt.pop %v5185
      %v5218 = vrsqrt.pop %v5186
      %v5219 = vrsqrt.pop %v5187
      %v5220 = vrsqrt.pop %v5188
      %v5221 = vrsqrt.pop %v5189
      %v5222 = vrsqrt.pop %v5190
      %v5223 = vrsqrt.pop %v5191
      %v5224 = vrsqrt.pop %v5192
      %v5225 = vrsqrt.pop %v5193
      %v5226 = vrsqrt.pop %v5194
      %v5227 = vrsqrt.pop %v5195
      %v5228 = vrsqrt.pop %v5196
      %v5229 = vrsqrt.pop %v5197
      %v5230 = vrsqrt.pop %v5198
      %v5231 = vrsqrt.pop %v5199
      %v5232 = vrsqrt.pop %v5200
      %v5233 = vrsqrt.pop %v5201
      %v5234 = vrsqrt.pop %v5202
      %v5235 = vrsqrt.pop %v5203
      %v5236 = vrsqrt.pop %v5204
      %v5237 = vrsqrt.pop %v5205
      %v5238 = vrsqrt.pop %v5206
      %v5239 = vrsqrt.pop %v5207
      %v5240 = vrsqrt.pop %v5208
      %v5241 = vmul.f32 %v5015, %v5209
      %v5242 = vmul.f32 %v5016, %v5210
      %v5243 = vmul.f32 %v5017, %v5211
      %v5244 = vmul.f32 %v5018, %v5212
      %v5245 = vmul.f32 %v5019, %v5213
      %v5246 = vmul.f32 %v5020, %v5214
      %v5247 = vmul.f32 %v5021, %v5215
      %v5248 = vmul.f32 %v5022, %v5216
      %v5249 = vmul.f32 %v5023, %v5217
      %v5250 = vmul.f32 %v5024, %v5218
      %v5251 = vmul.f32 %v5025, %v5219
      %v5252 = vmul.f32 %v5026, %v5220
      %v5253 = vmul.f32 %v5027, %v5221
      %v5254 = vmul.f32 %v5028, %v5222
      %v5255 = vmul.f32 %v5029, %v5223
      %v5256 = vmul.f32 %v5030, %v5224
      %v5257 = vmul.f32 %v5031, %v5225
      %v5258 = vmul.f32 %v5032, %v5226
      %v5259 = vmul.f32 %v5033, %v5227
      %v5260 = vmul.f32 %v5034, %v5228
      %v5261 = vmul.f32 %v5035, %v5229
      %v5262 = vmul.f32 %v5036, %v5230
      %v5263 = vmul.f32 %v5037, %v5231
      %v5264 = vmul.f32 %v5038, %v5232
      %v5265 = vmul.f32 %v5039, %v5233
      %v5266 = vmul.f32 %v5040, %v5234
      %v5267 = vmul.f32 %v5041, %v5235
      %v5268 = vmul.f32 %v5042, %v5236
      %v5269 = vmul.f32 %v5043, %v5237
      %v5270 = vmul.f32 %v5044, %v5238
      %v5271 = vmul.f32 %v5045, %v5239
      %v5272 = vmul.f32 %v5046, %v5240
      %5305 = vrot.lane.b32.xlu0 %v5048, 124
      %v5306 = vpop.permute.xlu0 %5305
      %5307 = vrot.lane.b32.xlu0 %v5049, 124
      %v5308 = vpop.permute.xlu0 %5307
      %5309 = vrot.lane.b32.xlu0 %v5050, 124
      %v5310 = vpop.permute.xlu0 %5309
      %5311 = vrot.lane.b32.xlu0 %v5051, 124
      %v5312 = vpop.permute.xlu0 %5311
      %5313 = vrot.lane.b32.xlu0 %v5052, 124
      %v5314 = vpop.permute.xlu0 %5313
      %5315 = vrot.lane.b32.xlu0 %v5053, 124
      %v5316 = vpop.permute.xlu0 %5315
      %5317 = vrot.lane.b32.xlu0 %v5054, 124
      %v5318 = vpop.permute.xlu0 %5317
      %5319 = vrot.lane.b32.xlu0 %v5055, 124
      %v5320 = vpop.permute.xlu0 %5319
      %5321 = vrot.lane.b32.xlu0 %v5056, 124
      %v5322 = vpop.permute.xlu0 %5321
      %5323 = vrot.lane.b32.xlu0 %v5057, 124
      %v5324 = vpop.permute.xlu0 %5323
      %5325 = vrot.lane.b32.xlu0 %v5058, 124
      %v5326 = vpop.permute.xlu0 %5325
      %5327 = vrot.lane.b32.xlu0 %v5059, 124
      %v5328 = vpop.permute.xlu0 %5327
      %5329 = vrot.lane.b32.xlu0 %v5060, 124
      %v5330 = vpop.permute.xlu0 %5329
      %5331 = vrot.lane.b32.xlu0 %v5061, 124
      %v5332 = vpop.permute.xlu0 %5331
      %5333 = vrot.lane.b32.xlu0 %v5062, 124
      %v5334 = vpop.permute.xlu0 %5333
      %5335 = vrot.lane.b32.xlu0 %v5063, 124
      %v5336 = vpop.permute.xlu0 %5335
      %5337 = vrot.lane.b32.xlu0 %v5064, 124
      %v5338 = vpop.permute.xlu0 %5337
      %5339 = vrot.lane.b32.xlu0 %v5065, 124
      %v5340 = vpop.permute.xlu0 %5339
      %5341 = vrot.lane.b32.xlu0 %v5066, 124
      %v5342 = vpop.permute.xlu0 %5341
      %5343 = vrot.lane.b32.xlu0 %v5067, 124
      %v5344 = vpop.permute.xlu0 %5343
      %5345 = vrot.lane.b32.xlu0 %v5068, 124
      %v5346 = vpop.permute.xlu0 %5345
      %5347 = vrot.lane.b32.xlu0 %v5069, 124
      %v5348 = vpop.permute.xlu0 %5347
      %5349 = vrot.lane.b32.xlu0 %v5070, 124
      %v5350 = vpop.permute.xlu0 %5349
      %5351 = vrot.lane.b32.xlu0 %v5071, 124
      %v5352 = vpop.permute.xlu0 %5351
      %5353 = vrot.lane.b32.xlu0 %v5072, 124
      %v5354 = vpop.permute.xlu0 %5353
      %5355 = vrot.lane.b32.xlu0 %v5073, 124
      %v5356 = vpop.permute.xlu0 %5355
      %5357 = vrot.lane.b32.xlu0 %v5074, 124
      %v5358 = vpop.permute.xlu0 %5357
      %5359 = vrot.lane.b32.xlu0 %v5075, 124
      %v5360 = vpop.permute.xlu0 %5359
      %5361 = vrot.lane.b32.xlu0 %v5076, 124
      %v5362 = vpop.permute.xlu0 %5361
      %5363 = vrot.lane.b32.xlu0 %v5077, 124
      %v5364 = vpop.permute.xlu0 %5363
      %5365 = vrot.lane.b32.xlu0 %v5078, 124
      %v5366 = vpop.permute.xlu0 %5365
      %5367 = vrot.lane.b32.xlu0 %v5079, 124
      %v5368 = vpop.permute.xlu0 %5367
      %v5401 = vsel %vm5080, %v5306, 0.0
      %5402 = vadd.xlane.f32.xlu0 %v5401
      %v5403 = vpop.xlane.xlu0 %5402
      %v5404 = vsel %vm5080, %v5308, 0.0
      %5405 = vadd.xlane.f32.xlu0 %v5404
      %v5406 = vpop.xlane.xlu0 %5405
      %v5407 = vsel %vm5080, %v5310, 0.0
      %5408 = vadd.xlane.f32.xlu0 %v5407
      %v5409 = vpop.xlane.xlu0 %5408
      %v5410 = vsel %vm5080, %v5312, 0.0
      %5411 = vadd.xlane.f32.xlu0 %v5410
      %v5412 = vpop.xlane.xlu0 %5411
      %v5413 = vsel %vm5080, %v5314, 0.0
      %5414 = vadd.xlane.f32.xlu0 %v5413
      %v5415 = vpop.xlane.xlu0 %5414
      %v5416 = vsel %vm5080, %v5316, 0.0
      %5417 = vadd.xlane.f32.xlu0 %v5416
      %v5418 = vpop.xlane.xlu0 %5417
      %v5419 = vsel %vm5080, %v5318, 0.0
      %5420 = vadd.xlane.f32.xlu0 %v5419
      %v5421 = vpop.xlane.xlu0 %5420
      %v5422 = vsel %vm5080, %v5320, 0.0
      %5423 = vadd.xlane.f32.xlu0 %v5422
      %v5424 = vpop.xlane.xlu0 %5423
      %v5425 = vsel %vm5080, %v5322, 0.0
      %5426 = vadd.xlane.f32.xlu0 %v5425
      %v5427 = vpop.xlane.xlu0 %5426
      %v5428 = vsel %vm5080, %v5324, 0.0
      %5429 = vadd.xlane.f32.xlu0 %v5428
      %v5430 = vpop.xlane.xlu0 %5429
      %v5431 = vsel %vm5080, %v5326, 0.0
      %5432 = vadd.xlane.f32.xlu0 %v5431
      %v5433 = vpop.xlane.xlu0 %5432
      %v5434 = vsel %vm5080, %v5328, 0.0
      %5435 = vadd.xlane.f32.xlu0 %v5434
      %v5436 = vpop.xlane.xlu0 %5435
      %v5437 = vsel %vm5080, %v5330, 0.0
      %5438 = vadd.xlane.f32.xlu0 %v5437
      %v5439 = vpop.xlane.xlu0 %5438
      %v5440 = vsel %vm5080, %v5332, 0.0
      %5441 = vadd.xlane.f32.xlu0 %v5440
      %v5442 = vpop.xlane.xlu0 %5441
      %v5443 = vsel %vm5080, %v5334, 0.0
      %5444 = vadd.xlane.f32.xlu0 %v5443
      %v5445 = vpop.xlane.xlu0 %5444
      %v5446 = vsel %vm5080, %v5336, 0.0
      %5447 = vadd.xlane.f32.xlu0 %v5446
      %v5448 = vpop.xlane.xlu0 %5447
      %v5449 = vsel %vm5080, %v5338, 0.0
      %5450 = vadd.xlane.f32.xlu0 %v5449
      %v5451 = vpop.xlane.xlu0 %5450
      %v5452 = vsel %vm5080, %v5340, 0.0
      %5453 = vadd.xlane.f32.xlu0 %v5452
      %v5454 = vpop.xlane.xlu0 %5453
      %v5455 = vsel %vm5080, %v5342, 0.0
      %5456 = vadd.xlane.f32.xlu0 %v5455
      %v5457 = vpop.xlane.xlu0 %5456
      %v5458 = vsel %vm5080, %v5344, 0.0
      %5459 = vadd.xlane.f32.xlu0 %v5458
      %v5460 = vpop.xlane.xlu0 %5459
      %v5461 = vsel %vm5080, %v5346, 0.0
      %5462 = vadd.xlane.f32.xlu0 %v5461
      %v5463 = vpop.xlane.xlu0 %5462
      %v5464 = vsel %vm5080, %v5348, 0.0
      %5465 = vadd.xlane.f32.xlu0 %v5464
      %v5466 = vpop.xlane.xlu0 %5465
      %v5467 = vsel %vm5080, %v5350, 0.0
      %5468 = vadd.xlane.f32.xlu0 %v5467
      %v5469 = vpop.xlane.xlu0 %5468
      %v5470 = vsel %vm5080, %v5352, 0.0
      %5471 = vadd.xlane.f32.xlu0 %v5470
      %v5472 = vpop.xlane.xlu0 %5471
      %v5473 = vsel %vm5080, %v5354, 0.0
      %5474 = vadd.xlane.f32.xlu0 %v5473
      %v5475 = vpop.xlane.xlu0 %5474
      %v5476 = vsel %vm5080, %v5356, 0.0
      %5477 = vadd.xlane.f32.xlu0 %v5476
      %v5478 = vpop.xlane.xlu0 %5477
      %v5479 = vsel %vm5080, %v5358, 0.0
      %5480 = vadd.xlane.f32.xlu0 %v5479
      %v5481 = vpop.xlane.xlu0 %5480
      %v5482 = vsel %vm5080, %v5360, 0.0
      %5483 = vadd.xlane.f32.xlu0 %v5482
      %v5484 = vpop.xlane.xlu0 %5483
      %v5485 = vsel %vm5080, %v5362, 0.0
      %5486 = vadd.xlane.f32.xlu0 %v5485
      %v5487 = vpop.xlane.xlu0 %5486
      %v5488 = vsel %vm5080, %v5364, 0.0
      %5489 = vadd.xlane.f32.xlu0 %v5488
      %v5490 = vpop.xlane.xlu0 %5489
      %v5491 = vsel %vm5080, %v5366, 0.0
      %5492 = vadd.xlane.f32.xlu0 %v5491
      %v5493 = vpop.xlane.xlu0 %5492
      %v5494 = vsel %vm5080, %v5368, 0.0
      %5495 = vadd.xlane.f32.xlu0 %v5494
      %v5496 = vpop.xlane.xlu0 %5495
      %v5497 = vmax.f32 %v5403, 1e-24
      %v5498 = vmax.f32 %v5406, 1e-24
      %v5499 = vmax.f32 %v5409, 1e-24
      %v5500 = vmax.f32 %v5412, 1e-24
      %v5501 = vmax.f32 %v5415, 1e-24
      %v5502 = vmax.f32 %v5418, 1e-24
      %v5503 = vmax.f32 %v5421, 1e-24
      %v5504 = vmax.f32 %v5424, 1e-24
      %v5505 = vmax.f32 %v5427, 1e-24
      %v5506 = vmax.f32 %v5430, 1e-24
      %v5507 = vmax.f32 %v5433, 1e-24
      %v5508 = vmax.f32 %v5436, 1e-24
      %v5509 = vmax.f32 %v5439, 1e-24
      %v5510 = vmax.f32 %v5442, 1e-24
      %v5511 = vmax.f32 %v5445, 1e-24
      %v5512 = vmax.f32 %v5448, 1e-24
      %v5513 = vmax.f32 %v5451, 1e-24
      %v5514 = vmax.f32 %v5454, 1e-24
      %v5515 = vmax.f32 %v5457, 1e-24
      %v5516 = vmax.f32 %v5460, 1e-24
      %v5517 = vmax.f32 %v5463, 1e-24
      %v5518 = vmax.f32 %v5466, 1e-24
      %v5519 = vmax.f32 %v5469, 1e-24
      %v5520 = vmax.f32 %v5472, 1e-24
      %v5521 = vmax.f32 %v5475, 1e-24
      %v5522 = vmax.f32 %v5478, 1e-24
      %v5523 = vmax.f32 %v5481, 1e-24
      %v5524 = vmax.f32 %v5484, 1e-24
      %v5525 = vmax.f32 %v5487, 1e-24
      %v5526 = vmax.f32 %v5490, 1e-24
      %v5527 = vmax.f32 %v5493, 1e-24
      %v5528 = vmax.f32 %v5496, 1e-24
      %v5529 = vrsqrt.pop %v5497
      %v5530 = vrsqrt.pop %v5498
      %v5531 = vrsqrt.pop %v5499
      %v5532 = vrsqrt.pop %v5500
      %v5533 = vrsqrt.pop %v5501
      %v5534 = vrsqrt.pop %v5502
      %v5535 = vrsqrt.pop %v5503
      %v5536 = vrsqrt.pop %v5504
      %v5537 = vrsqrt.pop %v5505
      %v5538 = vrsqrt.pop %v5506
      %v5539 = vrsqrt.pop %v5507
      %v5540 = vrsqrt.pop %v5508
      %v5541 = vrsqrt.pop %v5509
      %v5542 = vrsqrt.pop %v5510
      %v5543 = vrsqrt.pop %v5511
      %v5544 = vrsqrt.pop %v5512
      %v5545 = vrsqrt.pop %v5513
      %v5546 = vrsqrt.pop %v5514
      %v5547 = vrsqrt.pop %v5515
      %v5548 = vrsqrt.pop %v5516
      %v5549 = vrsqrt.pop %v5517
      %v5550 = vrsqrt.pop %v5518
      %v5551 = vrsqrt.pop %v5519
      %v5552 = vrsqrt.pop %v5520
      %v5553 = vrsqrt.pop %v5521
      %v5554 = vrsqrt.pop %v5522
      %v5555 = vrsqrt.pop %v5523
      %v5556 = vrsqrt.pop %v5524
      %v5557 = vrsqrt.pop %v5525
      %v5558 = vrsqrt.pop %v5526
      %v5559 = vrsqrt.pop %v5527
      %v5560 = vrsqrt.pop %v5528
      %v5561 = vmul.f32 %v5015, %v5529
      %v5562 = vmul.f32 %v5016, %v5530
      %v5563 = vmul.f32 %v5017, %v5531
      %v5564 = vmul.f32 %v5018, %v5532
      %v5565 = vmul.f32 %v5019, %v5533
      %v5566 = vmul.f32 %v5020, %v5534
      %v5567 = vmul.f32 %v5021, %v5535
      %v5568 = vmul.f32 %v5022, %v5536
      %v5569 = vmul.f32 %v5023, %v5537
      %v5570 = vmul.f32 %v5024, %v5538
      %v5571 = vmul.f32 %v5025, %v5539
      %v5572 = vmul.f32 %v5026, %v5540
      %v5573 = vmul.f32 %v5027, %v5541
      %v5574 = vmul.f32 %v5028, %v5542
      %v5575 = vmul.f32 %v5029, %v5543
      %v5576 = vmul.f32 %v5030, %v5544
      %v5577 = vmul.f32 %v5031, %v5545
      %v5578 = vmul.f32 %v5032, %v5546
      %v5579 = vmul.f32 %v5033, %v5547
      %v5580 = vmul.f32 %v5034, %v5548
      %v5581 = vmul.f32 %v5035, %v5549
      %v5582 = vmul.f32 %v5036, %v5550
      %v5583 = vmul.f32 %v5037, %v5551
      %v5584 = vmul.f32 %v5038, %v5552
      %v5585 = vmul.f32 %v5039, %v5553
      %v5586 = vmul.f32 %v5040, %v5554
      %v5587 = vmul.f32 %v5041, %v5555
      %v5588 = vmul.f32 %v5042, %v5556
      %v5589 = vmul.f32 %v5043, %v5557
      %v5590 = vmul.f32 %v5044, %v5558
      %v5591 = vmul.f32 %v5045, %v5559
      %v5592 = vmul.f32 %v5046, %v5560
      %v5593 = vpack.c.bf16 %v5242, %v5241
      %v5594 = vpack.c.bf16 %v5244, %v5243
      %v5595 = vpack.c.bf16 %v5246, %v5245
      %v5596 = vpack.c.bf16 %v5248, %v5247
      %v5597 = vpack.c.bf16 %v5250, %v5249
      %v5598 = vpack.c.bf16 %v5252, %v5251
      %v5599 = vpack.c.bf16 %v5254, %v5253
      %v5600 = vpack.c.bf16 %v5256, %v5255
      %v5601 = vpack.c.bf16 %v5258, %v5257
      %v5602 = vpack.c.bf16 %v5260, %v5259
      %v5603 = vpack.c.bf16 %v5262, %v5261
      %v5604 = vpack.c.bf16 %v5264, %v5263
      %v5605 = vpack.c.bf16 %v5266, %v5265
      %v5606 = vpack.c.bf16 %v5268, %v5267
      %v5607 = vpack.c.bf16 %v5270, %v5269
      %v5608 = vpack.c.bf16 %v5272, %v5271
      %v5609 = vpack.c.bf16 %v5562, %v5561
      %v5610 = vpack.c.bf16 %v5564, %v5563
      %v5611 = vpack.c.bf16 %v5566, %v5565
      %v5612 = vpack.c.bf16 %v5568, %v5567
      %v5613 = vpack.c.bf16 %v5570, %v5569
      %v5614 = vpack.c.bf16 %v5572, %v5571
      %v5615 = vpack.c.bf16 %v5574, %v5573
      %v5616 = vpack.c.bf16 %v5576, %v5575
      %v5617 = vpack.c.bf16 %v5578, %v5577
      %v5618 = vpack.c.bf16 %v5580, %v5579
      %v5619 = vpack.c.bf16 %v5582, %v5581
      %v5620 = vpack.c.bf16 %v5584, %v5583
      %v5621 = vpack.c.bf16 %v5586, %v5585
      %v5622 = vpack.c.bf16 %v5588, %v5587
      %v5623 = vpack.c.bf16 %v5590, %v5589
      %v5624 = vpack.c.bf16 %v5592, %v5591
      %5626 = vrot.lane.b32.xlu0 %v5609, 124
      %v5627 = vpop.permute.xlu0 %5626
      %v5629 = vsel %vm5080, %v5593, 0
      %v5632 = vsel %vm5080, %v5627, 0
      %5634 = vmatprep.subr.bf16.mxu0 0
      %5635 = vmatpush1.bf16.xpose.msra.mxu0 %v5632
      %5636 = vmatprep.subr.bf16.mxu0 0
      %5637 = vmatpush1.bf16.xpose.msra.mxu0 0
      %5638 = vmatprep.subr.bf16.mxu0 0
      %5639 = vmatpush1.bf16.xpose.msra.mxu0 0
      %5640 = vmatprep.subr.bf16.mxu0 0
      %5641 = vmatpush1.bf16.xpose.msra.mxu0 0
      %5642 = vmatprep.subr.bf16.mxu0 0
      %5643 = vmatpush1.bf16.xpose.msra.mxu0 0
      %5644 = vmatprep.subr.bf16.mxu0 0
      %5645 = vmatpush1.bf16.xpose.msra.mxu0 0
      %5646 = vmatprep.subr.bf16.mxu0 0
      %5647 = vmatpush1.bf16.xpose.msra.mxu0 0
      %5648 = vmatprep.subr.bf16.mxu0 0
      %5649 = vmatpush1.bf16.xpose.msra.mxu0 0
      %5650 = vmatprep.subr.bf16.mxu0 0
      %5651 = vmatpush1.bf16.xpose.msra.mxu0 0
      %5652 = vmatprep.subr.bf16.mxu0 0
      %5653 = vmatpush1.bf16.xpose.msra.mxu0 0
      %5654 = vmatprep.subr.bf16.mxu0 0
      %5655 = vmatpush1.bf16.xpose.msra.mxu0 0
      %5656 = vmatprep.subr.bf16.mxu0 0
      %5657 = vmatpush1.bf16.xpose.msra.mxu0 0
      %5658 = vmatprep.subr.bf16.mxu0 0
      %5659 = vmatpush1.bf16.xpose.msra.mxu0 0
      %5660 = vmatprep.subr.bf16.mxu0 0
      %5661 = vmatpush1.bf16.xpose.msra.mxu0 0
      %5662 = vmatprep.subr.bf16.mxu0 0
      %5663 = vmatpush1.bf16.xpose.msra.mxu0 0
      %5664 = vmatprep.subr.bf16.mxu0 0
      %5665 = vmatpush1.bf16.xpose.msra.mxu0 0
      %5666 = vmatprep.mubr.bf16.mxu0 0
      %5667 = vmatmul.mubr.bf16.gmra.mrb[0].mxu0 %v5629
      %v5668 = vpop.f32.mrb[0].mxu0
      %v5669 = vadd.f32 0.0, %v5668
      %v5670 = vpop.f32.mrb[0].mxu0
      %v5671 = vpop.f32.mrb[0].mxu0
      %v5672 = vadd.f32 0.0, %v5671
      %v5673 = vpop.f32.mrb[0].mxu0
      %5674 = vdwg.mxu0
      %5676 = vrot.lane.b32.xlu0 %v5610, 124
      %v5677 = vpop.permute.xlu0 %5676
      %v5679 = vsel %vm5080, %v5594, 0
      %v5682 = vsel %vm5080, %v5677, 0
      %5684 = vmatprep.subr.bf16.mxu0 0
      %5685 = vmatpush1.bf16.xpose.msra.mxu0 %v5682
      %5686 = vmatprep.subr.bf16.mxu0 0
      %5687 = vmatpush1.bf16.xpose.msra.mxu0 0
      %5688 = vmatprep.subr.bf16.mxu0 0
      %5689 = vmatpush1.bf16.xpose.msra.mxu0 0
      %5690 = vmatprep.subr.bf16.mxu0 0
      %5691 = vmatpush1.bf16.xpose.msra.mxu0 0
      %5692 = vmatprep.subr.bf16.mxu0 0
      %5693 = vmatpush1.bf16.xpose.msra.mxu0 0
      %5694 = vmatprep.subr.bf16.mxu0 0
      %5695 = vmatpush1.bf16.xpose.msra.mxu0 0
      %5696 = vmatprep.subr.bf16.mxu0 0
      %5697 = vmatpush1.bf16.xpose.msra.mxu0 0
      %5698 = vmatprep.subr.bf16.mxu0 0
      %5699 = vmatpush1.bf16.xpose.msra.mxu0 0
      %5700 = vmatprep.subr.bf16.mxu0 0
      %5701 = vmatpush1.bf16.xpose.msra.mxu0 0
      %5702 = vmatprep.subr.bf16.mxu0 0
      %5703 = vmatpush1.bf16.xpose.msra.mxu0 0
      %5704 = vmatprep.subr.bf16.mxu0 0
      %5705 = vmatpush1.bf16.xpose.msra.mxu0 0
      %5706 = vmatprep.subr.bf16.mxu0 0
      %5707 = vmatpush1.bf16.xpose.msra.mxu0 0
      %5708 = vmatprep.subr.bf16.mxu0 0
      %5709 = vmatpush1.bf16.xpose.msra.mxu0 0
      %5710 = vmatprep.subr.bf16.mxu0 0
      %5711 = vmatpush1.bf16.xpose.msra.mxu0 0
      %5712 = vmatprep.subr.bf16.mxu0 0
      %5713 = vmatpush1.bf16.xpose.msra.mxu0 0
      %5714 = vmatprep.subr.bf16.mxu0 0
      %5715 = vmatpush1.bf16.xpose.msra.mxu0 0
      %5716 = vmatprep.mubr.bf16.mxu0 0
      %5717 = vmatmul.mubr.bf16.gmra.mrb[0].mxu0 %v5679
      %v5718 = vpop.f32.mrb[0].mxu0
      %v5719 = vadd.f32 0.0, %v5718
      %v5720 = vpop.f32.mrb[0].mxu0
      %v5721 = vpop.f32.mrb[0].mxu0
      %v5722 = vadd.f32 0.0, %v5721
      %v5723 = vpop.f32.mrb[0].mxu0
      %5724 = vdwg.mxu0
      %5726 = vrot.lane.b32.xlu0 %v5611, 124
      %v5727 = vpop.permute.xlu0 %5726
      %v5729 = vsel %vm5080, %v5595, 0
      %v5732 = vsel %vm5080, %v5727, 0
      %5734 = vmatprep.subr.bf16.mxu0 0
      %5735 = vmatpush1.bf16.xpose.msra.mxu0 %v5732
      %5736 = vmatprep.subr.bf16.mxu0 0
      %5737 = vmatpush1.bf16.xpose.msra.mxu0 0
      %5738 = vmatprep.subr.bf16.mxu0 0
      %5739 = vmatpush1.bf16.xpose.msra.mxu0 0
      %5740 = vmatprep.subr.bf16.mxu0 0
      %5741 = vmatpush1.bf16.xpose.msra.mxu0 0
      %5742 = vmatprep.subr.bf16.mxu0 0
      %5743 = vmatpush1.bf16.xpose.msra.mxu0 0
      %5744 = vmatprep.subr.bf16.mxu0 0
      %5745 = vmatpush1.bf16.xpose.msra.mxu0 0
      %5746 = vmatprep.subr.bf16.mxu0 0
      %5747 = vmatpush1.bf16.xpose.msra.mxu0 0
      %5748 = vmatprep.subr.bf16.mxu0 0
      %5749 = vmatpush1.bf16.xpose.msra.mxu0 0
      %5750 = vmatprep.subr.bf16.mxu0 0
      %5751 = vmatpush1.bf16.xpose.msra.mxu0 0
      %5752 = vmatprep.subr.bf16.mxu0 0
      %5753 = vmatpush1.bf16.xpose.msra.mxu0 0
      %5754 = vmatprep.subr.bf16.mxu0 0
      %5755 = vmatpush1.bf16.xpose.msra.mxu0 0
      %5756 = vmatprep.subr.bf16.mxu0 0
      %5757 = vmatpush1.bf16.xpose.msra.mxu0 0
      %5758 = vmatprep.subr.bf16.mxu0 0
      %5759 = vmatpush1.bf16.xpose.msra.mxu0 0
      %5760 = vmatprep.subr.bf16.mxu0 0
      %5761 = vmatpush1.bf16.xpose.msra.mxu0 0
      %5762 = vmatprep.subr.bf16.mxu0 0
      %5763 = vmatpush1.bf16.xpose.msra.mxu0 0
      %5764 = vmatprep.subr.bf16.mxu0 0
      %5765 = vmatpush1.bf16.xpose.msra.mxu0 0
      %5766 = vmatprep.mubr.bf16.mxu0 0
      %5767 = vmatmul.mubr.bf16.gmra.mrb[0].mxu0 %v5729
      %v5768 = vpop.f32.mrb[0].mxu0
      %v5769 = vadd.f32 0.0, %v5768
      %v5770 = vpop.f32.mrb[0].mxu0
      %v5771 = vpop.f32.mrb[0].mxu0
      %v5772 = vadd.f32 0.0, %v5771
      %v5773 = vpop.f32.mrb[0].mxu0
      %5774 = vdwg.mxu0
      %5776 = vrot.lane.b32.xlu0 %v5612, 124
      %v5777 = vpop.permute.xlu0 %5776
      %v5779 = vsel %vm5080, %v5596, 0
      %v5782 = vsel %vm5080, %v5777, 0
      %5784 = vmatprep.subr.bf16.mxu0 0
      %5785 = vmatpush1.bf16.xpose.msra.mxu0 %v5782
      %5786 = vmatprep.subr.bf16.mxu0 0
      %5787 = vmatpush1.bf16.xpose.msra.mxu0 0
      %5788 = vmatprep.subr.bf16.mxu0 0
      %5789 = vmatpush1.bf16.xpose.msra.mxu0 0
      %5790 = vmatprep.subr.bf16.mxu0 0
      %5791 = vmatpush1.bf16.xpose.msra.mxu0 0
      %5792 = vmatprep.subr.bf16.mxu0 0
      %5793 = vmatpush1.bf16.xpose.msra.mxu0 0
      %5794 = vmatprep.subr.bf16.mxu0 0
      %5795 = vmatpush1.bf16.xpose.msra.mxu0 0
      %5796 = vmatprep.subr.bf16.mxu0 0
      %5797 = vmatpush1.bf16.xpose.msra.mxu0 0
      %5798 = vmatprep.subr.bf16.mxu0 0
      %5799 = vmatpush1.bf16.xpose.msra.mxu0 0
      %5800 = vmatprep.subr.bf16.mxu0 0
      %5801 = vmatpush1.bf16.xpose.msra.mxu0 0
      %5802 = vmatprep.subr.bf16.mxu0 0
      %5803 = vmatpush1.bf16.xpose.msra.mxu0 0
      %5804 = vmatprep.subr.bf16.mxu0 0
      %5805 = vmatpush1.bf16.xpose.msra.mxu0 0
      %5806 = vmatprep.subr.bf16.mxu0 0
      %5807 = vmatpush1.bf16.xpose.msra.mxu0 0
      %5808 = vmatprep.subr.bf16.mxu0 0
      %5809 = vmatpush1.bf16.xpose.msra.mxu0 0
      %5810 = vmatprep.subr.bf16.mxu0 0
      %5811 = vmatpush1.bf16.xpose.msra.mxu0 0
      %5812 = vmatprep.subr.bf16.mxu0 0
      %5813 = vmatpush1.bf16.xpose.msra.mxu0 0
      %5814 = vmatprep.subr.bf16.mxu0 0
      %5815 = vmatpush1.bf16.xpose.msra.mxu0 0
      %5816 = vmatprep.mubr.bf16.mxu0 0
      %5817 = vmatmul.mubr.bf16.gmra.mrb[0].mxu0 %v5779
      %v5818 = vpop.f32.mrb[0].mxu0
      %v5819 = vadd.f32 0.0, %v5818
      %v5820 = vpop.f32.mrb[0].mxu0
      %v5821 = vpop.f32.mrb[0].mxu0
      %v5822 = vadd.f32 0.0, %v5821
      %v5823 = vpop.f32.mrb[0].mxu0
      %5824 = vdwg.mxu0
      %5826 = vrot.lane.b32.xlu0 %v5613, 124
      %v5827 = vpop.permute.xlu0 %5826
      %v5829 = vsel %vm5080, %v5597, 0
      %v5832 = vsel %vm5080, %v5827, 0
      %5834 = vmatprep.subr.bf16.mxu0 0
      %5835 = vmatpush1.bf16.xpose.msra.mxu0 %v5832
      %5836 = vmatprep.subr.bf16.mxu0 0
      %5837 = vmatpush1.bf16.xpose.msra.mxu0 0
      %5838 = vmatprep.subr.bf16.mxu0 0
      %5839 = vmatpush1.bf16.xpose.msra.mxu0 0
      %5840 = vmatprep.subr.bf16.mxu0 0
      %5841 = vmatpush1.bf16.xpose.msra.mxu0 0
      %5842 = vmatprep.subr.bf16.mxu0 0
      %5843 = vmatpush1.bf16.xpose.msra.mxu0 0
      %5844 = vmatprep.subr.bf16.mxu0 0
      %5845 = vmatpush1.bf16.xpose.msra.mxu0 0
      %5846 = vmatprep.subr.bf16.mxu0 0
      %5847 = vmatpush1.bf16.xpose.msra.mxu0 0
      %5848 = vmatprep.subr.bf16.mxu0 0
      %5849 = vmatpush1.bf16.xpose.msra.mxu0 0
      %5850 = vmatprep.subr.bf16.mxu0 0
      %5851 = vmatpush1.bf16.xpose.msra.mxu0 0
      %5852 = vmatprep.subr.bf16.mxu0 0
      %5853 = vmatpush1.bf16.xpose.msra.mxu0 0
      %5854 = vmatprep.subr.bf16.mxu0 0
      %5855 = vmatpush1.bf16.xpose.msra.mxu0 0
      %5856 = vmatprep.subr.bf16.mxu0 0
      %5857 = vmatpush1.bf16.xpose.msra.mxu0 0
      %5858 = vmatprep.subr.bf16.mxu0 0
      %5859 = vmatpush1.bf16.xpose.msra.mxu0 0
      %5860 = vmatprep.subr.bf16.mxu0 0
      %5861 = vmatpush1.bf16.xpose.msra.mxu0 0
      %5862 = vmatprep.subr.bf16.mxu0 0
      %5863 = vmatpush1.bf16.xpose.msra.mxu0 0
      %5864 = vmatprep.subr.bf16.mxu0 0
      %5865 = vmatpush1.bf16.xpose.msra.mxu0 0
      %5866 = vmatprep.mubr.bf16.mxu0 0
      %5867 = vmatmul.mubr.bf16.gmra.mrb[0].mxu0 %v5829
      %v5868 = vpop.f32.mrb[0].mxu0
      %v5869 = vadd.f32 0.0, %v5868
      %v5870 = vpop.f32.mrb[0].mxu0
      %v5871 = vpop.f32.mrb[0].mxu0
      %v5872 = vadd.f32 0.0, %v5871
      %v5873 = vpop.f32.mrb[0].mxu0
      %5874 = vdwg.mxu0
      %5876 = vrot.lane.b32.xlu0 %v5614, 124
      %v5877 = vpop.permute.xlu0 %5876
      %v5879 = vsel %vm5080, %v5598, 0
      %v5882 = vsel %vm5080, %v5877, 0
      %5884 = vmatprep.subr.bf16.mxu0 0
      %5885 = vmatpush1.bf16.xpose.msra.mxu0 %v5882
      %5886 = vmatprep.subr.bf16.mxu0 0
      %5887 = vmatpush1.bf16.xpose.msra.mxu0 0
      %5888 = vmatprep.subr.bf16.mxu0 0
      %5889 = vmatpush1.bf16.xpose.msra.mxu0 0
      %5890 = vmatprep.subr.bf16.mxu0 0
      %5891 = vmatpush1.bf16.xpose.msra.mxu0 0
      %5892 = vmatprep.subr.bf16.mxu0 0
      %5893 = vmatpush1.bf16.xpose.msra.mxu0 0
      %5894 = vmatprep.subr.bf16.mxu0 0
      %5895 = vmatpush1.bf16.xpose.msra.mxu0 0
      %5896 = vmatprep.subr.bf16.mxu0 0
      %5897 = vmatpush1.bf16.xpose.msra.mxu0 0
      %5898 = vmatprep.subr.bf16.mxu0 0
      %5899 = vmatpush1.bf16.xpose.msra.mxu0 0
      %5900 = vmatprep.subr.bf16.mxu0 0
      %5901 = vmatpush1.bf16.xpose.msra.mxu0 0
      %5902 = vmatprep.subr.bf16.mxu0 0
      %5903 = vmatpush1.bf16.xpose.msra.mxu0 0
      %5904 = vmatprep.subr.bf16.mxu0 0
      %5905 = vmatpush1.bf16.xpose.msra.mxu0 0
      %5906 = vmatprep.subr.bf16.mxu0 0
      %5907 = vmatpush1.bf16.xpose.msra.mxu0 0
      %5908 = vmatprep.subr.bf16.mxu0 0
      %5909 = vmatpush1.bf16.xpose.msra.mxu0 0
      %5910 = vmatprep.subr.bf16.mxu0 0
      %5911 = vmatpush1.bf16.xpose.msra.mxu0 0
      %5912 = vmatprep.subr.bf16.mxu0 0
      %5913 = vmatpush1.bf16.xpose.msra.mxu0 0
      %5914 = vmatprep.subr.bf16.mxu0 0
      %5915 = vmatpush1.bf16.xpose.msra.mxu0 0
      %5916 = vmatprep.mubr.bf16.mxu0 0
      %5917 = vmatmul.mubr.bf16.gmra.mrb[0].mxu0 %v5879
      %v5918 = vpop.f32.mrb[0].mxu0
      %v5919 = vadd.f32 0.0, %v5918
      %v5920 = vpop.f32.mrb[0].mxu0
      %v5921 = vpop.f32.mrb[0].mxu0
      %v5922 = vadd.f32 0.0, %v5921
      %v5923 = vpop.f32.mrb[0].mxu0
      %5924 = vdwg.mxu0
      %5926 = vrot.lane.b32.xlu0 %v5615, 124
      %v5927 = vpop.permute.xlu0 %5926
      %v5929 = vsel %vm5080, %v5599, 0
      %v5932 = vsel %vm5080, %v5927, 0
      %5934 = vmatprep.subr.bf16.mxu0 0
      %5935 = vmatpush1.bf16.xpose.msra.mxu0 %v5932
      %5936 = vmatprep.subr.bf16.mxu0 0
      %5937 = vmatpush1.bf16.xpose.msra.mxu0 0
      %5938 = vmatprep.subr.bf16.mxu0 0
      %5939 = vmatpush1.bf16.xpose.msra.mxu0 0
      %5940 = vmatprep.subr.bf16.mxu0 0
      %5941 = vmatpush1.bf16.xpose.msra.mxu0 0
      %5942 = vmatprep.subr.bf16.mxu0 0
      %5943 = vmatpush1.bf16.xpose.msra.mxu0 0
      %5944 = vmatprep.subr.bf16.mxu0 0
      %5945 = vmatpush1.bf16.xpose.msra.mxu0 0
      %5946 = vmatprep.subr.bf16.mxu0 0
      %5947 = vmatpush1.bf16.xpose.msra.mxu0 0
      %5948 = vmatprep.subr.bf16.mxu0 0
      %5949 = vmatpush1.bf16.xpose.msra.mxu0 0
      %5950 = vmatprep.subr.bf16.mxu0 0
      %5951 = vmatpush1.bf16.xpose.msra.mxu0 0
      %5952 = vmatprep.subr.bf16.mxu0 0
      %5953 = vmatpush1.bf16.xpose.msra.mxu0 0
      %5954 = vmatprep.subr.bf16.mxu0 0
      %5955 = vmatpush1.bf16.xpose.msra.mxu0 0
      %5956 = vmatprep.subr.bf16.mxu0 0
      %5957 = vmatpush1.bf16.xpose.msra.mxu0 0
      %5958 = vmatprep.subr.bf16.mxu0 0
      %5959 = vmatpush1.bf16.xpose.msra.mxu0 0
      %5960 = vmatprep.subr.bf16.mxu0 0
      %5961 = vmatpush1.bf16.xpose.msra.mxu0 0
      %5962 = vmatprep.subr.bf16.mxu0 0
      %5963 = vmatpush1.bf16.xpose.msra.mxu0 0
      %5964 = vmatprep.subr.bf16.mxu0 0
      %5965 = vmatpush1.bf16.xpose.msra.mxu0 0
      %5966 = vmatprep.mubr.bf16.mxu0 0
      %5967 = vmatmul.mubr.bf16.gmra.mrb[0].mxu0 %v5929
      %v5968 = vpop.f32.mrb[0].mxu0
      %v5969 = vadd.f32 0.0, %v5968
      %v5970 = vpop.f32.mrb[0].mxu0
      %v5971 = vpop.f32.mrb[0].mxu0
      %v5972 = vadd.f32 0.0, %v5971
      %v5973 = vpop.f32.mrb[0].mxu0
      %5974 = vdwg.mxu0
      %5976 = vrot.lane.b32.xlu0 %v5616, 124
      %v5977 = vpop.permute.xlu0 %5976
      %v5979 = vsel %vm5080, %v5600, 0
      %v5982 = vsel %vm5080, %v5977, 0
      %5984 = vmatprep.subr.bf16.mxu0 0
      %5985 = vmatpush1.bf16.xpose.msra.mxu0 %v5982
      %5986 = vmatprep.subr.bf16.mxu0 0
      %5987 = vmatpush1.bf16.xpose.msra.mxu0 0
      %5988 = vmatprep.subr.bf16.mxu0 0
      %5989 = vmatpush1.bf16.xpose.msra.mxu0 0
      %5990 = vmatprep.subr.bf16.mxu0 0
      %5991 = vmatpush1.bf16.xpose.msra.mxu0 0
      %5992 = vmatprep.subr.bf16.mxu0 0
      %5993 = vmatpush1.bf16.xpose.msra.mxu0 0
      %5994 = vmatprep.subr.bf16.mxu0 0
      %5995 = vmatpush1.bf16.xpose.msra.mxu0 0
      %5996 = vmatprep.subr.bf16.mxu0 0
      %5997 = vmatpush1.bf16.xpose.msra.mxu0 0
      %5998 = vmatprep.subr.bf16.mxu0 0
      %5999 = vmatpush1.bf16.xpose.msra.mxu0 0
      %6000 = vmatprep.subr.bf16.mxu0 0
      %6001 = vmatpush1.bf16.xpose.msra.mxu0 0
      %6002 = vmatprep.subr.bf16.mxu0 0
      %6003 = vmatpush1.bf16.xpose.msra.mxu0 0
      %6004 = vmatprep.subr.bf16.mxu0 0
      %6005 = vmatpush1.bf16.xpose.msra.mxu0 0
      %6006 = vmatprep.subr.bf16.mxu0 0
      %6007 = vmatpush1.bf16.xpose.msra.mxu0 0
      %6008 = vmatprep.subr.bf16.mxu0 0
      %6009 = vmatpush1.bf16.xpose.msra.mxu0 0
      %6010 = vmatprep.subr.bf16.mxu0 0
      %6011 = vmatpush1.bf16.xpose.msra.mxu0 0
      %6012 = vmatprep.subr.bf16.mxu0 0
      %6013 = vmatpush1.bf16.xpose.msra.mxu0 0
      %6014 = vmatprep.subr.bf16.mxu0 0
      %6015 = vmatpush1.bf16.xpose.msra.mxu0 0
      %6016 = vmatprep.mubr.bf16.mxu0 0
      %6017 = vmatmul.mubr.bf16.gmra.mrb[0].mxu0 %v5979
      %v6018 = vpop.f32.mrb[0].mxu0
      %v6019 = vadd.f32 0.0, %v6018
      %v6020 = vpop.f32.mrb[0].mxu0
      %v6021 = vpop.f32.mrb[0].mxu0
      %v6022 = vadd.f32 0.0, %v6021
      %v6023 = vpop.f32.mrb[0].mxu0
      %6024 = vdwg.mxu0
      %6026 = vrot.lane.b32.xlu0 %v5617, 124
      %v6027 = vpop.permute.xlu0 %6026
      %v6029 = vsel %vm5080, %v5601, 0
      %v6032 = vsel %vm5080, %v6027, 0
      %6034 = vmatprep.subr.bf16.mxu0 0
      %6035 = vmatpush1.bf16.xpose.msra.mxu0 %v6032
      %6036 = vmatprep.subr.bf16.mxu0 0
      %6037 = vmatpush1.bf16.xpose.msra.mxu0 0
      %6038 = vmatprep.subr.bf16.mxu0 0
      %6039 = vmatpush1.bf16.xpose.msra.mxu0 0
      %6040 = vmatprep.subr.bf16.mxu0 0
      %6041 = vmatpush1.bf16.xpose.msra.mxu0 0
      %6042 = vmatprep.subr.bf16.mxu0 0
      %6043 = vmatpush1.bf16.xpose.msra.mxu0 0
      %6044 = vmatprep.subr.bf16.mxu0 0
      %6045 = vmatpush1.bf16.xpose.msra.mxu0 0
      %6046 = vmatprep.subr.bf16.mxu0 0
      %6047 = vmatpush1.bf16.xpose.msra.mxu0 0
      %6048 = vmatprep.subr.bf16.mxu0 0
      %6049 = vmatpush1.bf16.xpose.msra.mxu0 0
      %6050 = vmatprep.subr.bf16.mxu0 0
      %6051 = vmatpush1.bf16.xpose.msra.mxu0 0
      %6052 = vmatprep.subr.bf16.mxu0 0
      %6053 = vmatpush1.bf16.xpose.msra.mxu0 0
      %6054 = vmatprep.subr.bf16.mxu0 0
      %6055 = vmatpush1.bf16.xpose.msra.mxu0 0
      %6056 = vmatprep.subr.bf16.mxu0 0
      %6057 = vmatpush1.bf16.xpose.msra.mxu0 0
      %6058 = vmatprep.subr.bf16.mxu0 0
      %6059 = vmatpush1.bf16.xpose.msra.mxu0 0
      %6060 = vmatprep.subr.bf16.mxu0 0
      %6061 = vmatpush1.bf16.xpose.msra.mxu0 0
      %6062 = vmatprep.subr.bf16.mxu0 0
      %6063 = vmatpush1.bf16.xpose.msra.mxu0 0
      %6064 = vmatprep.subr.bf16.mxu0 0
      %6065 = vmatpush1.bf16.xpose.msra.mxu0 0
      %6066 = vmatprep.mubr.bf16.mxu0 0
      %6067 = vmatmul.mubr.bf16.gmra.mrb[0].mxu0 %v6029
      %v6068 = vpop.f32.mrb[0].mxu0
      %v6069 = vadd.f32 0.0, %v6068
      %v6070 = vpop.f32.mrb[0].mxu0
      %v6071 = vpop.f32.mrb[0].mxu0
      %v6072 = vadd.f32 0.0, %v6071
      %v6073 = vpop.f32.mrb[0].mxu0
      %6074 = vdwg.mxu0
      %6076 = vrot.lane.b32.xlu0 %v5618, 124
      %v6077 = vpop.permute.xlu0 %6076
      %v6079 = vsel %vm5080, %v5602, 0
      %v6082 = vsel %vm5080, %v6077, 0
      %6084 = vmatprep.subr.bf16.mxu0 0
      %6085 = vmatpush1.bf16.xpose.msra.mxu0 %v6082
      %6086 = vmatprep.subr.bf16.mxu0 0
      %6087 = vmatpush1.bf16.xpose.msra.mxu0 0
      %6088 = vmatprep.subr.bf16.mxu0 0
      %6089 = vmatpush1.bf16.xpose.msra.mxu0 0
      %6090 = vmatprep.subr.bf16.mxu0 0
      %6091 = vmatpush1.bf16.xpose.msra.mxu0 0
      %6092 = vmatprep.subr.bf16.mxu0 0
      %6093 = vmatpush1.bf16.xpose.msra.mxu0 0
      %6094 = vmatprep.subr.bf16.mxu0 0
      %6095 = vmatpush1.bf16.xpose.msra.mxu0 0
      %6096 = vmatprep.subr.bf16.mxu0 0
      %6097 = vmatpush1.bf16.xpose.msra.mxu0 0
      %6098 = vmatprep.subr.bf16.mxu0 0
      %6099 = vmatpush1.bf16.xpose.msra.mxu0 0
      %6100 = vmatprep.subr.bf16.mxu0 0
      %6101 = vmatpush1.bf16.xpose.msra.mxu0 0
      %6102 = vmatprep.subr.bf16.mxu0 0
      %6103 = vmatpush1.bf16.xpose.msra.mxu0 0
      %6104 = vmatprep.subr.bf16.mxu0 0
      %6105 = vmatpush1.bf16.xpose.msra.mxu0 0
      %6106 = vmatprep.subr.bf16.mxu0 0
      %6107 = vmatpush1.bf16.xpose.msra.mxu0 0
      %6108 = vmatprep.subr.bf16.mxu0 0
      %6109 = vmatpush1.bf16.xpose.msra.mxu0 0
      %6110 = vmatprep.subr.bf16.mxu0 0
      %6111 = vmatpush1.bf16.xpose.msra.mxu0 0
      %6112 = vmatprep.subr.bf16.mxu0 0
      %6113 = vmatpush1.bf16.xpose.msra.mxu0 0
      %6114 = vmatprep.subr.bf16.mxu0 0
      %6115 = vmatpush1.bf16.xpose.msra.mxu0 0
      %6116 = vmatprep.mubr.bf16.mxu0 0
      %6117 = vmatmul.mubr.bf16.gmra.mrb[0].mxu0 %v6079
      %v6118 = vpop.f32.mrb[0].mxu0
      %v6119 = vadd.f32 0.0, %v6118
      %v6120 = vpop.f32.mrb[0].mxu0
      %v6121 = vpop.f32.mrb[0].mxu0
      %v6122 = vadd.f32 0.0, %v6121
      %v6123 = vpop.f32.mrb[0].mxu0
      %6124 = vdwg.mxu0
      %6126 = vrot.lane.b32.xlu0 %v5619, 124
      %v6127 = vpop.permute.xlu0 %6126
      %v6129 = vsel %vm5080, %v5603, 0
      %v6132 = vsel %vm5080, %v6127, 0
      %6134 = vmatprep.subr.bf16.mxu0 0
      %6135 = vmatpush1.bf16.xpose.msra.mxu0 %v6132
      %6136 = vmatprep.subr.bf16.mxu0 0
      %6137 = vmatpush1.bf16.xpose.msra.mxu0 0
      %6138 = vmatprep.subr.bf16.mxu0 0
      %6139 = vmatpush1.bf16.xpose.msra.mxu0 0
      %6140 = vmatprep.subr.bf16.mxu0 0
      %6141 = vmatpush1.bf16.xpose.msra.mxu0 0
      %6142 = vmatprep.subr.bf16.mxu0 0
      %6143 = vmatpush1.bf16.xpose.msra.mxu0 0
      %6144 = vmatprep.subr.bf16.mxu0 0
      %6145 = vmatpush1.bf16.xpose.msra.mxu0 0
      %6146 = vmatprep.subr.bf16.mxu0 0
      %6147 = vmatpush1.bf16.xpose.msra.mxu0 0
      %6148 = vmatprep.subr.bf16.mxu0 0
      %6149 = vmatpush1.bf16.xpose.msra.mxu0 0
      %6150 = vmatprep.subr.bf16.mxu0 0
      %6151 = vmatpush1.bf16.xpose.msra.mxu0 0
      %6152 = vmatprep.subr.bf16.mxu0 0
      %6153 = vmatpush1.bf16.xpose.msra.mxu0 0
      %6154 = vmatprep.subr.bf16.mxu0 0
      %6155 = vmatpush1.bf16.xpose.msra.mxu0 0
      %6156 = vmatprep.subr.bf16.mxu0 0
      %6157 = vmatpush1.bf16.xpose.msra.mxu0 0
      %6158 = vmatprep.subr.bf16.mxu0 0
      %6159 = vmatpush1.bf16.xpose.msra.mxu0 0
      %6160 = vmatprep.subr.bf16.mxu0 0
      %6161 = vmatpush1.bf16.xpose.msra.mxu0 0
      %6162 = vmatprep.subr.bf16.mxu0 0
      %6163 = vmatpush1.bf16.xpose.msra.mxu0 0
      %6164 = vmatprep.subr.bf16.mxu0 0
      %6165 = vmatpush1.bf16.xpose.msra.mxu0 0
      %6166 = vmatprep.mubr.bf16.mxu0 0
      %6167 = vmatmul.mubr.bf16.gmra.mrb[0].mxu0 %v6129
      %v6168 = vpop.f32.mrb[0].mxu0
      %v6169 = vadd.f32 0.0, %v6168
      %v6170 = vpop.f32.mrb[0].mxu0
      %v6171 = vpop.f32.mrb[0].mxu0
      %v6172 = vadd.f32 0.0, %v6171
      %v6173 = vpop.f32.mrb[0].mxu0
      %6174 = vdwg.mxu0
      %6176 = vrot.lane.b32.xlu0 %v5620, 124
      %v6177 = vpop.permute.xlu0 %6176
      %v6179 = vsel %vm5080, %v5604, 0
      %v6182 = vsel %vm5080, %v6177, 0
      %6184 = vmatprep.subr.bf16.mxu0 0
      %6185 = vmatpush1.bf16.xpose.msra.mxu0 %v6182
      %6186 = vmatprep.subr.bf16.mxu0 0
      %6187 = vmatpush1.bf16.xpose.msra.mxu0 0
      %6188 = vmatprep.subr.bf16.mxu0 0
      %6189 = vmatpush1.bf16.xpose.msra.mxu0 0
      %6190 = vmatprep.subr.bf16.mxu0 0
      %6191 = vmatpush1.bf16.xpose.msra.mxu0 0
      %6192 = vmatprep.subr.bf16.mxu0 0
      %6193 = vmatpush1.bf16.xpose.msra.mxu0 0
      %6194 = vmatprep.subr.bf16.mxu0 0
      %6195 = vmatpush1.bf16.xpose.msra.mxu0 0
      %6196 = vmatprep.subr.bf16.mxu0 0
      %6197 = vmatpush1.bf16.xpose.msra.mxu0 0
      %6198 = vmatprep.subr.bf16.mxu0 0
      %6199 = vmatpush1.bf16.xpose.msra.mxu0 0
      %6200 = vmatprep.subr.bf16.mxu0 0
      %6201 = vmatpush1.bf16.xpose.msra.mxu0 0
      %6202 = vmatprep.subr.bf16.mxu0 0
      %6203 = vmatpush1.bf16.xpose.msra.mxu0 0
      %6204 = vmatprep.subr.bf16.mxu0 0
      %6205 = vmatpush1.bf16.xpose.msra.mxu0 0
      %6206 = vmatprep.subr.bf16.mxu0 0
      %6207 = vmatpush1.bf16.xpose.msra.mxu0 0
      %6208 = vmatprep.subr.bf16.mxu0 0
      %6209 = vmatpush1.bf16.xpose.msra.mxu0 0
      %6210 = vmatprep.subr.bf16.mxu0 0
      %6211 = vmatpush1.bf16.xpose.msra.mxu0 0
      %6212 = vmatprep.subr.bf16.mxu0 0
      %6213 = vmatpush1.bf16.xpose.msra.mxu0 0
      %6214 = vmatprep.subr.bf16.mxu0 0
      %6215 = vmatpush1.bf16.xpose.msra.mxu0 0
      %6216 = vmatprep.mubr.bf16.mxu0 0
      %6217 = vmatmul.mubr.bf16.gmra.mrb[0].mxu0 %v6179
      %v6218 = vpop.f32.mrb[0].mxu0
      %v6219 = vadd.f32 0.0, %v6218
      %v6220 = vpop.f32.mrb[0].mxu0
      %v6221 = vpop.f32.mrb[0].mxu0
      %v6222 = vadd.f32 0.0, %v6221
      %v6223 = vpop.f32.mrb[0].mxu0
      %6224 = vdwg.mxu0
      %6226 = vrot.lane.b32.xlu0 %v5621, 124
      %v6227 = vpop.permute.xlu0 %6226
      %v6229 = vsel %vm5080, %v5605, 0
      %v6232 = vsel %vm5080, %v6227, 0
      %6234 = vmatprep.subr.bf16.mxu0 0
      %6235 = vmatpush1.bf16.xpose.msra.mxu0 %v6232
      %6236 = vmatprep.subr.bf16.mxu0 0
      %6237 = vmatpush1.bf16.xpose.msra.mxu0 0
      %6238 = vmatprep.subr.bf16.mxu0 0
      %6239 = vmatpush1.bf16.xpose.msra.mxu0 0
      %6240 = vmatprep.subr.bf16.mxu0 0
      %6241 = vmatpush1.bf16.xpose.msra.mxu0 0
      %6242 = vmatprep.subr.bf16.mxu0 0
      %6243 = vmatpush1.bf16.xpose.msra.mxu0 0
      %6244 = vmatprep.subr.bf16.mxu0 0
      %6245 = vmatpush1.bf16.xpose.msra.mxu0 0
      %6246 = vmatprep.subr.bf16.mxu0 0
      %6247 = vmatpush1.bf16.xpose.msra.mxu0 0
      %6248 = vmatprep.subr.bf16.mxu0 0
      %6249 = vmatpush1.bf16.xpose.msra.mxu0 0
      %6250 = vmatprep.subr.bf16.mxu0 0
      %6251 = vmatpush1.bf16.xpose.msra.mxu0 0
      %6252 = vmatprep.subr.bf16.mxu0 0
      %6253 = vmatpush1.bf16.xpose.msra.mxu0 0
      %6254 = vmatprep.subr.bf16.mxu0 0
      %6255 = vmatpush1.bf16.xpose.msra.mxu0 0
      %6256 = vmatprep.subr.bf16.mxu0 0
      %6257 = vmatpush1.bf16.xpose.msra.mxu0 0
      %6258 = vmatprep.subr.bf16.mxu0 0
      %6259 = vmatpush1.bf16.xpose.msra.mxu0 0
      %6260 = vmatprep.subr.bf16.mxu0 0
      %6261 = vmatpush1.bf16.xpose.msra.mxu0 0
      %6262 = vmatprep.subr.bf16.mxu0 0
      %6263 = vmatpush1.bf16.xpose.msra.mxu0 0
      %6264 = vmatprep.subr.bf16.mxu0 0
      %6265 = vmatpush1.bf16.xpose.msra.mxu0 0
      %6266 = vmatprep.mubr.bf16.mxu0 0
      %6267 = vmatmul.mubr.bf16.gmra.mrb[0].mxu0 %v6229
      %v6268 = vpop.f32.mrb[0].mxu0
      %v6269 = vadd.f32 0.0, %v6268
      %v6270 = vpop.f32.mrb[0].mxu0
      %v6271 = vpop.f32.mrb[0].mxu0
      %v6272 = vadd.f32 0.0, %v6271
      %v6273 = vpop.f32.mrb[0].mxu0
      %6274 = vdwg.mxu0
      %6276 = vrot.lane.b32.xlu0 %v5622, 124
      %v6277 = vpop.permute.xlu0 %6276
      %v6279 = vsel %vm5080, %v5606, 0
      %v6282 = vsel %vm5080, %v6277, 0
      %6284 = vmatprep.subr.bf16.mxu0 0
      %6285 = vmatpush1.bf16.xpose.msra.mxu0 %v6282
      %6286 = vmatprep.subr.bf16.mxu0 0
      %6287 = vmatpush1.bf16.xpose.msra.mxu0 0
      %6288 = vmatprep.subr.bf16.mxu0 0
      %6289 = vmatpush1.bf16.xpose.msra.mxu0 0
      %6290 = vmatprep.subr.bf16.mxu0 0
      %6291 = vmatpush1.bf16.xpose.msra.mxu0 0
      %6292 = vmatprep.subr.bf16.mxu0 0
      %6293 = vmatpush1.bf16.xpose.msra.mxu0 0
      %6294 = vmatprep.subr.bf16.mxu0 0
      %6295 = vmatpush1.bf16.xpose.msra.mxu0 0
      %6296 = vmatprep.subr.bf16.mxu0 0
      %6297 = vmatpush1.bf16.xpose.msra.mxu0 0
      %6298 = vmatprep.subr.bf16.mxu0 0
      %6299 = vmatpush1.bf16.xpose.msra.mxu0 0
      %6300 = vmatprep.subr.bf16.mxu0 0
      %6301 = vmatpush1.bf16.xpose.msra.mxu0 0
      %6302 = vmatprep.subr.bf16.mxu0 0
      %6303 = vmatpush1.bf16.xpose.msra.mxu0 0
      %6304 = vmatprep.subr.bf16.mxu0 0
      %6305 = vmatpush1.bf16.xpose.msra.mxu0 0
      %6306 = vmatprep.subr.bf16.mxu0 0
      %6307 = vmatpush1.bf16.xpose.msra.mxu0 0
      %6308 = vmatprep.subr.bf16.mxu0 0
      %6309 = vmatpush1.bf16.xpose.msra.mxu0 0
      %6310 = vmatprep.subr.bf16.mxu0 0
      %6311 = vmatpush1.bf16.xpose.msra.mxu0 0
      %6312 = vmatprep.subr.bf16.mxu0 0
      %6313 = vmatpush1.bf16.xpose.msra.mxu0 0
      %6314 = vmatprep.subr.bf16.mxu0 0
      %6315 = vmatpush1.bf16.xpose.msra.mxu0 0
      %6316 = vmatprep.mubr.bf16.mxu0 0
      %6317 = vmatmul.mubr.bf16.gmra.mrb[0].mxu0 %v6279
      %v6318 = vpop.f32.mrb[0].mxu0
      %v6319 = vadd.f32 0.0, %v6318
      %v6320 = vpop.f32.mrb[0].mxu0
      %v6321 = vpop.f32.mrb[0].mxu0
      %v6322 = vadd.f32 0.0, %v6321
      %v6323 = vpop.f32.mrb[0].mxu0
      %6324 = vdwg.mxu0
      %6326 = vrot.lane.b32.xlu0 %v5623, 124
      %v6327 = vpop.permute.xlu0 %6326
      %v6329 = vsel %vm5080, %v5607, 0
      %v6332 = vsel %vm5080, %v6327, 0
      %6334 = vmatprep.subr.bf16.mxu0 0
      %6335 = vmatpush1.bf16.xpose.msra.mxu0 %v6332
      %6336 = vmatprep.subr.bf16.mxu0 0
      %6337 = vmatpush1.bf16.xpose.msra.mxu0 0
      %6338 = vmatprep.subr.bf16.mxu0 0
      %6339 = vmatpush1.bf16.xpose.msra.mxu0 0
      %6340 = vmatprep.subr.bf16.mxu0 0
      %6341 = vmatpush1.bf16.xpose.msra.mxu0 0
      %6342 = vmatprep.subr.bf16.mxu0 0
      %6343 = vmatpush1.bf16.xpose.msra.mxu0 0
      %6344 = vmatprep.subr.bf16.mxu0 0
      %6345 = vmatpush1.bf16.xpose.msra.mxu0 0
      %6346 = vmatprep.subr.bf16.mxu0 0
      %6347 = vmatpush1.bf16.xpose.msra.mxu0 0
      %6348 = vmatprep.subr.bf16.mxu0 0
      %6349 = vmatpush1.bf16.xpose.msra.mxu0 0
      %6350 = vmatprep.subr.bf16.mxu0 0
      %6351 = vmatpush1.bf16.xpose.msra.mxu0 0
      %6352 = vmatprep.subr.bf16.mxu0 0
      %6353 = vmatpush1.bf16.xpose.msra.mxu0 0
      %6354 = vmatprep.subr.bf16.mxu0 0
      %6355 = vmatpush1.bf16.xpose.msra.mxu0 0
      %6356 = vmatprep.subr.bf16.mxu0 0
      %6357 = vmatpush1.bf16.xpose.msra.mxu0 0
      %6358 = vmatprep.subr.bf16.mxu0 0
      %6359 = vmatpush1.bf16.xpose.msra.mxu0 0
      %6360 = vmatprep.subr.bf16.mxu0 0
      %6361 = vmatpush1.bf16.xpose.msra.mxu0 0
      %6362 = vmatprep.subr.bf16.mxu0 0
      %6363 = vmatpush1.bf16.xpose.msra.mxu0 0
      %6364 = vmatprep.subr.bf16.mxu0 0
      %6365 = vmatpush1.bf16.xpose.msra.mxu0 0
      %6366 = vmatprep.mubr.bf16.mxu0 0
      %6367 = vmatmul.mubr.bf16.gmra.mrb[0].mxu0 %v6329
      %v6368 = vpop.f32.mrb[0].mxu0
      %v6369 = vadd.f32 0.0, %v6368
      %v6370 = vpop.f32.mrb[0].mxu0
      %v6371 = vpop.f32.mrb[0].mxu0
      %v6372 = vadd.f32 0.0, %v6371
      %v6373 = vpop.f32.mrb[0].mxu0
      %6374 = vdwg.mxu0
      %6376 = vrot.lane.b32.xlu0 %v5624, 124
      %v6377 = vpop.permute.xlu0 %6376
      %v6379 = vsel %vm5080, %v5608, 0
      %v6382 = vsel %vm5080, %v6377, 0
      %6384 = vmatprep.subr.bf16.mxu0 0
      %6385 = vmatpush1.bf16.xpose.msra.mxu0 %v6382
      %6386 = vmatprep.subr.bf16.mxu0 0
      %6387 = vmatpush1.bf16.xpose.msra.mxu0 0
      %6388 = vmatprep.subr.bf16.mxu0 0
      %6389 = vmatpush1.bf16.xpose.msra.mxu0 0
      %6390 = vmatprep.subr.bf16.mxu0 0
      %6391 = vmatpush1.bf16.xpose.msra.mxu0 0
      %6392 = vmatprep.subr.bf16.mxu0 0
      %6393 = vmatpush1.bf16.xpose.msra.mxu0 0
      %6394 = vmatprep.subr.bf16.mxu0 0
      %6395 = vmatpush1.bf16.xpose.msra.mxu0 0
      %6396 = vmatprep.subr.bf16.mxu0 0
      %6397 = vmatpush1.bf16.xpose.msra.mxu0 0
      %6398 = vmatprep.subr.bf16.mxu0 0
      %6399 = vmatpush1.bf16.xpose.msra.mxu0 0
      %6400 = vmatprep.subr.bf16.mxu0 0
      %6401 = vmatpush1.bf16.xpose.msra.mxu0 0
      %6402 = vmatprep.subr.bf16.mxu0 0
      %6403 = vmatpush1.bf16.xpose.msra.mxu0 0
      %6404 = vmatprep.subr.bf16.mxu0 0
      %6405 = vmatpush1.bf16.xpose.msra.mxu0 0
      %6406 = vmatprep.subr.bf16.mxu0 0
      %6407 = vmatpush1.bf16.xpose.msra.mxu0 0
      %6408 = vmatprep.subr.bf16.mxu0 0
      %6409 = vmatpush1.bf16.xpose.msra.mxu0 0
      %6410 = vmatprep.subr.bf16.mxu0 0
      %6411 = vmatpush1.bf16.xpose.msra.mxu0 0
      %6412 = vmatprep.subr.bf16.mxu0 0
      %6413 = vmatpush1.bf16.xpose.msra.mxu0 0
      %6414 = vmatprep.subr.bf16.mxu0 0
      %6415 = vmatpush1.bf16.xpose.msra.mxu0 0
      %6416 = vmatprep.mubr.bf16.mxu0 0
      %6417 = vmatmul.mubr.bf16.gmra.mrb[0].mxu0 %v6379
      %v6418 = vpop.f32.mrb[0].mxu0
      %v6419 = vadd.f32 0.0, %v6418
      %v6420 = vpop.f32.mrb[0].mxu0
      %v6421 = vpop.f32.mrb[0].mxu0
      %v6422 = vadd.f32 0.0, %v6421
      %v6423 = vpop.f32.mrb[0].mxu0
      %6424 = vdwg.mxu0
      %v6425 = vstv %s5047
      %v6426 = vmul.f32 %v5669, %v6425
      %v6427 = vmul.f32 %v5672, %v6425
      %v6428 = vmul.f32 %v5719, %v6425
      %v6429 = vmul.f32 %v5722, %v6425
      %v6430 = vmul.f32 %v5769, %v6425
      %v6431 = vmul.f32 %v5772, %v6425
      %v6432 = vmul.f32 %v5819, %v6425
      %v6433 = vmul.f32 %v5822, %v6425
      %v6434 = vmul.f32 %v5869, %v6425
      %v6435 = vmul.f32 %v5872, %v6425
      %v6436 = vmul.f32 %v5919, %v6425
      %v6437 = vmul.f32 %v5922, %v6425
      %v6438 = vmul.f32 %v5969, %v6425
      %v6439 = vmul.f32 %v5972, %v6425
      %v6440 = vmul.f32 %v6019, %v6425
      %v6441 = vmul.f32 %v6022, %v6425
      %v6442 = vmul.f32 %v6069, %v6425
      %v6443 = vmul.f32 %v6072, %v6425
      %v6444 = vmul.f32 %v6119, %v6425
      %v6445 = vmul.f32 %v6122, %v6425
      %v6446 = vmul.f32 %v6169, %v6425
      %v6447 = vmul.f32 %v6172, %v6425
      %v6448 = vmul.f32 %v6219, %v6425
      %v6449 = vmul.f32 %v6222, %v6425
      %v6450 = vmul.f32 %v6269, %v6425
      %v6451 = vmul.f32 %v6272, %v6425
      %v6452 = vmul.f32 %v6319, %v6425
      %v6453 = vmul.f32 %v6322, %v6425
      %v6454 = vmul.f32 %v6369, %v6425
      %v6455 = vmul.f32 %v6372, %v6425
      %v6456 = vmul.f32 %v6419, %v6425
      %v6457 = vmul.f32 %v6422, %v6425
      %vm6458 = vcmask 130048
      %v6459 = vsel %vm6458, %v6426, -inf
      %6460 = vmax.xlane.f32.xlu0 %v6459
      %v6461 = vpop.xlane.xlu0 %6460
      %v6462 = vsel %vm6458, %v6427, -inf
      %6463 = vmax.xlane.f32.xlu0 %v6462
      %v6464 = vpop.xlane.xlu0 %6463
      %v6465 = vsel %vm6458, %v6428, -inf
      %6466 = vmax.xlane.f32.xlu0 %v6465
      %v6467 = vpop.xlane.xlu0 %6466
      %v6468 = vsel %vm6458, %v6429, -inf
      %6469 = vmax.xlane.f32.xlu0 %v6468
      %v6470 = vpop.xlane.xlu0 %6469
      %v6471 = vsel %vm6458, %v6430, -inf
      %6472 = vmax.xlane.f32.xlu0 %v6471
      %v6473 = vpop.xlane.xlu0 %6472
      %v6474 = vsel %vm6458, %v6431, -inf
      %6475 = vmax.xlane.f32.xlu0 %v6474
      %v6476 = vpop.xlane.xlu0 %6475
      %v6477 = vsel %vm6458, %v6432, -inf
      %6478 = vmax.xlane.f32.xlu0 %v6477
      %v6479 = vpop.xlane.xlu0 %6478
      %v6480 = vsel %vm6458, %v6433, -inf
      %6481 = vmax.xlane.f32.xlu0 %v6480
      %v6482 = vpop.xlane.xlu0 %6481
      %v6483 = vsel %vm6458, %v6434, -inf
      %6484 = vmax.xlane.f32.xlu0 %v6483
      %v6485 = vpop.xlane.xlu0 %6484
      %v6486 = vsel %vm6458, %v6435, -inf
      %6487 = vmax.xlane.f32.xlu0 %v6486
      %v6488 = vpop.xlane.xlu0 %6487
      %v6489 = vsel %vm6458, %v6436, -inf
      %6490 = vmax.xlane.f32.xlu0 %v6489
      %v6491 = vpop.xlane.xlu0 %6490
      %v6492 = vsel %vm6458, %v6437, -inf
      %6493 = vmax.xlane.f32.xlu0 %v6492
      %v6494 = vpop.xlane.xlu0 %6493
      %v6495 = vsel %vm6458, %v6438, -inf
      %6496 = vmax.xlane.f32.xlu0 %v6495
      %v6497 = vpop.xlane.xlu0 %6496
      %v6498 = vsel %vm6458, %v6439, -inf
      %6499 = vmax.xlane.f32.xlu0 %v6498
      %v6500 = vpop.xlane.xlu0 %6499
      %v6501 = vsel %vm6458, %v6440, -inf
      %6502 = vmax.xlane.f32.xlu0 %v6501
      %v6503 = vpop.xlane.xlu0 %6502
      %v6504 = vsel %vm6458, %v6441, -inf
      %6505 = vmax.xlane.f32.xlu0 %v6504
      %v6506 = vpop.xlane.xlu0 %6505
      %v6507 = vsel %vm6458, %v6442, -inf
      %6508 = vmax.xlane.f32.xlu0 %v6507
      %v6509 = vpop.xlane.xlu0 %6508
      %v6510 = vsel %vm6458, %v6443, -inf
      %6511 = vmax.xlane.f32.xlu0 %v6510
      %v6512 = vpop.xlane.xlu0 %6511
      %v6513 = vsel %vm6458, %v6444, -inf
      %6514 = vmax.xlane.f32.xlu0 %v6513
      %v6515 = vpop.xlane.xlu0 %6514
      %v6516 = vsel %vm6458, %v6445, -inf
      %6517 = vmax.xlane.f32.xlu0 %v6516
      %v6518 = vpop.xlane.xlu0 %6517
      %v6519 = vsel %vm6458, %v6446, -inf
      %6520 = vmax.xlane.f32.xlu0 %v6519
      %v6521 = vpop.xlane.xlu0 %6520
      %v6522 = vsel %vm6458, %v6447, -inf
      %6523 = vmax.xlane.f32.xlu0 %v6522
      %v6524 = vpop.xlane.xlu0 %6523
      %v6525 = vsel %vm6458, %v6448, -inf
      %6526 = vmax.xlane.f32.xlu0 %v6525
      %v6527 = vpop.xlane.xlu0 %6526
      %v6528 = vsel %vm6458, %v6449, -inf
      %6529 = vmax.xlane.f32.xlu0 %v6528
      %v6530 = vpop.xlane.xlu0 %6529
      %v6531 = vsel %vm6458, %v6450, -inf
      %6532 = vmax.xlane.f32.xlu0 %v6531
      %v6533 = vpop.xlane.xlu0 %6532
      %v6534 = vsel %vm6458, %v6451, -inf
      %6535 = vmax.xlane.f32.xlu0 %v6534
      %v6536 = vpop.xlane.xlu0 %6535
      %v6537 = vsel %vm6458, %v6452, -inf
      %6538 = vmax.xlane.f32.xlu0 %v6537
      %v6539 = vpop.xlane.xlu0 %6538
      %v6540 = vsel %vm6458, %v6453, -inf
      %6541 = vmax.xlane.f32.xlu0 %v6540
      %v6542 = vpop.xlane.xlu0 %6541
      %v6543 = vsel %vm6458, %v6454, -inf
      %6544 = vmax.xlane.f32.xlu0 %v6543
      %v6545 = vpop.xlane.xlu0 %6544
      %v6546 = vsel %vm6458, %v6455, -inf
      %6547 = vmax.xlane.f32.xlu0 %v6546
      %v6548 = vpop.xlane.xlu0 %6547
      %v6549 = vsel %vm6458, %v6456, -inf
      %6550 = vmax.xlane.f32.xlu0 %v6549
      %v6551 = vpop.xlane.xlu0 %6550
      %v6552 = vsel %vm6458, %v6457, -inf
      %6553 = vmax.xlane.f32.xlu0 %v6552
      %v6554 = vpop.xlane.xlu0 %6553
      %v6555 = vsub.f32 %v6426, %v6461
      %v6556 = vsub.f32 %v6427, %v6464
      %v6557 = vsub.f32 %v6428, %v6467
      %v6558 = vsub.f32 %v6429, %v6470
      %v6559 = vsub.f32 %v6430, %v6473
      %v6560 = vsub.f32 %v6431, %v6476
      %v6561 = vsub.f32 %v6432, %v6479
      %v6562 = vsub.f32 %v6433, %v6482
      %v6563 = vsub.f32 %v6434, %v6485
      %v6564 = vsub.f32 %v6435, %v6488
      %v6565 = vsub.f32 %v6436, %v6491
      %v6566 = vsub.f32 %v6437, %v6494
      %v6567 = vsub.f32 %v6438, %v6497
      %v6568 = vsub.f32 %v6439, %v6500
      %v6569 = vsub.f32 %v6440, %v6503
      %v6570 = vsub.f32 %v6441, %v6506
      %v6571 = vsub.f32 %v6442, %v6509
      %v6572 = vsub.f32 %v6443, %v6512
      %v6573 = vsub.f32 %v6444, %v6515
      %v6574 = vsub.f32 %v6445, %v6518
      %v6575 = vsub.f32 %v6446, %v6521
      %v6576 = vsub.f32 %v6447, %v6524
      %v6577 = vsub.f32 %v6448, %v6527
      %v6578 = vsub.f32 %v6449, %v6530
      %v6579 = vsub.f32 %v6450, %v6533
      %v6580 = vsub.f32 %v6451, %v6536
      %v6581 = vsub.f32 %v6452, %v6539
      %v6582 = vsub.f32 %v6453, %v6542
      %v6583 = vsub.f32 %v6454, %v6545
      %v6584 = vsub.f32 %v6455, %v6548
      %v6585 = vsub.f32 %v6456, %v6551
      %v6586 = vsub.f32 %v6457, %v6554
      %v6587 = vmul.f32 %v6555, 1.442695
      %v6588 = vpow.pop %v6587
      %v6589 = vmul.f32 %v6556, 1.442695
      %v6590 = vpow.pop %v6589
      %v6591 = vmul.f32 %v6557, 1.442695
      %v6592 = vpow.pop %v6591
      %v6593 = vmul.f32 %v6558, 1.442695
      %v6594 = vpow.pop %v6593
      %v6595 = vmul.f32 %v6559, 1.442695
      %v6596 = vpow.pop %v6595
      %v6597 = vmul.f32 %v6560, 1.442695
      %v6598 = vpow.pop %v6597
      %v6599 = vmul.f32 %v6561, 1.442695
      %v6600 = vpow.pop %v6599
      %v6601 = vmul.f32 %v6562, 1.442695
      %v6602 = vpow.pop %v6601
      %v6603 = vmul.f32 %v6563, 1.442695
      %v6604 = vpow.pop %v6603
      %v6605 = vmul.f32 %v6564, 1.442695
      %v6606 = vpow.pop %v6605
      %v6607 = vmul.f32 %v6565, 1.442695
      %v6608 = vpow.pop %v6607
      %v6609 = vmul.f32 %v6566, 1.442695
      %v6610 = vpow.pop %v6609
      %v6611 = vmul.f32 %v6567, 1.442695
      %v6612 = vpow.pop %v6611
      %v6613 = vmul.f32 %v6568, 1.442695
      %v6614 = vpow.pop %v6613
      %v6615 = vmul.f32 %v6569, 1.442695
      %v6616 = vpow.pop %v6615
      %v6617 = vmul.f32 %v6570, 1.442695
      %v6618 = vpow.pop %v6617
      %v6619 = vmul.f32 %v6571, 1.442695
      %v6620 = vpow.pop %v6619
      %v6621 = vmul.f32 %v6572, 1.442695
      %v6622 = vpow.pop %v6621
      %v6623 = vmul.f32 %v6573, 1.442695
      %v6624 = vpow.pop %v6623
      %v6625 = vmul.f32 %v6574, 1.442695
      %v6626 = vpow.pop %v6625
      %v6627 = vmul.f32 %v6575, 1.442695
      %v6628 = vpow.pop %v6627
      %v6629 = vmul.f32 %v6576, 1.442695
      %v6630 = vpow.pop %v6629
      %v6631 = vmul.f32 %v6577, 1.442695
      %v6632 = vpow.pop %v6631
      %v6633 = vmul.f32 %v6578, 1.442695
      %v6634 = vpow.pop %v6633
      %v6635 = vmul.f32 %v6579, 1.442695
      %v6636 = vpow.pop %v6635
      %v6637 = vmul.f32 %v6580, 1.442695
      %v6638 = vpow.pop %v6637
      %v6639 = vmul.f32 %v6581, 1.442695
      %v6640 = vpow.pop %v6639
      %v6641 = vmul.f32 %v6582, 1.442695
      %v6642 = vpow.pop %v6641
      %v6643 = vmul.f32 %v6583, 1.442695
      %v6644 = vpow.pop %v6643
      %v6645 = vmul.f32 %v6584, 1.442695
      %v6646 = vpow.pop %v6645
      %v6647 = vmul.f32 %v6585, 1.442695
      %v6648 = vpow.pop %v6647
      %v6649 = vmul.f32 %v6586, 1.442695
      %v6650 = vpow.pop %v6649
      %v6651 = vsel %vm6458, %v6588, 0.0
      %6652 = vadd.xlane.f32.xlu0 %v6651
      %v6653 = vpop.xlane.xlu0 %6652
      %v6654 = vsel %vm6458, %v6590, 0.0
      %6655 = vadd.xlane.f32.xlu0 %v6654
      %v6656 = vpop.xlane.xlu0 %6655
      %v6657 = vsel %vm6458, %v6592, 0.0
      %6658 = vadd.xlane.f32.xlu0 %v6657
      %v6659 = vpop.xlane.xlu0 %6658
      %v6660 = vsel %vm6458, %v6594, 0.0
      %6661 = vadd.xlane.f32.xlu0 %v6660
      %v6662 = vpop.xlane.xlu0 %6661
      %v6663 = vsel %vm6458, %v6596, 0.0
      %6664 = vadd.xlane.f32.xlu0 %v6663
      %v6665 = vpop.xlane.xlu0 %6664
      %v6666 = vsel %vm6458, %v6598, 0.0
      %6667 = vadd.xlane.f32.xlu0 %v6666
      %v6668 = vpop.xlane.xlu0 %6667
      %v6669 = vsel %vm6458, %v6600, 0.0
      %6670 = vadd.xlane.f32.xlu0 %v6669
      %v6671 = vpop.xlane.xlu0 %6670
      %v6672 = vsel %vm6458, %v6602, 0.0
      %6673 = vadd.xlane.f32.xlu0 %v6672
      %v6674 = vpop.xlane.xlu0 %6673
      %v6675 = vsel %vm6458, %v6604, 0.0
      %6676 = vadd.xlane.f32.xlu0 %v6675
      %v6677 = vpop.xlane.xlu0 %6676
      %v6678 = vsel %vm6458, %v6606, 0.0
      %6679 = vadd.xlane.f32.xlu0 %v6678
      %v6680 = vpop.xlane.xlu0 %6679
      %v6681 = vsel %vm6458, %v6608, 0.0
      %6682 = vadd.xlane.f32.xlu0 %v6681
      %v6683 = vpop.xlane.xlu0 %6682
      %v6684 = vsel %vm6458, %v6610, 0.0
      %6685 = vadd.xlane.f32.xlu0 %v6684
      %v6686 = vpop.xlane.xlu0 %6685
      %v6687 = vsel %vm6458, %v6612, 0.0
      %6688 = vadd.xlane.f32.xlu0 %v6687
      %v6689 = vpop.xlane.xlu0 %6688
      %v6690 = vsel %vm6458, %v6614, 0.0
      %6691 = vadd.xlane.f32.xlu0 %v6690
      %v6692 = vpop.xlane.xlu0 %6691
      %v6693 = vsel %vm6458, %v6616, 0.0
      %6694 = vadd.xlane.f32.xlu0 %v6693
      %v6695 = vpop.xlane.xlu0 %6694
      %v6696 = vsel %vm6458, %v6618, 0.0
      %6697 = vadd.xlane.f32.xlu0 %v6696
      %v6698 = vpop.xlane.xlu0 %6697
      %v6699 = vsel %vm6458, %v6620, 0.0
      %6700 = vadd.xlane.f32.xlu0 %v6699
      %v6701 = vpop.xlane.xlu0 %6700
      %v6702 = vsel %vm6458, %v6622, 0.0
      %6703 = vadd.xlane.f32.xlu0 %v6702
      %v6704 = vpop.xlane.xlu0 %6703
      %v6705 = vsel %vm6458, %v6624, 0.0
      %6706 = vadd.xlane.f32.xlu0 %v6705
      %v6707 = vpop.xlane.xlu0 %6706
      %v6708 = vsel %vm6458, %v6626, 0.0
      %6709 = vadd.xlane.f32.xlu0 %v6708
      %v6710 = vpop.xlane.xlu0 %6709
      %v6711 = vsel %vm6458, %v6628, 0.0
      %6712 = vadd.xlane.f32.xlu0 %v6711
      %v6713 = vpop.xlane.xlu0 %6712
      %v6714 = vsel %vm6458, %v6630, 0.0
      %6715 = vadd.xlane.f32.xlu0 %v6714
      %v6716 = vpop.xlane.xlu0 %6715
      %v6717 = vsel %vm6458, %v6632, 0.0
      %6718 = vadd.xlane.f32.xlu0 %v6717
      %v6719 = vpop.xlane.xlu0 %6718
      %v6720 = vsel %vm6458, %v6634, 0.0
      %6721 = vadd.xlane.f32.xlu0 %v6720
      %v6722 = vpop.xlane.xlu0 %6721
      %v6723 = vsel %vm6458, %v6636, 0.0
      %6724 = vadd.xlane.f32.xlu0 %v6723
      %v6725 = vpop.xlane.xlu0 %6724
      %v6726 = vsel %vm6458, %v6638, 0.0
      %6727 = vadd.xlane.f32.xlu0 %v6726
      %v6728 = vpop.xlane.xlu0 %6727
      %v6729 = vsel %vm6458, %v6640, 0.0
      %6730 = vadd.xlane.f32.xlu0 %v6729
      %v6731 = vpop.xlane.xlu0 %6730
      %v6732 = vsel %vm6458, %v6642, 0.0
      %6733 = vadd.xlane.f32.xlu0 %v6732
      %v6734 = vpop.xlane.xlu0 %6733
      %v6735 = vsel %vm6458, %v6644, 0.0
      %6736 = vadd.xlane.f32.xlu0 %v6735
      %v6737 = vpop.xlane.xlu0 %6736
      %v6738 = vsel %vm6458, %v6646, 0.0
      %6739 = vadd.xlane.f32.xlu0 %v6738
      %v6740 = vpop.xlane.xlu0 %6739
      %v6741 = vsel %vm6458, %v6648, 0.0
      %6742 = vadd.xlane.f32.xlu0 %v6741
      %v6743 = vpop.xlane.xlu0 %6742
      %v6744 = vsel %vm6458, %v6650, 0.0
      %6745 = vadd.xlane.f32.xlu0 %v6744
      %v6746 = vpop.xlane.xlu0 %6745
      %v6747 = vrcp.pop %v6653
      %v6748 = vrcp.pop %v6656
      %v6749 = vrcp.pop %v6659
      %v6750 = vrcp.pop %v6662
      %v6751 = vrcp.pop %v6665
      %v6752 = vrcp.pop %v6668
      %v6753 = vrcp.pop %v6671
      %v6754 = vrcp.pop %v6674
      %v6755 = vrcp.pop %v6677
      %v6756 = vrcp.pop %v6680
      %v6757 = vrcp.pop %v6683
      %v6758 = vrcp.pop %v6686
      %v6759 = vrcp.pop %v6689
      %v6760 = vrcp.pop %v6692
      %v6761 = vrcp.pop %v6695
      %v6762 = vrcp.pop %v6698
      %v6763 = vrcp.pop %v6701
      %v6764 = vrcp.pop %v6704
      %v6765 = vrcp.pop %v6707
      %v6766 = vrcp.pop %v6710
      %v6767 = vrcp.pop %v6713
      %v6768 = vrcp.pop %v6716
      %v6769 = vrcp.pop %v6719
      %v6770 = vrcp.pop %v6722
      %v6771 = vrcp.pop %v6725
      %v6772 = vrcp.pop %v6728
      %v6773 = vrcp.pop %v6731
      %v6774 = vrcp.pop %v6734
      %v6775 = vrcp.pop %v6737
      %v6776 = vrcp.pop %v6740
      %v6777 = vrcp.pop %v6743
      %v6778 = vrcp.pop %v6746
      %v6779 = vmul.f32 %v6588, %v6747
      %v6780 = vmul.f32 %v6590, %v6748
      %v6781 = vmul.f32 %v6592, %v6749
      %v6782 = vmul.f32 %v6594, %v6750
      %v6783 = vmul.f32 %v6596, %v6751
      %v6784 = vmul.f32 %v6598, %v6752
      %v6785 = vmul.f32 %v6600, %v6753
      %v6786 = vmul.f32 %v6602, %v6754
      %v6787 = vmul.f32 %v6604, %v6755
      %v6788 = vmul.f32 %v6606, %v6756
      %v6789 = vmul.f32 %v6608, %v6757
      %v6790 = vmul.f32 %v6610, %v6758
      %v6791 = vmul.f32 %v6612, %v6759
      %v6792 = vmul.f32 %v6614, %v6760
      %v6793 = vmul.f32 %v6616, %v6761
      %v6794 = vmul.f32 %v6618, %v6762
      %v6795 = vmul.f32 %v6620, %v6763
      %v6796 = vmul.f32 %v6622, %v6764
      %v6797 = vmul.f32 %v6624, %v6765
      %v6798 = vmul.f32 %v6626, %v6766
      %v6799 = vmul.f32 %v6628, %v6767
      %v6800 = vmul.f32 %v6630, %v6768
      %v6801 = vmul.f32 %v6632, %v6769
      %v6802 = vmul.f32 %v6634, %v6770
      %v6803 = vmul.f32 %v6636, %v6771
      %v6804 = vmul.f32 %v6638, %v6772
      %v6805 = vmul.f32 %v6640, %v6773
      %v6806 = vmul.f32 %v6642, %v6774
      %v6807 = vmul.f32 %v6644, %v6775
      %v6808 = vmul.f32 %v6646, %v6776
      %v6809 = vmul.f32 %v6648, %v6777
      %v6810 = vmul.f32 %v6650, %v6778
      %v6811 = vpack.c.bf16 %v6780, %v6779
      %v6812 = vpack.c.bf16 %v6782, %v6781
      %v6813 = vpack.c.bf16 %v6784, %v6783
      %v6814 = vpack.c.bf16 %v6786, %v6785
      %v6815 = vpack.c.bf16 %v6788, %v6787
      %v6816 = vpack.c.bf16 %v6790, %v6789
      %v6817 = vpack.c.bf16 %v6792, %v6791
      %v6818 = vpack.c.bf16 %v6794, %v6793
      %v6819 = vpack.c.bf16 %v6796, %v6795
      %v6820 = vpack.c.bf16 %v6798, %v6797
      %v6821 = vpack.c.bf16 %v6800, %v6799
      %v6822 = vpack.c.bf16 %v6802, %v6801
      %v6823 = vpack.c.bf16 %v6804, %v6803
      %v6824 = vpack.c.bf16 %v6806, %v6805
      %v6825 = vpack.c.bf16 %v6808, %v6807
      %v6826 = vpack.c.bf16 %v6810, %v6809
      %v6827 = vpack.c.bf16 %v5016, %v5015
      %v6828 = vpack.c.bf16 %v5018, %v5017
      %v6829 = vpack.c.bf16 %v5020, %v5019
      %v6830 = vpack.c.bf16 %v5022, %v5021
      %v6831 = vpack.c.bf16 %v5024, %v5023
      %v6832 = vpack.c.bf16 %v5026, %v5025
      %v6833 = vpack.c.bf16 %v5028, %v5027
      %v6834 = vpack.c.bf16 %v5030, %v5029
      %v6835 = vpack.c.bf16 %v5032, %v5031
      %v6836 = vpack.c.bf16 %v5034, %v5033
      %v6837 = vpack.c.bf16 %v5036, %v5035
      %v6838 = vpack.c.bf16 %v5038, %v5037
      %v6839 = vpack.c.bf16 %v5040, %v5039
      %v6840 = vpack.c.bf16 %v5042, %v5041
      %v6841 = vpack.c.bf16 %v5044, %v5043
      %v6842 = vpack.c.bf16 %v5046, %v5045
      %6844 = vrot.lane.b32.xlu0 %v6827, 120
      %v6845 = vpop.permute.xlu0 %6844
      %v6848 = vsel %vm6458, %v6811, 0
      %6850 = vmatprep.subr.bf16.mxu0 0
      %6851 = vmatpush1.bf16.msra.mxu0 %v6845
      %6852 = vmatprep.subr.bf16.mxu0 0
      %6853 = vmatpush1.bf16.msra.mxu0 0
      %6854 = vmatprep.subr.bf16.mxu0 0
      %6855 = vmatpush1.bf16.msra.mxu0 0
      %6856 = vmatprep.subr.bf16.mxu0 0
      %6857 = vmatpush1.bf16.msra.mxu0 0
      %6858 = vmatprep.subr.bf16.mxu0 0
      %6859 = vmatpush1.bf16.msra.mxu0 0
      %6860 = vmatprep.subr.bf16.mxu0 0
      %6861 = vmatpush1.bf16.msra.mxu0 0
      %6862 = vmatprep.subr.bf16.mxu0 0
      %6863 = vmatpush1.bf16.msra.mxu0 0
      %6864 = vmatprep.subr.bf16.mxu0 0
      %6865 = vmatpush1.bf16.msra.mxu0 0
      %6866 = vmatprep.subr.bf16.mxu0 0
      %6867 = vmatpush1.bf16.msra.mxu0 0
      %6868 = vmatprep.subr.bf16.mxu0 0
      %6869 = vmatpush1.bf16.msra.mxu0 0
      %6870 = vmatprep.subr.bf16.mxu0 0
      %6871 = vmatpush1.bf16.msra.mxu0 0
      %6872 = vmatprep.subr.bf16.mxu0 0
      %6873 = vmatpush1.bf16.msra.mxu0 0
      %6874 = vmatprep.subr.bf16.mxu0 0
      %6875 = vmatpush1.bf16.msra.mxu0 0
      %6876 = vmatprep.subr.bf16.mxu0 0
      %6877 = vmatpush1.bf16.msra.mxu0 0
      %6878 = vmatprep.subr.bf16.mxu0 0
      %6879 = vmatpush1.bf16.msra.mxu0 0
      %6880 = vmatprep.subr.bf16.mxu0 0
      %6881 = vmatpush1.bf16.msra.mxu0 0
      %6882 = vmatprep.mubr.bf16.mxu0 0
      %6883 = vmatmul.mubr.bf16.gmra.mrb[0].mxu0 %v6848
      %v6884 = vpop.f32.mrb[0].mxu0
      %v6885 = vadd.f32 0.0, %v6884
      %v6886 = vpop.f32.mrb[0].mxu0
      %v6887 = vpop.f32.mrb[0].mxu0
      %v6888 = vadd.f32 0.0, %v6887
      %v6889 = vpop.f32.mrb[0].mxu0
      %6890 = vdwg.mxu0
      %6892 = vrot.lane.b32.xlu0 %v6828, 120
      %v6893 = vpop.permute.xlu0 %6892
      %v6896 = vsel %vm6458, %v6812, 0
      %6898 = vmatprep.subr.bf16.mxu0 0
      %6899 = vmatpush1.bf16.msra.mxu0 %v6893
      %6900 = vmatprep.subr.bf16.mxu0 0
      %6901 = vmatpush1.bf16.msra.mxu0 0
      %6902 = vmatprep.subr.bf16.mxu0 0
      %6903 = vmatpush1.bf16.msra.mxu0 0
      %6904 = vmatprep.subr.bf16.mxu0 0
      %6905 = vmatpush1.bf16.msra.mxu0 0
      %6906 = vmatprep.subr.bf16.mxu0 0
      %6907 = vmatpush1.bf16.msra.mxu0 0
      %6908 = vmatprep.subr.bf16.mxu0 0
      %6909 = vmatpush1.bf16.msra.mxu0 0
      %6910 = vmatprep.subr.bf16.mxu0 0
      %6911 = vmatpush1.bf16.msra.mxu0 0
      %6912 = vmatprep.subr.bf16.mxu0 0
      %6913 = vmatpush1.bf16.msra.mxu0 0
      %6914 = vmatprep.subr.bf16.mxu0 0
      %6915 = vmatpush1.bf16.msra.mxu0 0
      %6916 = vmatprep.subr.bf16.mxu0 0
      %6917 = vmatpush1.bf16.msra.mxu0 0
      %6918 = vmatprep.subr.bf16.mxu0 0
      %6919 = vmatpush1.bf16.msra.mxu0 0
      %6920 = vmatprep.subr.bf16.mxu0 0
      %6921 = vmatpush1.bf16.msra.mxu0 0
      %6922 = vmatprep.subr.bf16.mxu0 0
      %6923 = vmatpush1.bf16.msra.mxu0 0
      %6924 = vmatprep.subr.bf16.mxu0 0
      %6925 = vmatpush1.bf16.msra.mxu0 0
      %6926 = vmatprep.subr.bf16.mxu0 0
      %6927 = vmatpush1.bf16.msra.mxu0 0
      %6928 = vmatprep.subr.bf16.mxu0 0
      %6929 = vmatpush1.bf16.msra.mxu0 0
      %6930 = vmatprep.mubr.bf16.mxu0 0
      %6931 = vmatmul.mubr.bf16.gmra.mrb[0].mxu0 %v6896
      %v6932 = vpop.f32.mrb[0].mxu0
      %v6933 = vadd.f32 0.0, %v6932
      %v6934 = vpop.f32.mrb[0].mxu0
      %v6935 = vpop.f32.mrb[0].mxu0
      %v6936 = vadd.f32 0.0, %v6935
      %v6937 = vpop.f32.mrb[0].mxu0
      %6938 = vdwg.mxu0
      %6940 = vrot.lane.b32.xlu0 %v6829, 120
      %v6941 = vpop.permute.xlu0 %6940
      %v6944 = vsel %vm6458, %v6813, 0
      %6946 = vmatprep.subr.bf16.mxu0 0
      %6947 = vmatpush1.bf16.msra.mxu0 %v6941
      %6948 = vmatprep.subr.bf16.mxu0 0
      %6949 = vmatpush1.bf16.msra.mxu0 0
      %6950 = vmatprep.subr.bf16.mxu0 0
      %6951 = vmatpush1.bf16.msra.mxu0 0
      %6952 = vmatprep.subr.bf16.mxu0 0
      %6953 = vmatpush1.bf16.msra.mxu0 0
      %6954 = vmatprep.subr.bf16.mxu0 0
      %6955 = vmatpush1.bf16.msra.mxu0 0
      %6956 = vmatprep.subr.bf16.mxu0 0
      %6957 = vmatpush1.bf16.msra.mxu0 0
      %6958 = vmatprep.subr.bf16.mxu0 0
      %6959 = vmatpush1.bf16.msra.mxu0 0
      %6960 = vmatprep.subr.bf16.mxu0 0
      %6961 = vmatpush1.bf16.msra.mxu0 0
      %6962 = vmatprep.subr.bf16.mxu0 0
      %6963 = vmatpush1.bf16.msra.mxu0 0
      %6964 = vmatprep.subr.bf16.mxu0 0
      %6965 = vmatpush1.bf16.msra.mxu0 0
      %6966 = vmatprep.subr.bf16.mxu0 0
      %6967 = vmatpush1.bf16.msra.mxu0 0
      %6968 = vmatprep.subr.bf16.mxu0 0
      %6969 = vmatpush1.bf16.msra.mxu0 0
      %6970 = vmatprep.subr.bf16.mxu0 0
      %6971 = vmatpush1.bf16.msra.mxu0 0
      %6972 = vmatprep.subr.bf16.mxu0 0
      %6973 = vmatpush1.bf16.msra.mxu0 0
      %6974 = vmatprep.subr.bf16.mxu0 0
      %6975 = vmatpush1.bf16.msra.mxu0 0
      %6976 = vmatprep.subr.bf16.mxu0 0
      %6977 = vmatpush1.bf16.msra.mxu0 0
      %6978 = vmatprep.mubr.bf16.mxu0 0
      %6979 = vmatmul.mubr.bf16.gmra.mrb[0].mxu0 %v6944
      %v6980 = vpop.f32.mrb[0].mxu0
      %v6981 = vadd.f32 0.0, %v6980
      %v6982 = vpop.f32.mrb[0].mxu0
      %v6983 = vpop.f32.mrb[0].mxu0
      %v6984 = vadd.f32 0.0, %v6983
      %v6985 = vpop.f32.mrb[0].mxu0
      %6986 = vdwg.mxu0
      %6988 = vrot.lane.b32.xlu0 %v6830, 120
      %v6989 = vpop.permute.xlu0 %6988
      %v6992 = vsel %vm6458, %v6814, 0
      %6994 = vmatprep.subr.bf16.mxu0 0
      %6995 = vmatpush1.bf16.msra.mxu0 %v6989
      %6996 = vmatprep.subr.bf16.mxu0 0
      %6997 = vmatpush1.bf16.msra.mxu0 0
      %6998 = vmatprep.subr.bf16.mxu0 0
      %6999 = vmatpush1.bf16.msra.mxu0 0
      %7000 = vmatprep.subr.bf16.mxu0 0
      %7001 = vmatpush1.bf16.msra.mxu0 0
      %7002 = vmatprep.subr.bf16.mxu0 0
      %7003 = vmatpush1.bf16.msra.mxu0 0
      %7004 = vmatprep.subr.bf16.mxu0 0
      %7005 = vmatpush1.bf16.msra.mxu0 0
      %7006 = vmatprep.subr.bf16.mxu0 0
      %7007 = vmatpush1.bf16.msra.mxu0 0
      %7008 = vmatprep.subr.bf16.mxu0 0
      %7009 = vmatpush1.bf16.msra.mxu0 0
      %7010 = vmatprep.subr.bf16.mxu0 0
      %7011 = vmatpush1.bf16.msra.mxu0 0
      %7012 = vmatprep.subr.bf16.mxu0 0
      %7013 = vmatpush1.bf16.msra.mxu0 0
      %7014 = vmatprep.subr.bf16.mxu0 0
      %7015 = vmatpush1.bf16.msra.mxu0 0
      %7016 = vmatprep.subr.bf16.mxu0 0
      %7017 = vmatpush1.bf16.msra.mxu0 0
      %7018 = vmatprep.subr.bf16.mxu0 0
      %7019 = vmatpush1.bf16.msra.mxu0 0
      %7020 = vmatprep.subr.bf16.mxu0 0
      %7021 = vmatpush1.bf16.msra.mxu0 0
      %7022 = vmatprep.subr.bf16.mxu0 0
      %7023 = vmatpush1.bf16.msra.mxu0 0
      %7024 = vmatprep.subr.bf16.mxu0 0
      %7025 = vmatpush1.bf16.msra.mxu0 0
      %7026 = vmatprep.mubr.bf16.mxu0 0
      %7027 = vmatmul.mubr.bf16.gmra.mrb[0].mxu0 %v6992
      %v7028 = vpop.f32.mrb[0].mxu0
      %v7029 = vadd.f32 0.0, %v7028
      %v7030 = vpop.f32.mrb[0].mxu0
      %v7031 = vpop.f32.mrb[0].mxu0
      %v7032 = vadd.f32 0.0, %v7031
      %v7033 = vpop.f32.mrb[0].mxu0
      %7034 = vdwg.mxu0
      %7036 = vrot.lane.b32.xlu0 %v6831, 120
      %v7037 = vpop.permute.xlu0 %7036
      %v7040 = vsel %vm6458, %v6815, 0
      %7042 = vmatprep.subr.bf16.mxu0 0
      %7043 = vmatpush1.bf16.msra.mxu0 %v7037
      %7044 = vmatprep.subr.bf16.mxu0 0
      %7045 = vmatpush1.bf16.msra.mxu0 0
      %7046 = vmatprep.subr.bf16.mxu0 0
      %7047 = vmatpush1.bf16.msra.mxu0 0
      %7048 = vmatprep.subr.bf16.mxu0 0
      %7049 = vmatpush1.bf16.msra.mxu0 0
      %7050 = vmatprep.subr.bf16.mxu0 0
      %7051 = vmatpush1.bf16.msra.mxu0 0
      %7052 = vmatprep.subr.bf16.mxu0 0
      %7053 = vmatpush1.bf16.msra.mxu0 0
      %7054 = vmatprep.subr.bf16.mxu0 0
      %7055 = vmatpush1.bf16.msra.mxu0 0
      %7056 = vmatprep.subr.bf16.mxu0 0
      %7057 = vmatpush1.bf16.msra.mxu0 0
      %7058 = vmatprep.subr.bf16.mxu0 0
      %7059 = vmatpush1.bf16.msra.mxu0 0
      %7060 = vmatprep.subr.bf16.mxu0 0
      %7061 = vmatpush1.bf16.msra.mxu0 0
      %7062 = vmatprep.subr.bf16.mxu0 0
      %7063 = vmatpush1.bf16.msra.mxu0 0
      %7064 = vmatprep.subr.bf16.mxu0 0
      %7065 = vmatpush1.bf16.msra.mxu0 0
      %7066 = vmatprep.subr.bf16.mxu0 0
      %7067 = vmatpush1.bf16.msra.mxu0 0
      %7068 = vmatprep.subr.bf16.mxu0 0
      %7069 = vmatpush1.bf16.msra.mxu0 0
      %7070 = vmatprep.subr.bf16.mxu0 0
      %7071 = vmatpush1.bf16.msra.mxu0 0
      %7072 = vmatprep.subr.bf16.mxu0 0
      %7073 = vmatpush1.bf16.msra.mxu0 0
      %7074 = vmatprep.mubr.bf16.mxu0 0
      %7075 = vmatmul.mubr.bf16.gmra.mrb[0].mxu0 %v7040
      %v7076 = vpop.f32.mrb[0].mxu0
      %v7077 = vadd.f32 0.0, %v7076
      %v7078 = vpop.f32.mrb[0].mxu0
      %v7079 = vpop.f32.mrb[0].mxu0
      %v7080 = vadd.f32 0.0, %v7079
      %v7081 = vpop.f32.mrb[0].mxu0
      %7082 = vdwg.mxu0
      %7084 = vrot.lane.b32.xlu0 %v6832, 120
      %v7085 = vpop.permute.xlu0 %7084
      %v7088 = vsel %vm6458, %v6816, 0
      %7090 = vmatprep.subr.bf16.mxu0 0
      %7091 = vmatpush1.bf16.msra.mxu0 %v7085
      %7092 = vmatprep.subr.bf16.mxu0 0
      %7093 = vmatpush1.bf16.msra.mxu0 0
      %7094 = vmatprep.subr.bf16.mxu0 0
      %7095 = vmatpush1.bf16.msra.mxu0 0
      %7096 = vmatprep.subr.bf16.mxu0 0
      %7097 = vmatpush1.bf16.msra.mxu0 0
      %7098 = vmatprep.subr.bf16.mxu0 0
      %7099 = vmatpush1.bf16.msra.mxu0 0
      %7100 = vmatprep.subr.bf16.mxu0 0
      %7101 = vmatpush1.bf16.msra.mxu0 0
      %7102 = vmatprep.subr.bf16.mxu0 0
      %7103 = vmatpush1.bf16.msra.mxu0 0
      %7104 = vmatprep.subr.bf16.mxu0 0
      %7105 = vmatpush1.bf16.msra.mxu0 0
      %7106 = vmatprep.subr.bf16.mxu0 0
      %7107 = vmatpush1.bf16.msra.mxu0 0
      %7108 = vmatprep.subr.bf16.mxu0 0
      %7109 = vmatpush1.bf16.msra.mxu0 0
      %7110 = vmatprep.subr.bf16.mxu0 0
      %7111 = vmatpush1.bf16.msra.mxu0 0
      %7112 = vmatprep.subr.bf16.mxu0 0
      %7113 = vmatpush1.bf16.msra.mxu0 0
      %7114 = vmatprep.subr.bf16.mxu0 0
      %7115 = vmatpush1.bf16.msra.mxu0 0
      %7116 = vmatprep.subr.bf16.mxu0 0
      %7117 = vmatpush1.bf16.msra.mxu0 0
      %7118 = vmatprep.subr.bf16.mxu0 0
      %7119 = vmatpush1.bf16.msra.mxu0 0
      %7120 = vmatprep.subr.bf16.mxu0 0
      %7121 = vmatpush1.bf16.msra.mxu0 0
      %7122 = vmatprep.mubr.bf16.mxu0 0
      %7123 = vmatmul.mubr.bf16.gmra.mrb[0].mxu0 %v7088
      %v7124 = vpop.f32.mrb[0].mxu0
      %v7125 = vadd.f32 0.0, %v7124
      %v7126 = vpop.f32.mrb[0].mxu0
      %v7127 = vpop.f32.mrb[0].mxu0
      %v7128 = vadd.f32 0.0, %v7127
      %v7129 = vpop.f32.mrb[0].mxu0
      %7130 = vdwg.mxu0
      %7132 = vrot.lane.b32.xlu0 %v6833, 120
      %v7133 = vpop.permute.xlu0 %7132
      %v7136 = vsel %vm6458, %v6817, 0
      %7138 = vmatprep.subr.bf16.mxu0 0
      %7139 = vmatpush1.bf16.msra.mxu0 %v7133
      %7140 = vmatprep.subr.bf16.mxu0 0
      %7141 = vmatpush1.bf16.msra.mxu0 0
      %7142 = vmatprep.subr.bf16.mxu0 0
      %7143 = vmatpush1.bf16.msra.mxu0 0
      %7144 = vmatprep.subr.bf16.mxu0 0
      %7145 = vmatpush1.bf16.msra.mxu0 0
      %7146 = vmatprep.subr.bf16.mxu0 0
      %7147 = vmatpush1.bf16.msra.mxu0 0
      %7148 = vmatprep.subr.bf16.mxu0 0
      %7149 = vmatpush1.bf16.msra.mxu0 0
      %7150 = vmatprep.subr.bf16.mxu0 0
      %7151 = vmatpush1.bf16.msra.mxu0 0
      %7152 = vmatprep.subr.bf16.mxu0 0
      %7153 = vmatpush1.bf16.msra.mxu0 0
      %7154 = vmatprep.subr.bf16.mxu0 0
      %7155 = vmatpush1.bf16.msra.mxu0 0
      %7156 = vmatprep.subr.bf16.mxu0 0
      %7157 = vmatpush1.bf16.msra.mxu0 0
      %7158 = vmatprep.subr.bf16.mxu0 0
      %7159 = vmatpush1.bf16.msra.mxu0 0
      %7160 = vmatprep.subr.bf16.mxu0 0
      %7161 = vmatpush1.bf16.msra.mxu0 0
      %7162 = vmatprep.subr.bf16.mxu0 0
      %7163 = vmatpush1.bf16.msra.mxu0 0
      %7164 = vmatprep.subr.bf16.mxu0 0
      %7165 = vmatpush1.bf16.msra.mxu0 0
      %7166 = vmatprep.subr.bf16.mxu0 0
      %7167 = vmatpush1.bf16.msra.mxu0 0
      %7168 = vmatprep.subr.bf16.mxu0 0
      %7169 = vmatpush1.bf16.msra.mxu0 0
      %7170 = vmatprep.mubr.bf16.mxu0 0
      %7171 = vmatmul.mubr.bf16.gmra.mrb[0].mxu0 %v7136
      %v7172 = vpop.f32.mrb[0].mxu0
      %v7173 = vadd.f32 0.0, %v7172
      %v7174 = vpop.f32.mrb[0].mxu0
      %v7175 = vpop.f32.mrb[0].mxu0
      %v7176 = vadd.f32 0.0, %v7175
      %v7177 = vpop.f32.mrb[0].mxu0
      %7178 = vdwg.mxu0
      %7180 = vrot.lane.b32.xlu0 %v6834, 120
      %v7181 = vpop.permute.xlu0 %7180
      %v7184 = vsel %vm6458, %v6818, 0
      %7186 = vmatprep.subr.bf16.mxu0 0
      %7187 = vmatpush1.bf16.msra.mxu0 %v7181
      %7188 = vmatprep.subr.bf16.mxu0 0
      %7189 = vmatpush1.bf16.msra.mxu0 0
      %7190 = vmatprep.subr.bf16.mxu0 0
      %7191 = vmatpush1.bf16.msra.mxu0 0
      %7192 = vmatprep.subr.bf16.mxu0 0
      %7193 = vmatpush1.bf16.msra.mxu0 0
      %7194 = vmatprep.subr.bf16.mxu0 0
      %7195 = vmatpush1.bf16.msra.mxu0 0
      %7196 = vmatprep.subr.bf16.mxu0 0
      %7197 = vmatpush1.bf16.msra.mxu0 0
      %7198 = vmatprep.subr.bf16.mxu0 0
      %7199 = vmatpush1.bf16.msra.mxu0 0
      %7200 = vmatprep.subr.bf16.mxu0 0
      %7201 = vmatpush1.bf16.msra.mxu0 0
      %7202 = vmatprep.subr.bf16.mxu0 0
      %7203 = vmatpush1.bf16.msra.mxu0 0
      %7204 = vmatprep.subr.bf16.mxu0 0
      %7205 = vmatpush1.bf16.msra.mxu0 0
      %7206 = vmatprep.subr.bf16.mxu0 0
      %7207 = vmatpush1.bf16.msra.mxu0 0
      %7208 = vmatprep.subr.bf16.mxu0 0
      %7209 = vmatpush1.bf16.msra.mxu0 0
      %7210 = vmatprep.subr.bf16.mxu0 0
      %7211 = vmatpush1.bf16.msra.mxu0 0
      %7212 = vmatprep.subr.bf16.mxu0 0
      %7213 = vmatpush1.bf16.msra.mxu0 0
      %7214 = vmatprep.subr.bf16.mxu0 0
      %7215 = vmatpush1.bf16.msra.mxu0 0
      %7216 = vmatprep.subr.bf16.mxu0 0
      %7217 = vmatpush1.bf16.msra.mxu0 0
      %7218 = vmatprep.mubr.bf16.mxu0 0
      %7219 = vmatmul.mubr.bf16.gmra.mrb[0].mxu0 %v7184
      %v7220 = vpop.f32.mrb[0].mxu0
      %v7221 = vadd.f32 0.0, %v7220
      %v7222 = vpop.f32.mrb[0].mxu0
      %v7223 = vpop.f32.mrb[0].mxu0
      %v7224 = vadd.f32 0.0, %v7223
      %v7225 = vpop.f32.mrb[0].mxu0
      %7226 = vdwg.mxu0
      %7228 = vrot.lane.b32.xlu0 %v6835, 120
      %v7229 = vpop.permute.xlu0 %7228
      %v7232 = vsel %vm6458, %v6819, 0
      %7234 = vmatprep.subr.bf16.mxu0 0
      %7235 = vmatpush1.bf16.msra.mxu0 %v7229
      %7236 = vmatprep.subr.bf16.mxu0 0
      %7237 = vmatpush1.bf16.msra.mxu0 0
      %7238 = vmatprep.subr.bf16.mxu0 0
      %7239 = vmatpush1.bf16.msra.mxu0 0
      %7240 = vmatprep.subr.bf16.mxu0 0
      %7241 = vmatpush1.bf16.msra.mxu0 0
      %7242 = vmatprep.subr.bf16.mxu0 0
      %7243 = vmatpush1.bf16.msra.mxu0 0
      %7244 = vmatprep.subr.bf16.mxu0 0
      %7245 = vmatpush1.bf16.msra.mxu0 0
      %7246 = vmatprep.subr.bf16.mxu0 0
      %7247 = vmatpush1.bf16.msra.mxu0 0
      %7248 = vmatprep.subr.bf16.mxu0 0
      %7249 = vmatpush1.bf16.msra.mxu0 0
      %7250 = vmatprep.subr.bf16.mxu0 0
      %7251 = vmatpush1.bf16.msra.mxu0 0
      %7252 = vmatprep.subr.bf16.mxu0 0
      %7253 = vmatpush1.bf16.msra.mxu0 0
      %7254 = vmatprep.subr.bf16.mxu0 0
      %7255 = vmatpush1.bf16.msra.mxu0 0
      %7256 = vmatprep.subr.bf16.mxu0 0
      %7257 = vmatpush1.bf16.msra.mxu0 0
      %7258 = vmatprep.subr.bf16.mxu0 0
      %7259 = vmatpush1.bf16.msra.mxu0 0
      %7260 = vmatprep.subr.bf16.mxu0 0
      %7261 = vmatpush1.bf16.msra.mxu0 0
      %7262 = vmatprep.subr.bf16.mxu0 0
      %7263 = vmatpush1.bf16.msra.mxu0 0
      %7264 = vmatprep.subr.bf16.mxu0 0
      %7265 = vmatpush1.bf16.msra.mxu0 0
      %7266 = vmatprep.mubr.bf16.mxu0 0
      %7267 = vmatmul.mubr.bf16.gmra.mrb[0].mxu0 %v7232
      %v7268 = vpop.f32.mrb[0].mxu0
      %v7269 = vadd.f32 0.0, %v7268
      %v7270 = vpop.f32.mrb[0].mxu0
      %v7271 = vpop.f32.mrb[0].mxu0
      %v7272 = vadd.f32 0.0, %v7271
      %v7273 = vpop.f32.mrb[0].mxu0
      %7274 = vdwg.mxu0
      %7276 = vrot.lane.b32.xlu0 %v6836, 120
      %v7277 = vpop.permute.xlu0 %7276
      %v7280 = vsel %vm6458, %v6820, 0
      %7282 = vmatprep.subr.bf16.mxu0 0
      %7283 = vmatpush1.bf16.msra.mxu0 %v7277
      %7284 = vmatprep.subr.bf16.mxu0 0
      %7285 = vmatpush1.bf16.msra.mxu0 0
      %7286 = vmatprep.subr.bf16.mxu0 0
      %7287 = vmatpush1.bf16.msra.mxu0 0
      %7288 = vmatprep.subr.bf16.mxu0 0
      %7289 = vmatpush1.bf16.msra.mxu0 0
      %7290 = vmatprep.subr.bf16.mxu0 0
      %7291 = vmatpush1.bf16.msra.mxu0 0
      %7292 = vmatprep.subr.bf16.mxu0 0
      %7293 = vmatpush1.bf16.msra.mxu0 0
      %7294 = vmatprep.subr.bf16.mxu0 0
      %7295 = vmatpush1.bf16.msra.mxu0 0
      %7296 = vmatprep.subr.bf16.mxu0 0
      %7297 = vmatpush1.bf16.msra.mxu0 0
      %7298 = vmatprep.subr.bf16.mxu0 0
      %7299 = vmatpush1.bf16.msra.mxu0 0
      %7300 = vmatprep.subr.bf16.mxu0 0
      %7301 = vmatpush1.bf16.msra.mxu0 0
      %7302 = vmatprep.subr.bf16.mxu0 0
      %7303 = vmatpush1.bf16.msra.mxu0 0
      %7304 = vmatprep.subr.bf16.mxu0 0
      %7305 = vmatpush1.bf16.msra.mxu0 0
      %7306 = vmatprep.subr.bf16.mxu0 0
      %7307 = vmatpush1.bf16.msra.mxu0 0
      %7308 = vmatprep.subr.bf16.mxu0 0
      %7309 = vmatpush1.bf16.msra.mxu0 0
      %7310 = vmatprep.subr.bf16.mxu0 0
      %7311 = vmatpush1.bf16.msra.mxu0 0
      %7312 = vmatprep.subr.bf16.mxu0 0
      %7313 = vmatpush1.bf16.msra.mxu0 0
      %7314 = vmatprep.mubr.bf16.mxu0 0
      %7315 = vmatmul.mubr.bf16.gmra.mrb[0].mxu0 %v7280
      %v7316 = vpop.f32.mrb[0].mxu0
      %v7317 = vadd.f32 0.0, %v7316
      %v7318 = vpop.f32.mrb[0].mxu0
      %v7319 = vpop.f32.mrb[0].mxu0
      %v7320 = vadd.f32 0.0, %v7319
      %v7321 = vpop.f32.mrb[0].mxu0
      %7322 = vdwg.mxu0
      %7324 = vrot.lane.b32.xlu0 %v6837, 120
      %v7325 = vpop.permute.xlu0 %7324
      %v7328 = vsel %vm6458, %v6821, 0
      %7330 = vmatprep.subr.bf16.mxu0 0
      %7331 = vmatpush1.bf16.msra.mxu0 %v7325
      %7332 = vmatprep.subr.bf16.mxu0 0
      %7333 = vmatpush1.bf16.msra.mxu0 0
      %7334 = vmatprep.subr.bf16.mxu0 0
      %7335 = vmatpush1.bf16.msra.mxu0 0
      %7336 = vmatprep.subr.bf16.mxu0 0
      %7337 = vmatpush1.bf16.msra.mxu0 0
      %7338 = vmatprep.subr.bf16.mxu0 0
      %7339 = vmatpush1.bf16.msra.mxu0 0
      %7340 = vmatprep.subr.bf16.mxu0 0
      %7341 = vmatpush1.bf16.msra.mxu0 0
      %7342 = vmatprep.subr.bf16.mxu0 0
      %7343 = vmatpush1.bf16.msra.mxu0 0
      %7344 = vmatprep.subr.bf16.mxu0 0
      %7345 = vmatpush1.bf16.msra.mxu0 0
      %7346 = vmatprep.subr.bf16.mxu0 0
      %7347 = vmatpush1.bf16.msra.mxu0 0
      %7348 = vmatprep.subr.bf16.mxu0 0
      %7349 = vmatpush1.bf16.msra.mxu0 0
      %7350 = vmatprep.subr.bf16.mxu0 0
      %7351 = vmatpush1.bf16.msra.mxu0 0
      %7352 = vmatprep.subr.bf16.mxu0 0
      %7353 = vmatpush1.bf16.msra.mxu0 0
      %7354 = vmatprep.subr.bf16.mxu0 0
      %7355 = vmatpush1.bf16.msra.mxu0 0
      %7356 = vmatprep.subr.bf16.mxu0 0
      %7357 = vmatpush1.bf16.msra.mxu0 0
      %7358 = vmatprep.subr.bf16.mxu0 0
      %7359 = vmatpush1.bf16.msra.mxu0 0
      %7360 = vmatprep.subr.bf16.mxu0 0
      %7361 = vmatpush1.bf16.msra.mxu0 0
      %7362 = vmatprep.mubr.bf16.mxu0 0
      %7363 = vmatmul.mubr.bf16.gmra.mrb[0].mxu0 %v7328
      %v7364 = vpop.f32.mrb[0].mxu0
      %v7365 = vadd.f32 0.0, %v7364
      %v7366 = vpop.f32.mrb[0].mxu0
      %v7367 = vpop.f32.mrb[0].mxu0
      %v7368 = vadd.f32 0.0, %v7367
      %v7369 = vpop.f32.mrb[0].mxu0
      %7370 = vdwg.mxu0
      %7372 = vrot.lane.b32.xlu0 %v6838, 120
      %v7373 = vpop.permute.xlu0 %7372
      %v7376 = vsel %vm6458, %v6822, 0
      %7378 = vmatprep.subr.bf16.mxu0 0
      %7379 = vmatpush1.bf16.msra.mxu0 %v7373
      %7380 = vmatprep.subr.bf16.mxu0 0
      %7381 = vmatpush1.bf16.msra.mxu0 0
      %7382 = vmatprep.subr.bf16.mxu0 0
      %7383 = vmatpush1.bf16.msra.mxu0 0
      %7384 = vmatprep.subr.bf16.mxu0 0
      %7385 = vmatpush1.bf16.msra.mxu0 0
      %7386 = vmatprep.subr.bf16.mxu0 0
      %7387 = vmatpush1.bf16.msra.mxu0 0
      %7388 = vmatprep.subr.bf16.mxu0 0
      %7389 = vmatpush1.bf16.msra.mxu0 0
      %7390 = vmatprep.subr.bf16.mxu0 0
      %7391 = vmatpush1.bf16.msra.mxu0 0
      %7392 = vmatprep.subr.bf16.mxu0 0
      %7393 = vmatpush1.bf16.msra.mxu0 0
      %7394 = vmatprep.subr.bf16.mxu0 0
      %7395 = vmatpush1.bf16.msra.mxu0 0
      %7396 = vmatprep.subr.bf16.mxu0 0
      %7397 = vmatpush1.bf16.msra.mxu0 0
      %7398 = vmatprep.subr.bf16.mxu0 0
      %7399 = vmatpush1.bf16.msra.mxu0 0
      %7400 = vmatprep.subr.bf16.mxu0 0
      %7401 = vmatpush1.bf16.msra.mxu0 0
      %7402 = vmatprep.subr.bf16.mxu0 0
      %7403 = vmatpush1.bf16.msra.mxu0 0
      %7404 = vmatprep.subr.bf16.mxu0 0
      %7405 = vmatpush1.bf16.msra.mxu0 0
      %7406 = vmatprep.subr.bf16.mxu0 0
      %7407 = vmatpush1.bf16.msra.mxu0 0
      %7408 = vmatprep.subr.bf16.mxu0 0
      %7409 = vmatpush1.bf16.msra.mxu0 0
      %7410 = vmatprep.mubr.bf16.mxu0 0
      %7411 = vmatmul.mubr.bf16.gmra.mrb[0].mxu0 %v7376
      %v7412 = vpop.f32.mrb[0].mxu0
      %v7413 = vadd.f32 0.0, %v7412
      %v7414 = vpop.f32.mrb[0].mxu0
      %v7415 = vpop.f32.mrb[0].mxu0
      %v7416 = vadd.f32 0.0, %v7415
      %v7417 = vpop.f32.mrb[0].mxu0
      %7418 = vdwg.mxu0
      %7420 = vrot.lane.b32.xlu0 %v6839, 120
      %v7421 = vpop.permute.xlu0 %7420
      %v7424 = vsel %vm6458, %v6823, 0
      %7426 = vmatprep.subr.bf16.mxu0 0
      %7427 = vmatpush1.bf16.msra.mxu0 %v7421
      %7428 = vmatprep.subr.bf16.mxu0 0
      %7429 = vmatpush1.bf16.msra.mxu0 0
      %7430 = vmatprep.subr.bf16.mxu0 0
      %7431 = vmatpush1.bf16.msra.mxu0 0
      %7432 = vmatprep.subr.bf16.mxu0 0
      %7433 = vmatpush1.bf16.msra.mxu0 0
      %7434 = vmatprep.subr.bf16.mxu0 0
      %7435 = vmatpush1.bf16.msra.mxu0 0
      %7436 = vmatprep.subr.bf16.mxu0 0
      %7437 = vmatpush1.bf16.msra.mxu0 0
      %7438 = vmatprep.subr.bf16.mxu0 0
      %7439 = vmatpush1.bf16.msra.mxu0 0
      %7440 = vmatprep.subr.bf16.mxu0 0
      %7441 = vmatpush1.bf16.msra.mxu0 0
      %7442 = vmatprep.subr.bf16.mxu0 0
      %7443 = vmatpush1.bf16.msra.mxu0 0
      %7444 = vmatprep.subr.bf16.mxu0 0
      %7445 = vmatpush1.bf16.msra.mxu0 0
      %7446 = vmatprep.subr.bf16.mxu0 0
      %7447 = vmatpush1.bf16.msra.mxu0 0
      %7448 = vmatprep.subr.bf16.mxu0 0
      %7449 = vmatpush1.bf16.msra.mxu0 0
      %7450 = vmatprep.subr.bf16.mxu0 0
      %7451 = vmatpush1.bf16.msra.mxu0 0
      %7452 = vmatprep.subr.bf16.mxu0 0
      %7453 = vmatpush1.bf16.msra.mxu0 0
      %7454 = vmatprep.subr.bf16.mxu0 0
      %7455 = vmatpush1.bf16.msra.mxu0 0
      %7456 = vmatprep.subr.bf16.mxu0 0
      %7457 = vmatpush1.bf16.msra.mxu0 0
      %7458 = vmatprep.mubr.bf16.mxu0 0
      %7459 = vmatmul.mubr.bf16.gmra.mrb[0].mxu0 %v7424
      %v7460 = vpop.f32.mrb[0].mxu0
      %v7461 = vadd.f32 0.0, %v7460
      %v7462 = vpop.f32.mrb[0].mxu0
      %v7463 = vpop.f32.mrb[0].mxu0
      %v7464 = vadd.f32 0.0, %v7463
      %v7465 = vpop.f32.mrb[0].mxu0
      %7466 = vdwg.mxu0
      %7468 = vrot.lane.b32.xlu0 %v6840, 120
      %v7469 = vpop.permute.xlu0 %7468
      %v7472 = vsel %vm6458, %v6824, 0
      %7474 = vmatprep.subr.bf16.mxu0 0
      %7475 = vmatpush1.bf16.msra.mxu0 %v7469
      %7476 = vmatprep.subr.bf16.mxu0 0
      %7477 = vmatpush1.bf16.msra.mxu0 0
      %7478 = vmatprep.subr.bf16.mxu0 0
      %7479 = vmatpush1.bf16.msra.mxu0 0
      %7480 = vmatprep.subr.bf16.mxu0 0
      %7481 = vmatpush1.bf16.msra.mxu0 0
      %7482 = vmatprep.subr.bf16.mxu0 0
      %7483 = vmatpush1.bf16.msra.mxu0 0
      %7484 = vmatprep.subr.bf16.mxu0 0
      %7485 = vmatpush1.bf16.msra.mxu0 0
      %7486 = vmatprep.subr.bf16.mxu0 0
      %7487 = vmatpush1.bf16.msra.mxu0 0
      %7488 = vmatprep.subr.bf16.mxu0 0
      %7489 = vmatpush1.bf16.msra.mxu0 0
      %7490 = vmatprep.subr.bf16.mxu0 0
      %7491 = vmatpush1.bf16.msra.mxu0 0
      %7492 = vmatprep.subr.bf16.mxu0 0
      %7493 = vmatpush1.bf16.msra.mxu0 0
      %7494 = vmatprep.subr.bf16.mxu0 0
      %7495 = vmatpush1.bf16.msra.mxu0 0
      %7496 = vmatprep.subr.bf16.mxu0 0
      %7497 = vmatpush1.bf16.msra.mxu0 0
      %7498 = vmatprep.subr.bf16.mxu0 0
      %7499 = vmatpush1.bf16.msra.mxu0 0
      %7500 = vmatprep.subr.bf16.mxu0 0
      %7501 = vmatpush1.bf16.msra.mxu0 0
      %7502 = vmatprep.subr.bf16.mxu0 0
      %7503 = vmatpush1.bf16.msra.mxu0 0
      %7504 = vmatprep.subr.bf16.mxu0 0
      %7505 = vmatpush1.bf16.msra.mxu0 0
      %7506 = vmatprep.mubr.bf16.mxu0 0
      %7507 = vmatmul.mubr.bf16.gmra.mrb[0].mxu0 %v7472
      %v7508 = vpop.f32.mrb[0].mxu0
      %v7509 = vadd.f32 0.0, %v7508
      %v7510 = vpop.f32.mrb[0].mxu0
      %v7511 = vpop.f32.mrb[0].mxu0
      %v7512 = vadd.f32 0.0, %v7511
      %v7513 = vpop.f32.mrb[0].mxu0
      %7514 = vdwg.mxu0
      %7516 = vrot.lane.b32.xlu0 %v6841, 120
      %v7517 = vpop.permute.xlu0 %7516
      %v7520 = vsel %vm6458, %v6825, 0
      %7522 = vmatprep.subr.bf16.mxu0 0
      %7523 = vmatpush1.bf16.msra.mxu0 %v7517
      %7524 = vmatprep.subr.bf16.mxu0 0
      %7525 = vmatpush1.bf16.msra.mxu0 0
      %7526 = vmatprep.subr.bf16.mxu0 0
      %7527 = vmatpush1.bf16.msra.mxu0 0
      %7528 = vmatprep.subr.bf16.mxu0 0
      %7529 = vmatpush1.bf16.msra.mxu0 0
      %7530 = vmatprep.subr.bf16.mxu0 0
      %7531 = vmatpush1.bf16.msra.mxu0 0
      %7532 = vmatprep.subr.bf16.mxu0 0
      %7533 = vmatpush1.bf16.msra.mxu0 0
      %7534 = vmatprep.subr.bf16.mxu0 0
      %7535 = vmatpush1.bf16.msra.mxu0 0
      %7536 = vmatprep.subr.bf16.mxu0 0
      %7537 = vmatpush1.bf16.msra.mxu0 0
      %7538 = vmatprep.subr.bf16.mxu0 0
      %7539 = vmatpush1.bf16.msra.mxu0 0
      %7540 = vmatprep.subr.bf16.mxu0 0
      %7541 = vmatpush1.bf16.msra.mxu0 0
      %7542 = vmatprep.subr.bf16.mxu0 0
      %7543 = vmatpush1.bf16.msra.mxu0 0
      %7544 = vmatprep.subr.bf16.mxu0 0
      %7545 = vmatpush1.bf16.msra.mxu0 0
      %7546 = vmatprep.subr.bf16.mxu0 0
      %7547 = vmatpush1.bf16.msra.mxu0 0
      %7548 = vmatprep.subr.bf16.mxu0 0
      %7549 = vmatpush1.bf16.msra.mxu0 0
      %7550 = vmatprep.subr.bf16.mxu0 0
      %7551 = vmatpush1.bf16.msra.mxu0 0
      %7552 = vmatprep.subr.bf16.mxu0 0
      %7553 = vmatpush1.bf16.msra.mxu0 0
      %7554 = vmatprep.mubr.bf16.mxu0 0
      %7555 = vmatmul.mubr.bf16.gmra.mrb[0].mxu0 %v7520
      %v7556 = vpop.f32.mrb[0].mxu0
      %v7557 = vadd.f32 0.0, %v7556
      %v7558 = vpop.f32.mrb[0].mxu0
      %v7559 = vpop.f32.mrb[0].mxu0
      %v7560 = vadd.f32 0.0, %v7559
      %v7561 = vpop.f32.mrb[0].mxu0
      %7562 = vdwg.mxu0
      %7564 = vrot.lane.b32.xlu0 %v6842, 120
      %v7565 = vpop.permute.xlu0 %7564
      %v7568 = vsel %vm6458, %v6826, 0
      %7570 = vmatprep.subr.bf16.mxu0 0
      %7571 = vmatpush1.bf16.msra.mxu0 %v7565
      %7572 = vmatprep.subr.bf16.mxu0 0
      %7573 = vmatpush1.bf16.msra.mxu0 0
      %7574 = vmatprep.subr.bf16.mxu0 0
      %7575 = vmatpush1.bf16.msra.mxu0 0
      %7576 = vmatprep.subr.bf16.mxu0 0
      %7577 = vmatpush1.bf16.msra.mxu0 0
      %7578 = vmatprep.subr.bf16.mxu0 0
      %7579 = vmatpush1.bf16.msra.mxu0 0
      %7580 = vmatprep.subr.bf16.mxu0 0
      %7581 = vmatpush1.bf16.msra.mxu0 0
      %7582 = vmatprep.subr.bf16.mxu0 0
      %7583 = vmatpush1.bf16.msra.mxu0 0
      %7584 = vmatprep.subr.bf16.mxu0 0
      %7585 = vmatpush1.bf16.msra.mxu0 0
      %7586 = vmatprep.subr.bf16.mxu0 0
      %7587 = vmatpush1.bf16.msra.mxu0 0
      %7588 = vmatprep.subr.bf16.mxu0 0
      %7589 = vmatpush1.bf16.msra.mxu0 0
      %7590 = vmatprep.subr.bf16.mxu0 0
      %7591 = vmatpush1.bf16.msra.mxu0 0
      %7592 = vmatprep.subr.bf16.mxu0 0
      %7593 = vmatpush1.bf16.msra.mxu0 0
      %7594 = vmatprep.subr.bf16.mxu0 0
      %7595 = vmatpush1.bf16.msra.mxu0 0
      %7596 = vmatprep.subr.bf16.mxu0 0
      %7597 = vmatpush1.bf16.msra.mxu0 0
      %7598 = vmatprep.subr.bf16.mxu0 0
      %7599 = vmatpush1.bf16.msra.mxu0 0
      %7600 = vmatprep.subr.bf16.mxu0 0
      %7601 = vmatpush1.bf16.msra.mxu0 0
      %7602 = vmatprep.mubr.bf16.mxu0 0
      %7603 = vmatmul.mubr.bf16.gmra.mrb[0].mxu0 %v7568
      %v7604 = vpop.f32.mrb[0].mxu0
      %v7605 = vadd.f32 0.0, %v7604
      %v7606 = vpop.f32.mrb[0].mxu0
      %v7607 = vpop.f32.mrb[0].mxu0
      %v7608 = vadd.f32 0.0, %v7607
      %v7609 = vpop.f32.mrb[0].mxu0
      %7610 = vdwg.mxu0
      %v7611 = vpack.c.bf16 %v6888, %v6885
      %v7612 = vpack.c.bf16 %v6936, %v6933
      %v7613 = vpack.c.bf16 %v6984, %v6981
      %v7614 = vpack.c.bf16 %v7032, %v7029
      %v7615 = vpack.c.bf16 %v7080, %v7077
      %v7616 = vpack.c.bf16 %v7128, %v7125
      %v7617 = vpack.c.bf16 %v7176, %v7173
      %v7618 = vpack.c.bf16 %v7224, %v7221
      %v7619 = vpack.c.bf16 %v7272, %v7269
      %v7620 = vpack.c.bf16 %v7320, %v7317
      %v7621 = vpack.c.bf16 %v7368, %v7365
      %v7622 = vpack.c.bf16 %v7416, %v7413
      %v7623 = vpack.c.bf16 %v7464, %v7461
      %v7624 = vpack.c.bf16 %v7512, %v7509
      %v7625 = vpack.c.bf16 %v7560, %v7557
      %v7626 = vpack.c.bf16 %v7608, %v7605
      %v7627 = vld [vmem:[%s11] sm:$0x3]
      %v7628 = vld [vmem:[%s12] sm:$0x1]
      %v7630 = vlaneseq
      %v7631 = vshrl.u32 %v7630, 7
      %v7632 = vsub.s32 0, %v7631
      %v7633 = vrot.slane %v7628, %v7632
      %v7636 = vsel %vm5080, %v7611, 0
      %v7639 = vsel %vm5080, %v7612, 0
      %v7642 = vsel %vm5080, %v7613, 0
      %v7645 = vsel %vm5080, %v7614, 0
      %v7648 = vsel %vm5080, %v7615, 0
      %v7651 = vsel %vm5080, %v7616, 0
      %v7654 = vsel %vm5080, %v7617, 0
      %v7657 = vsel %vm5080, %v7618, 0
      %v7660 = vsel %vm5080, %v7619, 0
      %v7663 = vsel %vm5080, %v7620, 0
      %v7666 = vsel %vm5080, %v7621, 0
      %v7669 = vsel %vm5080, %v7622, 0
      %v7672 = vsel %vm5080, %v7623, 0
      %v7675 = vsel %vm5080, %v7624, 0
      %v7678 = vsel %vm5080, %v7625, 0
      %v7681 = vsel %vm5080, %v7626, 0
      %vm7683 = vcmask 1041408
      %v7685 = vsel %vm7683, %v7627, 0
      %7687 = vmatprep.subr.bf16.mxu0 0
      %7688 = vmatpush1.bf16.msra.mxu0 %v7685
      %7689 = vmatprep.subr.bf16.mxu0 0
      %7690 = vmatpush1.bf16.msra.mxu0 0
      %7691 = vmatprep.subr.bf16.mxu0 0
      %7692 = vmatpush1.bf16.msra.mxu0 0
      %7693 = vmatprep.subr.bf16.mxu0 0
      %7694 = vmatpush1.bf16.msra.mxu0 0
      %7695 = vmatprep.subr.bf16.mxu0 0
      %7696 = vmatpush1.bf16.msra.mxu0 0
      %7697 = vmatprep.subr.bf16.mxu0 0
      %7698 = vmatpush1.bf16.msra.mxu0 0
      %7699 = vmatprep.subr.bf16.mxu0 0
      %7700 = vmatpush1.bf16.msra.mxu0 0
      %7701 = vmatprep.subr.bf16.mxu0 0
      %7702 = vmatpush1.bf16.msra.mxu0 0
      %7703 = vmatprep.subr.bf16.mxu0 0
      %7704 = vmatpush1.bf16.msra.mxu0 0
      %7705 = vmatprep.subr.bf16.mxu0 0
      %7706 = vmatpush1.bf16.msra.mxu0 0
      %7707 = vmatprep.subr.bf16.mxu0 0
      %7708 = vmatpush1.bf16.msra.mxu0 0
      %7709 = vmatprep.subr.bf16.mxu0 0
      %7710 = vmatpush1.bf16.msra.mxu0 0
      %7711 = vmatprep.subr.bf16.mxu0 0
      %7712 = vmatpush1.bf16.msra.mxu0 0
      %7713 = vmatprep.subr.bf16.mxu0 0
      %7714 = vmatpush1.bf16.msra.mxu0 0
      %7715 = vmatprep.subr.bf16.mxu0 0
      %7716 = vmatpush1.bf16.msra.mxu0 0
      %7717 = vmatprep.subr.bf16.mxu0 0
      %7718 = vmatpush1.bf16.msra.mxu0 0
      %7719 = vmatprep.mubr.bf16.mxu0 0
      %7720 = vmatmul.mubr.bf16.gmra.mrb[0].mxu0 %v7636
      %v7721 = vpop.f32.mrb[0].mxu0
      %v7722 = vadd.f32 %v7633, %v7721
      %v7723 = vpop.f32.mrb[0].mxu0
      %v7724 = vpop.f32.mrb[0].mxu0
      %v7725 = vadd.f32 %v7633, %v7724
      %v7726 = vpop.f32.mrb[0].mxu0
      %7727 = vmatprep.mubr.bf16.mxu0 0
      %7728 = vmatmul.mubr.bf16.gmra.mrb[0].mxu0 %v7639
      %v7729 = vpop.f32.mrb[0].mxu0
      %v7730 = vadd.f32 %v7633, %v7729
      %v7731 = vpop.f32.mrb[0].mxu0
      %v7732 = vpop.f32.mrb[0].mxu0
      %v7733 = vadd.f32 %v7633, %v7732
      %v7734 = vpop.f32.mrb[0].mxu0
      %7735 = vmatprep.mubr.bf16.mxu0 0
      %7736 = vmatmul.mubr.bf16.gmra.mrb[0].mxu0 %v7642
      %v7737 = vpop.f32.mrb[0].mxu0
      %v7738 = vadd.f32 %v7633, %v7737
      %v7739 = vpop.f32.mrb[0].mxu0
      %v7740 = vpop.f32.mrb[0].mxu0
      %v7741 = vadd.f32 %v7633, %v7740
      %v7742 = vpop.f32.mrb[0].mxu0
      %7743 = vmatprep.mubr.bf16.mxu0 0
      %7744 = vmatmul.mubr.bf16.gmra.mrb[0].mxu0 %v7645
      %v7745 = vpop.f32.mrb[0].mxu0
      %v7746 = vadd.f32 %v7633, %v7745
      %v7747 = vpop.f32.mrb[0].mxu0
      %v7748 = vpop.f32.mrb[0].mxu0
      %v7749 = vadd.f32 %v7633, %v7748
      %v7750 = vpop.f32.mrb[0].mxu0
      %7751 = vmatprep.mubr.bf16.mxu0 0
      %7752 = vmatmul.mubr.bf16.gmra.mrb[0].mxu0 %v7648
      %v7753 = vpop.f32.mrb[0].mxu0
      %v7754 = vadd.f32 %v7633, %v7753
      %v7755 = vpop.f32.mrb[0].mxu0
      %v7756 = vpop.f32.mrb[0].mxu0
      %v7757 = vadd.f32 %v7633, %v7756
      %v7758 = vpop.f32.mrb[0].mxu0
      %7759 = vmatprep.mubr.bf16.mxu0 0
      %7760 = vmatmul.mubr.bf16.gmra.mrb[0].mxu0 %v7651
      %v7761 = vpop.f32.mrb[0].mxu0
      %v7762 = vadd.f32 %v7633, %v7761
      %v7763 = vpop.f32.mrb[0].mxu0
      %v7764 = vpop.f32.mrb[0].mxu0
      %v7765 = vadd.f32 %v7633, %v7764
      %v7766 = vpop.f32.mrb[0].mxu0
      %7767 = vmatprep.mubr.bf16.mxu0 0
      %7768 = vmatmul.mubr.bf16.gmra.mrb[0].mxu0 %v7654
      %v7769 = vpop.f32.mrb[0].mxu0
      %v7770 = vadd.f32 %v7633, %v7769
      %v7771 = vpop.f32.mrb[0].mxu0
      %v7772 = vpop.f32.mrb[0].mxu0
      %v7773 = vadd.f32 %v7633, %v7772
      %v7774 = vpop.f32.mrb[0].mxu0
      %7775 = vmatprep.mubr.bf16.mxu0 0
      %7776 = vmatmul.mubr.bf16.gmra.mrb[0].mxu0 %v7657
      %v7777 = vpop.f32.mrb[0].mxu0
      %v7778 = vadd.f32 %v7633, %v7777
      %v7779 = vpop.f32.mrb[0].mxu0
      %v7780 = vpop.f32.mrb[0].mxu0
      %v7781 = vadd.f32 %v7633, %v7780
      %v7782 = vpop.f32.mrb[0].mxu0
      %7783 = vmatprep.mubr.bf16.mxu0 0
      %7784 = vmatmul.mubr.bf16.gmra.mrb[0].mxu0 %v7660
      %v7785 = vpop.f32.mrb[0].mxu0
      %v7786 = vadd.f32 %v7633, %v7785
      %v7787 = vpop.f32.mrb[0].mxu0
      %v7788 = vpop.f32.mrb[0].mxu0
      %v7789 = vadd.f32 %v7633, %v7788
      %v7790 = vpop.f32.mrb[0].mxu0
      %7791 = vmatprep.mubr.bf16.mxu0 0
      %7792 = vmatmul.mubr.bf16.gmra.mrb[0].mxu0 %v7663
      %v7793 = vpop.f32.mrb[0].mxu0
      %v7794 = vadd.f32 %v7633, %v7793
      %v7795 = vpop.f32.mrb[0].mxu0
      %v7796 = vpop.f32.mrb[0].mxu0
      %v7797 = vadd.f32 %v7633, %v7796
      %v7798 = vpop.f32.mrb[0].mxu0
      %7799 = vmatprep.mubr.bf16.mxu0 0
      %7800 = vmatmul.mubr.bf16.gmra.mrb[0].mxu0 %v7666
      %v7801 = vpop.f32.mrb[0].mxu0
      %v7802 = vadd.f32 %v7633, %v7801
      %v7803 = vpop.f32.mrb[0].mxu0
      %v7804 = vpop.f32.mrb[0].mxu0
      %v7805 = vadd.f32 %v7633, %v7804
      %v7806 = vpop.f32.mrb[0].mxu0
      %7807 = vmatprep.mubr.bf16.mxu0 0
      %7808 = vmatmul.mubr.bf16.gmra.mrb[0].mxu0 %v7669
      %v7809 = vpop.f32.mrb[0].mxu0
      %v7810 = vadd.f32 %v7633, %v7809
      %v7811 = vpop.f32.mrb[0].mxu0
      %v7812 = vpop.f32.mrb[0].mxu0
      %v7813 = vadd.f32 %v7633, %v7812
      %v7814 = vpop.f32.mrb[0].mxu0
      %7815 = vmatprep.mubr.bf16.mxu0 0
      %7816 = vmatmul.mubr.bf16.gmra.mrb[0].mxu0 %v7672
      %v7817 = vpop.f32.mrb[0].mxu0
      %v7818 = vadd.f32 %v7633, %v7817
      %v7819 = vpop.f32.mrb[0].mxu0
      %v7820 = vpop.f32.mrb[0].mxu0
      %v7821 = vadd.f32 %v7633, %v7820
      %v7822 = vpop.f32.mrb[0].mxu0
      %7823 = vmatprep.mubr.bf16.mxu0 0
      %7824 = vmatmul.mubr.bf16.gmra.mrb[0].mxu0 %v7675
      %v7825 = vpop.f32.mrb[0].mxu0
      %v7826 = vadd.f32 %v7633, %v7825
      %v7827 = vpop.f32.mrb[0].mxu0
      %v7828 = vpop.f32.mrb[0].mxu0
      %v7829 = vadd.f32 %v7633, %v7828
      %v7830 = vpop.f32.mrb[0].mxu0
      %7831 = vmatprep.mubr.bf16.mxu0 0
      %7832 = vmatmul.mubr.bf16.gmra.mrb[0].mxu0 %v7678
      %v7833 = vpop.f32.mrb[0].mxu0
      %v7834 = vadd.f32 %v7633, %v7833
      %v7835 = vpop.f32.mrb[0].mxu0
      %v7836 = vpop.f32.mrb[0].mxu0
      %v7837 = vadd.f32 %v7633, %v7836
      %v7838 = vpop.f32.mrb[0].mxu0
      %7839 = vmatprep.mubr.bf16.mxu0 0
      %7840 = vmatmul.mubr.bf16.gmra.mrb[0].mxu0 %v7681
      %v7841 = vpop.f32.mrb[0].mxu0
      %v7842 = vadd.f32 %v7633, %v7841
      %v7843 = vpop.f32.mrb[0].mxu0
      %v7844 = vpop.f32.mrb[0].mxu0
      %v7845 = vadd.f32 %v7633, %v7844
      %v7846 = vpop.f32.mrb[0].mxu0
      %7847 = vdwg.mxu0
      %v7848 = vld [vmem:[%s760] sm:$0xff]
      %v7849 = vld [vmem:[%s760 + $0x8] sm:$0xff]
      %v7850 = vld [vmem:[%s760 + $0x10] sm:$0xff]
      %v7851 = vld [vmem:[%s760 + $0x18] sm:$0xff]
      %v7852 = vld [vmem:[%s760 + $0x20] sm:$0xff]
      %v7853 = vld [vmem:[%s760 + $0x28] sm:$0xff]
      %v7854 = vld [vmem:[%s760 + $0x30] sm:$0xff]
      %v7855 = vld [vmem:[%s760 + $0x38] sm:$0xff]
      %v7856 = vld [vmem:[%s760 + $0x40] sm:$0xff]
      %v7857 = vld [vmem:[%s760 + $0x48] sm:$0xff]
      %v7858 = vld [vmem:[%s760 + $0x50] sm:$0xff]
      %v7859 = vld [vmem:[%s760 + $0x58] sm:$0xff]
      %v7860 = vld [vmem:[%s760 + $0x60] sm:$0xff]
      %v7861 = vld [vmem:[%s760 + $0x68] sm:$0xff]
      %v7862 = vld [vmem:[%s760 + $0x70] sm:$0xff]
      %v7863 = vld [vmem:[%s760 + $0x78] sm:$0xff]
      %v7864 = vld [vmem:[%s760 + $0x80] sm:$0xff]
      %v7865 = vld [vmem:[%s760 + $0x88] sm:$0xff]
      %v7866 = vld [vmem:[%s760 + $0x90] sm:$0xff]
      %v7867 = vld [vmem:[%s760 + $0x98] sm:$0xff]
      %v7868 = vld [vmem:[%s760 + $0xa0] sm:$0xff]
      %v7869 = vld [vmem:[%s760 + $0xa8] sm:$0xff]
      %v7870 = vld [vmem:[%s760 + $0xb0] sm:$0xff]
      %v7871 = vld [vmem:[%s760 + $0xb8] sm:$0xff]
      %v7872 = vld [vmem:[%s760 + $0xc0] sm:$0xff]
      %v7873 = vld [vmem:[%s760 + $0xc8] sm:$0xff]
      %v7874 = vld [vmem:[%s760 + $0xd0] sm:$0xff]
      %v7875 = vld [vmem:[%s760 + $0xd8] sm:$0xff]
      %v7876 = vld [vmem:[%s760 + $0xe0] sm:$0xff]
      %v7877 = vld [vmem:[%s760 + $0xe8] sm:$0xff]
      %v7878 = vld [vmem:[%s760 + $0xf0] sm:$0xff]
      %v7879 = vld [vmem:[%s760 + $0xf8] sm:$0xff]
      %v7880 = vadd.f32 %v7722, %v7848
      %v7881 = vadd.f32 %v7725, %v7849
      %v7882 = vadd.f32 %v7730, %v7850
      %v7883 = vadd.f32 %v7733, %v7851
      %v7884 = vadd.f32 %v7738, %v7852
      %v7885 = vadd.f32 %v7741, %v7853
      %v7886 = vadd.f32 %v7746, %v7854
      %v7887 = vadd.f32 %v7749, %v7855
      %v7888 = vadd.f32 %v7754, %v7856
      %v7889 = vadd.f32 %v7757, %v7857
      %v7890 = vadd.f32 %v7762, %v7858
      %v7891 = vadd.f32 %v7765, %v7859
      %v7892 = vadd.f32 %v7770, %v7860
      %v7893 = vadd.f32 %v7773, %v7861
      %v7894 = vadd.f32 %v7778, %v7862
      %v7895 = vadd.f32 %v7781, %v7863
      %v7896 = vadd.f32 %v7786, %v7864
      %v7897 = vadd.f32 %v7789, %v7865
      %v7898 = vadd.f32 %v7794, %v7866
      %v7899 = vadd.f32 %v7797, %v7867
      %v7900 = vadd.f32 %v7802, %v7868
      %v7901 = vadd.f32 %v7805, %v7869
      %v7902 = vadd.f32 %v7810, %v7870
      %v7903 = vadd.f32 %v7813, %v7871
      %v7904 = vadd.f32 %v7818, %v7872
      %v7905 = vadd.f32 %v7821, %v7873
      %v7906 = vadd.f32 %v7826, %v7874
      %v7907 = vadd.f32 %v7829, %v7875
      %v7908 = vadd.f32 %v7834, %v7876
      %v7909 = vadd.f32 %v7837, %v7877
      %v7910 = vadd.f32 %v7842, %v7878
      %v7911 = vadd.f32 %v7845, %v7879
      %7912 = vst.msk [vmem:[%s771] sm:$0xff] %vm5080, %v7880
      %7913 = vst.msk [vmem:[%s771 + $0x8] sm:$0xff] %vm5080, %v7881
      %7914 = vst.msk [vmem:[%s771 + $0x10] sm:$0xff] %vm5080, %v7882
      %7915 = vst.msk [vmem:[%s771 + $0x18] sm:$0xff] %vm5080, %v7883
      %7916 = vst.msk [vmem:[%s771 + $0x20] sm:$0xff] %vm5080, %v7884
      %7917 = vst.msk [vmem:[%s771 + $0x28] sm:$0xff] %vm5080, %v7885
      %7918 = vst.msk [vmem:[%s771 + $0x30] sm:$0xff] %vm5080, %v7886
      %7919 = vst.msk [vmem:[%s771 + $0x38] sm:$0xff] %vm5080, %v7887
      %7920 = vst.msk [vmem:[%s771 + $0x40] sm:$0xff] %vm5080, %v7888
      %7921 = vst.msk [vmem:[%s771 + $0x48] sm:$0xff] %vm5080, %v7889
      %7922 = vst.msk [vmem:[%s771 + $0x50] sm:$0xff] %vm5080, %v7890
      %7923 = vst.msk [vmem:[%s771 + $0x58] sm:$0xff] %vm5080, %v7891
      %7924 = vst.msk [vmem:[%s771 + $0x60] sm:$0xff] %vm5080, %v7892
      %7925 = vst.msk [vmem:[%s771 + $0x68] sm:$0xff] %vm5080, %v7893
      %7926 = vst.msk [vmem:[%s771 + $0x70] sm:$0xff] %vm5080, %v7894
      %7927 = vst.msk [vmem:[%s771 + $0x78] sm:$0xff] %vm5080, %v7895
      %7928 = vst.msk [vmem:[%s771 + $0x80] sm:$0xff] %vm5080, %v7896
      %7929 = vst.msk [vmem:[%s771 + $0x88] sm:$0xff] %vm5080, %v7897
      %7930 = vst.msk [vmem:[%s771 + $0x90] sm:$0xff] %vm5080, %v7898
      %7931 = vst.msk [vmem:[%s771 + $0x98] sm:$0xff] %vm5080, %v7899
      %7932 = vst.msk [vmem:[%s771 + $0xa0] sm:$0xff] %vm5080, %v7900
      %7933 = vst.msk [vmem:[%s771 + $0xa8] sm:$0xff] %vm5080, %v7901
      %7934 = vst.msk [vmem:[%s771 + $0xb0] sm:$0xff] %vm5080, %v7902
      %7935 = vst.msk [vmem:[%s771 + $0xb8] sm:$0xff] %vm5080, %v7903
      %7936 = vst.msk [vmem:[%s771 + $0xc0] sm:$0xff] %vm5080, %v7904
      %7937 = vst.msk [vmem:[%s771 + $0xc8] sm:$0xff] %vm5080, %v7905
      %7938 = vst.msk [vmem:[%s771 + $0xd0] sm:$0xff] %vm5080, %v7906
      %7939 = vst.msk [vmem:[%s771 + $0xd8] sm:$0xff] %vm5080, %v7907
      %7940 = vst.msk [vmem:[%s771 + $0xe0] sm:$0xff] %vm5080, %v7908
      %7941 = vst.msk [vmem:[%s771 + $0xe8] sm:$0xff] %vm5080, %v7909
      %7942 = vst.msk [vmem:[%s771 + $0xf0] sm:$0xff] %vm5080, %v7910
      %7943 = vst.msk [vmem:[%s771 + $0xf8] sm:$0xff] %vm5080, %v7911
      %s7944 = smul.u32 16, %s30
      %p7945 = scmp.lt.s32.totalorder %s29, 1
      %s7946 = scalar_select %p7945, %s29, 1
      %p7947 = scmp.lt.s32.totalorder %s7944, 15
      %s7948 = scalar_select %p7947, %s7944, 15
      %s7949 = smul.addr %s7948, 2
      %s7950 = smul.addr %s7946, 32
      %s7951 = sadd.s32 %s7949, %s7950
      %s7952 = smul.addr %s7951, 8
      %s7953 = scalar_lea.vmem %s13, %s7952
      // Predicated region
      $region73: #{lsab_forward.3} parent=71 // pred_check
        %p7954 = pneg %p404
      $region74: #{lsab_forward.3} parent=71 // pred_check_branch
        %7956 = sbr.rel (%p7954) target = $region76
      $region75: #{lsab_forward.3} parent=71 // pred_region
        %s7957 = smul.u32 16, %s30
      $region76: #{lsab_forward.3} parent=71 // pred_fallthru
        _
    $region72: #{lsab_forward.3} parent=5 // pred_fallthru
      _
    %p7958 = scmp.le.s32.totalorder 2, %s20
    // Predicated region
    $region77: #{lsab_forward.3} parent=5 // pred_check
      %p7959 = pneg %p7958
    $region78: #{lsab_forward.3} parent=5 // pred_check_branch
      %7961 = sbr.rel (%p7959) target = $region80
    $region79: #{lsab_forward.3} parent=5 // pred_region
      %s7962 = ssub.s32 %s20, 2
      // Predicated region
      $region81: #{lsab_forward.3} parent=79 // pred_check
        %p7963 = pneg %p410
      $region82: #{lsab_forward.3} parent=79 // pred_check_branch
        %7965 = sbr.rel (%p7963) target = $region84
      $region83: #{lsab_forward.3} parent=79 // pred_region
        %s7966 = smul.u32 16, %s32
        %p7967 = scmp.lt.s32.totalorder %s31, 1
        %s7968 = scalar_select %p7967, %s31, 1
        %p7969 = scmp.lt.s32.totalorder %s7966, 15
        %s7970 = scalar_select %p7969, %s7966, 15
        %s7971 = smul.addr %s7970, 2
        %s7972 = smul.addr %s7968, 32
        %s7973 = sadd.s32 %s7971, %s7972
        %s7974 = smul.addr %s7973, 8
        %s7975 = scalar_lea.vmem %s13, %s7974
      $region84: #{lsab_forward.3} parent=79 // pred_fallthru
        _
    $region80: #{lsab_forward.3} parent=5 // pred_fallthru
      _
  $region6: #{lsab_forward.3} parent=0 // loop_footer
    %s24 = sadd.s32 1, %s20
  $region7: #{lsab_forward.3} parent=0 // loop_footer_branch
    %19 = sbr.rel target = $region3
  $region8: #{lsab_forward.3} parent=0 // loop_exit
    _

</llo_original>
